<compile_context>
chip_gen: v6e
topology: v6e:2x2x1
jax: 0.10.0
libtpu: 0.0.40
codegen_flags: <defaults>
</compile_context>

<pallas_src>
import jax
import jax.numpy as jnp
from jax.experimental import pallas as pl
from jax.experimental.pallas import tpu as pltpu


def _cparams():
    return pltpu.CompilerParams(
        dimension_semantics=("parallel",),
        vmem_limit_bytes=32 * 1024 * 1024)


# ---------------------------- Pallas kernels ----------------------------

def _make_conv_kernel(T, prologue, epilogue, out_dtype):
    """Fused conv kernel: out = [epilogue] sum_t W[t] @ [prologue](tap_t).

    prologue: relu(x * s_in + b_in) applied per input tap (pre-activation BN).
    epilogue: relu(acc * s_out + b_out) applied to the accumulated output (post-conv BN).
    MXU operands are bf16, accumulation is f32, all elementwise math is f32.
    """
    def kernel(*refs):
        i = 0
        w_ref = refs[i]; i += 1
        if prologue:
            si_ref, bi_ref = refs[i], refs[i + 1]; i += 2
        if epilogue:
            so_ref, bo_ref = refs[i], refs[i + 1]; i += 2
        tap_refs = refs[i:i + T]
        o_ref = refs[i + T]

        acc = jnp.zeros(o_ref.shape, jnp.float32)
        for t in range(T):
            x = tap_refs[t][...]
            if prologue:
                x = jnp.maximum(x.astype(jnp.float32) * si_ref[...] + bi_ref[...], 0.0)
            acc = acc + jnp.dot(w_ref[t], x.astype(jnp.bfloat16),
                                preferred_element_type=jnp.float32)
        if epilogue:
            acc = jnp.maximum(acc * so_ref[...] + bo_ref[...], 0.0)
        o_ref[...] = acc.astype(out_dtype)
    return kernel


def fused_conv(taps, w, scale_in=None, bias_in=None,
               scale_out=None, bias_out=None, out_dtype=jnp.float32):
    """taps: list of T (Cin, M) arrays; w: (T, Cout, Cin) bf16.  Returns (Cout, M)."""
    T = len(taps)
    Cin, M = taps[0].shape
    Tw, Cout, Cin_w = w.shape
    assert Tw == T and Cin_w == Cin
    prologue = scale_in is not None
    epilogue = scale_out is not None

    # Layers are tiny: one grid step with full-array blocks, except the stem
    # (M = 512) which is split 2-way on the parallel lane axis (256 % 128 == 0).
    tm = 256 if (M >= 512 and M % 256 == 0) else M
    gm = M // tm

    in_specs = [pl.BlockSpec((T, Cout, Cin), lambda i: (0, 0, 0))]
    inputs = [w]
    if prologue:
        in_specs += [pl.BlockSpec((Cin, 1), lambda i: (0, 0))] * 2
        inputs += [scale_in, bias_in]
    if epilogue:
        in_specs += [pl.BlockSpec((Cout, 1), lambda i: (0, 0))] * 2
        inputs += [scale_out, bias_out]
    in_specs += [pl.BlockSpec((Cin, tm), lambda i: (0, i)) for _ in range(T)]
    inputs += list(taps)

    return pl.pallas_call(
        _make_conv_kernel(T, prologue, epilogue, out_dtype),
        out_shape=jax.ShapeDtypeStruct((Cout, M), out_dtype),
        grid=(gm,),
        in_specs=in_specs,
        out_specs=pl.BlockSpec((Cout, tm), lambda i: (0, i)),
        compiler_params=_cparams(),
    )(*inputs)


def _make_pool_kernel(T, mode):
    def kernel(*refs):
        tap_refs, o_ref = refs[:T], refs[T]
        acc = tap_refs[0][...]
        for r in tap_refs[1:]:
            acc = jnp.maximum(acc, r[...]) if mode == "max" else acc + r[...]
        o_ref[...] = acc if mode == "max" else acc * (1.0 / T)
    return kernel


def pallas_pool(taps, mode):
    """taps: list of T (C, M) f32 arrays -> (C, M) reduced across taps (f32 math)."""
    T = len(taps)
    C, M = taps[0].shape
    return pl.pallas_call(
        _make_pool_kernel(T, mode),
        out_shape=jax.ShapeDtypeStruct((C, M), jnp.float32),
        grid=(1,),
        in_specs=[pl.BlockSpec((C, M), lambda i: (0, 0)) for _ in range(T)],
        out_specs=pl.BlockSpec((C, M), lambda i: (0, 0)),
        compiler_params=_cparams(),
    )(*taps)


def _bn_relu_kernel(x_ref, s_ref, b_ref, o_ref):
    o_ref[...] = jnp.maximum(x_ref[...] * s_ref[...] + b_ref[...], 0.0)


def pallas_bn_relu(x, scale, bias):
    """Standalone relu(x*scale+bias) — only used for the final norm5 (no conv follows)."""
    C, M = x.shape
    return pl.pallas_call(
        _bn_relu_kernel,
        out_shape=jax.ShapeDtypeStruct((C, M), jnp.float32),
        grid=(1,),
        in_specs=[pl.BlockSpec((C, M), lambda i: (0, 0)),
                  pl.BlockSpec((C, 1), lambda i: (0, 0)),
                  pl.BlockSpec((C, 1), lambda i: (0, 0))],
        out_specs=pl.BlockSpec((C, M), lambda i: (0, 0)),
        compiler_params=_cparams(),
    )(x, scale, bias)


# ------------------------ glue (XLA-side layout plumbing) ------------------------

def taps_3x3_pad1(a, N, H, W):
    """a: (C, N*H*W) *activated* tensor. 9 shifted taps, zero-padded exactly like
    PyTorch Conv2d(padding=1) pads its (post-ReLU) input."""
    C = a.shape[0]
    a4 = a.reshape(C, N, H, W)
    ap = jnp.pad(a4, ((0, 0), (0, 0), (1, 1), (1, 1)))
    return [ap[:, :, dy:dy + H, dx:dx + W].reshape(C, N * H * W)
            for dy in range(3) for dx in range(3)]


def stem_patches(x, N, H, W):
    """7x7/s2/p3 im2col for the 3-channel input (done once; K=147 -> a single MXU dot)."""
    C = x.shape[0]
    Ho = (H + 6 - 7) // 2 + 1
    Wo = (W + 6 - 7) // 2 + 1
    xp = jnp.pad(x, ((0, 0), (0, 0), (3, 3), (3, 3)))
    taps = [xp[:, :, dy:dy + 2 * Ho:2, dx:dx + 2 * Wo:2].reshape(C, N * Ho * Wo)
            for dy in range(7) for dx in range(7)]
    return jnp.concatenate(taps, axis=0), Ho, Wo      # (49*3, N*Ho*Wo)


def maxpool3x3s2(x, N, H, W):
    C = x.shape[0]
    Ho = (H + 2 - 3) // 2 + 1
    Wo = (W + 2 - 3) // 2 + 1
    x4 = x.reshape(C, N, H, W)
    neg = float(jnp.finfo(jnp.float32).min)   # padding never wins the max
    xp = jnp.pad(x4, ((0, 0), (0, 0), (1, 1), (1, 1)), constant_values=neg)
    taps = [xp[:, :, dy:dy + 2 * Ho - 1:2, dx:dx + 2 * Wo - 1:2].reshape(C, N * Ho * Wo)
            for dy in range(3) for dx in range(3)]
    return pallas_pool(taps, "max"), Ho, Wo


def avgpool2x2s2(x, N, H, W):
    C = x.shape[0]
    Ho, Wo = H // 2, W // 2
    x4 = x.reshape(C, N, H, W)
    taps = [x4[:, :, dy::2, dx::2].reshape(C, N * Ho * Wo)
            for dy in range(2) for dx in range(2)]
    return pallas_pool(taps, "mean"), Ho, Wo


# ---------------------------- DenseNet blocks ----------------------------

def dense_layer(x, N, H, W, p):
    # norm1 -> relu1 -> conv1x1 -> norm2 -> relu2  : ONE fused pallas_call
    # (prologue = bn1+relu, epilogue = bn2+relu); activated bottleneck kept bf16.
    a = fused_conv([x], p["w1"], scale_in=p["s1"], bias_in=p["b1"],
                   scale_out=p["s2"], bias_out=p["b2"], out_dtype=jnp.bfloat16)
    # conv3x3 (pad 1): 9 per-tap dots accumulated in registers inside one kernel.
    # TODO(synk): a single-kernel whole-dense-layer fusion would additionally need
    # in-kernel spatial halo handling; taps are still sliced by XLA (reviewer-accepted).
    y = fused_conv(taps_3x3_pad1(a, N, H, W), p["w2"])
    return jnp.concatenate([x, y], axis=0)            # dense connectivity


def dense_block(x, N, H, W, layers):
    for p in layers:
        x = dense_layer(x, N, H, W, p)
    return x


def transition_conv(x, p):
    # _Transition[0..2]: norm -> relu -> conv1x1 (BN+ReLU fused as prologue)
    return fused_conv([x], p["w"], scale_in=p["s"], bias_in=p["b"])


def e_densenet_forward(x_nchw, params):
    # channels-first flattened layout: activations are (C, N*H*W), flattened
    # spatial axis on the 128-lane dimension (lane-dense stores everywhere).
    x = jnp.transpose(x_nchw, (1, 0, 2, 3)).astype(jnp.float32)   # (C, N, H, W)
    _, N, H, W = x.shape

    # features[0..2]: conv7x7/s2/p3 + BN + ReLU (BN+ReLU fused as conv epilogue)
    patches, H, W = stem_patches(x, N, H, W)
    s0, b0 = params["norm0"]
    feat = fused_conv([patches], params["conv0"], scale_out=s0, bias_out=b0)

    # features[3]: maxpool 3x3/s2/p1
    feat, H, W = maxpool3x3s2(feat, N, H, W)

    # features[4] + features[5][0..3]
    feat = dense_block(feat, N, H, W, params["block1"])
    xb1 = transition_conv(feat, params["trans1"]); h1, w1 = H, W
    feat, H, W = avgpool2x2s2(xb1, N, H, W)

    # features[6] + features[7][0..3]
    feat = dense_block(feat, N, H, W, params["block2"])
    xb2 = transition_conv(feat, params["trans2"]); h2, w2 = H, W
    feat, H, W = avgpool2x2s2(xb2, N, H, W)

    # features[8] + features[9][0..3]
    feat = dense_block(feat, N, H, W, params["block3"])
    xb3 = transition_conv(feat, params["trans3"]); h3, w3 = H, W
    feat, H, W = avgpool2x2s2(xb3, N, H, W)

    # features[10] + F.relu(features[11](.))
    feat = dense_block(feat, N, H, W, params["block4"])
    s5, b5 = params["norm5"]
    xb4 = pallas_bn_relu(feat, s5, b5); h4, w4 = H, W

    def to_nchw(t, h, w):
        C = t.shape[0]
        return jnp.transpose(t.reshape(C, N, h, w), (1, 0, 2, 3))

    return (to_nchw(xb1, h1, w1), to_nchw(xb2, h2, w2),
            to_nchw(xb3, h3, w3), to_nchw(xb4, h4, w4))


# ----------------------- deterministic synthetic params -----------------------

def init_params(num_init=8, growth=4, bn_size=2, blocks=(2, 2, 2, 2), eps=1e-5):
    rng = jax.random.PRNGKey(42)

    def split():
        nonlocal rng
        rng, sub = jax.random.split(rng)
        return sub

    def conv_w(T, cin, cout):
        # pre-packed (T, cout, cin) bf16 MXU operand; kaiming-normal, fan_in = T*cin
        std = (2.0 / (T * cin)) ** 0.5
        w = std * jax.random.normal(split(), (T, cout, cin), jnp.float32)
        return w.astype(jnp.bfloat16)

    def bn_folded(c):
        # eval-mode BatchNorm folded once at init into (scale, bias), shaped (c, 1)
        gamma = 1.0 + 0.1 * jax.random.normal(split(), (c,), jnp.float32)
        beta = 0.1 * jax.random.normal(split(), (c,), jnp.float32)
        mean = 0.1 * jax.random.normal(split(), (c,), jnp.float32)
        var = 1.0 + 0.1 * jnp.abs(jax.random.normal(split(), (c,), jnp.float32))
        scale = gamma / jnp.sqrt(var + eps)
        bias = beta - mean * scale
        return scale.reshape(c, 1), bias.reshape(c, 1)

    params = {"conv0": conv_w(1, 7 * 7 * 3, num_init), "norm0": bn_folded(num_init)}
    c = num_init
    for bi, nl in enumerate(blocks, start=1):
        layers = []
        for _ in range(nl):
            s1, b1 = bn_folded(c)
            s2, b2 = bn_folded(bn_size * growth)
            layers.append(dict(
                s1=s1, b1=b1, w1=conv_w(1, c, bn_size * growth),
                s2=s2, b2=b2, w2=conv_w(9, bn_size * growth, growth)))
            c += growth
        params[f"block{bi}"] = layers
        if bi != len(blocks):
            s, b = bn_folded(c)
            params[f"trans{bi}"] = dict(s=s, b=b, w=conv_w(1, c, c // 2))
            c //= 2
    params["norm5"] = bn_folded(c)
    return params


if __name__ == "__main__":
    params = init_params()
    # NCHW input, matching the PyTorch module's interface (small synthetic DenseNet).
    x = jax.random.normal(jax.random.PRNGKey(0), (2, 3, 32, 32), jnp.float32)

    fwd = jax.jit(e_densenet_forward)
    outs = jax.block_until_ready(fwd(x, params))
    b1, b2, b3, b4 = outs

    assert b1.shape == (2, 8, 8, 8), b1.shape
    assert b2.shape == (2, 8, 4, 4), b2.shape
    assert b3.shape == (2, 8, 2, 2), b3.shape
    assert b4.shape == (2, 16, 1, 1), b4.shape
    assert all(bool(jnp.isfinite(o).all()) for o in outs)
    print("KERNEL_OK")
</pallas_src>

<mosaic_0001>
module attributes {stable_mosaic.version = 11 : i64} {
  func.func @kernel(%arg0: i32, %arg1: memref<1x8x147xbf16, #tpu.memory_space<vmem>>, %arg2: memref<8x1xf32, #tpu.memory_space<vmem>>, %arg3: memref<8x1xf32, #tpu.memory_space<vmem>>, %arg4: memref<147x256xf32, #tpu.memory_space<vmem>>, %arg5: memref<8x256xf32, #tpu.memory_space<vmem>>) attributes {dimension_semantics = [#tpu.dimension_semantics<parallel>], iteration_bounds = array<i64: 2>, scalar_prefetch = 0 : i64, scratch_operands = 0 : i64, tpu.core_type = #tpu.core_type<tc>, window_params = [{pipeline_mode = #tpu.pipeline_mode<synchronous>, transform_indices = @transform_0, window_bounds = array<i64: 1, 8, 147>}, {pipeline_mode = #tpu.pipeline_mode<synchronous>, transform_indices = @transform_1, window_bounds = array<i64: 8, 1>}, {pipeline_mode = #tpu.pipeline_mode<synchronous>, transform_indices = @transform_2, window_bounds = array<i64: 8, 1>}, {transform_indices = @transform_3, window_bounds = array<i64: 147, 256>}, {transform_indices = @transform_4, window_bounds = array<i64: 8, 256>}]} {
    %cst = arith.constant 0.000000e+00 : f32
    %0 = vector.broadcast %cst : f32 to vector<8x256xf32>
    %c0 = arith.constant 0 : index
    %c0_0 = arith.constant 0 : index
    %1 = vector.load %arg4[%c0, %c0_0] : memref<147x256xf32, #tpu.memory_space<vmem>>, vector<147x256xf32>
    %c0_1 = arith.constant 0 : index
    %c0_2 = arith.constant 0 : index
    %c0_3 = arith.constant 0 : index
    %2 = vector.load %arg1[%c0_1, %c0_2, %c0_3] : memref<1x8x147xbf16, #tpu.memory_space<vmem>>, vector<1x8x147xbf16>
    %3 = vector.shape_cast %2 : vector<1x8x147xbf16> to vector<8x147xbf16>
    %4 = arith.truncf %1 : vector<147x256xf32> to vector<147x256xbf16>
    %cst_4 = arith.constant dense<0.000000e+00> : vector<8x256xf32>
    %5 = tpu.matmul %3, %4, %cst_4 {dimension_numbers = #tpu.dot_dimension_numbers<[1], [0], [0], [1], [0, 0, 1, 1], [], []>} : vector<8x147xbf16>, vector<147x256xbf16>, vector<8x256xf32> -> vector<8x256xf32>
    %6 = arith.addf %0, %5 : vector<8x256xf32>
    %c0_5 = arith.constant 0 : index
    %c0_6 = arith.constant 0 : index
    %7 = vector.load %arg2[%c0_5, %c0_6] : memref<8x1xf32, #tpu.memory_space<vmem>>, vector<8x1xf32>
    %8 = vector.broadcast %7 : vector<8x1xf32> to vector<8x256xf32>
    %9 = arith.mulf %6, %8 : vector<8x256xf32>
    %c0_7 = arith.constant 0 : index
    %c0_8 = arith.constant 0 : index
    %10 = vector.load %arg3[%c0_7, %c0_8] : memref<8x1xf32, #tpu.memory_space<vmem>>, vector<8x1xf32>
    %11 = vector.broadcast %10 : vector<8x1xf32> to vector<8x256xf32>
    %12 = arith.addf %9, %11 : vector<8x256xf32>
    %cst_9 = arith.constant 0.000000e+00 : f32
    %13 = vector.broadcast %cst_9 : f32 to vector<8x256xf32>
    %14 = arith.maximumf %12, %13 : vector<8x256xf32>
    %c0_10 = arith.constant 0 : index
    %c0_11 = arith.constant 0 : index
    %15 = vector.load %arg5[%c0_10, %c0_11] : memref<8x256xf32, #tpu.memory_space<vmem>>, vector<8x256xf32>
    tpu.vector_store %arg5[%c0_10, %c0_11], %14 {strides = array<i32>} : memref<8x256xf32, #tpu.memory_space<vmem>>, vector<8x256xf32>,
    return
  }
  func.func @transform_0(%arg0: i32) -> (i32, i32, i32) {
    %c0_i32 = arith.constant 0 : i32
    %c0_i32_0 = arith.constant 0 : i32
    %c0_i32_1 = arith.constant 0 : i32
    %c0_i32_2 = arith.constant 0 : i32
    return %c0_i32, %c0_i32_0, %c0_i32_1 : i32, i32, i32
  }
  func.func @transform_1(%arg0: i32) -> (i32, i32) {
    %c0_i32 = arith.constant 0 : i32
    %c0_i32_0 = arith.constant 0 : i32
    %c0_i32_1 = arith.constant 0 : i32
    return %c0_i32, %c0_i32_0 : i32, i32
  }
  func.func @transform_2(%arg0: i32) -> (i32, i32) {
    %c0_i32 = arith.constant 0 : i32
    %c0_i32_0 = arith.constant 0 : i32
    %c0_i32_1 = arith.constant 0 : i32
    return %c0_i32, %c0_i32_0 : i32, i32
  }
  func.func @transform_3(%arg0: i32) -> (i32, i32) {
    %c0_i32 = arith.constant 0 : i32
    %c0_i32_0 = arith.constant 0 : i32
    return %c0_i32, %arg0 : i32, i32
  }
  func.func @transform_4(%arg0: i32) -> (i32, i32) {
    %c0_i32 = arith.constant 0 : i32
    %c0_i32_0 = arith.constant 0 : i32
    return %c0_i32, %arg0 : i32, i32
  }
}

module attributes {stable_mosaic.version = 11 : i64} {
  func.func @kernel(%arg0: i32, %arg1: memref<8x128xf32, #tpu.memory_space<vmem>>, %arg2: memref<8x128xf32, #tpu.memory_space<vmem>>, %arg3: memref<8x128xf32, #tpu.memory_space<vmem>>, %arg4: memref<8x128xf32, #tpu.memory_space<vmem>>, %arg5: memref<8x128xf32, #tpu.memory_space<vmem>>, %arg6: memref<8x128xf32, #tpu.memory_space<vmem>>, %arg7: memref<8x128xf32, #tpu.memory_space<vmem>>, %arg8: memref<8x128xf32, #tpu.memory_space<vmem>>, %arg9: memref<8x128xf32, #tpu.memory_space<vmem>>, %arg10: memref<8x128xf32, #tpu.memory_space<vmem>>) attributes {dimension_semantics = [#tpu.dimension_semantics<parallel>], iteration_bounds = array<i64: 1>, scalar_prefetch = 0 : i64, scratch_operands = 0 : i64, tpu.core_type = #tpu.core_type<tc>, window_params = [{pipeline_mode = #tpu.pipeline_mode<synchronous>, transform_indices = @transform_0, window_bounds = array<i64: 8, 128>}, {pipeline_mode = #tpu.pipeline_mode<synchronous>, transform_indices = @transform_1, window_bounds = array<i64: 8, 128>}, {pipeline_mode = #tpu.pipeline_mode<synchronous>, transform_indices = @transform_2, window_bounds = array<i64: 8, 128>}, {pipeline_mode = #tpu.pipeline_mode<synchronous>, transform_indices = @transform_3, window_bounds = array<i64: 8, 128>}, {pipeline_mode = #tpu.pipeline_mode<synchronous>, transform_indices = @transform_4, window_bounds = array<i64: 8, 128>}, {pipeline_mode = #tpu.pipeline_mode<synchronous>, transform_indices = @transform_5, window_bounds = array<i64: 8, 128>}, {pipeline_mode = #tpu.pipeline_mode<synchronous>, transform_indices = @transform_6, window_bounds = array<i64: 8, 128>}, {pipeline_mode = #tpu.pipeline_mode<synchronous>, transform_indices = @transform_7, window_bounds = array<i64: 8, 128>}, {pipeline_mode = #tpu.pipeline_mode<synchronous>, transform_indices = @transform_8, window_bounds = array<i64: 8, 128>}, {pipeline_mode = #tpu.pipeline_mode<synchronous>, transform_indices = @transform_9, window_bounds = array<i64: 8, 128>}]} {
    %c0 = arith.constant 0 : index
    %c0_0 = arith.constant 0 : index
    %0 = vector.load %arg1[%c0, %c0_0] : memref<8x128xf32, #tpu.memory_space<vmem>>, vector<8x128xf32>
    %c0_1 = arith.constant 0 : index
    %c0_2 = arith.constant 0 : index
    %1 = vector.load %arg2[%c0_1, %c0_2] : memref<8x128xf32, #tpu.memory_space<vmem>>, vector<8x128xf32>
    %2 = arith.maximumf %0, %1 : vector<8x128xf32>
    %c0_3 = arith.constant 0 : index
    %c0_4 = arith.constant 0 : index
    %3 = vector.load %arg3[%c0_3, %c0_4] : memref<8x128xf32, #tpu.memory_space<vmem>>, vector<8x128xf32>
    %4 = arith.maximumf %2, %3 : vector<8x128xf32>
    %c0_5 = arith.constant 0 : index
    %c0_6 = arith.constant 0 : index
    %5 = vector.load %arg4[%c0_5, %c0_6] : memref<8x128xf32, #tpu.memory_space<vmem>>, vector<8x128xf32>
    %6 = arith.maximumf %4, %5 : vector<8x128xf32>
    %c0_7 = arith.constant 0 : index
    %c0_8 = arith.constant 0 : index
    %7 = vector.load %arg5[%c0_7, %c0_8] : memref<8x128xf32, #tpu.memory_space<vmem>>, vector<8x128xf32>
    %8 = arith.maximumf %6, %7 : vector<8x128xf32>
    %c0_9 = arith.constant 0 : index
    %c0_10 = arith.constant 0 : index
    %9 = vector.load %arg6[%c0_9, %c0_10] : memref<8x128xf32, #tpu.memory_space<vmem>>, vector<8x128xf32>
    %10 = arith.maximumf %8, %9 : vector<8x128xf32>
    %c0_11 = arith.constant 0 : index
    %c0_12 = arith.constant 0 : index
    %11 = vector.load %arg7[%c0_11, %c0_12] : memref<8x128xf32, #tpu.memory_space<vmem>>, vector<8x128xf32>
    %12 = arith.maximumf %10, %11 : vector<8x128xf32>
    %c0_13 = arith.constant 0 : index
    %c0_14 = arith.constant 0 : index
    %13 = vector.load %arg8[%c0_13, %c0_14] : memref<8x128xf32, #tpu.memory_space<vmem>>, vector<8x128xf32>
    %14 = arith.maximumf %12, %13 : vector<8x128xf32>
    %c0_15 = arith.constant 0 : index
    %c0_16 = arith.constant 0 : index
    %15 = vector.load %arg9[%c0_15, %c0_16] : memref<8x128xf32, #tpu.memory_space<vmem>>, vector<8x128xf32>
    %16 = arith.maximumf %14, %15 : vector<8x128xf32>
    %c0_17 = arith.constant 0 : index
    %c0_18 = arith.constant 0 : index
    %17 = vector.load %arg10[%c0_17, %c0_18] : memref<8x128xf32, #tpu.memory_space<vmem>>, vector<8x128xf32>
    tpu.vector_store %arg10[%c0_17, %c0_18], %16 {strides = array<i32>} : memref<8x128xf32, #tpu.memory_space<vmem>>, vector<8x128xf32>,
    return
  }
  func.func @transform_0(%arg0: i32) -> (i32, i32) {
    %c0_i32 = arith.constant 0 : i32
    %c0_i32_0 = arith.constant 0 : i32
    %c0_i32_1 = arith.constant 0 : i32
    return %c0_i32, %c0_i32_0 : i32, i32
  }
  func.func @transform_1(%arg0: i32) -> (i32, i32) {
    %c0_i32 = arith.constant 0 : i32
    %c0_i32_0 = arith.constant 0 : i32
    %c0_i32_1 = arith.constant 0 : i32
    return %c0_i32, %c0_i32_0 : i32, i32
  }
  func.func @transform_2(%arg0: i32) -> (i32, i32) {
    %c0_i32 = arith.constant 0 : i32
    %c0_i32_0 = arith.constant 0 : i32
    %c0_i32_1 = arith.constant 0 : i32
    return %c0_i32, %c0_i32_0 : i32, i32
  }
  func.func @transform_3(%arg0: i32) -> (i32, i32) {
    %c0_i32 = arith.constant 0 : i32
    %c0_i32_0 = arith.constant 0 : i32
    %c0_i32_1 = arith.constant 0 : i32
    return %c0_i32, %c0_i32_0 : i32, i32
  }
  func.func @transform_4(%arg0: i32) -> (i32, i32) {
    %c0_i32 = arith.constant 0 : i32
    %c0_i32_0 = arith.constant 0 : i32
    %c0_i32_1 = arith.constant 0 : i32
    return %c0_i32, %c0_i32_0 : i32, i32
  }
  func.func @transform_5(%arg0: i32) -> (i32, i32) {
    %c0_i32 = arith.constant 0 : i32
    %c0_i32_0 = arith.constant 0 : i32
    %c0_i32_1 = arith.constant 0 : i32
    return %c0_i32, %c0_i32_0 : i32, i32
  }
  func.func @transform_6(%arg0: i32) -> (i32, i32) {
    %c0_i32 = arith.constant 0 : i32
    %c0_i32_0 = arith.constant 0 : i32
    %c0_i32_1 = arith.constant 0 : i32
    return %c0_i32, %c0_i32_0 : i32, i32
  }
  func.func @transform_7(%arg0: i32) -> (i32, i32) {
    %c0_i32 = arith.constant 0 : i32
    %c0_i32_0 = arith.constant 0 : i32
    %c0_i32_1 = arith.constant 0 : i32
    return %c0_i32, %c0_i32_0 : i32, i32
  }
  func.func @transform_8(%arg0: i32) -> (i32, i32) {
    %c0_i32 = arith.constant 0 : i32
    %c0_i32_0 = arith.constant 0 : i32
    %c0_i32_1 = arith.constant 0 : i32
    return %c0_i32, %c0_i32_0 : i32, i32
  }
  func.func @transform_9(%arg0: i32) -> (i32, i32) {
    %c0_i32 = arith.constant 0 : i32
    %c0_i32_0 = arith.constant 0 : i32
    %c0_i32_1 = arith.constant 0 : i32
    return %c0_i32, %c0_i32_0 : i32, i32
  }
}

module attributes {stable_mosaic.version = 11 : i64} {
  func.func @kernel(%arg0: i32, %arg1: memref<1x8x8xbf16, #tpu.memory_space<vmem>>, %arg2: memref<8x1xf32, #tpu.memory_space<vmem>>, %arg3: memref<8x1xf32, #tpu.memory_space<vmem>>, %arg4: memref<8x1xf32, #tpu.memory_space<vmem>>, %arg5: memref<8x1xf32, #tpu.memory_space<vmem>>, %arg6: memref<8x128xf32, #tpu.memory_space<vmem>>, %arg7: memref<8x128xbf16, #tpu.memory_space<vmem>>) attributes {dimension_semantics = [#tpu.dimension_semantics<parallel>], iteration_bounds = array<i64: 1>, scalar_prefetch = 0 : i64, scratch_operands = 0 : i64, tpu.core_type = #tpu.core_type<tc>, window_params = [{pipeline_mode = #tpu.pipeline_mode<synchronous>, transform_indices = @transform_0, window_bounds = array<i64: 1, 8, 8>}, {pipeline_mode = #tpu.pipeline_mode<synchronous>, transform_indices = @transform_1, window_bounds = array<i64: 8, 1>}, {pipeline_mode = #tpu.pipeline_mode<synchronous>, transform_indices = @transform_2, window_bounds = array<i64: 8, 1>}, {pipeline_mode = #tpu.pipeline_mode<synchronous>, transform_indices = @transform_3, window_bounds = array<i64: 8, 1>}, {pipeline_mode = #tpu.pipeline_mode<synchronous>, transform_indices = @transform_4, window_bounds = array<i64: 8, 1>}, {transform_indices = @transform_5, window_bounds = array<i64: 8, 128>}, {transform_indices = @transform_6, window_bounds = array<i64: 8, 128>}]} {
    %cst = arith.constant 0.000000e+00 : f32
    %0 = vector.broadcast %cst : f32 to vector<8x128xf32>
    %c0 = arith.constant 0 : index
    %c0_0 = arith.constant 0 : index
    %1 = vector.load %arg6[%c0, %c0_0] : memref<8x128xf32, #tpu.memory_space<vmem>>, vector<8x128xf32>
    %c0_1 = arith.constant 0 : index
    %c0_2 = arith.constant 0 : index
    %2 = vector.load %arg2[%c0_1, %c0_2] : memref<8x1xf32, #tpu.memory_space<vmem>>, vector<8x1xf32>
    %3 = vector.broadcast %2 : vector<8x1xf32> to vector<8x128xf32>
    %4 = arith.mulf %1, %3 : vector<8x128xf32>
    %c0_3 = arith.constant 0 : index
    %c0_4 = arith.constant 0 : index
    %5 = vector.load %arg3[%c0_3, %c0_4] : memref<8x1xf32, #tpu.memory_space<vmem>>, vector<8x1xf32>
    %6 = vector.broadcast %5 : vector<8x1xf32> to vector<8x128xf32>
    %7 = arith.addf %4, %6 : vector<8x128xf32>
    %cst_5 = arith.constant 0.000000e+00 : f32
    %8 = vector.broadcast %cst_5 : f32 to vector<8x128xf32>
    %9 = arith.maximumf %7, %8 : vector<8x128xf32>
    %c0_6 = arith.constant 0 : index
    %c0_7 = arith.constant 0 : index
    %c0_8 = arith.constant 0 : index
    %10 = vector.load %arg1[%c0_6, %c0_7, %c0_8] : memref<1x8x8xbf16, #tpu.memory_space<vmem>>, vector<1x8x8xbf16>
    %11 = vector.shape_cast %10 : vector<1x8x8xbf16> to vector<8x8xbf16>
    %12 = arith.truncf %9 : vector<8x128xf32> to vector<8x128xbf16>
    %cst_9 = arith.constant dense<0.000000e+00> : vector<8x128xf32>
    %13 = tpu.matmul %11, %12, %cst_9 {dimension_numbers = #tpu.dot_dimension_numbers<[1], [0], [0], [1], [0, 0, 1, 1], [], []>} : vector<8x8xbf16>, vector<8x128xbf16>, vector<8x128xf32> -> vector<8x128xf32>
    %14 = arith.addf %0, %13 : vector<8x128xf32>
    %c0_10 = arith.constant 0 : index
    %c0_11 = arith.constant 0 : index
    %15 = vector.load %arg4[%c0_10, %c0_11] : memref<8x1xf32, #tpu.memory_space<vmem>>, vector<8x1xf32>
    %16 = vector.broadcast %15 : vector<8x1xf32> to vector<8x128xf32>
    %17 = arith.mulf %14, %16 : vector<8x128xf32>
    %c0_12 = arith.constant 0 : index
    %c0_13 = arith.constant 0 : index
    %18 = vector.load %arg5[%c0_12, %c0_13] : memref<8x1xf32, #tpu.memory_space<vmem>>, vector<8x1xf32>
    %19 = vector.broadcast %18 : vector<8x1xf32> to vector<8x128xf32>
    %20 = arith.addf %17, %19 : vector<8x128xf32>
    %cst_14 = arith.constant 0.000000e+00 : f32
    %21 = vector.broadcast %cst_14 : f32 to vector<8x128xf32>
    %22 = arith.maximumf %20, %21 : vector<8x128xf32>
    %23 = arith.truncf %22 : vector<8x128xf32> to vector<8x128xbf16>
    %c0_15 = arith.constant 0 : index
    %c0_16 = arith.constant 0 : index
    %24 = vector.load %arg7[%c0_15, %c0_16] : memref<8x128xbf16, #tpu.memory_space<vmem>>, vector<8x128xbf16>
    tpu.vector_store %arg7[%c0_15, %c0_16], %23 {strides = array<i32>} : memref<8x128xbf16, #tpu.memory_space<vmem>>, vector<8x128xbf16>,
    return
  }
  func.func @transform_0(%arg0: i32) -> (i32, i32, i32) {
    %c0_i32 = arith.constant 0 : i32
    %c0_i32_0 = arith.constant 0 : i32
    %c0_i32_1 = arith.constant 0 : i32
    %c0_i32_2 = arith.constant 0 : i32
    return %c0_i32, %c0_i32_0, %c0_i32_1 : i32, i32, i32
  }
  func.func @transform_1(%arg0: i32) -> (i32, i32) {
    %c0_i32 = arith.constant 0 : i32
    %c0_i32_0 = arith.constant 0 : i32
    %c0_i32_1 = arith.constant 0 : i32
    return %c0_i32, %c0_i32_0 : i32, i32
  }
  func.func @transform_2(%arg0: i32) -> (i32, i32) {
    %c0_i32 = arith.constant 0 : i32
    %c0_i32_0 = arith.constant 0 : i32
    %c0_i32_1 = arith.constant 0 : i32
    return %c0_i32, %c0_i32_0 : i32, i32
  }
  func.func @transform_3(%arg0: i32) -> (i32, i32) {
    %c0_i32 = arith.constant 0 : i32
    %c0_i32_0 = arith.constant 0 : i32
    %c0_i32_1 = arith.constant 0 : i32
    return %c0_i32, %c0_i32_0 : i32, i32
  }
  func.func @transform_4(%arg0: i32) -> (i32, i32) {
    %c0_i32 = arith.constant 0 : i32
    %c0_i32_0 = arith.constant 0 : i32
    %c0_i32_1 = arith.constant 0 : i32
    return %c0_i32, %c0_i32_0 : i32, i32
  }
  func.func @transform_5(%arg0: i32) -> (i32, i32) {
    %c0_i32 = arith.constant 0 : i32
    %c0_i32_0 = arith.constant 0 : i32
    return %c0_i32, %arg0 : i32, i32
  }
  func.func @transform_6(%arg0: i32) -> (i32, i32) {
    %c0_i32 = arith.constant 0 : i32
    %c0_i32_0 = arith.constant 0 : i32
    return %c0_i32, %arg0 : i32, i32
  }
}

module attributes {stable_mosaic.version = 11 : i64} {
  func.func @kernel(%arg0: i32, %arg1: memref<9x4x8xbf16, #tpu.memory_space<vmem>>, %arg2: memref<8x128xbf16, #tpu.memory_space<vmem>>, %arg3: memref<8x128xbf16, #tpu.memory_space<vmem>>, %arg4: memref<8x128xbf16, #tpu.memory_space<vmem>>, %arg5: memref<8x128xbf16, #tpu.memory_space<vmem>>, %arg6: memref<8x128xbf16, #tpu.memory_space<vmem>>, %arg7: memref<8x128xbf16, #tpu.memory_space<vmem>>, %arg8: memref<8x128xbf16, #tpu.memory_space<vmem>>, %arg9: memref<8x128xbf16, #tpu.memory_space<vmem>>, %arg10: memref<8x128xbf16, #tpu.memory_space<vmem>>, %arg11: memref<4x128xf32, #tpu.memory_space<vmem>>) attributes {dimension_semantics = [#tpu.dimension_semantics<parallel>], iteration_bounds = array<i64: 1>, scalar_prefetch = 0 : i64, scratch_operands = 0 : i64, tpu.core_type = #tpu.core_type<tc>, window_params = [{pipeline_mode = #tpu.pipeline_mode<synchronous>, transform_indices = @transform_0, window_bounds = array<i64: 9, 4, 8>}, {transform_indices = @transform_1, window_bounds = array<i64: 8, 128>}, {transform_indices = @transform_2, window_bounds = array<i64: 8, 128>}, {transform_indices = @transform_3, window_bounds = array<i64: 8, 128>}, {transform_indices = @transform_4, window_bounds = array<i64: 8, 128>}, {transform_indices = @transform_5, window_bounds = array<i64: 8, 128>}, {transform_indices = @transform_6, window_bounds = array<i64: 8, 128>}, {transform_indices = @transform_7, window_bounds = array<i64: 8, 128>}, {transform_indices = @transform_8, window_bounds = array<i64: 8, 128>}, {transform_indices = @transform_9, window_bounds = array<i64: 8, 128>}, {transform_indices = @transform_10, window_bounds = array<i64: 4, 128>}]} {
    %cst = arith.constant 0.000000e+00 : f32
    %0 = vector.broadcast %cst : f32 to vector<4x128xf32>
    %c0 = arith.constant 0 : index
    %c0_0 = arith.constant 0 : index
    %1 = vector.load %arg2[%c0, %c0_0] : memref<8x128xbf16, #tpu.memory_space<vmem>>, vector<8x128xbf16>
    %c0_1 = arith.constant 0 : index
    %c0_2 = arith.constant 0 : index
    %c0_3 = arith.constant 0 : index
    %2 = vector.load %arg1[%c0_1, %c0_2, %c0_3] : memref<9x4x8xbf16, #tpu.memory_space<vmem>>, vector<1x4x8xbf16>
    %3 = vector.shape_cast %2 : vector<1x4x8xbf16> to vector<4x8xbf16>
    %cst_4 = arith.constant dense<0.000000e+00> : vector<4x128xf32>
    %4 = tpu.matmul %3, %1, %cst_4 {dimension_numbers = #tpu.dot_dimension_numbers<[1], [0], [0], [1], [0, 0, 1, 1], [], []>} : vector<4x8xbf16>, vector<8x128xbf16>, vector<4x128xf32> -> vector<4x128xf32>
    %5 = arith.addf %0, %4 : vector<4x128xf32>
    %c0_5 = arith.constant 0 : index
    %c0_6 = arith.constant 0 : index
    %6 = vector.load %arg3[%c0_5, %c0_6] : memref<8x128xbf16, #tpu.memory_space<vmem>>, vector<8x128xbf16>
    %c1 = arith.constant 1 : index
    %c0_7 = arith.constant 0 : index
    %c0_8 = arith.constant 0 : index
    %7 = vector.load %arg1[%c1, %c0_7, %c0_8] : memref<9x4x8xbf16, #tpu.memory_space<vmem>>, vector<1x4x8xbf16>
    %8 = vector.shape_cast %7 : vector<1x4x8xbf16> to vector<4x8xbf16>
    %cst_9 = arith.constant dense<0.000000e+00> : vector<4x128xf32>
    %9 = tpu.matmul %8, %6, %cst_9 {dimension_numbers = #tpu.dot_dimension_numbers<[1], [0], [0], [1], [0, 0, 1, 1], [], []>} : vector<4x8xbf16>, vector<8x128xbf16>, vector<4x128xf32> -> vector<4x128xf32>
    %10 = arith.addf %5, %9 : vector<4x128xf32>
    %c0_10 = arith.constant 0 : index
    %c0_11 = arith.constant 0 : index
    %11 = vector.load %arg4[%c0_10, %c0_11] : memref<8x128xbf16, #tpu.memory_space<vmem>>, vector<8x128xbf16>
    %c2 = arith.constant 2 : index
    %c0_12 = arith.constant 0 : index
    %c0_13 = arith.constant 0 : index
    %12 = vector.load %arg1[%c2, %c0_12, %c0_13] : memref<9x4x8xbf16, #tpu.memory_space<vmem>>, vector<1x4x8xbf16>
    %13 = vector.shape_cast %12 : vector<1x4x8xbf16> to vector<4x8xbf16>
    %cst_14 = arith.constant dense<0.000000e+00> : vector<4x128xf32>
    %14 = tpu.matmul %13, %11, %cst_14 {dimension_numbers = #tpu.dot_dimension_numbers<[1], [0], [0], [1], [0, 0, 1, 1], [], []>} : vector<4x8xbf16>, vector<8x128xbf16>, vector<4x128xf32> -> vector<4x128xf32>
    %15 = arith.addf %10, %14 : vector<4x128xf32>
    %c0_15 = arith.constant 0 : index
    %c0_16 = arith.constant 0 : index
    %16 = vector.load %arg5[%c0_15, %c0_16] : memref<8x128xbf16, #tpu.memory_space<vmem>>, vector<8x128xbf16>
    %c3 = arith.constant 3 : index
    %c0_17 = arith.constant 0 : index
    %c0_18 = arith.constant 0 : index
    %17 = vector.load %arg1[%c3, %c0_17, %c0_18] : memref<9x4x8xbf16, #tpu.memory_space<vmem>>, vector<1x4x8xbf16>
    %18 = vector.shape_cast %17 : vector<1x4x8xbf16> to vector<4x8xbf16>
    %cst_19 = arith.constant dense<0.000000e+00> : vector<4x128xf32>
    %19 = tpu.matmul %18, %16, %cst_19 {dimension_numbers = #tpu.dot_dimension_numbers<[1], [0], [0], [1], [0, 0, 1, 1], [], []>} : vector<4x8xbf16>, vector<8x128xbf16>, vector<4x128xf32> -> vector<4x128xf32>
    %20 = arith.addf %15, %19 : vector<4x128xf32>
    %c0_20 = arith.constant 0 : index
    %c0_21 = arith.constant 0 : index
    %21 = vector.load %arg6[%c0_20, %c0_21] : memref<8x128xbf16, #tpu.memory_space<vmem>>, vector<8x128xbf16>
    %c4 = arith.constant 4 : index
    %c0_22 = arith.constant 0 : index
    %c0_23 = arith.constant 0 : index
    %22 = vector.load %arg1[%c4, %c0_22, %c0_23] : memref<9x4x8xbf16, #tpu.memory_space<vmem>>, vector<1x4x8xbf16>
    %23 = vector.shape_cast %22 : vector<1x4x8xbf16> to vector<4x8xbf16>
    %cst_24 = arith.constant dense<0.000000e+00> : vector<4x128xf32>
    %24 = tpu.matmul %23, %21, %cst_24 {dimension_numbers = #tpu.dot_dimension_numbers<[1], [0], [0], [1], [0, 0, 1, 1], [], []>} : vector<4x8xbf16>, vector<8x128xbf16>, vector<4x128xf32> -> vector<4x128xf32>
    %25 = arith.addf %20, %24 : vector<4x128xf32>
    %c0_25 = arith.constant 0 : index
    %c0_26 = arith.constant 0 : index
    %26 = vector.load %arg7[%c0_25, %c0_26] : memref<8x128xbf16, #tpu.memory_space<vmem>>, vector<8x128xbf16>
    %c5 = arith.constant 5 : index
    %c0_27 = arith.constant 0 : index
    %c0_28 = arith.constant 0 : index
    %27 = vector.load %arg1[%c5, %c0_27, %c0_28] : memref<9x4x8xbf16, #tpu.memory_space<vmem>>, vector<1x4x8xbf16>
    %28 = vector.shape_cast %27 : vector<1x4x8xbf16> to vector<4x8xbf16>
    %cst_29 = arith.constant dense<0.000000e+00> : vector<4x128xf32>
    %29 = tpu.matmul %28, %26, %cst_29 {dimension_numbers = #tpu.dot_dimension_numbers<[1], [0], [0], [1], [0, 0, 1, 1], [], []>} : vector<4x8xbf16>, vector<8x128xbf16>, vector<4x128xf32> -> vector<4x128xf32>
    %30 = arith.addf %25, %29 : vector<4x128xf32>
    %c0_30 = arith.constant 0 : index
    %c0_31 = arith.constant 0 : index
    %31 = vector.load %arg8[%c0_30, %c0_31] : memref<8x128xbf16, #tpu.memory_space<vmem>>, vector<8x128xbf16>
    %c6 = arith.constant 6 : index
    %c0_32 = arith.constant 0 : index
    %c0_33 = arith.constant 0 : index
    %32 = vector.load %arg1[%c6, %c0_32, %c0_33] : memref<9x4x8xbf16, #tpu.memory_space<vmem>>, vector<1x4x8xbf16>
    %33 = vector.shape_cast %32 : vector<1x4x8xbf16> to vector<4x8xbf16>
    %cst_34 = arith.constant dense<0.000000e+00> : vector<4x128xf32>
    %34 = tpu.matmul %33, %31, %cst_34 {dimension_numbers = #tpu.dot_dimension_numbers<[1], [0], [0], [1], [0, 0, 1, 1], [], []>} : vector<4x8xbf16>, vector<8x128xbf16>, vector<4x128xf32> -> vector<4x128xf32>
    %35 = arith.addf %30, %34 : vector<4x128xf32>
    %c0_35 = arith.constant 0 : index
    %c0_36 = arith.constant 0 : index
    %36 = vector.load %arg9[%c0_35, %c0_36] : memref<8x128xbf16, #tpu.memory_space<vmem>>, vector<8x128xbf16>
    %c7 = arith.constant 7 : index
    %c0_37 = arith.constant 0 : index
    %c0_38 = arith.constant 0 : index
    %37 = vector.load %arg1[%c7, %c0_37, %c0_38] : memref<9x4x8xbf16, #tpu.memory_space<vmem>>, vector<1x4x8xbf16>
    %38 = vector.shape_cast %37 : vector<1x4x8xbf16> to vector<4x8xbf16>
    %cst_39 = arith.constant dense<0.000000e+00> : vector<4x128xf32>
    %39 = tpu.matmul %38, %36, %cst_39 {dimension_numbers = #tpu.dot_dimension_numbers<[1], [0], [0], [1], [0, 0, 1, 1], [], []>} : vector<4x8xbf16>, vector<8x128xbf16>, vector<4x128xf32> -> vector<4x128xf32>
    %40 = arith.addf %35, %39 : vector<4x128xf32>
    %c0_40 = arith.constant 0 : index
    %c0_41 = arith.constant 0 : index
    %41 = vector.load %arg10[%c0_40, %c0_41] : memref<8x128xbf16, #tpu.memory_space<vmem>>, vector<8x128xbf16>
    %c8 = arith.constant 8 : index
    %c0_42 = arith.constant 0 : index
    %c0_43 = arith.constant 0 : index
    %42 = vector.load %arg1[%c8, %c0_42, %c0_43] : memref<9x4x8xbf16, #tpu.memory_space<vmem>>, vector<1x4x8xbf16>
    %43 = vector.shape_cast %42 : vector<1x4x8xbf16> to vector<4x8xbf16>
    %cst_44 = arith.constant dense<0.000000e+00> : vector<4x128xf32>
    %44 = tpu.matmul %43, %41, %cst_44 {dimension_numbers = #tpu.dot_dimension_numbers<[1], [0], [0], [1], [0, 0, 1, 1], [], []>} : vector<4x8xbf16>, vector<8x128xbf16>, vector<4x128xf32> -> vector<4x128xf32>
    %45 = arith.addf %40, %44 : vector<4x128xf32>
    %c0_45 = arith.constant 0 : index
    %c0_46 = arith.constant 0 : index
    %46 = vector.load %arg11[%c0_45, %c0_46] : memref<4x128xf32, #tpu.memory_space<vmem>>, vector<4x128xf32>
    tpu.vector_store %arg11[%c0_45, %c0_46], %45 {strides = array<i32>} : memref<4x128xf32, #tpu.memory_space<vmem>>, vector<4x128xf32>,
    return
  }
  func.func @transform_0(%arg0: i32) -> (i32, i32, i32) {
    %c0_i32 = arith.constant 0 : i32
    %c0_i32_0 = arith.constant 0 : i32
    %c0_i32_1 = arith.constant 0 : i32
    %c0_i32_2 = arith.constant 0 : i32
    return %c0_i32, %c0_i32_0, %c0_i32_1 : i32, i32, i32
  }
  func.func @transform_1(%arg0: i32) -> (i32, i32) {
    %c0_i32 = arith.constant 0 : i32
    %c0_i32_0 = arith.constant 0 : i32
    return %c0_i32, %arg0 : i32, i32
  }
  func.func @transform_2(%arg0: i32) -> (i32, i32) {
    %c0_i32 = arith.constant 0 : i32
    %c0_i32_0 = arith.constant 0 : i32
    return %c0_i32, %arg0 : i32, i32
  }
  func.func @transform_3(%arg0: i32) -> (i32, i32) {
    %c0_i32 = arith.constant 0 : i32
    %c0_i32_0 = arith.constant 0 : i32
    return %c0_i32, %arg0 : i32, i32
  }
  func.func @transform_4(%arg0: i32) -> (i32, i32) {
    %c0_i32 = arith.constant 0 : i32
    %c0_i32_0 = arith.constant 0 : i32
    return %c0_i32, %arg0 : i32, i32
  }
  func.func @transform_5(%arg0: i32) -> (i32, i32) {
    %c0_i32 = arith.constant 0 : i32
    %c0_i32_0 = arith.constant 0 : i32
    return %c0_i32, %arg0 : i32, i32
  }
  func.func @transform_6(%arg0: i32) -> (i32, i32) {
    %c0_i32 = arith.constant 0 : i32
    %c0_i32_0 = arith.constant 0 : i32
    return %c0_i32, %arg0 : i32, i32
  }
  func.func @transform_7(%arg0: i32) -> (i32, i32) {
    %c0_i32 = arith.constant 0 : i32
    %c0_i32_0 = arith.constant 0 : i32
    return %c0_i32, %arg0 : i32, i32
  }
  func.func @transform_8(%arg0: i32) -> (i32, i32) {
    %c0_i32 = arith.constant 0 : i32
    %c0_i32_0 = arith.constant 0 : i32
    return %c0_i32, %arg0 : i32, i32
  }
  func.func @transform_9(%arg0: i32) -> (i32, i32) {
    %c0_i32 = arith.constant 0 : i32
    %c0_i32_0 = arith.constant 0 : i32
    return %c0_i32, %arg0 : i32, i32
  }
  func.func @transform_10(%arg0: i32) -> (i32, i32) {
    %c0_i32 = arith.constant 0 : i32
    %c0_i32_0 = arith.constant 0 : i32
    return %c0_i32, %arg0 : i32, i32
  }
}

module attributes {stable_mosaic.version = 11 : i64} {
  func.func @kernel(%arg0: i32, %arg1: memref<1x8x12xbf16, #tpu.memory_space<vmem>>, %arg2: memref<12x1xf32, #tpu.memory_space<vmem>>, %arg3: memref<12x1xf32, #tpu.memory_space<vmem>>, %arg4: memref<8x1xf32, #tpu.memory_space<vmem>>, %arg5: memref<8x1xf32, #tpu.memory_space<vmem>>, %arg6: memref<12x128xf32, #tpu.memory_space<vmem>>, %arg7: memref<8x128xbf16, #tpu.memory_space<vmem>>) attributes {dimension_semantics = [#tpu.dimension_semantics<parallel>], iteration_bounds = array<i64: 1>, scalar_prefetch = 0 : i64, scratch_operands = 0 : i64, tpu.core_type = #tpu.core_type<tc>, window_params = [{pipeline_mode = #tpu.pipeline_mode<synchronous>, transform_indices = @transform_0, window_bounds = array<i64: 1, 8, 12>}, {pipeline_mode = #tpu.pipeline_mode<synchronous>, transform_indices = @transform_1, window_bounds = array<i64: 12, 1>}, {pipeline_mode = #tpu.pipeline_mode<synchronous>, transform_indices = @transform_2, window_bounds = array<i64: 12, 1>}, {pipeline_mode = #tpu.pipeline_mode<synchronous>, transform_indices = @transform_3, window_bounds = array<i64: 8, 1>}, {pipeline_mode = #tpu.pipeline_mode<synchronous>, transform_indices = @transform_4, window_bounds = array<i64: 8, 1>}, {transform_indices = @transform_5, window_bounds = array<i64: 12, 128>}, {transform_indices = @transform_6, window_bounds = array<i64: 8, 128>}]} {
    %cst = arith.constant 0.000000e+00 : f32
    %0 = vector.broadcast %cst : f32 to vector<8x128xf32>
    %c0 = arith.constant 0 : index
    %c0_0 = arith.constant 0 : index
    %1 = vector.load %arg6[%c0, %c0_0] : memref<12x128xf32, #tpu.memory_space<vmem>>, vector<12x128xf32>
    %c0_1 = arith.constant 0 : index
    %c0_2 = arith.constant 0 : index
    %2 = vector.load %arg2[%c0_1, %c0_2] : memref<12x1xf32, #tpu.memory_space<vmem>>, vector<12x1xf32>
    %3 = vector.broadcast %2 : vector<12x1xf32> to vector<12x128xf32>
    %4 = arith.mulf %1, %3 : vector<12x128xf32>
    %c0_3 = arith.constant 0 : index
    %c0_4 = arith.constant 0 : index
    %5 = vector.load %arg3[%c0_3, %c0_4] : memref<12x1xf32, #tpu.memory_space<vmem>>, vector<12x1xf32>
    %6 = vector.broadcast %5 : vector<12x1xf32> to vector<12x128xf32>
    %7 = arith.addf %4, %6 : vector<12x128xf32>
    %cst_5 = arith.constant 0.000000e+00 : f32
    %8 = vector.broadcast %cst_5 : f32 to vector<12x128xf32>
    %9 = arith.maximumf %7, %8 : vector<12x128xf32>
    %c0_6 = arith.constant 0 : index
    %c0_7 = arith.constant 0 : index
    %c0_8 = arith.constant 0 : index
    %10 = vector.load %arg1[%c0_6, %c0_7, %c0_8] : memref<1x8x12xbf16, #tpu.memory_space<vmem>>, vector<1x8x12xbf16>
    %11 = vector.shape_cast %10 : vector<1x8x12xbf16> to vector<8x12xbf16>
    %12 = arith.truncf %9 : vector<12x128xf32> to vector<12x128xbf16>
    %cst_9 = arith.constant dense<0.000000e+00> : vector<8x128xf32>
    %13 = tpu.matmul %11, %12, %cst_9 {dimension_numbers = #tpu.dot_dimension_numbers<[1], [0], [0], [1], [0, 0, 1, 1], [], []>} : vector<8x12xbf16>, vector<12x128xbf16>, vector<8x128xf32> -> vector<8x128xf32>
    %14 = arith.addf %0, %13 : vector<8x128xf32>
    %c0_10 = arith.constant 0 : index
    %c0_11 = arith.constant 0 : index
    %15 = vector.load %arg4[%c0_10, %c0_11] : memref<8x1xf32, #tpu.memory_space<vmem>>, vector<8x1xf32>
    %16 = vector.broadcast %15 : vector<8x1xf32> to vector<8x128xf32>
    %17 = arith.mulf %14, %16 : vector<8x128xf32>
    %c0_12 = arith.constant 0 : index
    %c0_13 = arith.constant 0 : index
    %18 = vector.load %arg5[%c0_12, %c0_13] : memref<8x1xf32, #tpu.memory_space<vmem>>, vector<8x1xf32>
    %19 = vector.broadcast %18 : vector<8x1xf32> to vector<8x128xf32>
    %20 = arith.addf %17, %19 : vector<8x128xf32>
    %cst_14 = arith.constant 0.000000e+00 : f32
    %21 = vector.broadcast %cst_14 : f32 to vector<8x128xf32>
    %22 = arith.maximumf %20, %21 : vector<8x128xf32>
    %23 = arith.truncf %22 : vector<8x128xf32> to vector<8x128xbf16>
    %c0_15 = arith.constant 0 : index
    %c0_16 = arith.constant 0 : index
    %24 = vector.load %arg7[%c0_15, %c0_16] : memref<8x128xbf16, #tpu.memory_space<vmem>>, vector<8x128xbf16>
    tpu.vector_store %arg7[%c0_15, %c0_16], %23 {strides = array<i32>} : memref<8x128xbf16, #tpu.memory_space<vmem>>, vector<8x128xbf16>,
    return
  }
  func.func @transform_0(%arg0: i32) -> (i32, i32, i32) {
    %c0_i32 = arith.constant 0 : i32
    %c0_i32_0 = arith.constant 0 : i32
    %c0_i32_1 = arith.constant 0 : i32
    %c0_i32_2 = arith.constant 0 : i32
    return %c0_i32, %c0_i32_0, %c0_i32_1 : i32, i32, i32
  }
  func.func @transform_1(%arg0: i32) -> (i32, i32) {
    %c0_i32 = arith.constant 0 : i32
    %c0_i32_0 = arith.constant 0 : i32
    %c0_i32_1 = arith.constant 0 : i32
    return %c0_i32, %c0_i32_0 : i32, i32
  }
  func.func @transform_2(%arg0: i32) -> (i32, i32) {
    %c0_i32 = arith.constant 0 : i32
    %c0_i32_0 = arith.constant 0 : i32
    %c0_i32_1 = arith.constant 0 : i32
    return %c0_i32, %c0_i32_0 : i32, i32
  }
  func.func @transform_3(%arg0: i32) -> (i32, i32) {
    %c0_i32 = arith.constant 0 : i32
    %c0_i32_0 = arith.constant 0 : i32
    %c0_i32_1 = arith.constant 0 : i32
    return %c0_i32, %c0_i32_0 : i32, i32
  }
  func.func @transform_4(%arg0: i32) -> (i32, i32) {
    %c0_i32 = arith.constant 0 : i32
    %c0_i32_0 = arith.constant 0 : i32
    %c0_i32_1 = arith.constant 0 : i32
    return %c0_i32, %c0_i32_0 : i32, i32
  }
  func.func @transform_5(%arg0: i32) -> (i32, i32) {
    %c0_i32 = arith.constant 0 : i32
    %c0_i32_0 = arith.constant 0 : i32
    return %c0_i32, %arg0 : i32, i32
  }
  func.func @transform_6(%arg0: i32) -> (i32, i32) {
    %c0_i32 = arith.constant 0 : i32
    %c0_i32_0 = arith.constant 0 : i32
    return %c0_i32, %arg0 : i32, i32
  }
}

module attributes {stable_mosaic.version = 11 : i64} {
  func.func @kernel(%arg0: i32, %arg1: memref<1x8x16xbf16, #tpu.memory_space<vmem>>, %arg2: memref<16x1xf32, #tpu.memory_space<vmem>>, %arg3: memref<16x1xf32, #tpu.memory_space<vmem>>, %arg4: memref<16x128xf32, #tpu.memory_space<vmem>>, %arg5: memref<8x128xf32, #tpu.memory_space<vmem>>) attributes {dimension_semantics = [#tpu.dimension_semantics<parallel>], iteration_bounds = array<i64: 1>, scalar_prefetch = 0 : i64, scratch_operands = 0 : i64, tpu.core_type = #tpu.core_type<tc>, window_params = [{pipeline_mode = #tpu.pipeline_mode<synchronous>, transform_indices = @transform_0, window_bounds = array<i64: 1, 8, 16>}, {pipeline_mode = #tpu.pipeline_mode<synchronous>, transform_indices = @transform_1, window_bounds = array<i64: 16, 1>}, {pipeline_mode = #tpu.pipeline_mode<synchronous>, transform_indices = @transform_2, window_bounds = array<i64: 16, 1>}, {transform_indices = @transform_3, window_bounds = array<i64: 16, 128>}, {transform_indices = @transform_4, window_bounds = array<i64: 8, 128>}]} {
    %cst = arith.constant 0.000000e+00 : f32
    %0 = vector.broadcast %cst : f32 to vector<8x128xf32>
    %c0 = arith.constant 0 : index
    %c0_0 = arith.constant 0 : index
    %1 = vector.load %arg4[%c0, %c0_0] : memref<16x128xf32, #tpu.memory_space<vmem>>, vector<16x128xf32>
    %c0_1 = arith.constant 0 : index
    %c0_2 = arith.constant 0 : index
    %2 = vector.load %arg2[%c0_1, %c0_2] : memref<16x1xf32, #tpu.memory_space<vmem>>, vector<16x1xf32>
    %3 = vector.broadcast %2 : vector<16x1xf32> to vector<16x128xf32>
    %4 = arith.mulf %1, %3 : vector<16x128xf32>
    %c0_3 = arith.constant 0 : index
    %c0_4 = arith.constant 0 : index
    %5 = vector.load %arg3[%c0_3, %c0_4] : memref<16x1xf32, #tpu.memory_space<vmem>>, vector<16x1xf32>
    %6 = vector.broadcast %5 : vector<16x1xf32> to vector<16x128xf32>
    %7 = arith.addf %4, %6 : vector<16x128xf32>
    %cst_5 = arith.constant 0.000000e+00 : f32
    %8 = vector.broadcast %cst_5 : f32 to vector<16x128xf32>
    %9 = arith.maximumf %7, %8 : vector<16x128xf32>
    %c0_6 = arith.constant 0 : index
    %c0_7 = arith.constant 0 : index
    %c0_8 = arith.constant 0 : index
    %10 = vector.load %arg1[%c0_6, %c0_7, %c0_8] : memref<1x8x16xbf16, #tpu.memory_space<vmem>>, vector<1x8x16xbf16>
    %11 = vector.shape_cast %10 : vector<1x8x16xbf16> to vector<8x16xbf16>
    %12 = arith.truncf %9 : vector<16x128xf32> to vector<16x128xbf16>
    %cst_9 = arith.constant dense<0.000000e+00> : vector<8x128xf32>
    %13 = tpu.matmul %11, %12, %cst_9 {dimension_numbers = #tpu.dot_dimension_numbers<[1], [0], [0], [1], [0, 0, 1, 1], [], []>} : vector<8x16xbf16>, vector<16x128xbf16>, vector<8x128xf32> -> vector<8x128xf32>
    %14 = arith.addf %0, %13 : vector<8x128xf32>
    %c0_10 = arith.constant 0 : index
    %c0_11 = arith.constant 0 : index
    %15 = vector.load %arg5[%c0_10, %c0_11] : memref<8x128xf32, #tpu.memory_space<vmem>>, vector<8x128xf32>
    tpu.vector_store %arg5[%c0_10, %c0_11], %14 {strides = array<i32>} : memref<8x128xf32, #tpu.memory_space<vmem>>, vector<8x128xf32>,
    return
  }
  func.func @transform_0(%arg0: i32) -> (i32, i32, i32) {
    %c0_i32 = arith.constant 0 : i32
    %c0_i32_0 = arith.constant 0 : i32
    %c0_i32_1 = arith.constant 0 : i32
    %c0_i32_2 = arith.constant 0 : i32
    return %c0_i32, %c0_i32_0, %c0_i32_1 : i32, i32, i32
  }
  func.func @transform_1(%arg0: i32) -> (i32, i32) {
    %c0_i32 = arith.constant 0 : i32
    %c0_i32_0 = arith.constant 0 : i32
    %c0_i32_1 = arith.constant 0 : i32
    return %c0_i32, %c0_i32_0 : i32, i32
  }
  func.func @transform_2(%arg0: i32) -> (i32, i32) {
    %c0_i32 = arith.constant 0 : i32
    %c0_i32_0 = arith.constant 0 : i32
    %c0_i32_1 = arith.constant 0 : i32
    return %c0_i32, %c0_i32_0 : i32, i32
  }
  func.func @transform_3(%arg0: i32) -> (i32, i32) {
    %c0_i32 = arith.constant 0 : i32
    %c0_i32_0 = arith.constant 0 : i32
    return %c0_i32, %arg0 : i32, i32
  }
  func.func @transform_4(%arg0: i32) -> (i32, i32) {
    %c0_i32 = arith.constant 0 : i32
    %c0_i32_0 = arith.constant 0 : i32
    return %c0_i32, %arg0 : i32, i32
  }
}

module attributes {stable_mosaic.version = 11 : i64} {
  func.func @kernel(%arg0: i32, %arg1: memref<8x32xf32, #tpu.memory_space<vmem>>, %arg2: memref<8x32xf32, #tpu.memory_space<vmem>>, %arg3: memref<8x32xf32, #tpu.memory_space<vmem>>, %arg4: memref<8x32xf32, #tpu.memory_space<vmem>>, %arg5: memref<8x32xf32, #tpu.memory_space<vmem>>) attributes {dimension_semantics = [#tpu.dimension_semantics<parallel>], iteration_bounds = array<i64: 1>, scalar_prefetch = 0 : i64, scratch_operands = 0 : i64, tpu.core_type = #tpu.core_type<tc>, window_params = [{pipeline_mode = #tpu.pipeline_mode<synchronous>, transform_indices = @transform_0, window_bounds = array<i64: 8, 32>}, {pipeline_mode = #tpu.pipeline_mode<synchronous>, transform_indices = @transform_1, window_bounds = array<i64: 8, 32>}, {pipeline_mode = #tpu.pipeline_mode<synchronous>, transform_indices = @transform_2, window_bounds = array<i64: 8, 32>}, {pipeline_mode = #tpu.pipeline_mode<synchronous>, transform_indices = @transform_3, window_bounds = array<i64: 8, 32>}, {pipeline_mode = #tpu.pipeline_mode<synchronous>, transform_indices = @transform_4, window_bounds = array<i64: 8, 32>}]} {
    %c0 = arith.constant 0 : index
    %c0_0 = arith.constant 0 : index
    %0 = vector.load %arg1[%c0, %c0_0] : memref<8x32xf32, #tpu.memory_space<vmem>>, vector<8x32xf32>
    %c0_1 = arith.constant 0 : index
    %c0_2 = arith.constant 0 : index
    %1 = vector.load %arg2[%c0_1, %c0_2] : memref<8x32xf32, #tpu.memory_space<vmem>>, vector<8x32xf32>
    %2 = arith.addf %0, %1 : vector<8x32xf32>
    %c0_3 = arith.constant 0 : index
    %c0_4 = arith.constant 0 : index
    %3 = vector.load %arg3[%c0_3, %c0_4] : memref<8x32xf32, #tpu.memory_space<vmem>>, vector<8x32xf32>
    %4 = arith.addf %2, %3 : vector<8x32xf32>
    %c0_5 = arith.constant 0 : index
    %c0_6 = arith.constant 0 : index
    %5 = vector.load %arg4[%c0_5, %c0_6] : memref<8x32xf32, #tpu.memory_space<vmem>>, vector<8x32xf32>
    %6 = arith.addf %4, %5 : vector<8x32xf32>
    %cst = arith.constant 2.500000e-01 : f32
    %7 = vector.broadcast %cst : f32 to vector<8x32xf32>
    %8 = arith.mulf %6, %7 : vector<8x32xf32>
    %c0_7 = arith.constant 0 : index
    %c0_8 = arith.constant 0 : index
    %9 = vector.load %arg5[%c0_7, %c0_8] : memref<8x32xf32, #tpu.memory_space<vmem>>, vector<8x32xf32>
    tpu.vector_store %arg5[%c0_7, %c0_8], %8 {strides = array<i32>} : memref<8x32xf32, #tpu.memory_space<vmem>>, vector<8x32xf32>,
    return
  }
  func.func @transform_0(%arg0: i32) -> (i32, i32) {
    %c0_i32 = arith.constant 0 : i32
    %c0_i32_0 = arith.constant 0 : i32
    %c0_i32_1 = arith.constant 0 : i32
    return %c0_i32, %c0_i32_0 : i32, i32
  }
  func.func @transform_1(%arg0: i32) -> (i32, i32) {
    %c0_i32 = arith.constant 0 : i32
    %c0_i32_0 = arith.constant 0 : i32
    %c0_i32_1 = arith.constant 0 : i32
    return %c0_i32, %c0_i32_0 : i32, i32
  }
  func.func @transform_2(%arg0: i32) -> (i32, i32) {
    %c0_i32 = arith.constant 0 : i32
    %c0_i32_0 = arith.constant 0 : i32
    %c0_i32_1 = arith.constant 0 : i32
    return %c0_i32, %c0_i32_0 : i32, i32
  }
  func.func @transform_3(%arg0: i32) -> (i32, i32) {
    %c0_i32 = arith.constant 0 : i32
    %c0_i32_0 = arith.constant 0 : i32
    %c0_i32_1 = arith.constant 0 : i32
    return %c0_i32, %c0_i32_0 : i32, i32
  }
  func.func @transform_4(%arg0: i32) -> (i32, i32) {
    %c0_i32 = arith.constant 0 : i32
    %c0_i32_0 = arith.constant 0 : i32
    %c0_i32_1 = arith.constant 0 : i32
    return %c0_i32, %c0_i32_0 : i32, i32
  }
}

module attributes {stable_mosaic.version = 11 : i64} {
  func.func @kernel(%arg0: i32, %arg1: memref<1x8x8xbf16, #tpu.memory_space<vmem>>, %arg2: memref<8x1xf32, #tpu.memory_space<vmem>>, %arg3: memref<8x1xf32, #tpu.memory_space<vmem>>, %arg4: memref<8x1xf32, #tpu.memory_space<vmem>>, %arg5: memref<8x1xf32, #tpu.memory_space<vmem>>, %arg6: memref<8x32xf32, #tpu.memory_space<vmem>>, %arg7: memref<8x32xbf16, #tpu.memory_space<vmem>>) attributes {dimension_semantics = [#tpu.dimension_semantics<parallel>], iteration_bounds = array<i64: 1>, scalar_prefetch = 0 : i64, scratch_operands = 0 : i64, tpu.core_type = #tpu.core_type<tc>, window_params = [{pipeline_mode = #tpu.pipeline_mode<synchronous>, transform_indices = @transform_0, window_bounds = array<i64: 1, 8, 8>}, {pipeline_mode = #tpu.pipeline_mode<synchronous>, transform_indices = @transform_1, window_bounds = array<i64: 8, 1>}, {pipeline_mode = #tpu.pipeline_mode<synchronous>, transform_indices = @transform_2, window_bounds = array<i64: 8, 1>}, {pipeline_mode = #tpu.pipeline_mode<synchronous>, transform_indices = @transform_3, window_bounds = array<i64: 8, 1>}, {pipeline_mode = #tpu.pipeline_mode<synchronous>, transform_indices = @transform_4, window_bounds = array<i64: 8, 1>}, {transform_indices = @transform_5, window_bounds = array<i64: 8, 32>}, {transform_indices = @transform_6, window_bounds = array<i64: 8, 32>}]} {
    %cst = arith.constant 0.000000e+00 : f32
    %0 = vector.broadcast %cst : f32 to vector<8x32xf32>
    %c0 = arith.constant 0 : index
    %c0_0 = arith.constant 0 : index
    %1 = vector.load %arg6[%c0, %c0_0] : memref<8x32xf32, #tpu.memory_space<vmem>>, vector<8x32xf32>
    %c0_1 = arith.constant 0 : index
    %c0_2 = arith.constant 0 : index
    %2 = vector.load %arg2[%c0_1, %c0_2] : memref<8x1xf32, #tpu.memory_space<vmem>>, vector<8x1xf32>
    %3 = vector.broadcast %2 : vector<8x1xf32> to vector<8x32xf32>
    %4 = arith.mulf %1, %3 : vector<8x32xf32>
    %c0_3 = arith.constant 0 : index
    %c0_4 = arith.constant 0 : index
    %5 = vector.load %arg3[%c0_3, %c0_4] : memref<8x1xf32, #tpu.memory_space<vmem>>, vector<8x1xf32>
    %6 = vector.broadcast %5 : vector<8x1xf32> to vector<8x32xf32>
    %7 = arith.addf %4, %6 : vector<8x32xf32>
    %cst_5 = arith.constant 0.000000e+00 : f32
    %8 = vector.broadcast %cst_5 : f32 to vector<8x32xf32>
    %9 = arith.maximumf %7, %8 : vector<8x32xf32>
    %c0_6 = arith.constant 0 : index
    %c0_7 = arith.constant 0 : index
    %c0_8 = arith.constant 0 : index
    %10 = vector.load %arg1[%c0_6, %c0_7, %c0_8] : memref<1x8x8xbf16, #tpu.memory_space<vmem>>, vector<1x8x8xbf16>
    %11 = vector.shape_cast %10 : vector<1x8x8xbf16> to vector<8x8xbf16>
    %12 = arith.truncf %9 : vector<8x32xf32> to vector<8x32xbf16>
    %cst_9 = arith.constant dense<0.000000e+00> : vector<8x32xf32>
    %13 = tpu.matmul %11, %12, %cst_9 {dimension_numbers = #tpu.dot_dimension_numbers<[1], [0], [0], [1], [0, 0, 1, 1], [], []>} : vector<8x8xbf16>, vector<8x32xbf16>, vector<8x32xf32> -> vector<8x32xf32>
    %14 = arith.addf %0, %13 : vector<8x32xf32>
    %c0_10 = arith.constant 0 : index
    %c0_11 = arith.constant 0 : index
    %15 = vector.load %arg4[%c0_10, %c0_11] : memref<8x1xf32, #tpu.memory_space<vmem>>, vector<8x1xf32>
    %16 = vector.broadcast %15 : vector<8x1xf32> to vector<8x32xf32>
    %17 = arith.mulf %14, %16 : vector<8x32xf32>
    %c0_12 = arith.constant 0 : index
    %c0_13 = arith.constant 0 : index
    %18 = vector.load %arg5[%c0_12, %c0_13] : memref<8x1xf32, #tpu.memory_space<vmem>>, vector<8x1xf32>
    %19 = vector.broadcast %18 : vector<8x1xf32> to vector<8x32xf32>
    %20 = arith.addf %17, %19 : vector<8x32xf32>
    %cst_14 = arith.constant 0.000000e+00 : f32
    %21 = vector.broadcast %cst_14 : f32 to vector<8x32xf32>
    %22 = arith.maximumf %20, %21 : vector<8x32xf32>
    %23 = arith.truncf %22 : vector<8x32xf32> to vector<8x32xbf16>
    %c0_15 = arith.constant 0 : index
    %c0_16 = arith.constant 0 : index
    %24 = vector.load %arg7[%c0_15, %c0_16] : memref<8x32xbf16, #tpu.memory_space<vmem>>, vector<8x32xbf16>
    tpu.vector_store %arg7[%c0_15, %c0_16], %23 {strides = array<i32>} : memref<8x32xbf16, #tpu.memory_space<vmem>>, vector<8x32xbf16>,
    return
  }
  func.func @transform_0(%arg0: i32) -> (i32, i32, i32) {
    %c0_i32 = arith.constant 0 : i32
    %c0_i32_0 = arith.constant 0 : i32
    %c0_i32_1 = arith.constant 0 : i32
    %c0_i32_2 = arith.constant 0 : i32
    return %c0_i32, %c0_i32_0, %c0_i32_1 : i32, i32, i32
  }
  func.func @transform_1(%arg0: i32) -> (i32, i32) {
    %c0_i32 = arith.constant 0 : i32
    %c0_i32_0 = arith.constant 0 : i32
    %c0_i32_1 = arith.constant 0 : i32
    return %c0_i32, %c0_i32_0 : i32, i32
  }
  func.func @transform_2(%arg0: i32) -> (i32, i32) {
    %c0_i32 = arith.constant 0 : i32
    %c0_i32_0 = arith.constant 0 : i32
    %c0_i32_1 = arith.constant 0 : i32
    return %c0_i32, %c0_i32_0 : i32, i32
  }
  func.func @transform_3(%arg0: i32) -> (i32, i32) {
    %c0_i32 = arith.constant 0 : i32
    %c0_i32_0 = arith.constant 0 : i32
    %c0_i32_1 = arith.constant 0 : i32
    return %c0_i32, %c0_i32_0 : i32, i32
  }
  func.func @transform_4(%arg0: i32) -> (i32, i32) {
    %c0_i32 = arith.constant 0 : i32
    %c0_i32_0 = arith.constant 0 : i32
    %c0_i32_1 = arith.constant 0 : i32
    return %c0_i32, %c0_i32_0 : i32, i32
  }
  func.func @transform_5(%arg0: i32) -> (i32, i32) {
    %c0_i32 = arith.constant 0 : i32
    %c0_i32_0 = arith.constant 0 : i32
    return %c0_i32, %arg0 : i32, i32
  }
  func.func @transform_6(%arg0: i32) -> (i32, i32) {
    %c0_i32 = arith.constant 0 : i32
    %c0_i32_0 = arith.constant 0 : i32
    return %c0_i32, %arg0 : i32, i32
  }
}

module attributes {stable_mosaic.version = 11 : i64} {
  func.func @kernel(%arg0: i32, %arg1: memref<9x4x8xbf16, #tpu.memory_space<vmem>>, %arg2: memref<8x32xbf16, #tpu.memory_space<vmem>>, %arg3: memref<8x32xbf16, #tpu.memory_space<vmem>>, %arg4: memref<8x32xbf16, #tpu.memory_space<vmem>>, %arg5: memref<8x32xbf16, #tpu.memory_space<vmem>>, %arg6: memref<8x32xbf16, #tpu.memory_space<vmem>>, %arg7: memref<8x32xbf16, #tpu.memory_space<vmem>>, %arg8: memref<8x32xbf16, #tpu.memory_space<vmem>>, %arg9: memref<8x32xbf16, #tpu.memory_space<vmem>>, %arg10: memref<8x32xbf16, #tpu.memory_space<vmem>>, %arg11: memref<4x32xf32, #tpu.memory_space<vmem>>) attributes {dimension_semantics = [#tpu.dimension_semantics<parallel>], iteration_bounds = array<i64: 1>, scalar_prefetch = 0 : i64, scratch_operands = 0 : i64, tpu.core_type = #tpu.core_type<tc>, window_params = [{pipeline_mode = #tpu.pipeline_mode<synchronous>, transform_indices = @transform_0, window_bounds = array<i64: 9, 4, 8>}, {transform_indices = @transform_1, window_bounds = array<i64: 8, 32>}, {transform_indices = @transform_2, window_bounds = array<i64: 8, 32>}, {transform_indices = @transform_3, window_bounds = array<i64: 8, 32>}, {transform_indices = @transform_4, window_bounds = array<i64: 8, 32>}, {transform_indices = @transform_5, window_bounds = array<i64: 8, 32>}, {transform_indices = @transform_6, window_bounds = array<i64: 8, 32>}, {transform_indices = @transform_7, window_bounds = array<i64: 8, 32>}, {transform_indices = @transform_8, window_bounds = array<i64: 8, 32>}, {transform_indices = @transform_9, window_bounds = array<i64: 8, 32>}, {transform_indices = @transform_10, window_bounds = array<i64: 4, 32>}]} {
    %cst = arith.constant 0.000000e+00 : f32
    %0 = vector.broadcast %cst : f32 to vector<4x32xf32>
    %c0 = arith.constant 0 : index
    %c0_0 = arith.constant 0 : index
    %1 = vector.load %arg2[%c0, %c0_0] : memref<8x32xbf16, #tpu.memory_space<vmem>>, vector<8x32xbf16>
    %c0_1 = arith.constant 0 : index
    %c0_2 = arith.constant 0 : index
    %c0_3 = arith.constant 0 : index
    %2 = vector.load %arg1[%c0_1, %c0_2, %c0_3] : memref<9x4x8xbf16, #tpu.memory_space<vmem>>, vector<1x4x8xbf16>
    %3 = vector.shape_cast %2 : vector<1x4x8xbf16> to vector<4x8xbf16>
    %cst_4 = arith.constant dense<0.000000e+00> : vector<4x32xf32>
    %4 = tpu.matmul %3, %1, %cst_4 {dimension_numbers = #tpu.dot_dimension_numbers<[1], [0], [0], [1], [0, 0, 1, 1], [], []>} : vector<4x8xbf16>, vector<8x32xbf16>, vector<4x32xf32> -> vector<4x32xf32>
    %5 = arith.addf %0, %4 : vector<4x32xf32>
    %c0_5 = arith.constant 0 : index
    %c0_6 = arith.constant 0 : index
    %6 = vector.load %arg3[%c0_5, %c0_6] : memref<8x32xbf16, #tpu.memory_space<vmem>>, vector<8x32xbf16>
    %c1 = arith.constant 1 : index
    %c0_7 = arith.constant 0 : index
    %c0_8 = arith.constant 0 : index
    %7 = vector.load %arg1[%c1, %c0_7, %c0_8] : memref<9x4x8xbf16, #tpu.memory_space<vmem>>, vector<1x4x8xbf16>
    %8 = vector.shape_cast %7 : vector<1x4x8xbf16> to vector<4x8xbf16>
    %cst_9 = arith.constant dense<0.000000e+00> : vector<4x32xf32>
    %9 = tpu.matmul %8, %6, %cst_9 {dimension_numbers = #tpu.dot_dimension_numbers<[1], [0], [0], [1], [0, 0, 1, 1], [], []>} : vector<4x8xbf16>, vector<8x32xbf16>, vector<4x32xf32> -> vector<4x32xf32>
    %10 = arith.addf %5, %9 : vector<4x32xf32>
    %c0_10 = arith.constant 0 : index
    %c0_11 = arith.constant 0 : index
    %11 = vector.load %arg4[%c0_10, %c0_11] : memref<8x32xbf16, #tpu.memory_space<vmem>>, vector<8x32xbf16>
    %c2 = arith.constant 2 : index
    %c0_12 = arith.constant 0 : index
    %c0_13 = arith.constant 0 : index
    %12 = vector.load %arg1[%c2, %c0_12, %c0_13] : memref<9x4x8xbf16, #tpu.memory_space<vmem>>, vector<1x4x8xbf16>
    %13 = vector.shape_cast %12 : vector<1x4x8xbf16> to vector<4x8xbf16>
    %cst_14 = arith.constant dense<0.000000e+00> : vector<4x32xf32>
    %14 = tpu.matmul %13, %11, %cst_14 {dimension_numbers = #tpu.dot_dimension_numbers<[1], [0], [0], [1], [0, 0, 1, 1], [], []>} : vector<4x8xbf16>, vector<8x32xbf16>, vector<4x32xf32> -> vector<4x32xf32>
    %15 = arith.addf %10, %14 : vector<4x32xf32>
    %c0_15 = arith.constant 0 : index
    %c0_16 = arith.constant 0 : index
    %16 = vector.load %arg5[%c0_15, %c0_16] : memref<8x32xbf16, #tpu.memory_space<vmem>>, vector<8x32xbf16>
    %c3 = arith.constant 3 : index
    %c0_17 = arith.constant 0 : index
    %c0_18 = arith.constant 0 : index
    %17 = vector.load %arg1[%c3, %c0_17, %c0_18] : memref<9x4x8xbf16, #tpu.memory_space<vmem>>, vector<1x4x8xbf16>
    %18 = vector.shape_cast %17 : vector<1x4x8xbf16> to vector<4x8xbf16>
    %cst_19 = arith.constant dense<0.000000e+00> : vector<4x32xf32>
    %19 = tpu.matmul %18, %16, %cst_19 {dimension_numbers = #tpu.dot_dimension_numbers<[1], [0], [0], [1], [0, 0, 1, 1], [], []>} : vector<4x8xbf16>, vector<8x32xbf16>, vector<4x32xf32> -> vector<4x32xf32>
    %20 = arith.addf %15, %19 : vector<4x32xf32>
    %c0_20 = arith.constant 0 : index
    %c0_21 = arith.constant 0 : index
    %21 = vector.load %arg6[%c0_20, %c0_21] : memref<8x32xbf16, #tpu.memory_space<vmem>>, vector<8x32xbf16>
    %c4 = arith.constant 4 : index
    %c0_22 = arith.constant 0 : index
    %c0_23 = arith.constant 0 : index
    %22 = vector.load %arg1[%c4, %c0_22, %c0_23] : memref<9x4x8xbf16, #tpu.memory_space<vmem>>, vector<1x4x8xbf16>
    %23 = vector.shape_cast %22 : vector<1x4x8xbf16> to vector<4x8xbf16>
    %cst_24 = arith.constant dense<0.000000e+00> : vector<4x32xf32>
    %24 = tpu.matmul %23, %21, %cst_24 {dimension_numbers = #tpu.dot_dimension_numbers<[1], [0], [0], [1], [0, 0, 1, 1], [], []>} : vector<4x8xbf16>, vector<8x32xbf16>, vector<4x32xf32> -> vector<4x32xf32>
    %25 = arith.addf %20, %24 : vector<4x32xf32>
    %c0_25 = arith.constant 0 : index
    %c0_26 = arith.constant 0 : index
    %26 = vector.load %arg7[%c0_25, %c0_26] : memref<8x32xbf16, #tpu.memory_space<vmem>>, vector<8x32xbf16>
    %c5 = arith.constant 5 : index
    %c0_27 = arith.constant 0 : index
    %c0_28 = arith.constant 0 : index
    %27 = vector.load %arg1[%c5, %c0_27, %c0_28] : memref<9x4x8xbf16, #tpu.memory_space<vmem>>, vector<1x4x8xbf16>
    %28 = vector.shape_cast %27 : vector<1x4x8xbf16> to vector<4x8xbf16>
    %cst_29 = arith.constant dense<0.000000e+00> : vector<4x32xf32>
    %29 = tpu.matmul %28, %26, %cst_29 {dimension_numbers = #tpu.dot_dimension_numbers<[1], [0], [0], [1], [0, 0, 1, 1], [], []>} : vector<4x8xbf16>, vector<8x32xbf16>, vector<4x32xf32> -> vector<4x32xf32>
    %30 = arith.addf %25, %29 : vector<4x32xf32>
    %c0_30 = arith.constant 0 : index
    %c0_31 = arith.constant 0 : index
    %31 = vector.load %arg8[%c0_30, %c0_31] : memref<8x32xbf16, #tpu.memory_space<vmem>>, vector<8x32xbf16>
    %c6 = arith.constant 6 : index
    %c0_32 = arith.constant 0 : index
    %c0_33 = arith.constant 0 : index
    %32 = vector.load %arg1[%c6, %c0_32, %c0_33] : memref<9x4x8xbf16, #tpu.memory_space<vmem>>, vector<1x4x8xbf16>
    %33 = vector.shape_cast %32 : vector<1x4x8xbf16> to vector<4x8xbf16>
    %cst_34 = arith.constant dense<0.000000e+00> : vector<4x32xf32>
    %34 = tpu.matmul %33, %31, %cst_34 {dimension_numbers = #tpu.dot_dimension_numbers<[1], [0], [0], [1], [0, 0, 1, 1], [], []>} : vector<4x8xbf16>, vector<8x32xbf16>, vector<4x32xf32> -> vector<4x32xf32>
    %35 = arith.addf %30, %34 : vector<4x32xf32>
    %c0_35 = arith.constant 0 : index
    %c0_36 = arith.constant 0 : index
    %36 = vector.load %arg9[%c0_35, %c0_36] : memref<8x32xbf16, #tpu.memory_space<vmem>>, vector<8x32xbf16>
    %c7 = arith.constant 7 : index
    %c0_37 = arith.constant 0 : index
    %c0_38 = arith.constant 0 : index
    %37 = vector.load %arg1[%c7, %c0_37, %c0_38] : memref<9x4x8xbf16, #tpu.memory_space<vmem>>, vector<1x4x8xbf16>
    %38 = vector.shape_cast %37 : vector<1x4x8xbf16> to vector<4x8xbf16>
    %cst_39 = arith.constant dense<0.000000e+00> : vector<4x32xf32>
    %39 = tpu.matmul %38, %36, %cst_39 {dimension_numbers = #tpu.dot_dimension_numbers<[1], [0], [0], [1], [0, 0, 1, 1], [], []>} : vector<4x8xbf16>, vector<8x32xbf16>, vector<4x32xf32> -> vector<4x32xf32>
    %40 = arith.addf %35, %39 : vector<4x32xf32>
    %c0_40 = arith.constant 0 : index
    %c0_41 = arith.constant 0 : index
    %41 = vector.load %arg10[%c0_40, %c0_41] : memref<8x32xbf16, #tpu.memory_space<vmem>>, vector<8x32xbf16>
    %c8 = arith.constant 8 : index
    %c0_42 = arith.constant 0 : index
    %c0_43 = arith.constant 0 : index
    %42 = vector.load %arg1[%c8, %c0_42, %c0_43] : memref<9x4x8xbf16, #tpu.memory_space<vmem>>, vector<1x4x8xbf16>
    %43 = vector.shape_cast %42 : vector<1x4x8xbf16> to vector<4x8xbf16>
    %cst_44 = arith.constant dense<0.000000e+00> : vector<4x32xf32>
    %44 = tpu.matmul %43, %41, %cst_44 {dimension_numbers = #tpu.dot_dimension_numbers<[1], [0], [0], [1], [0, 0, 1, 1], [], []>} : vector<4x8xbf16>, vector<8x32xbf16>, vector<4x32xf32> -> vector<4x32xf32>
    %45 = arith.addf %40, %44 : vector<4x32xf32>
    %c0_45 = arith.constant 0 : index
    %c0_46 = arith.constant 0 : index
    %46 = vector.load %arg11[%c0_45, %c0_46] : memref<4x32xf32, #tpu.memory_space<vmem>>, vector<4x32xf32>
    tpu.vector_store %arg11[%c0_45, %c0_46], %45 {strides = array<i32>} : memref<4x32xf32, #tpu.memory_space<vmem>>, vector<4x32xf32>,
    return
  }
  func.func @transform_0(%arg0: i32) -> (i32, i32, i32) {
    %c0_i32 = arith.constant 0 : i32
    %c0_i32_0 = arith.constant 0 : i32
    %c0_i32_1 = arith.constant 0 : i32
    %c0_i32_2 = arith.constant 0 : i32
    return %c0_i32, %c0_i32_0, %c0_i32_1 : i32, i32, i32
  }
  func.func @transform_1(%arg0: i32) -> (i32, i32) {
    %c0_i32 = arith.constant 0 : i32
    %c0_i32_0 = arith.constant 0 : i32
    return %c0_i32, %arg0 : i32, i32
  }
  func.func @transform_2(%arg0: i32) -> (i32, i32) {
    %c0_i32 = arith.constant 0 : i32
    %c0_i32_0 = arith.constant 0 : i32
    return %c0_i32, %arg0 : i32, i32
  }
  func.func @transform_3(%arg0: i32) -> (i32, i32) {
    %c0_i32 = arith.constant 0 : i32
    %c0_i32_0 = arith.constant 0 : i32
    return %c0_i32, %arg0 : i32, i32
  }
  func.func @transform_4(%arg0: i32) -> (i32, i32) {
    %c0_i32 = arith.constant 0 : i32
    %c0_i32_0 = arith.constant 0 : i32
    return %c0_i32, %arg0 : i32, i32
  }
  func.func @transform_5(%arg0: i32) -> (i32, i32) {
    %c0_i32 = arith.constant 0 : i32
    %c0_i32_0 = arith.constant 0 : i32
    return %c0_i32, %arg0 : i32, i32
  }
  func.func @transform_6(%arg0: i32) -> (i32, i32) {
    %c0_i32 = arith.constant 0 : i32
    %c0_i32_0 = arith.constant 0 : i32
    return %c0_i32, %arg0 : i32, i32
  }
  func.func @transform_7(%arg0: i32) -> (i32, i32) {
    %c0_i32 = arith.constant 0 : i32
    %c0_i32_0 = arith.constant 0 : i32
    return %c0_i32, %arg0 : i32, i32
  }
  func.func @transform_8(%arg0: i32) -> (i32, i32) {
    %c0_i32 = arith.constant 0 : i32
    %c0_i32_0 = arith.constant 0 : i32
    return %c0_i32, %arg0 : i32, i32
  }
  func.func @transform_9(%arg0: i32) -> (i32, i32) {
    %c0_i32 = arith.constant 0 : i32
    %c0_i32_0 = arith.constant 0 : i32
    return %c0_i32, %arg0 : i32, i32
  }
  func.func @transform_10(%arg0: i32) -> (i32, i32) {
    %c0_i32 = arith.constant 0 : i32
    %c0_i32_0 = arith.constant 0 : i32
    return %c0_i32, %arg0 : i32, i32
  }
}

module attributes {stable_mosaic.version = 11 : i64} {
  func.func @kernel(%arg0: i32, %arg1: memref<1x8x12xbf16, #tpu.memory_space<vmem>>, %arg2: memref<12x1xf32, #tpu.memory_space<vmem>>, %arg3: memref<12x1xf32, #tpu.memory_space<vmem>>, %arg4: memref<8x1xf32, #tpu.memory_space<vmem>>, %arg5: memref<8x1xf32, #tpu.memory_space<vmem>>, %arg6: memref<12x32xf32, #tpu.memory_space<vmem>>, %arg7: memref<8x32xbf16, #tpu.memory_space<vmem>>) attributes {dimension_semantics = [#tpu.dimension_semantics<parallel>], iteration_bounds = array<i64: 1>, scalar_prefetch = 0 : i64, scratch_operands = 0 : i64, tpu.core_type = #tpu.core_type<tc>, window_params = [{pipeline_mode = #tpu.pipeline_mode<synchronous>, transform_indices = @transform_0, window_bounds = array<i64: 1, 8, 12>}, {pipeline_mode = #tpu.pipeline_mode<synchronous>, transform_indices = @transform_1, window_bounds = array<i64: 12, 1>}, {pipeline_mode = #tpu.pipeline_mode<synchronous>, transform_indices = @transform_2, window_bounds = array<i64: 12, 1>}, {pipeline_mode = #tpu.pipeline_mode<synchronous>, transform_indices = @transform_3, window_bounds = array<i64: 8, 1>}, {pipeline_mode = #tpu.pipeline_mode<synchronous>, transform_indices = @transform_4, window_bounds = array<i64: 8, 1>}, {transform_indices = @transform_5, window_bounds = array<i64: 12, 32>}, {transform_indices = @transform_6, window_bounds = array<i64: 8, 32>}]} {
    %cst = arith.constant 0.000000e+00 : f32
    %0 = vector.broadcast %cst : f32 to vector<8x32xf32>
    %c0 = arith.constant 0 : index
    %c0_0 = arith.constant 0 : index
    %1 = vector.load %arg6[%c0, %c0_0] : memref<12x32xf32, #tpu.memory_space<vmem>>, vector<12x32xf32>
    %c0_1 = arith.constant 0 : index
    %c0_2 = arith.constant 0 : index
    %2 = vector.load %arg2[%c0_1, %c0_2] : memref<12x1xf32, #tpu.memory_space<vmem>>, vector<12x1xf32>
    %3 = vector.broadcast %2 : vector<12x1xf32> to vector<12x32xf32>
    %4 = arith.mulf %1, %3 : vector<12x32xf32>
    %c0_3 = arith.constant 0 : index
    %c0_4 = arith.constant 0 : index
    %5 = vector.load %arg3[%c0_3, %c0_4] : memref<12x1xf32, #tpu.memory_space<vmem>>, vector<12x1xf32>
    %6 = vector.broadcast %5 : vector<12x1xf32> to vector<12x32xf32>
    %7 = arith.addf %4, %6 : vector<12x32xf32>
    %cst_5 = arith.constant 0.000000e+00 : f32
    %8 = vector.broadcast %cst_5 : f32 to vector<12x32xf32>
    %9 = arith.maximumf %7, %8 : vector<12x32xf32>
    %c0_6 = arith.constant 0 : index
    %c0_7 = arith.constant 0 : index
    %c0_8 = arith.constant 0 : index
    %10 = vector.load %arg1[%c0_6, %c0_7, %c0_8] : memref<1x8x12xbf16, #tpu.memory_space<vmem>>, vector<1x8x12xbf16>
    %11 = vector.shape_cast %10 : vector<1x8x12xbf16> to vector<8x12xbf16>
    %12 = arith.truncf %9 : vector<12x32xf32> to vector<12x32xbf16>
    %cst_9 = arith.constant dense<0.000000e+00> : vector<8x32xf32>
    %13 = tpu.matmul %11, %12, %cst_9 {dimension_numbers = #tpu.dot_dimension_numbers<[1], [0], [0], [1], [0, 0, 1, 1], [], []>} : vector<8x12xbf16>, vector<12x32xbf16>, vector<8x32xf32> -> vector<8x32xf32>
    %14 = arith.addf %0, %13 : vector<8x32xf32>
    %c0_10 = arith.constant 0 : index
    %c0_11 = arith.constant 0 : index
    %15 = vector.load %arg4[%c0_10, %c0_11] : memref<8x1xf32, #tpu.memory_space<vmem>>, vector<8x1xf32>
    %16 = vector.broadcast %15 : vector<8x1xf32> to vector<8x32xf32>
    %17 = arith.mulf %14, %16 : vector<8x32xf32>
    %c0_12 = arith.constant 0 : index
    %c0_13 = arith.constant 0 : index
    %18 = vector.load %arg5[%c0_12, %c0_13] : memref<8x1xf32, #tpu.memory_space<vmem>>, vector<8x1xf32>
    %19 = vector.broadcast %18 : vector<8x1xf32> to vector<8x32xf32>
    %20 = arith.addf %17, %19 : vector<8x32xf32>
    %cst_14 = arith.constant 0.000000e+00 : f32
    %21 = vector.broadcast %cst_14 : f32 to vector<8x32xf32>
    %22 = arith.maximumf %20, %21 : vector<8x32xf32>
    %23 = arith.truncf %22 : vector<8x32xf32> to vector<8x32xbf16>
    %c0_15 = arith.constant 0 : index
    %c0_16 = arith.constant 0 : index
    %24 = vector.load %arg7[%c0_15, %c0_16] : memref<8x32xbf16, #tpu.memory_space<vmem>>, vector<8x32xbf16>
    tpu.vector_store %arg7[%c0_15, %c0_16], %23 {strides = array<i32>} : memref<8x32xbf16, #tpu.memory_space<vmem>>, vector<8x32xbf16>,
    return
  }
  func.func @transform_0(%arg0: i32) -> (i32, i32, i32) {
    %c0_i32 = arith.constant 0 : i32
    %c0_i32_0 = arith.constant 0 : i32
    %c0_i32_1 = arith.constant 0 : i32
    %c0_i32_2 = arith.constant 0 : i32
    return %c0_i32, %c0_i32_0, %c0_i32_1 : i32, i32, i32
  }
  func.func @transform_1(%arg0: i32) -> (i32, i32) {
    %c0_i32 = arith.constant 0 : i32
    %c0_i32_0 = arith.constant 0 : i32
    %c0_i32_1 = arith.constant 0 : i32
    return %c0_i32, %c0_i32_0 : i32, i32
  }
  func.func @transform_2(%arg0: i32) -> (i32, i32) {
    %c0_i32 = arith.constant 0 : i32
    %c0_i32_0 = arith.constant 0 : i32
    %c0_i32_1 = arith.constant 0 : i32
    return %c0_i32, %c0_i32_0 : i32, i32
  }
  func.func @transform_3(%arg0: i32) -> (i32, i32) {
    %c0_i32 = arith.constant 0 : i32
    %c0_i32_0 = arith.constant 0 : i32
    %c0_i32_1 = arith.constant 0 : i32
    return %c0_i32, %c0_i32_0 : i32, i32
  }
  func.func @transform_4(%arg0: i32) -> (i32, i32) {
    %c0_i32 = arith.constant 0 : i32
    %c0_i32_0 = arith.constant 0 : i32
    %c0_i32_1 = arith.constant 0 : i32
    return %c0_i32, %c0_i32_0 : i32, i32
  }
  func.func @transform_5(%arg0: i32) -> (i32, i32) {
    %c0_i32 = arith.constant 0 : i32
    %c0_i32_0 = arith.constant 0 : i32
    return %c0_i32, %arg0 : i32, i32
  }
  func.func @transform_6(%arg0: i32) -> (i32, i32) {
    %c0_i32 = arith.constant 0 : i32
    %c0_i32_0 = arith.constant 0 : i32
    return %c0_i32, %arg0 : i32, i32
  }
}

module attributes {stable_mosaic.version = 11 : i64} {
  func.func @kernel(%arg0: i32, %arg1: memref<1x8x16xbf16, #tpu.memory_space<vmem>>, %arg2: memref<16x1xf32, #tpu.memory_space<vmem>>, %arg3: memref<16x1xf32, #tpu.memory_space<vmem>>, %arg4: memref<16x32xf32, #tpu.memory_space<vmem>>, %arg5: memref<8x32xf32, #tpu.memory_space<vmem>>) attributes {dimension_semantics = [#tpu.dimension_semantics<parallel>], iteration_bounds = array<i64: 1>, scalar_prefetch = 0 : i64, scratch_operands = 0 : i64, tpu.core_type = #tpu.core_type<tc>, window_params = [{pipeline_mode = #tpu.pipeline_mode<synchronous>, transform_indices = @transform_0, window_bounds = array<i64: 1, 8, 16>}, {pipeline_mode = #tpu.pipeline_mode<synchronous>, transform_indices = @transform_1, window_bounds = array<i64: 16, 1>}, {pipeline_mode = #tpu.pipeline_mode<synchronous>, transform_indices = @transform_2, window_bounds = array<i64: 16, 1>}, {transform_indices = @transform_3, window_bounds = array<i64: 16, 32>}, {transform_indices = @transform_4, window_bounds = array<i64: 8, 32>}]} {
    %cst = arith.constant 0.000000e+00 : f32
    %0 = vector.broadcast %cst : f32 to vector<8x32xf32>
    %c0 = arith.constant 0 : index
    %c0_0 = arith.constant 0 : index
    %1 = vector.load %arg4[%c0, %c0_0] : memref<16x32xf32, #tpu.memory_space<vmem>>, vector<16x32xf32>
    %c0_1 = arith.constant 0 : index
    %c0_2 = arith.constant 0 : index
    %2 = vector.load %arg2[%c0_1, %c0_2] : memref<16x1xf32, #tpu.memory_space<vmem>>, vector<16x1xf32>
    %3 = vector.broadcast %2 : vector<16x1xf32> to vector<16x32xf32>
    %4 = arith.mulf %1, %3 : vector<16x32xf32>
    %c0_3 = arith.constant 0 : index
    %c0_4 = arith.constant 0 : index
    %5 = vector.load %arg3[%c0_3, %c0_4] : memref<16x1xf32, #tpu.memory_space<vmem>>, vector<16x1xf32>
    %6 = vector.broadcast %5 : vector<16x1xf32> to vector<16x32xf32>
    %7 = arith.addf %4, %6 : vector<16x32xf32>
    %cst_5 = arith.constant 0.000000e+00 : f32
    %8 = vector.broadcast %cst_5 : f32 to vector<16x32xf32>
    %9 = arith.maximumf %7, %8 : vector<16x32xf32>
    %c0_6 = arith.constant 0 : index
    %c0_7 = arith.constant 0 : index
    %c0_8 = arith.constant 0 : index
    %10 = vector.load %arg1[%c0_6, %c0_7, %c0_8] : memref<1x8x16xbf16, #tpu.memory_space<vmem>>, vector<1x8x16xbf16>
    %11 = vector.shape_cast %10 : vector<1x8x16xbf16> to vector<8x16xbf16>
    %12 = arith.truncf %9 : vector<16x32xf32> to vector<16x32xbf16>
    %cst_9 = arith.constant dense<0.000000e+00> : vector<8x32xf32>
    %13 = tpu.matmul %11, %12, %cst_9 {dimension_numbers = #tpu.dot_dimension_numbers<[1], [0], [0], [1], [0, 0, 1, 1], [], []>} : vector<8x16xbf16>, vector<16x32xbf16>, vector<8x32xf32> -> vector<8x32xf32>
    %14 = arith.addf %0, %13 : vector<8x32xf32>
    %c0_10 = arith.constant 0 : index
    %c0_11 = arith.constant 0 : index
    %15 = vector.load %arg5[%c0_10, %c0_11] : memref<8x32xf32, #tpu.memory_space<vmem>>, vector<8x32xf32>
    tpu.vector_store %arg5[%c0_10, %c0_11], %14 {strides = array<i32>} : memref<8x32xf32, #tpu.memory_space<vmem>>, vector<8x32xf32>,
    return
  }
  func.func @transform_0(%arg0: i32) -> (i32, i32, i32) {
    %c0_i32 = arith.constant 0 : i32
    %c0_i32_0 = arith.constant 0 : i32
    %c0_i32_1 = arith.constant 0 : i32
    %c0_i32_2 = arith.constant 0 : i32
    return %c0_i32, %c0_i32_0, %c0_i32_1 : i32, i32, i32
  }
  func.func @transform_1(%arg0: i32) -> (i32, i32) {
    %c0_i32 = arith.constant 0 : i32
    %c0_i32_0 = arith.constant 0 : i32
    %c0_i32_1 = arith.constant 0 : i32
    return %c0_i32, %c0_i32_0 : i32, i32
  }
  func.func @transform_2(%arg0: i32) -> (i32, i32) {
    %c0_i32 = arith.constant 0 : i32
    %c0_i32_0 = arith.constant 0 : i32
    %c0_i32_1 = arith.constant 0 : i32
    return %c0_i32, %c0_i32_0 : i32, i32
  }
  func.func @transform_3(%arg0: i32) -> (i32, i32) {
    %c0_i32 = arith.constant 0 : i32
    %c0_i32_0 = arith.constant 0 : i32
    return %c0_i32, %arg0 : i32, i32
  }
  func.func @transform_4(%arg0: i32) -> (i32, i32) {
    %c0_i32 = arith.constant 0 : i32
    %c0_i32_0 = arith.constant 0 : i32
    return %c0_i32, %arg0 : i32, i32
  }
}

module attributes {stable_mosaic.version = 11 : i64} {
  func.func @kernel(%arg0: i32, %arg1: memref<1x8x8xbf16, #tpu.memory_space<vmem>>, %arg2: memref<8x1xf32, #tpu.memory_space<vmem>>, %arg3: memref<8x1xf32, #tpu.memory_space<vmem>>, %arg4: memref<8x1xf32, #tpu.memory_space<vmem>>, %arg5: memref<8x1xf32, #tpu.memory_space<vmem>>, %arg6: memref<8x8xf32, #tpu.memory_space<vmem>>, %arg7: memref<8x8xbf16, #tpu.memory_space<vmem>>) attributes {dimension_semantics = [#tpu.dimension_semantics<parallel>], iteration_bounds = array<i64: 1>, scalar_prefetch = 0 : i64, scratch_operands = 0 : i64, tpu.core_type = #tpu.core_type<tc>, window_params = [{pipeline_mode = #tpu.pipeline_mode<synchronous>, transform_indices = @transform_0, window_bounds = array<i64: 1, 8, 8>}, {pipeline_mode = #tpu.pipeline_mode<synchronous>, transform_indices = @transform_1, window_bounds = array<i64: 8, 1>}, {pipeline_mode = #tpu.pipeline_mode<synchronous>, transform_indices = @transform_2, window_bounds = array<i64: 8, 1>}, {pipeline_mode = #tpu.pipeline_mode<synchronous>, transform_indices = @transform_3, window_bounds = array<i64: 8, 1>}, {pipeline_mode = #tpu.pipeline_mode<synchronous>, transform_indices = @transform_4, window_bounds = array<i64: 8, 1>}, {transform_indices = @transform_5, window_bounds = array<i64: 8, 8>}, {transform_indices = @transform_6, window_bounds = array<i64: 8, 8>}]} {
    %cst = arith.constant 0.000000e+00 : f32
    %0 = vector.broadcast %cst : f32 to vector<8x8xf32>
    %c0 = arith.constant 0 : index
    %c0_0 = arith.constant 0 : index
    %1 = vector.load %arg6[%c0, %c0_0] : memref<8x8xf32, #tpu.memory_space<vmem>>, vector<8x8xf32>
    %c0_1 = arith.constant 0 : index
    %c0_2 = arith.constant 0 : index
    %2 = vector.load %arg2[%c0_1, %c0_2] : memref<8x1xf32, #tpu.memory_space<vmem>>, vector<8x1xf32>
    %3 = vector.broadcast %2 : vector<8x1xf32> to vector<8x8xf32>
    %4 = arith.mulf %1, %3 : vector<8x8xf32>
    %c0_3 = arith.constant 0 : index
    %c0_4 = arith.constant 0 : index
    %5 = vector.load %arg3[%c0_3, %c0_4] : memref<8x1xf32, #tpu.memory_space<vmem>>, vector<8x1xf32>
    %6 = vector.broadcast %5 : vector<8x1xf32> to vector<8x8xf32>
    %7 = arith.addf %4, %6 : vector<8x8xf32>
    %cst_5 = arith.constant 0.000000e+00 : f32
    %8 = vector.broadcast %cst_5 : f32 to vector<8x8xf32>
    %9 = arith.maximumf %7, %8 : vector<8x8xf32>
    %c0_6 = arith.constant 0 : index
    %c0_7 = arith.constant 0 : index
    %c0_8 = arith.constant 0 : index
    %10 = vector.load %arg1[%c0_6, %c0_7, %c0_8] : memref<1x8x8xbf16, #tpu.memory_space<vmem>>, vector<1x8x8xbf16>
    %11 = vector.shape_cast %10 : vector<1x8x8xbf16> to vector<8x8xbf16>
    %12 = arith.truncf %9 : vector<8x8xf32> to vector<8x8xbf16>
    %cst_9 = arith.constant dense<0.000000e+00> : vector<8x8xf32>
    %13 = tpu.matmul %11, %12, %cst_9 {dimension_numbers = #tpu.dot_dimension_numbers<[1], [0], [0], [1], [0, 0, 1, 1], [], []>} : vector<8x8xbf16>, vector<8x8xbf16>, vector<8x8xf32> -> vector<8x8xf32>
    %14 = arith.addf %0, %13 : vector<8x8xf32>
    %c0_10 = arith.constant 0 : index
    %c0_11 = arith.constant 0 : index
    %15 = vector.load %arg4[%c0_10, %c0_11] : memref<8x1xf32, #tpu.memory_space<vmem>>, vector<8x1xf32>
    %16 = vector.broadcast %15 : vector<8x1xf32> to vector<8x8xf32>
    %17 = arith.mulf %14, %16 : vector<8x8xf32>
    %c0_12 = arith.constant 0 : index
    %c0_13 = arith.constant 0 : index
    %18 = vector.load %arg5[%c0_12, %c0_13] : memref<8x1xf32, #tpu.memory_space<vmem>>, vector<8x1xf32>
    %19 = vector.broadcast %18 : vector<8x1xf32> to vector<8x8xf32>
    %20 = arith.addf %17, %19 : vector<8x8xf32>
    %cst_14 = arith.constant 0.000000e+00 : f32
    %21 = vector.broadcast %cst_14 : f32 to vector<8x8xf32>
    %22 = arith.maximumf %20, %21 : vector<8x8xf32>
    %23 = arith.truncf %22 : vector<8x8xf32> to vector<8x8xbf16>
    %c0_15 = arith.constant 0 : index
    %c0_16 = arith.constant 0 : index
    %24 = vector.load %arg7[%c0_15, %c0_16] : memref<8x8xbf16, #tpu.memory_space<vmem>>, vector<8x8xbf16>
    tpu.vector_store %arg7[%c0_15, %c0_16], %23 {strides = array<i32>} : memref<8x8xbf16, #tpu.memory_space<vmem>>, vector<8x8xbf16>,
    return
  }
  func.func @transform_0(%arg0: i32) -> (i32, i32, i32) {
    %c0_i32 = arith.constant 0 : i32
    %c0_i32_0 = arith.constant 0 : i32
    %c0_i32_1 = arith.constant 0 : i32
    %c0_i32_2 = arith.constant 0 : i32
    return %c0_i32, %c0_i32_0, %c0_i32_1 : i32, i32, i32
  }
  func.func @transform_1(%arg0: i32) -> (i32, i32) {
    %c0_i32 = arith.constant 0 : i32
    %c0_i32_0 = arith.constant 0 : i32
    %c0_i32_1 = arith.constant 0 : i32
    return %c0_i32, %c0_i32_0 : i32, i32
  }
  func.func @transform_2(%arg0: i32) -> (i32, i32) {
    %c0_i32 = arith.constant 0 : i32
    %c0_i32_0 = arith.constant 0 : i32
    %c0_i32_1 = arith.constant 0 : i32
    return %c0_i32, %c0_i32_0 : i32, i32
  }
  func.func @transform_3(%arg0: i32) -> (i32, i32) {
    %c0_i32 = arith.constant 0 : i32
    %c0_i32_0 = arith.constant 0 : i32
    %c0_i32_1 = arith.constant 0 : i32
    return %c0_i32, %c0_i32_0 : i32, i32
  }
  func.func @transform_4(%arg0: i32) -> (i32, i32) {
    %c0_i32 = arith.constant 0 : i32
    %c0_i32_0 = arith.constant 0 : i32
    %c0_i32_1 = arith.constant 0 : i32
    return %c0_i32, %c0_i32_0 : i32, i32
  }
  func.func @transform_5(%arg0: i32) -> (i32, i32) {
    %c0_i32 = arith.constant 0 : i32
    %c0_i32_0 = arith.constant 0 : i32
    return %c0_i32, %arg0 : i32, i32
  }
  func.func @transform_6(%arg0: i32) -> (i32, i32) {
    %c0_i32 = arith.constant 0 : i32
    %c0_i32_0 = arith.constant 0 : i32
    return %c0_i32, %arg0 : i32, i32
  }
}

module attributes {stable_mosaic.version = 11 : i64} {
  func.func @kernel(%arg0: i32, %arg1: memref<8x8xf32, #tpu.memory_space<vmem>>, %arg2: memref<8x8xf32, #tpu.memory_space<vmem>>, %arg3: memref<8x8xf32, #tpu.memory_space<vmem>>, %arg4: memref<8x8xf32, #tpu.memory_space<vmem>>, %arg5: memref<8x8xf32, #tpu.memory_space<vmem>>) attributes {dimension_semantics = [#tpu.dimension_semantics<parallel>], iteration_bounds = array<i64: 1>, scalar_prefetch = 0 : i64, scratch_operands = 0 : i64, tpu.core_type = #tpu.core_type<tc>, window_params = [{pipeline_mode = #tpu.pipeline_mode<synchronous>, transform_indices = @transform_0, window_bounds = array<i64: 8, 8>}, {pipeline_mode = #tpu.pipeline_mode<synchronous>, transform_indices = @transform_1, window_bounds = array<i64: 8, 8>}, {pipeline_mode = #tpu.pipeline_mode<synchronous>, transform_indices = @transform_2, window_bounds = array<i64: 8, 8>}, {pipeline_mode = #tpu.pipeline_mode<synchronous>, transform_indices = @transform_3, window_bounds = array<i64: 8, 8>}, {pipeline_mode = #tpu.pipeline_mode<synchronous>, transform_indices = @transform_4, window_bounds = array<i64: 8, 8>}]} {
    %c0 = arith.constant 0 : index
    %c0_0 = arith.constant 0 : index
    %0 = vector.load %arg1[%c0, %c0_0] : memref<8x8xf32, #tpu.memory_space<vmem>>, vector<8x8xf32>
    %c0_1 = arith.constant 0 : index
    %c0_2 = arith.constant 0 : index
    %1 = vector.load %arg2[%c0_1, %c0_2] : memref<8x8xf32, #tpu.memory_space<vmem>>, vector<8x8xf32>
    %2 = arith.addf %0, %1 : vector<8x8xf32>
    %c0_3 = arith.constant 0 : index
    %c0_4 = arith.constant 0 : index
    %3 = vector.load %arg3[%c0_3, %c0_4] : memref<8x8xf32, #tpu.memory_space<vmem>>, vector<8x8xf32>
    %4 = arith.addf %2, %3 : vector<8x8xf32>
    %c0_5 = arith.constant 0 : index
    %c0_6 = arith.constant 0 : index
    %5 = vector.load %arg4[%c0_5, %c0_6] : memref<8x8xf32, #tpu.memory_space<vmem>>, vector<8x8xf32>
    %6 = arith.addf %4, %5 : vector<8x8xf32>
    %cst = arith.constant 2.500000e-01 : f32
    %7 = vector.broadcast %cst : f32 to vector<8x8xf32>
    %8 = arith.mulf %6, %7 : vector<8x8xf32>
    %c0_7 = arith.constant 0 : index
    %c0_8 = arith.constant 0 : index
    %9 = vector.load %arg5[%c0_7, %c0_8] : memref<8x8xf32, #tpu.memory_space<vmem>>, vector<8x8xf32>
    tpu.vector_store %arg5[%c0_7, %c0_8], %8 {strides = array<i32>} : memref<8x8xf32, #tpu.memory_space<vmem>>, vector<8x8xf32>,
    return
  }
  func.func @transform_0(%arg0: i32) -> (i32, i32) {
    %c0_i32 = arith.constant 0 : i32
    %c0_i32_0 = arith.constant 0 : i32
    %c0_i32_1 = arith.constant 0 : i32
    return %c0_i32, %c0_i32_0 : i32, i32
  }
  func.func @transform_1(%arg0: i32) -> (i32, i32) {
    %c0_i32 = arith.constant 0 : i32
    %c0_i32_0 = arith.constant 0 : i32
    %c0_i32_1 = arith.constant 0 : i32
    return %c0_i32, %c0_i32_0 : i32, i32
  }
  func.func @transform_2(%arg0: i32) -> (i32, i32) {
    %c0_i32 = arith.constant 0 : i32
    %c0_i32_0 = arith.constant 0 : i32
    %c0_i32_1 = arith.constant 0 : i32
    return %c0_i32, %c0_i32_0 : i32, i32
  }
  func.func @transform_3(%arg0: i32) -> (i32, i32) {
    %c0_i32 = arith.constant 0 : i32
    %c0_i32_0 = arith.constant 0 : i32
    %c0_i32_1 = arith.constant 0 : i32
    return %c0_i32, %c0_i32_0 : i32, i32
  }
  func.func @transform_4(%arg0: i32) -> (i32, i32) {
    %c0_i32 = arith.constant 0 : i32
    %c0_i32_0 = arith.constant 0 : i32
    %c0_i32_1 = arith.constant 0 : i32
    return %c0_i32, %c0_i32_0 : i32, i32
  }
}

module attributes {stable_mosaic.version = 11 : i64} {
  func.func @kernel(%arg0: i32, %arg1: memref<9x4x8xbf16, #tpu.memory_space<vmem>>, %arg2: memref<8x8xbf16, #tpu.memory_space<vmem>>, %arg3: memref<8x8xbf16, #tpu.memory_space<vmem>>, %arg4: memref<8x8xbf16, #tpu.memory_space<vmem>>, %arg5: memref<8x8xbf16, #tpu.memory_space<vmem>>, %arg6: memref<8x8xbf16, #tpu.memory_space<vmem>>, %arg7: memref<8x8xbf16, #tpu.memory_space<vmem>>, %arg8: memref<8x8xbf16, #tpu.memory_space<vmem>>, %arg9: memref<8x8xbf16, #tpu.memory_space<vmem>>, %arg10: memref<8x8xbf16, #tpu.memory_space<vmem>>, %arg11: memref<4x8xf32, #tpu.memory_space<vmem>>) attributes {dimension_semantics = [#tpu.dimension_semantics<parallel>], iteration_bounds = array<i64: 1>, scalar_prefetch = 0 : i64, scratch_operands = 0 : i64, tpu.core_type = #tpu.core_type<tc>, window_params = [{pipeline_mode = #tpu.pipeline_mode<synchronous>, transform_indices = @transform_0, window_bounds = array<i64: 9, 4, 8>}, {transform_indices = @transform_1, window_bounds = array<i64: 8, 8>}, {transform_indices = @transform_2, window_bounds = array<i64: 8, 8>}, {transform_indices = @transform_3, window_bounds = array<i64: 8, 8>}, {transform_indices = @transform_4, window_bounds = array<i64: 8, 8>}, {transform_indices = @transform_5, window_bounds = array<i64: 8, 8>}, {transform_indices = @transform_6, window_bounds = array<i64: 8, 8>}, {transform_indices = @transform_7, window_bounds = array<i64: 8, 8>}, {transform_indices = @transform_8, window_bounds = array<i64: 8, 8>}, {transform_indices = @transform_9, window_bounds = array<i64: 8, 8>}, {transform_indices = @transform_10, window_bounds = array<i64: 4, 8>}]} {
    %cst = arith.constant 0.000000e+00 : f32
    %0 = vector.broadcast %cst : f32 to vector<4x8xf32>
    %c0 = arith.constant 0 : index
    %c0_0 = arith.constant 0 : index
    %1 = vector.load %arg2[%c0, %c0_0] : memref<8x8xbf16, #tpu.memory_space<vmem>>, vector<8x8xbf16>
    %c0_1 = arith.constant 0 : index
    %c0_2 = arith.constant 0 : index
    %c0_3 = arith.constant 0 : index
    %2 = vector.load %arg1[%c0_1, %c0_2, %c0_3] : memref<9x4x8xbf16, #tpu.memory_space<vmem>>, vector<1x4x8xbf16>
    %3 = vector.shape_cast %2 : vector<1x4x8xbf16> to vector<4x8xbf16>
    %cst_4 = arith.constant dense<0.000000e+00> : vector<4x8xf32>
    %4 = tpu.matmul %3, %1, %cst_4 {dimension_numbers = #tpu.dot_dimension_numbers<[1], [0], [0], [1], [0, 0, 1, 1], [], []>} : vector<4x8xbf16>, vector<8x8xbf16>, vector<4x8xf32> -> vector<4x8xf32>
    %5 = arith.addf %0, %4 : vector<4x8xf32>
    %c0_5 = arith.constant 0 : index
    %c0_6 = arith.constant 0 : index
    %6 = vector.load %arg3[%c0_5, %c0_6] : memref<8x8xbf16, #tpu.memory_space<vmem>>, vector<8x8xbf16>
    %c1 = arith.constant 1 : index
    %c0_7 = arith.constant 0 : index
    %c0_8 = arith.constant 0 : index
    %7 = vector.load %arg1[%c1, %c0_7, %c0_8] : memref<9x4x8xbf16, #tpu.memory_space<vmem>>, vector<1x4x8xbf16>
    %8 = vector.shape_cast %7 : vector<1x4x8xbf16> to vector<4x8xbf16>
    %cst_9 = arith.constant dense<0.000000e+00> : vector<4x8xf32>
    %9 = tpu.matmul %8, %6, %cst_9 {dimension_numbers = #tpu.dot_dimension_numbers<[1], [0], [0], [1], [0, 0, 1, 1], [], []>} : vector<4x8xbf16>, vector<8x8xbf16>, vector<4x8xf32> -> vector<4x8xf32>
    %10 = arith.addf %5, %9 : vector<4x8xf32>
    %c0_10 = arith.constant 0 : index
    %c0_11 = arith.constant 0 : index
    %11 = vector.load %arg4[%c0_10, %c0_11] : memref<8x8xbf16, #tpu.memory_space<vmem>>, vector<8x8xbf16>
    %c2 = arith.constant 2 : index
    %c0_12 = arith.constant 0 : index
    %c0_13 = arith.constant 0 : index
    %12 = vector.load %arg1[%c2, %c0_12, %c0_13] : memref<9x4x8xbf16, #tpu.memory_space<vmem>>, vector<1x4x8xbf16>
    %13 = vector.shape_cast %12 : vector<1x4x8xbf16> to vector<4x8xbf16>
    %cst_14 = arith.constant dense<0.000000e+00> : vector<4x8xf32>
    %14 = tpu.matmul %13, %11, %cst_14 {dimension_numbers = #tpu.dot_dimension_numbers<[1], [0], [0], [1], [0, 0, 1, 1], [], []>} : vector<4x8xbf16>, vector<8x8xbf16>, vector<4x8xf32> -> vector<4x8xf32>
    %15 = arith.addf %10, %14 : vector<4x8xf32>
    %c0_15 = arith.constant 0 : index
    %c0_16 = arith.constant 0 : index
    %16 = vector.load %arg5[%c0_15, %c0_16] : memref<8x8xbf16, #tpu.memory_space<vmem>>, vector<8x8xbf16>
    %c3 = arith.constant 3 : index
    %c0_17 = arith.constant 0 : index
    %c0_18 = arith.constant 0 : index
    %17 = vector.load %arg1[%c3, %c0_17, %c0_18] : memref<9x4x8xbf16, #tpu.memory_space<vmem>>, vector<1x4x8xbf16>
    %18 = vector.shape_cast %17 : vector<1x4x8xbf16> to vector<4x8xbf16>
    %cst_19 = arith.constant dense<0.000000e+00> : vector<4x8xf32>
    %19 = tpu.matmul %18, %16, %cst_19 {dimension_numbers = #tpu.dot_dimension_numbers<[1], [0], [0], [1], [0, 0, 1, 1], [], []>} : vector<4x8xbf16>, vector<8x8xbf16>, vector<4x8xf32> -> vector<4x8xf32>
    %20 = arith.addf %15, %19 : vector<4x8xf32>
    %c0_20 = arith.constant 0 : index
    %c0_21 = arith.constant 0 : index
    %21 = vector.load %arg6[%c0_20, %c0_21] : memref<8x8xbf16, #tpu.memory_space<vmem>>, vector<8x8xbf16>
    %c4 = arith.constant 4 : index
    %c0_22 = arith.constant 0 : index
    %c0_23 = arith.constant 0 : index
    %22 = vector.load %arg1[%c4, %c0_22, %c0_23] : memref<9x4x8xbf16, #tpu.memory_space<vmem>>, vector<1x4x8xbf16>
    %23 = vector.shape_cast %22 : vector<1x4x8xbf16> to vector<4x8xbf16>
    %cst_24 = arith.constant dense<0.000000e+00> : vector<4x8xf32>
    %24 = tpu.matmul %23, %21, %cst_24 {dimension_numbers = #tpu.dot_dimension_numbers<[1], [0], [0], [1], [0, 0, 1, 1], [], []>} : vector<4x8xbf16>, vector<8x8xbf16>, vector<4x8xf32> -> vector<4x8xf32>
    %25 = arith.addf %20, %24 : vector<4x8xf32>
    %c0_25 = arith.constant 0 : index
    %c0_26 = arith.constant 0 : index
    %26 = vector.load %arg7[%c0_25, %c0_26] : memref<8x8xbf16, #tpu.memory_space<vmem>>, vector<8x8xbf16>
    %c5 = arith.constant 5 : index
    %c0_27 = arith.constant 0 : index
    %c0_28 = arith.constant 0 : index
    %27 = vector.load %arg1[%c5, %c0_27, %c0_28] : memref<9x4x8xbf16, #tpu.memory_space<vmem>>, vector<1x4x8xbf16>
    %28 = vector.shape_cast %27 : vector<1x4x8xbf16> to vector<4x8xbf16>
    %cst_29 = arith.constant dense<0.000000e+00> : vector<4x8xf32>
    %29 = tpu.matmul %28, %26, %cst_29 {dimension_numbers = #tpu.dot_dimension_numbers<[1], [0], [0], [1], [0, 0, 1, 1], [], []>} : vector<4x8xbf16>, vector<8x8xbf16>, vector<4x8xf32> -> vector<4x8xf32>
    %30 = arith.addf %25, %29 : vector<4x8xf32>
    %c0_30 = arith.constant 0 : index
    %c0_31 = arith.constant 0 : index
    %31 = vector.load %arg8[%c0_30, %c0_31] : memref<8x8xbf16, #tpu.memory_space<vmem>>, vector<8x8xbf16>
    %c6 = arith.constant 6 : index
    %c0_32 = arith.constant 0 : index
    %c0_33 = arith.constant 0 : index
    %32 = vector.load %arg1[%c6, %c0_32, %c0_33] : memref<9x4x8xbf16, #tpu.memory_space<vmem>>, vector<1x4x8xbf16>
    %33 = vector.shape_cast %32 : vector<1x4x8xbf16> to vector<4x8xbf16>
    %cst_34 = arith.constant dense<0.000000e+00> : vector<4x8xf32>
    %34 = tpu.matmul %33, %31, %cst_34 {dimension_numbers = #tpu.dot_dimension_numbers<[1], [0], [0], [1], [0, 0, 1, 1], [], []>} : vector<4x8xbf16>, vector<8x8xbf16>, vector<4x8xf32> -> vector<4x8xf32>
    %35 = arith.addf %30, %34 : vector<4x8xf32>
    %c0_35 = arith.constant 0 : index
    %c0_36 = arith.constant 0 : index
    %36 = vector.load %arg9[%c0_35, %c0_36] : memref<8x8xbf16, #tpu.memory_space<vmem>>, vector<8x8xbf16>
    %c7 = arith.constant 7 : index
    %c0_37 = arith.constant 0 : index
    %c0_38 = arith.constant 0 : index
    %37 = vector.load %arg1[%c7, %c0_37, %c0_38] : memref<9x4x8xbf16, #tpu.memory_space<vmem>>, vector<1x4x8xbf16>
    %38 = vector.shape_cast %37 : vector<1x4x8xbf16> to vector<4x8xbf16>
    %cst_39 = arith.constant dense<0.000000e+00> : vector<4x8xf32>
    %39 = tpu.matmul %38, %36, %cst_39 {dimension_numbers = #tpu.dot_dimension_numbers<[1], [0], [0], [1], [0, 0, 1, 1], [], []>} : vector<4x8xbf16>, vector<8x8xbf16>, vector<4x8xf32> -> vector<4x8xf32>
    %40 = arith.addf %35, %39 : vector<4x8xf32>
    %c0_40 = arith.constant 0 : index
    %c0_41 = arith.constant 0 : index
    %41 = vector.load %arg10[%c0_40, %c0_41] : memref<8x8xbf16, #tpu.memory_space<vmem>>, vector<8x8xbf16>
    %c8 = arith.constant 8 : index
    %c0_42 = arith.constant 0 : index
    %c0_43 = arith.constant 0 : index
    %42 = vector.load %arg1[%c8, %c0_42, %c0_43] : memref<9x4x8xbf16, #tpu.memory_space<vmem>>, vector<1x4x8xbf16>
    %43 = vector.shape_cast %42 : vector<1x4x8xbf16> to vector<4x8xbf16>
    %cst_44 = arith.constant dense<0.000000e+00> : vector<4x8xf32>
    %44 = tpu.matmul %43, %41, %cst_44 {dimension_numbers = #tpu.dot_dimension_numbers<[1], [0], [0], [1], [0, 0, 1, 1], [], []>} : vector<4x8xbf16>, vector<8x8xbf16>, vector<4x8xf32> -> vector<4x8xf32>
    %45 = arith.addf %40, %44 : vector<4x8xf32>
    %c0_45 = arith.constant 0 : index
    %c0_46 = arith.constant 0 : index
    %46 = vector.load %arg11[%c0_45, %c0_46] : memref<4x8xf32, #tpu.memory_space<vmem>>, vector<4x8xf32>
    tpu.vector_store %arg11[%c0_45, %c0_46], %45 {strides = array<i32>} : memref<4x8xf32, #tpu.memory_space<vmem>>, vector<4x8xf32>,
    return
  }
  func.func @transform_0(%arg0: i32) -> (i32, i32, i32) {
    %c0_i32 = arith.constant 0 : i32
    %c0_i32_0 = arith.constant 0 : i32
    %c0_i32_1 = arith.constant 0 : i32
    %c0_i32_2 = arith.constant 0 : i32
    return %c0_i32, %c0_i32_0, %c0_i32_1 : i32, i32, i32
  }
  func.func @transform_1(%arg0: i32) -> (i32, i32) {
    %c0_i32 = arith.constant 0 : i32
    %c0_i32_0 = arith.constant 0 : i32
    return %c0_i32, %arg0 : i32, i32
  }
  func.func @transform_2(%arg0: i32) -> (i32, i32) {
    %c0_i32 = arith.constant 0 : i32
    %c0_i32_0 = arith.constant 0 : i32
    return %c0_i32, %arg0 : i32, i32
  }
  func.func @transform_3(%arg0: i32) -> (i32, i32) {
    %c0_i32 = arith.constant 0 : i32
    %c0_i32_0 = arith.constant 0 : i32
    return %c0_i32, %arg0 : i32, i32
  }
  func.func @transform_4(%arg0: i32) -> (i32, i32) {
    %c0_i32 = arith.constant 0 : i32
    %c0_i32_0 = arith.constant 0 : i32
    return %c0_i32, %arg0 : i32, i32
  }
  func.func @transform_5(%arg0: i32) -> (i32, i32) {
    %c0_i32 = arith.constant 0 : i32
    %c0_i32_0 = arith.constant 0 : i32
    return %c0_i32, %arg0 : i32, i32
  }
  func.func @transform_6(%arg0: i32) -> (i32, i32) {
    %c0_i32 = arith.constant 0 : i32
    %c0_i32_0 = arith.constant 0 : i32
    return %c0_i32, %arg0 : i32, i32
  }
  func.func @transform_7(%arg0: i32) -> (i32, i32) {
    %c0_i32 = arith.constant 0 : i32
    %c0_i32_0 = arith.constant 0 : i32
    return %c0_i32, %arg0 : i32, i32
  }
  func.func @transform_8(%arg0: i32) -> (i32, i32) {
    %c0_i32 = arith.constant 0 : i32
    %c0_i32_0 = arith.constant 0 : i32
    return %c0_i32, %arg0 : i32, i32
  }
  func.func @transform_9(%arg0: i32) -> (i32, i32) {
    %c0_i32 = arith.constant 0 : i32
    %c0_i32_0 = arith.constant 0 : i32
    return %c0_i32, %arg0 : i32, i32
  }
  func.func @transform_10(%arg0: i32) -> (i32, i32) {
    %c0_i32 = arith.constant 0 : i32
    %c0_i32_0 = arith.constant 0 : i32
    return %c0_i32, %arg0 : i32, i32
  }
}

module attributes {stable_mosaic.version = 11 : i64} {
  func.func @kernel(%arg0: i32, %arg1: memref<1x8x12xbf16, #tpu.memory_space<vmem>>, %arg2: memref<12x1xf32, #tpu.memory_space<vmem>>, %arg3: memref<12x1xf32, #tpu.memory_space<vmem>>, %arg4: memref<8x1xf32, #tpu.memory_space<vmem>>, %arg5: memref<8x1xf32, #tpu.memory_space<vmem>>, %arg6: memref<12x8xf32, #tpu.memory_space<vmem>>, %arg7: memref<8x8xbf16, #tpu.memory_space<vmem>>) attributes {dimension_semantics = [#tpu.dimension_semantics<parallel>], iteration_bounds = array<i64: 1>, scalar_prefetch = 0 : i64, scratch_operands = 0 : i64, tpu.core_type = #tpu.core_type<tc>, window_params = [{pipeline_mode = #tpu.pipeline_mode<synchronous>, transform_indices = @transform_0, window_bounds = array<i64: 1, 8, 12>}, {pipeline_mode = #tpu.pipeline_mode<synchronous>, transform_indices = @transform_1, window_bounds = array<i64: 12, 1>}, {pipeline_mode = #tpu.pipeline_mode<synchronous>, transform_indices = @transform_2, window_bounds = array<i64: 12, 1>}, {pipeline_mode = #tpu.pipeline_mode<synchronous>, transform_indices = @transform_3, window_bounds = array<i64: 8, 1>}, {pipeline_mode = #tpu.pipeline_mode<synchronous>, transform_indices = @transform_4, window_bounds = array<i64: 8, 1>}, {transform_indices = @transform_5, window_bounds = array<i64: 12, 8>}, {transform_indices = @transform_6, window_bounds = array<i64: 8, 8>}]} {
    %cst = arith.constant 0.000000e+00 : f32
    %0 = vector.broadcast %cst : f32 to vector<8x8xf32>
    %c0 = arith.constant 0 : index
    %c0_0 = arith.constant 0 : index
    %1 = vector.load %arg6[%c0, %c0_0] : memref<12x8xf32, #tpu.memory_space<vmem>>, vector<12x8xf32>
    %c0_1 = arith.constant 0 : index
    %c0_2 = arith.constant 0 : index
    %2 = vector.load %arg2[%c0_1, %c0_2] : memref<12x1xf32, #tpu.memory_space<vmem>>, vector<12x1xf32>
    %3 = vector.broadcast %2 : vector<12x1xf32> to vector<12x8xf32>
    %4 = arith.mulf %1, %3 : vector<12x8xf32>
    %c0_3 = arith.constant 0 : index
    %c0_4 = arith.constant 0 : index
    %5 = vector.load %arg3[%c0_3, %c0_4] : memref<12x1xf32, #tpu.memory_space<vmem>>, vector<12x1xf32>
    %6 = vector.broadcast %5 : vector<12x1xf32> to vector<12x8xf32>
    %7 = arith.addf %4, %6 : vector<12x8xf32>
    %cst_5 = arith.constant 0.000000e+00 : f32
    %8 = vector.broadcast %cst_5 : f32 to vector<12x8xf32>
    %9 = arith.maximumf %7, %8 : vector<12x8xf32>
    %c0_6 = arith.constant 0 : index
    %c0_7 = arith.constant 0 : index
    %c0_8 = arith.constant 0 : index
    %10 = vector.load %arg1[%c0_6, %c0_7, %c0_8] : memref<1x8x12xbf16, #tpu.memory_space<vmem>>, vector<1x8x12xbf16>
    %11 = vector.shape_cast %10 : vector<1x8x12xbf16> to vector<8x12xbf16>
    %12 = arith.truncf %9 : vector<12x8xf32> to vector<12x8xbf16>
    %cst_9 = arith.constant dense<0.000000e+00> : vector<8x8xf32>
    %13 = tpu.matmul %11, %12, %cst_9 {dimension_numbers = #tpu.dot_dimension_numbers<[1], [0], [0], [1], [0, 0, 1, 1], [], []>} : vector<8x12xbf16>, vector<12x8xbf16>, vector<8x8xf32> -> vector<8x8xf32>
    %14 = arith.addf %0, %13 : vector<8x8xf32>
    %c0_10 = arith.constant 0 : index
    %c0_11 = arith.constant 0 : index
    %15 = vector.load %arg4[%c0_10, %c0_11] : memref<8x1xf32, #tpu.memory_space<vmem>>, vector<8x1xf32>
    %16 = vector.broadcast %15 : vector<8x1xf32> to vector<8x8xf32>
    %17 = arith.mulf %14, %16 : vector<8x8xf32>
    %c0_12 = arith.constant 0 : index
    %c0_13 = arith.constant 0 : index
    %18 = vector.load %arg5[%c0_12, %c0_13] : memref<8x1xf32, #tpu.memory_space<vmem>>, vector<8x1xf32>
    %19 = vector.broadcast %18 : vector<8x1xf32> to vector<8x8xf32>
    %20 = arith.addf %17, %19 : vector<8x8xf32>
    %cst_14 = arith.constant 0.000000e+00 : f32
    %21 = vector.broadcast %cst_14 : f32 to vector<8x8xf32>
    %22 = arith.maximumf %20, %21 : vector<8x8xf32>
    %23 = arith.truncf %22 : vector<8x8xf32> to vector<8x8xbf16>
    %c0_15 = arith.constant 0 : index
    %c0_16 = arith.constant 0 : index
    %24 = vector.load %arg7[%c0_15, %c0_16] : memref<8x8xbf16, #tpu.memory_space<vmem>>, vector<8x8xbf16>
    tpu.vector_store %arg7[%c0_15, %c0_16], %23 {strides = array<i32>} : memref<8x8xbf16, #tpu.memory_space<vmem>>, vector<8x8xbf16>,
    return
  }
  func.func @transform_0(%arg0: i32) -> (i32, i32, i32) {
    %c0_i32 = arith.constant 0 : i32
    %c0_i32_0 = arith.constant 0 : i32
    %c0_i32_1 = arith.constant 0 : i32
    %c0_i32_2 = arith.constant 0 : i32
    return %c0_i32, %c0_i32_0, %c0_i32_1 : i32, i32, i32
  }
  func.func @transform_1(%arg0: i32) -> (i32, i32) {
    %c0_i32 = arith.constant 0 : i32
    %c0_i32_0 = arith.constant 0 : i32
    %c0_i32_1 = arith.constant 0 : i32
    return %c0_i32, %c0_i32_0 : i32, i32
  }
  func.func @transform_2(%arg0: i32) -> (i32, i32) {
    %c0_i32 = arith.constant 0 : i32
    %c0_i32_0 = arith.constant 0 : i32
    %c0_i32_1 = arith.constant 0 : i32
    return %c0_i32, %c0_i32_0 : i32, i32
  }
  func.func @transform_3(%arg0: i32) -> (i32, i32) {
    %c0_i32 = arith.constant 0 : i32
    %c0_i32_0 = arith.constant 0 : i32
    %c0_i32_1 = arith.constant 0 : i32
    return %c0_i32, %c0_i32_0 : i32, i32
  }
  func.func @transform_4(%arg0: i32) -> (i32, i32) {
    %c0_i32 = arith.constant 0 : i32
    %c0_i32_0 = arith.constant 0 : i32
    %c0_i32_1 = arith.constant 0 : i32
    return %c0_i32, %c0_i32_0 : i32, i32
  }
  func.func @transform_5(%arg0: i32) -> (i32, i32) {
    %c0_i32 = arith.constant 0 : i32
    %c0_i32_0 = arith.constant 0 : i32
    return %c0_i32, %arg0 : i32, i32
  }
  func.func @transform_6(%arg0: i32) -> (i32, i32) {
    %c0_i32 = arith.constant 0 : i32
    %c0_i32_0 = arith.constant 0 : i32
    return %c0_i32, %arg0 : i32, i32
  }
}

module attributes {stable_mosaic.version = 11 : i64} {
  func.func @kernel(%arg0: i32, %arg1: memref<1x8x16xbf16, #tpu.memory_space<vmem>>, %arg2: memref<16x1xf32, #tpu.memory_space<vmem>>, %arg3: memref<16x1xf32, #tpu.memory_space<vmem>>, %arg4: memref<16x8xf32, #tpu.memory_space<vmem>>, %arg5: memref<8x8xf32, #tpu.memory_space<vmem>>) attributes {dimension_semantics = [#tpu.dimension_semantics<parallel>], iteration_bounds = array<i64: 1>, scalar_prefetch = 0 : i64, scratch_operands = 0 : i64, tpu.core_type = #tpu.core_type<tc>, window_params = [{pipeline_mode = #tpu.pipeline_mode<synchronous>, transform_indices = @transform_0, window_bounds = array<i64: 1, 8, 16>}, {pipeline_mode = #tpu.pipeline_mode<synchronous>, transform_indices = @transform_1, window_bounds = array<i64: 16, 1>}, {pipeline_mode = #tpu.pipeline_mode<synchronous>, transform_indices = @transform_2, window_bounds = array<i64: 16, 1>}, {transform_indices = @transform_3, window_bounds = array<i64: 16, 8>}, {transform_indices = @transform_4, window_bounds = array<i64: 8, 8>}]} {
    %cst = arith.constant 0.000000e+00 : f32
    %0 = vector.broadcast %cst : f32 to vector<8x8xf32>
    %c0 = arith.constant 0 : index
    %c0_0 = arith.constant 0 : index
    %1 = vector.load %arg4[%c0, %c0_0] : memref<16x8xf32, #tpu.memory_space<vmem>>, vector<16x8xf32>
    %c0_1 = arith.constant 0 : index
    %c0_2 = arith.constant 0 : index
    %2 = vector.load %arg2[%c0_1, %c0_2] : memref<16x1xf32, #tpu.memory_space<vmem>>, vector<16x1xf32>
    %3 = vector.broadcast %2 : vector<16x1xf32> to vector<16x8xf32>
    %4 = arith.mulf %1, %3 : vector<16x8xf32>
    %c0_3 = arith.constant 0 : index
    %c0_4 = arith.constant 0 : index
    %5 = vector.load %arg3[%c0_3, %c0_4] : memref<16x1xf32, #tpu.memory_space<vmem>>, vector<16x1xf32>
    %6 = vector.broadcast %5 : vector<16x1xf32> to vector<16x8xf32>
    %7 = arith.addf %4, %6 : vector<16x8xf32>
    %cst_5 = arith.constant 0.000000e+00 : f32
    %8 = vector.broadcast %cst_5 : f32 to vector<16x8xf32>
    %9 = arith.maximumf %7, %8 : vector<16x8xf32>
    %c0_6 = arith.constant 0 : index
    %c0_7 = arith.constant 0 : index
    %c0_8 = arith.constant 0 : index
    %10 = vector.load %arg1[%c0_6, %c0_7, %c0_8] : memref<1x8x16xbf16, #tpu.memory_space<vmem>>, vector<1x8x16xbf16>
    %11 = vector.shape_cast %10 : vector<1x8x16xbf16> to vector<8x16xbf16>
    %12 = arith.truncf %9 : vector<16x8xf32> to vector<16x8xbf16>
    %cst_9 = arith.constant dense<0.000000e+00> : vector<8x8xf32>
    %13 = tpu.matmul %11, %12, %cst_9 {dimension_numbers = #tpu.dot_dimension_numbers<[1], [0], [0], [1], [0, 0, 1, 1], [], []>} : vector<8x16xbf16>, vector<16x8xbf16>, vector<8x8xf32> -> vector<8x8xf32>
    %14 = arith.addf %0, %13 : vector<8x8xf32>
    %c0_10 = arith.constant 0 : index
    %c0_11 = arith.constant 0 : index
    %15 = vector.load %arg5[%c0_10, %c0_11] : memref<8x8xf32, #tpu.memory_space<vmem>>, vector<8x8xf32>
    tpu.vector_store %arg5[%c0_10, %c0_11], %14 {strides = array<i32>} : memref<8x8xf32, #tpu.memory_space<vmem>>, vector<8x8xf32>,
    return
  }
  func.func @transform_0(%arg0: i32) -> (i32, i32, i32) {
    %c0_i32 = arith.constant 0 : i32
    %c0_i32_0 = arith.constant 0 : i32
    %c0_i32_1 = arith.constant 0 : i32
    %c0_i32_2 = arith.constant 0 : i32
    return %c0_i32, %c0_i32_0, %c0_i32_1 : i32, i32, i32
  }
  func.func @transform_1(%arg0: i32) -> (i32, i32) {
    %c0_i32 = arith.constant 0 : i32
    %c0_i32_0 = arith.constant 0 : i32
    %c0_i32_1 = arith.constant 0 : i32
    return %c0_i32, %c0_i32_0 : i32, i32
  }
  func.func @transform_2(%arg0: i32) -> (i32, i32) {
    %c0_i32 = arith.constant 0 : i32
    %c0_i32_0 = arith.constant 0 : i32
    %c0_i32_1 = arith.constant 0 : i32
    return %c0_i32, %c0_i32_0 : i32, i32
  }
  func.func @transform_3(%arg0: i32) -> (i32, i32) {
    %c0_i32 = arith.constant 0 : i32
    %c0_i32_0 = arith.constant 0 : i32
    return %c0_i32, %arg0 : i32, i32
  }
  func.func @transform_4(%arg0: i32) -> (i32, i32) {
    %c0_i32 = arith.constant 0 : i32
    %c0_i32_0 = arith.constant 0 : i32
    return %c0_i32, %arg0 : i32, i32
  }
}

module attributes {stable_mosaic.version = 11 : i64} {
  func.func @kernel(%arg0: i32, %arg1: memref<8x2xf32, #tpu.memory_space<vmem>>, %arg2: memref<8x2xf32, #tpu.memory_space<vmem>>, %arg3: memref<8x2xf32, #tpu.memory_space<vmem>>, %arg4: memref<8x2xf32, #tpu.memory_space<vmem>>, %arg5: memref<8x2xf32, #tpu.memory_space<vmem>>) attributes {dimension_semantics = [#tpu.dimension_semantics<parallel>], iteration_bounds = array<i64: 1>, scalar_prefetch = 0 : i64, scratch_operands = 0 : i64, tpu.core_type = #tpu.core_type<tc>, window_params = [{pipeline_mode = #tpu.pipeline_mode<synchronous>, transform_indices = @transform_0, window_bounds = array<i64: 8, 2>}, {pipeline_mode = #tpu.pipeline_mode<synchronous>, transform_indices = @transform_1, window_bounds = array<i64: 8, 2>}, {pipeline_mode = #tpu.pipeline_mode<synchronous>, transform_indices = @transform_2, window_bounds = array<i64: 8, 2>}, {pipeline_mode = #tpu.pipeline_mode<synchronous>, transform_indices = @transform_3, window_bounds = array<i64: 8, 2>}, {pipeline_mode = #tpu.pipeline_mode<synchronous>, transform_indices = @transform_4, window_bounds = array<i64: 8, 2>}]} {
    %c0 = arith.constant 0 : index
    %c0_0 = arith.constant 0 : index
    %0 = vector.load %arg1[%c0, %c0_0] : memref<8x2xf32, #tpu.memory_space<vmem>>, vector<8x2xf32>
    %c0_1 = arith.constant 0 : index
    %c0_2 = arith.constant 0 : index
    %1 = vector.load %arg2[%c0_1, %c0_2] : memref<8x2xf32, #tpu.memory_space<vmem>>, vector<8x2xf32>
    %2 = arith.addf %0, %1 : vector<8x2xf32>
    %c0_3 = arith.constant 0 : index
    %c0_4 = arith.constant 0 : index
    %3 = vector.load %arg3[%c0_3, %c0_4] : memref<8x2xf32, #tpu.memory_space<vmem>>, vector<8x2xf32>
    %4 = arith.addf %2, %3 : vector<8x2xf32>
    %c0_5 = arith.constant 0 : index
    %c0_6 = arith.constant 0 : index
    %5 = vector.load %arg4[%c0_5, %c0_6] : memref<8x2xf32, #tpu.memory_space<vmem>>, vector<8x2xf32>
    %6 = arith.addf %4, %5 : vector<8x2xf32>
    %cst = arith.constant 2.500000e-01 : f32
    %7 = vector.broadcast %cst : f32 to vector<8x2xf32>
    %8 = arith.mulf %6, %7 : vector<8x2xf32>
    %c0_7 = arith.constant 0 : index
    %c0_8 = arith.constant 0 : index
    %9 = vector.load %arg5[%c0_7, %c0_8] : memref<8x2xf32, #tpu.memory_space<vmem>>, vector<8x2xf32>
    tpu.vector_store %arg5[%c0_7, %c0_8], %8 {strides = array<i32>} : memref<8x2xf32, #tpu.memory_space<vmem>>, vector<8x2xf32>,
    return
  }
  func.func @transform_0(%arg0: i32) -> (i32, i32) {
    %c0_i32 = arith.constant 0 : i32
    %c0_i32_0 = arith.constant 0 : i32
    %c0_i32_1 = arith.constant 0 : i32
    return %c0_i32, %c0_i32_0 : i32, i32
  }
  func.func @transform_1(%arg0: i32) -> (i32, i32) {
    %c0_i32 = arith.constant 0 : i32
    %c0_i32_0 = arith.constant 0 : i32
    %c0_i32_1 = arith.constant 0 : i32
    return %c0_i32, %c0_i32_0 : i32, i32
  }
  func.func @transform_2(%arg0: i32) -> (i32, i32) {
    %c0_i32 = arith.constant 0 : i32
    %c0_i32_0 = arith.constant 0 : i32
    %c0_i32_1 = arith.constant 0 : i32
    return %c0_i32, %c0_i32_0 : i32, i32
  }
  func.func @transform_3(%arg0: i32) -> (i32, i32) {
    %c0_i32 = arith.constant 0 : i32
    %c0_i32_0 = arith.constant 0 : i32
    %c0_i32_1 = arith.constant 0 : i32
    return %c0_i32, %c0_i32_0 : i32, i32
  }
  func.func @transform_4(%arg0: i32) -> (i32, i32) {
    %c0_i32 = arith.constant 0 : i32
    %c0_i32_0 = arith.constant 0 : i32
    %c0_i32_1 = arith.constant 0 : i32
    return %c0_i32, %c0_i32_0 : i32, i32
  }
}

module attributes {stable_mosaic.version = 11 : i64} {
  func.func @kernel(%arg0: i32, %arg1: memref<1x8x8xbf16, #tpu.memory_space<vmem>>, %arg2: memref<8x1xf32, #tpu.memory_space<vmem>>, %arg3: memref<8x1xf32, #tpu.memory_space<vmem>>, %arg4: memref<8x1xf32, #tpu.memory_space<vmem>>, %arg5: memref<8x1xf32, #tpu.memory_space<vmem>>, %arg6: memref<8x2xf32, #tpu.memory_space<vmem>>, %arg7: memref<8x2xbf16, #tpu.memory_space<vmem>>) attributes {dimension_semantics = [#tpu.dimension_semantics<parallel>], iteration_bounds = array<i64: 1>, scalar_prefetch = 0 : i64, scratch_operands = 0 : i64, tpu.core_type = #tpu.core_type<tc>, window_params = [{pipeline_mode = #tpu.pipeline_mode<synchronous>, transform_indices = @transform_0, window_bounds = array<i64: 1, 8, 8>}, {pipeline_mode = #tpu.pipeline_mode<synchronous>, transform_indices = @transform_1, window_bounds = array<i64: 8, 1>}, {pipeline_mode = #tpu.pipeline_mode<synchronous>, transform_indices = @transform_2, window_bounds = array<i64: 8, 1>}, {pipeline_mode = #tpu.pipeline_mode<synchronous>, transform_indices = @transform_3, window_bounds = array<i64: 8, 1>}, {pipeline_mode = #tpu.pipeline_mode<synchronous>, transform_indices = @transform_4, window_bounds = array<i64: 8, 1>}, {transform_indices = @transform_5, window_bounds = array<i64: 8, 2>}, {transform_indices = @transform_6, window_bounds = array<i64: 8, 2>}]} {
    %cst = arith.constant 0.000000e+00 : f32
    %0 = vector.broadcast %cst : f32 to vector<8x2xf32>
    %c0 = arith.constant 0 : index
    %c0_0 = arith.constant 0 : index
    %1 = vector.load %arg6[%c0, %c0_0] : memref<8x2xf32, #tpu.memory_space<vmem>>, vector<8x2xf32>
    %c0_1 = arith.constant 0 : index
    %c0_2 = arith.constant 0 : index
    %2 = vector.load %arg2[%c0_1, %c0_2] : memref<8x1xf32, #tpu.memory_space<vmem>>, vector<8x1xf32>
    %3 = vector.broadcast %2 : vector<8x1xf32> to vector<8x2xf32>
    %4 = arith.mulf %1, %3 : vector<8x2xf32>
    %c0_3 = arith.constant 0 : index
    %c0_4 = arith.constant 0 : index
    %5 = vector.load %arg3[%c0_3, %c0_4] : memref<8x1xf32, #tpu.memory_space<vmem>>, vector<8x1xf32>
    %6 = vector.broadcast %5 : vector<8x1xf32> to vector<8x2xf32>
    %7 = arith.addf %4, %6 : vector<8x2xf32>
    %cst_5 = arith.constant 0.000000e+00 : f32
    %8 = vector.broadcast %cst_5 : f32 to vector<8x2xf32>
    %9 = arith.maximumf %7, %8 : vector<8x2xf32>
    %c0_6 = arith.constant 0 : index
    %c0_7 = arith.constant 0 : index
    %c0_8 = arith.constant 0 : index
    %10 = vector.load %arg1[%c0_6, %c0_7, %c0_8] : memref<1x8x8xbf16, #tpu.memory_space<vmem>>, vector<1x8x8xbf16>
    %11 = vector.shape_cast %10 : vector<1x8x8xbf16> to vector<8x8xbf16>
    %12 = arith.truncf %9 : vector<8x2xf32> to vector<8x2xbf16>
    %cst_9 = arith.constant dense<0.000000e+00> : vector<8x2xf32>
    %13 = tpu.matmul %11, %12, %cst_9 {dimension_numbers = #tpu.dot_dimension_numbers<[1], [0], [0], [1], [0, 0, 1, 1], [], []>} : vector<8x8xbf16>, vector<8x2xbf16>, vector<8x2xf32> -> vector<8x2xf32>
    %14 = arith.addf %0, %13 : vector<8x2xf32>
    %c0_10 = arith.constant 0 : index
    %c0_11 = arith.constant 0 : index
    %15 = vector.load %arg4[%c0_10, %c0_11] : memref<8x1xf32, #tpu.memory_space<vmem>>, vector<8x1xf32>
    %16 = vector.broadcast %15 : vector<8x1xf32> to vector<8x2xf32>
    %17 = arith.mulf %14, %16 : vector<8x2xf32>
    %c0_12 = arith.constant 0 : index
    %c0_13 = arith.constant 0 : index
    %18 = vector.load %arg5[%c0_12, %c0_13] : memref<8x1xf32, #tpu.memory_space<vmem>>, vector<8x1xf32>
    %19 = vector.broadcast %18 : vector<8x1xf32> to vector<8x2xf32>
    %20 = arith.addf %17, %19 : vector<8x2xf32>
    %cst_14 = arith.constant 0.000000e+00 : f32
    %21 = vector.broadcast %cst_14 : f32 to vector<8x2xf32>
    %22 = arith.maximumf %20, %21 : vector<8x2xf32>
    %23 = arith.truncf %22 : vector<8x2xf32> to vector<8x2xbf16>
    %c0_15 = arith.constant 0 : index
    %c0_16 = arith.constant 0 : index
    %24 = vector.load %arg7[%c0_15, %c0_16] : memref<8x2xbf16, #tpu.memory_space<vmem>>, vector<8x2xbf16>
    tpu.vector_store %arg7[%c0_15, %c0_16], %23 {strides = array<i32>} : memref<8x2xbf16, #tpu.memory_space<vmem>>, vector<8x2xbf16>,
    return
  }
  func.func @transform_0(%arg0: i32) -> (i32, i32, i32) {
    %c0_i32 = arith.constant 0 : i32
    %c0_i32_0 = arith.constant 0 : i32
    %c0_i32_1 = arith.constant 0 : i32
    %c0_i32_2 = arith.constant 0 : i32
    return %c0_i32, %c0_i32_0, %c0_i32_1 : i32, i32, i32
  }
  func.func @transform_1(%arg0: i32) -> (i32, i32) {
    %c0_i32 = arith.constant 0 : i32
    %c0_i32_0 = arith.constant 0 : i32
    %c0_i32_1 = arith.constant 0 : i32
    return %c0_i32, %c0_i32_0 : i32, i32
  }
  func.func @transform_2(%arg0: i32) -> (i32, i32) {
    %c0_i32 = arith.constant 0 : i32
    %c0_i32_0 = arith.constant 0 : i32
    %c0_i32_1 = arith.constant 0 : i32
    return %c0_i32, %c0_i32_0 : i32, i32
  }
  func.func @transform_3(%arg0: i32) -> (i32, i32) {
    %c0_i32 = arith.constant 0 : i32
    %c0_i32_0 = arith.constant 0 : i32
    %c0_i32_1 = arith.constant 0 : i32
    return %c0_i32, %c0_i32_0 : i32, i32
  }
  func.func @transform_4(%arg0: i32) -> (i32, i32) {
    %c0_i32 = arith.constant 0 : i32
    %c0_i32_0 = arith.constant 0 : i32
    %c0_i32_1 = arith.constant 0 : i32
    return %c0_i32, %c0_i32_0 : i32, i32
  }
  func.func @transform_5(%arg0: i32) -> (i32, i32) {
    %c0_i32 = arith.constant 0 : i32
    %c0_i32_0 = arith.constant 0 : i32
    return %c0_i32, %arg0 : i32, i32
  }
  func.func @transform_6(%arg0: i32) -> (i32, i32) {
    %c0_i32 = arith.constant 0 : i32
    %c0_i32_0 = arith.constant 0 : i32
    return %c0_i32, %arg0 : i32, i32
  }
}

module attributes {stable_mosaic.version = 11 : i64} {
  func.func @kernel(%arg0: i32, %arg1: memref<1x8x12xbf16, #tpu.memory_space<vmem>>, %arg2: memref<12x1xf32, #tpu.memory_space<vmem>>, %arg3: memref<12x1xf32, #tpu.memory_space<vmem>>, %arg4: memref<8x1xf32, #tpu.memory_space<vmem>>, %arg5: memref<8x1xf32, #tpu.memory_space<vmem>>, %arg6: memref<12x2xf32, #tpu.memory_space<vmem>>, %arg7: memref<8x2xbf16, #tpu.memory_space<vmem>>) attributes {dimension_semantics = [#tpu.dimension_semantics<parallel>], iteration_bounds = array<i64: 1>, scalar_prefetch = 0 : i64, scratch_operands = 0 : i64, tpu.core_type = #tpu.core_type<tc>, window_params = [{pipeline_mode = #tpu.pipeline_mode<synchronous>, transform_indices = @transform_0, window_bounds = array<i64: 1, 8, 12>}, {pipeline_mode = #tpu.pipeline_mode<synchronous>, transform_indices = @transform_1, window_bounds = array<i64: 12, 1>}, {pipeline_mode = #tpu.pipeline_mode<synchronous>, transform_indices = @transform_2, window_bounds = array<i64: 12, 1>}, {pipeline_mode = #tpu.pipeline_mode<synchronous>, transform_indices = @transform_3, window_bounds = array<i64: 8, 1>}, {pipeline_mode = #tpu.pipeline_mode<synchronous>, transform_indices = @transform_4, window_bounds = array<i64: 8, 1>}, {transform_indices = @transform_5, window_bounds = array<i64: 12, 2>}, {transform_indices = @transform_6, window_bounds = array<i64: 8, 2>}]} {
    %cst = arith.constant 0.000000e+00 : f32
    %0 = vector.broadcast %cst : f32 to vector<8x2xf32>
    %c0 = arith.constant 0 : index
    %c0_0 = arith.constant 0 : index
    %1 = vector.load %arg6[%c0, %c0_0] : memref<12x2xf32, #tpu.memory_space<vmem>>, vector<12x2xf32>
    %c0_1 = arith.constant 0 : index
    %c0_2 = arith.constant 0 : index
    %2 = vector.load %arg2[%c0_1, %c0_2] : memref<12x1xf32, #tpu.memory_space<vmem>>, vector<12x1xf32>
    %3 = vector.broadcast %2 : vector<12x1xf32> to vector<12x2xf32>
    %4 = arith.mulf %1, %3 : vector<12x2xf32>
    %c0_3 = arith.constant 0 : index
    %c0_4 = arith.constant 0 : index
    %5 = vector.load %arg3[%c0_3, %c0_4] : memref<12x1xf32, #tpu.memory_space<vmem>>, vector<12x1xf32>
    %6 = vector.broadcast %5 : vector<12x1xf32> to vector<12x2xf32>
    %7 = arith.addf %4, %6 : vector<12x2xf32>
    %cst_5 = arith.constant 0.000000e+00 : f32
    %8 = vector.broadcast %cst_5 : f32 to vector<12x2xf32>
    %9 = arith.maximumf %7, %8 : vector<12x2xf32>
    %c0_6 = arith.constant 0 : index
    %c0_7 = arith.constant 0 : index
    %c0_8 = arith.constant 0 : index
    %10 = vector.load %arg1[%c0_6, %c0_7, %c0_8] : memref<1x8x12xbf16, #tpu.memory_space<vmem>>, vector<1x8x12xbf16>
    %11 = vector.shape_cast %10 : vector<1x8x12xbf16> to vector<8x12xbf16>
    %12 = arith.truncf %9 : vector<12x2xf32> to vector<12x2xbf16>
    %cst_9 = arith.constant dense<0.000000e+00> : vector<8x2xf32>
    %13 = tpu.matmul %11, %12, %cst_9 {dimension_numbers = #tpu.dot_dimension_numbers<[1], [0], [0], [1], [0, 0, 1, 1], [], []>} : vector<8x12xbf16>, vector<12x2xbf16>, vector<8x2xf32> -> vector<8x2xf32>
    %14 = arith.addf %0, %13 : vector<8x2xf32>
    %c0_10 = arith.constant 0 : index
    %c0_11 = arith.constant 0 : index
    %15 = vector.load %arg4[%c0_10, %c0_11] : memref<8x1xf32, #tpu.memory_space<vmem>>, vector<8x1xf32>
    %16 = vector.broadcast %15 : vector<8x1xf32> to vector<8x2xf32>
    %17 = arith.mulf %14, %16 : vector<8x2xf32>
    %c0_12 = arith.constant 0 : index
    %c0_13 = arith.constant 0 : index
    %18 = vector.load %arg5[%c0_12, %c0_13] : memref<8x1xf32, #tpu.memory_space<vmem>>, vector<8x1xf32>
    %19 = vector.broadcast %18 : vector<8x1xf32> to vector<8x2xf32>
    %20 = arith.addf %17, %19 : vector<8x2xf32>
    %cst_14 = arith.constant 0.000000e+00 : f32
    %21 = vector.broadcast %cst_14 : f32 to vector<8x2xf32>
    %22 = arith.maximumf %20, %21 : vector<8x2xf32>
    %23 = arith.truncf %22 : vector<8x2xf32> to vector<8x2xbf16>
    %c0_15 = arith.constant 0 : index
    %c0_16 = arith.constant 0 : index
    %24 = vector.load %arg7[%c0_15, %c0_16] : memref<8x2xbf16, #tpu.memory_space<vmem>>, vector<8x2xbf16>
    tpu.vector_store %arg7[%c0_15, %c0_16], %23 {strides = array<i32>} : memref<8x2xbf16, #tpu.memory_space<vmem>>, vector<8x2xbf16>,
    return
  }
  func.func @transform_0(%arg0: i32) -> (i32, i32, i32) {
    %c0_i32 = arith.constant 0 : i32
    %c0_i32_0 = arith.constant 0 : i32
    %c0_i32_1 = arith.constant 0 : i32
    %c0_i32_2 = arith.constant 0 : i32
    return %c0_i32, %c0_i32_0, %c0_i32_1 : i32, i32, i32
  }
  func.func @transform_1(%arg0: i32) -> (i32, i32) {
    %c0_i32 = arith.constant 0 : i32
    %c0_i32_0 = arith.constant 0 : i32
    %c0_i32_1 = arith.constant 0 : i32
    return %c0_i32, %c0_i32_0 : i32, i32
  }
  func.func @transform_2(%arg0: i32) -> (i32, i32) {
    %c0_i32 = arith.constant 0 : i32
    %c0_i32_0 = arith.constant 0 : i32
    %c0_i32_1 = arith.constant 0 : i32
    return %c0_i32, %c0_i32_0 : i32, i32
  }
  func.func @transform_3(%arg0: i32) -> (i32, i32) {
    %c0_i32 = arith.constant 0 : i32
    %c0_i32_0 = arith.constant 0 : i32
    %c0_i32_1 = arith.constant 0 : i32
    return %c0_i32, %c0_i32_0 : i32, i32
  }
  func.func @transform_4(%arg0: i32) -> (i32, i32) {
    %c0_i32 = arith.constant 0 : i32
    %c0_i32_0 = arith.constant 0 : i32
    %c0_i32_1 = arith.constant 0 : i32
    return %c0_i32, %c0_i32_0 : i32, i32
  }
  func.func @transform_5(%arg0: i32) -> (i32, i32) {
    %c0_i32 = arith.constant 0 : i32
    %c0_i32_0 = arith.constant 0 : i32
    return %c0_i32, %arg0 : i32, i32
  }
  func.func @transform_6(%arg0: i32) -> (i32, i32) {
    %c0_i32 = arith.constant 0 : i32
    %c0_i32_0 = arith.constant 0 : i32
    return %c0_i32, %arg0 : i32, i32
  }
}

module attributes {stable_mosaic.version = 11 : i64} {
  func.func @kernel(%arg0: i32, %arg1: memref<9x4x8xbf16, #tpu.memory_space<vmem>>, %arg2: memref<8x2xbf16, #tpu.memory_space<vmem>>, %arg3: memref<8x2xbf16, #tpu.memory_space<vmem>>, %arg4: memref<8x2xbf16, #tpu.memory_space<vmem>>, %arg5: memref<8x2xbf16, #tpu.memory_space<vmem>>, %arg6: memref<8x2xbf16, #tpu.memory_space<vmem>>, %arg7: memref<8x2xbf16, #tpu.memory_space<vmem>>, %arg8: memref<8x2xbf16, #tpu.memory_space<vmem>>, %arg9: memref<8x2xbf16, #tpu.memory_space<vmem>>, %arg10: memref<8x2xbf16, #tpu.memory_space<vmem>>, %arg11: memref<4x2xf32, #tpu.memory_space<vmem>>) attributes {dimension_semantics = [#tpu.dimension_semantics<parallel>], iteration_bounds = array<i64: 1>, scalar_prefetch = 0 : i64, scratch_operands = 0 : i64, tpu.core_type = #tpu.core_type<tc>, window_params = [{pipeline_mode = #tpu.pipeline_mode<synchronous>, transform_indices = @transform_0, window_bounds = array<i64: 9, 4, 8>}, {transform_indices = @transform_1, window_bounds = array<i64: 8, 2>}, {transform_indices = @transform_2, window_bounds = array<i64: 8, 2>}, {transform_indices = @transform_3, window_bounds = array<i64: 8, 2>}, {transform_indices = @transform_4, window_bounds = array<i64: 8, 2>}, {transform_indices = @transform_5, window_bounds = array<i64: 8, 2>}, {transform_indices = @transform_6, window_bounds = array<i64: 8, 2>}, {transform_indices = @transform_7, window_bounds = array<i64: 8, 2>}, {transform_indices = @transform_8, window_bounds = array<i64: 8, 2>}, {transform_indices = @transform_9, window_bounds = array<i64: 8, 2>}, {transform_indices = @transform_10, window_bounds = array<i64: 4, 2>}]} {
    %cst = arith.constant 0.000000e+00 : f32
    %0 = vector.broadcast %cst : f32 to vector<4x2xf32>
    %c0 = arith.constant 0 : index
    %c0_0 = arith.constant 0 : index
    %1 = vector.load %arg2[%c0, %c0_0] : memref<8x2xbf16, #tpu.memory_space<vmem>>, vector<8x2xbf16>
    %c0_1 = arith.constant 0 : index
    %c0_2 = arith.constant 0 : index
    %c0_3 = arith.constant 0 : index
    %2 = vector.load %arg1[%c0_1, %c0_2, %c0_3] : memref<9x4x8xbf16, #tpu.memory_space<vmem>>, vector<1x4x8xbf16>
    %3 = vector.shape_cast %2 : vector<1x4x8xbf16> to vector<4x8xbf16>
    %cst_4 = arith.constant dense<0.000000e+00> : vector<4x2xf32>
    %4 = tpu.matmul %3, %1, %cst_4 {dimension_numbers = #tpu.dot_dimension_numbers<[1], [0], [0], [1], [0, 0, 1, 1], [], []>} : vector<4x8xbf16>, vector<8x2xbf16>, vector<4x2xf32> -> vector<4x2xf32>
    %5 = arith.addf %0, %4 : vector<4x2xf32>
    %c0_5 = arith.constant 0 : index
    %c0_6 = arith.constant 0 : index
    %6 = vector.load %arg3[%c0_5, %c0_6] : memref<8x2xbf16, #tpu.memory_space<vmem>>, vector<8x2xbf16>
    %c1 = arith.constant 1 : index
    %c0_7 = arith.constant 0 : index
    %c0_8 = arith.constant 0 : index
    %7 = vector.load %arg1[%c1, %c0_7, %c0_8] : memref<9x4x8xbf16, #tpu.memory_space<vmem>>, vector<1x4x8xbf16>
    %8 = vector.shape_cast %7 : vector<1x4x8xbf16> to vector<4x8xbf16>
    %cst_9 = arith.constant dense<0.000000e+00> : vector<4x2xf32>
    %9 = tpu.matmul %8, %6, %cst_9 {dimension_numbers = #tpu.dot_dimension_numbers<[1], [0], [0], [1], [0, 0, 1, 1], [], []>} : vector<4x8xbf16>, vector<8x2xbf16>, vector<4x2xf32> -> vector<4x2xf32>
    %10 = arith.addf %5, %9 : vector<4x2xf32>
    %c0_10 = arith.constant 0 : index
    %c0_11 = arith.constant 0 : index
    %11 = vector.load %arg4[%c0_10, %c0_11] : memref<8x2xbf16, #tpu.memory_space<vmem>>, vector<8x2xbf16>
    %c2 = arith.constant 2 : index
    %c0_12 = arith.constant 0 : index
    %c0_13 = arith.constant 0 : index
    %12 = vector.load %arg1[%c2, %c0_12, %c0_13] : memref<9x4x8xbf16, #tpu.memory_space<vmem>>, vector<1x4x8xbf16>
    %13 = vector.shape_cast %12 : vector<1x4x8xbf16> to vector<4x8xbf16>
    %cst_14 = arith.constant dense<0.000000e+00> : vector<4x2xf32>
    %14 = tpu.matmul %13, %11, %cst_14 {dimension_numbers = #tpu.dot_dimension_numbers<[1], [0], [0], [1], [0, 0, 1, 1], [], []>} : vector<4x8xbf16>, vector<8x2xbf16>, vector<4x2xf32> -> vector<4x2xf32>
    %15 = arith.addf %10, %14 : vector<4x2xf32>
    %c0_15 = arith.constant 0 : index
    %c0_16 = arith.constant 0 : index
    %16 = vector.load %arg5[%c0_15, %c0_16] : memref<8x2xbf16, #tpu.memory_space<vmem>>, vector<8x2xbf16>
    %c3 = arith.constant 3 : index
    %c0_17 = arith.constant 0 : index
    %c0_18 = arith.constant 0 : index
    %17 = vector.load %arg1[%c3, %c0_17, %c0_18] : memref<9x4x8xbf16, #tpu.memory_space<vmem>>, vector<1x4x8xbf16>
    %18 = vector.shape_cast %17 : vector<1x4x8xbf16> to vector<4x8xbf16>
    %cst_19 = arith.constant dense<0.000000e+00> : vector<4x2xf32>
    %19 = tpu.matmul %18, %16, %cst_19 {dimension_numbers = #tpu.dot_dimension_numbers<[1], [0], [0], [1], [0, 0, 1, 1], [], []>} : vector<4x8xbf16>, vector<8x2xbf16>, vector<4x2xf32> -> vector<4x2xf32>
    %20 = arith.addf %15, %19 : vector<4x2xf32>
    %c0_20 = arith.constant 0 : index
    %c0_21 = arith.constant 0 : index
    %21 = vector.load %arg6[%c0_20, %c0_21] : memref<8x2xbf16, #tpu.memory_space<vmem>>, vector<8x2xbf16>
    %c4 = arith.constant 4 : index
    %c0_22 = arith.constant 0 : index
    %c0_23 = arith.constant 0 : index
    %22 = vector.load %arg1[%c4, %c0_22, %c0_23] : memref<9x4x8xbf16, #tpu.memory_space<vmem>>, vector<1x4x8xbf16>
    %23 = vector.shape_cast %22 : vector<1x4x8xbf16> to vector<4x8xbf16>
    %cst_24 = arith.constant dense<0.000000e+00> : vector<4x2xf32>
    %24 = tpu.matmul %23, %21, %cst_24 {dimension_numbers = #tpu.dot_dimension_numbers<[1], [0], [0], [1], [0, 0, 1, 1], [], []>} : vector<4x8xbf16>, vector<8x2xbf16>, vector<4x2xf32> -> vector<4x2xf32>
    %25 = arith.addf %20, %24 : vector<4x2xf32>
    %c0_25 = arith.constant 0 : index
    %c0_26 = arith.constant 0 : index
    %26 = vector.load %arg7[%c0_25, %c0_26] : memref<8x2xbf16, #tpu.memory_space<vmem>>, vector<8x2xbf16>
    %c5 = arith.constant 5 : index
    %c0_27 = arith.constant 0 : index
    %c0_28 = arith.constant 0 : index
    %27 = vector.load %arg1[%c5, %c0_27, %c0_28] : memref<9x4x8xbf16, #tpu.memory_space<vmem>>, vector<1x4x8xbf16>
    %28 = vector.shape_cast %27 : vector<1x4x8xbf16> to vector<4x8xbf16>
    %cst_29 = arith.constant dense<0.000000e+00> : vector<4x2xf32>
    %29 = tpu.matmul %28, %26, %cst_29 {dimension_numbers = #tpu.dot_dimension_numbers<[1], [0], [0], [1], [0, 0, 1, 1], [], []>} : vector<4x8xbf16>, vector<8x2xbf16>, vector<4x2xf32> -> vector<4x2xf32>
    %30 = arith.addf %25, %29 : vector<4x2xf32>
    %c0_30 = arith.constant 0 : index
    %c0_31 = arith.constant 0 : index
    %31 = vector.load %arg8[%c0_30, %c0_31] : memref<8x2xbf16, #tpu.memory_space<vmem>>, vector<8x2xbf16>
    %c6 = arith.constant 6 : index
    %c0_32 = arith.constant 0 : index
    %c0_33 = arith.constant 0 : index
    %32 = vector.load %arg1[%c6, %c0_32, %c0_33] : memref<9x4x8xbf16, #tpu.memory_space<vmem>>, vector<1x4x8xbf16>
    %33 = vector.shape_cast %32 : vector<1x4x8xbf16> to vector<4x8xbf16>
    %cst_34 = arith.constant dense<0.000000e+00> : vector<4x2xf32>
    %34 = tpu.matmul %33, %31, %cst_34 {dimension_numbers = #tpu.dot_dimension_numbers<[1], [0], [0], [1], [0, 0, 1, 1], [], []>} : vector<4x8xbf16>, vector<8x2xbf16>, vector<4x2xf32> -> vector<4x2xf32>
    %35 = arith.addf %30, %34 : vector<4x2xf32>
    %c0_35 = arith.constant 0 : index
    %c0_36 = arith.constant 0 : index
    %36 = vector.load %arg9[%c0_35, %c0_36] : memref<8x2xbf16, #tpu.memory_space<vmem>>, vector<8x2xbf16>
    %c7 = arith.constant 7 : index
    %c0_37 = arith.constant 0 : index
    %c0_38 = arith.constant 0 : index
    %37 = vector.load %arg1[%c7, %c0_37, %c0_38] : memref<9x4x8xbf16, #tpu.memory_space<vmem>>, vector<1x4x8xbf16>
    %38 = vector.shape_cast %37 : vector<1x4x8xbf16> to vector<4x8xbf16>
    %cst_39 = arith.constant dense<0.000000e+00> : vector<4x2xf32>
    %39 = tpu.matmul %38, %36, %cst_39 {dimension_numbers = #tpu.dot_dimension_numbers<[1], [0], [0], [1], [0, 0, 1, 1], [], []>} : vector<4x8xbf16>, vector<8x2xbf16>, vector<4x2xf32> -> vector<4x2xf32>
    %40 = arith.addf %35, %39 : vector<4x2xf32>
    %c0_40 = arith.constant 0 : index
    %c0_41 = arith.constant 0 : index
    %41 = vector.load %arg10[%c0_40, %c0_41] : memref<8x2xbf16, #tpu.memory_space<vmem>>, vector<8x2xbf16>
    %c8 = arith.constant 8 : index
    %c0_42 = arith.constant 0 : index
    %c0_43 = arith.constant 0 : index
    %42 = vector.load %arg1[%c8, %c0_42, %c0_43] : memref<9x4x8xbf16, #tpu.memory_space<vmem>>, vector<1x4x8xbf16>
    %43 = vector.shape_cast %42 : vector<1x4x8xbf16> to vector<4x8xbf16>
    %cst_44 = arith.constant dense<0.000000e+00> : vector<4x2xf32>
    %44 = tpu.matmul %43, %41, %cst_44 {dimension_numbers = #tpu.dot_dimension_numbers<[1], [0], [0], [1], [0, 0, 1, 1], [], []>} : vector<4x8xbf16>, vector<8x2xbf16>, vector<4x2xf32> -> vector<4x2xf32>
    %45 = arith.addf %40, %44 : vector<4x2xf32>
    %c0_45 = arith.constant 0 : index
    %c0_46 = arith.constant 0 : index
    %46 = vector.load %arg11[%c0_45, %c0_46] : memref<4x2xf32, #tpu.memory_space<vmem>>, vector<4x2xf32>
    tpu.vector_store %arg11[%c0_45, %c0_46], %45 {strides = array<i32>} : memref<4x2xf32, #tpu.memory_space<vmem>>, vector<4x2xf32>,
    return
  }
  func.func @transform_0(%arg0: i32) -> (i32, i32, i32) {
    %c0_i32 = arith.constant 0 : i32
    %c0_i32_0 = arith.constant 0 : i32
    %c0_i32_1 = arith.constant 0 : i32
    %c0_i32_2 = arith.constant 0 : i32
    return %c0_i32, %c0_i32_0, %c0_i32_1 : i32, i32, i32
  }
  func.func @transform_1(%arg0: i32) -> (i32, i32) {
    %c0_i32 = arith.constant 0 : i32
    %c0_i32_0 = arith.constant 0 : i32
    return %c0_i32, %arg0 : i32, i32
  }
  func.func @transform_2(%arg0: i32) -> (i32, i32) {
    %c0_i32 = arith.constant 0 : i32
    %c0_i32_0 = arith.constant 0 : i32
    return %c0_i32, %arg0 : i32, i32
  }
  func.func @transform_3(%arg0: i32) -> (i32, i32) {
    %c0_i32 = arith.constant 0 : i32
    %c0_i32_0 = arith.constant 0 : i32
    return %c0_i32, %arg0 : i32, i32
  }
  func.func @transform_4(%arg0: i32) -> (i32, i32) {
    %c0_i32 = arith.constant 0 : i32
    %c0_i32_0 = arith.constant 0 : i32
    return %c0_i32, %arg0 : i32, i32
  }
  func.func @transform_5(%arg0: i32) -> (i32, i32) {
    %c0_i32 = arith.constant 0 : i32
    %c0_i32_0 = arith.constant 0 : i32
    return %c0_i32, %arg0 : i32, i32
  }
  func.func @transform_6(%arg0: i32) -> (i32, i32) {
    %c0_i32 = arith.constant 0 : i32
    %c0_i32_0 = arith.constant 0 : i32
    return %c0_i32, %arg0 : i32, i32
  }
  func.func @transform_7(%arg0: i32) -> (i32, i32) {
    %c0_i32 = arith.constant 0 : i32
    %c0_i32_0 = arith.constant 0 : i32
    return %c0_i32, %arg0 : i32, i32
  }
  func.func @transform_8(%arg0: i32) -> (i32, i32) {
    %c0_i32 = arith.constant 0 : i32
    %c0_i32_0 = arith.constant 0 : i32
    return %c0_i32, %arg0 : i32, i32
  }
  func.func @transform_9(%arg0: i32) -> (i32, i32) {
    %c0_i32 = arith.constant 0 : i32
    %c0_i32_0 = arith.constant 0 : i32
    return %c0_i32, %arg0 : i32, i32
  }
  func.func @transform_10(%arg0: i32) -> (i32, i32) {
    %c0_i32 = arith.constant 0 : i32
    %c0_i32_0 = arith.constant 0 : i32
    return %c0_i32, %arg0 : i32, i32
  }
}

module attributes {stable_mosaic.version = 11 : i64} {
  func.func @_bn_relu_kernel(%arg0: i32, %arg1: memref<16x2xf32, #tpu.memory_space<vmem>>, %arg2: memref<16x1xf32, #tpu.memory_space<vmem>>, %arg3: memref<16x1xf32, #tpu.memory_space<vmem>>, %arg4: memref<16x2xf32, #tpu.memory_space<vmem>>) attributes {dimension_semantics = [#tpu.dimension_semantics<parallel>], iteration_bounds = array<i64: 1>, scalar_prefetch = 0 : i64, scratch_operands = 0 : i64, tpu.core_type = #tpu.core_type<tc>, window_params = [{pipeline_mode = #tpu.pipeline_mode<synchronous>, transform_indices = @transform_0, window_bounds = array<i64: 16, 2>}, {pipeline_mode = #tpu.pipeline_mode<synchronous>, transform_indices = @transform_1, window_bounds = array<i64: 16, 1>}, {pipeline_mode = #tpu.pipeline_mode<synchronous>, transform_indices = @transform_2, window_bounds = array<i64: 16, 1>}, {pipeline_mode = #tpu.pipeline_mode<synchronous>, transform_indices = @transform_3, window_bounds = array<i64: 16, 2>}]} {
    %c0 = arith.constant 0 : index
    %c0_0 = arith.constant 0 : index
    %0 = vector.load %arg1[%c0, %c0_0] : memref<16x2xf32, #tpu.memory_space<vmem>>, vector<16x2xf32>
    %c0_1 = arith.constant 0 : index
    %c0_2 = arith.constant 0 : index
    %1 = vector.load %arg2[%c0_1, %c0_2] : memref<16x1xf32, #tpu.memory_space<vmem>>, vector<16x1xf32>
    %2 = vector.broadcast %1 : vector<16x1xf32> to vector<16x2xf32>
    %3 = arith.mulf %0, %2 : vector<16x2xf32>
    %c0_3 = arith.constant 0 : index
    %c0_4 = arith.constant 0 : index
    %4 = vector.load %arg3[%c0_3, %c0_4] : memref<16x1xf32, #tpu.memory_space<vmem>>, vector<16x1xf32>
    %5 = vector.broadcast %4 : vector<16x1xf32> to vector<16x2xf32>
    %6 = arith.addf %3, %5 : vector<16x2xf32>
    %cst = arith.constant 0.000000e+00 : f32
    %7 = vector.broadcast %cst : f32 to vector<16x2xf32>
    %8 = arith.maximumf %6, %7 : vector<16x2xf32>
    %c0_5 = arith.constant 0 : index
    %c0_6 = arith.constant 0 : index
    %9 = vector.load %arg4[%c0_5, %c0_6] : memref<16x2xf32, #tpu.memory_space<vmem>>, vector<16x2xf32>
    tpu.vector_store %arg4[%c0_5, %c0_6], %8 {strides = array<i32>} : memref<16x2xf32, #tpu.memory_space<vmem>>, vector<16x2xf32>,
    return
  }
  func.func @transform_0(%arg0: i32) -> (i32, i32) {
    %c0_i32 = arith.constant 0 : i32
    %c0_i32_0 = arith.constant 0 : i32
    %c0_i32_1 = arith.constant 0 : i32
    return %c0_i32, %c0_i32_0 : i32, i32
  }
  func.func @transform_1(%arg0: i32) -> (i32, i32) {
    %c0_i32 = arith.constant 0 : i32
    %c0_i32_0 = arith.constant 0 : i32
    %c0_i32_1 = arith.constant 0 : i32
    return %c0_i32, %c0_i32_0 : i32, i32
  }
  func.func @transform_2(%arg0: i32) -> (i32, i32) {
    %c0_i32 = arith.constant 0 : i32
    %c0_i32_0 = arith.constant 0 : i32
    %c0_i32_1 = arith.constant 0 : i32
    return %c0_i32, %c0_i32_0 : i32, i32
  }
  func.func @transform_3(%arg0: i32) -> (i32, i32) {
    %c0_i32 = arith.constant 0 : i32
    %c0_i32_0 = arith.constant 0 : i32
    %c0_i32_1 = arith.constant 0 : i32
    return %c0_i32, %c0_i32_0 : i32, i32
  }
}

</mosaic_0001>

<llo_original>
// kernel: e_densenet_forward.25
$region0: #{e_densenet_forward.25}
  #allocation0 [shape = 'u32[]', space=smem, size = 0x4, offset = 0x4, fixed_abs, tag = 'smem constant byte address 0x4 - core index']
  #allocation1 [shape = 'u32[144,128]{1,0:T(1,128)}', space=vmem, size = 0x12000, scoped, tag = 'internal scratch']
  %s0 = inlined_call_operand.vmem [shape: bf16[1,8,147], index: 0, kind: input, shape index: {}]
  %s1 = inlined_call_operand.vmem [shape: f32[8,1], index: 1, kind: input, shape index: {}]
  %s2 = inlined_call_operand.vmem [shape: f32[8,1], index: 2, kind: input, shape index: {}]
  %s3 = inlined_call_operand.vmem [shape: f32[147,512], index: 3, kind: input, shape index: {}]
  %s4 = inlined_call_operand.vmem [shape: f32[8,512], index: 4, kind: output, shape index: {}]
  %s5 = sld [smem:[#allocation0]]
  $region72: #{e_densenet_forward.25} parent=0
    _
  %s7 = ssub.s32 1, %s5
  %s8 = scalar_select 0, %s7, %s5
  $region1: #{e_densenet_forward.25} parent=0
    #allocation2 [shape = 'u8[311296]{0}', space=vmem, size = 0x4c000, scoped, tag = 'input window, operand 3']
    loop: start=0, step=1, limit=4
    $region2: #{e_densenet_forward.25} parent=1 // loop_pre_header
      _
    $region3: #{e_densenet_forward.25} parent=1 // loop_header
      %s10 = sphi 0, %s14
      %p11 = scmp.ge.s32.totalorder %s10, 4
      %s18 = sphi 0, %s18
      %s20 = sphi 0, %s18
      %s21 = sphi 0, %s20
      %s35 = sphi 0, %s21
      %s39 = sphi 0, %s39
      %s41 = sphi 0, %s39
      %s42 = sphi 0, %s41
      %s56 = sphi 0, %s42
      %s60 = sphi 0, %s60
      %s62 = sphi 0, %s60
      %s63 = sphi 0, %s62
      %s77 = sphi 0, %s63
      %s83 = sphi 0, %s85
      %s86 = sphi 0, %s83
      %s87 = sphi 0, %s86
      %s103 = sphi 0, %s87
      %s109 = sphi 0, %s111
      %s112 = sphi 0, %s109
      %s113 = sphi 0, %s112
      %s129 = sphi 0, %s113
    $region4: #{e_densenet_forward.25} parent=1 // loop_header_branch
      %13 = sbr.rel (%p11) target = $region8
    $region5: #{e_densenet_forward.25} parent=1 // loop_body
      %s15 = ssub.s32 %s10, 1
      %s16 = ssub.s32 %s10, 2
      %s17 = sadd.s32 %s10, 1
      %s19 = sadd.s32 %s18, 1
      %p22 = scmp.eq.s32.totalorder %s10, 1
      %p23 = scmp.ne.s32.totalorder %s18, %s20
      %p24 = scmp.eq.s32.totalorder %s10, 0
      %p25 = por %p23, %p24
      %p26 = scmp.ne.s32.totalorder %s18, %s20
      %p27 = scmp.eq.s32.totalorder %s15, 1
      %p28 = por %p26, %p27
      %p29 = scmp.ne.s32.totalorder %s20, %s21
      %p30 = scmp.eq.s32.totalorder %s15, 0
      %p31 = por %p29, %p30
      %p32 = scmp.ne.s32.totalorder %s20, %s21
      %p33 = scmp.eq.s32.totalorder %s16, 1
      %p34 = por %p32, %p33
      %p36 = scmp.ne.s32.totalorder %s21, %s35
      %p37 = scmp.eq.s32.totalorder %s16, 0
      %p38 = por %p36, %p37
      %s40 = sadd.s32 %s39, 1
      %p43 = scmp.eq.s32.totalorder %s10, 1
      %p44 = scmp.ne.s32.totalorder %s39, %s41
      %p45 = scmp.eq.s32.totalorder %s10, 0
      %p46 = por %p44, %p45
      %p47 = scmp.ne.s32.totalorder %s39, %s41
      %p48 = scmp.eq.s32.totalorder %s15, 1
      %p49 = por %p47, %p48
      %p50 = scmp.ne.s32.totalorder %s41, %s42
      %p51 = scmp.eq.s32.totalorder %s15, 0
      %p52 = por %p50, %p51
      %p53 = scmp.ne.s32.totalorder %s41, %s42
      %p54 = scmp.eq.s32.totalorder %s16, 1
      %p55 = por %p53, %p54
      %p57 = scmp.ne.s32.totalorder %s42, %s56
      %p58 = scmp.eq.s32.totalorder %s16, 0
      %p59 = por %p57, %p58
      %s61 = sadd.s32 %s60, 1
      %p64 = scmp.eq.s32.totalorder %s10, 1
      %p65 = scmp.ne.s32.totalorder %s60, %s62
      %p66 = scmp.eq.s32.totalorder %s10, 0
      %p67 = por %p65, %p66
      %p68 = scmp.ne.s32.totalorder %s60, %s62
      %p69 = scmp.eq.s32.totalorder %s15, 1
      %p70 = por %p68, %p69
      %p71 = scmp.ne.s32.totalorder %s62, %s63
      %p72 = scmp.eq.s32.totalorder %s15, 0
      %p73 = por %p71, %p72
      %p74 = scmp.ne.s32.totalorder %s62, %s63
      %p75 = scmp.eq.s32.totalorder %s16, 1
      %p76 = por %p74, %p75
      %p78 = scmp.ne.s32.totalorder %s63, %s77
      %p79 = scmp.eq.s32.totalorder %s16, 0
      %p80 = por %p78, %p79
      %s81 = ssub.s32 %s10, %s17
      %p82 = scmp.eq.s32.totalorder %s81, 0
      %s84 = sadd.s32 %s83, 1
      %s85 = scalar_select %p82, %s83, %s84
      %p88 = pneg %p82
      %p89 = scmp.eq.s32.totalorder %s10, 1
      %p90 = por %p88, %p89
      %p91 = scmp.ne.s32.totalorder %s83, %s86
      %p92 = scmp.eq.s32.totalorder %s10, 0
      %p93 = por %p91, %p92
      %p94 = scmp.ne.s32.totalorder %s83, %s86
      %p95 = scmp.eq.s32.totalorder %s15, 1
      %p96 = por %p94, %p95
      %p97 = scmp.ne.s32.totalorder %s86, %s87
      %p98 = scmp.eq.s32.totalorder %s15, 0
      %p99 = por %p97, %p98
      %p100 = scmp.ne.s32.totalorder %s86, %s87
      %p101 = scmp.eq.s32.totalorder %s16, 1
      %p102 = por %p100, %p101
      %p104 = scmp.ne.s32.totalorder %s87, %s103
      %p105 = scmp.eq.s32.totalorder %s16, 0
      %p106 = por %p104, %p105
      %s107 = ssub.s32 %s10, %s17
      %p108 = scmp.eq.s32.totalorder %s107, 0
      %s110 = sadd.s32 %s109, 1
      %s111 = scalar_select %p108, %s109, %s110
      %p114 = pneg %p108
      %p115 = scmp.eq.s32.totalorder %s10, 1
      %p116 = por %p114, %p115
      %p117 = scmp.ne.s32.totalorder %s109, %s112
      %p118 = scmp.eq.s32.totalorder %s10, 0
      %p119 = por %p117, %p118
      %p120 = scmp.ne.s32.totalorder %s109, %s112
      %p121 = scmp.eq.s32.totalorder %s15, 1
      %p122 = por %p120, %p121
      %p123 = scmp.ne.s32.totalorder %s112, %s113
      %p124 = scmp.eq.s32.totalorder %s15, 0
      %p125 = por %p123, %p124
      %p126 = scmp.ne.s32.totalorder %s112, %s113
      %p127 = scmp.eq.s32.totalorder %s16, 1
      %p128 = por %p126, %p127
      %p130 = scmp.ne.s32.totalorder %s113, %s129
      %p131 = scmp.eq.s32.totalorder %s16, 0
      %p132 = por %p130, %p131
      %p133 = scmp.le.s32.totalorder 1, %s10
      %p134 = scmp.lt.s32.totalorder %s10, 3
      %p135 = pnand %p133, %p134
      %p136 = pneg %p135
      // Predicated region
      $region9: #{e_densenet_forward.25} parent=5 // pred_check
        _
      $region10: #{e_densenet_forward.25} parent=5 // pred_check_branch
        %138 = sbr.rel (%p135) target = $region12
      $region11: #{e_densenet_forward.25} parent=5 // pred_region
        %s139 = ssub.s32 %s10, 1
        // Predicated region
        $region13: #{e_densenet_forward.25} parent=11 // pred_check
          %p140 = pneg %p31
        $region14: #{e_densenet_forward.25} parent=11 // pred_check_branch
          %142 = sbr.rel (%p140) target = $region16
        $region15: #{e_densenet_forward.25} parent=11 // pred_region
          _
        $region16: #{e_densenet_forward.25} parent=11 // pred_fallthru
          _
        // Predicated region
        $region17: #{e_densenet_forward.25} parent=11 // pred_check
          %p143 = pneg %p52
        $region18: #{e_densenet_forward.25} parent=11 // pred_check_branch
          %145 = sbr.rel (%p143) target = $region20
        $region19: #{e_densenet_forward.25} parent=11 // pred_region
          _
        $region20: #{e_densenet_forward.25} parent=11 // pred_fallthru
          _
        // Predicated region
        $region21: #{e_densenet_forward.25} parent=11 // pred_check
          %p146 = pneg %p73
        $region22: #{e_densenet_forward.25} parent=11 // pred_check_branch
          %148 = sbr.rel (%p146) target = $region24
        $region23: #{e_densenet_forward.25} parent=11 // pred_region
          _
        $region24: #{e_densenet_forward.25} parent=11 // pred_fallthru
          _
      $region12: #{e_densenet_forward.25} parent=5 // pred_fallthru
        _
      %p149 = scmp.lt.s32.totalorder %s10, 2
      // Predicated region
      $region25: #{e_densenet_forward.25} parent=5 // pred_check
        %p150 = pneg %p149
      $region26: #{e_densenet_forward.25} parent=5 // pred_check_branch
        %152 = sbr.rel (%p150) target = $region28
      $region27: #{e_densenet_forward.25} parent=5 // pred_region
        // Predicated region
        $region29: #{e_densenet_forward.25} parent=27 // pred_check
          %p153 = pneg %p93
        $region30: #{e_densenet_forward.25} parent=27 // pred_check_branch
          %155 = sbr.rel (%p153) target = $region32
        $region31: #{e_densenet_forward.25} parent=27 // pred_region
          %s156 = sand.u32 %s83, 1
          %s157 = sand.u32 %s83, 1
          %s158 = smul.addr %s157, 304
          %s159 = scalar_lea.vmem [#allocation2], %s158
          %s160 = smul.u32 2, %s10
          %s161 = smul.addr %s160, 8
          %s162 = scalar_lea.vmem %s3, %s161
          // Predicated region
          $region33: #{e_densenet_forward.25} parent=31 // pred_check
            _
          $region34: #{e_densenet_forward.25} parent=31 // pred_check_branch
            %164 = sbr.rel (0) target = $region36
          $region35: #{e_densenet_forward.25} parent=31 // pred_region
            // Predicated region
            $region37: #{e_densenet_forward.25} parent=35 // pred_check
              _
            $region38: #{e_densenet_forward.25} parent=35 // pred_check_branch
              %166 = sbr.rel (0) target = $region40
            $region39: #{e_densenet_forward.25} parent=35 // pred_region
              loop: start=0, step=1, limit=1
              $region41: #{e_densenet_forward.25} parent=39 // loop_pre_header
                _
              $region42: #{e_densenet_forward.25} parent=39 // loop_header
                %s168 = sphi 0, %s172
                %p169 = scmp.ge.s32.totalorder %s168, 1
                %s173 = sphi %s162, %s162
                %s174 = sphi %s159, %s159
              $region43: #{e_densenet_forward.25} parent=39 // loop_header_branch
                %171 = sbr.rel (%p169) target = $region47
              $region44: #{e_densenet_forward.25} parent=39 // loop_body
                %v175 = vld [vmem:[%s173] sm:$0xff]
                %176 = vst [vmem:[%s174] sm:$0xff] %v175
                %v177 = vld [vmem:[%s173 + $0x8] sm:$0xff]
                %178 = vst [vmem:[%s174 + $0x8] sm:$0xff] %v177
                %v179 = vld [vmem:[%s173 + $0x20] sm:$0xff]
                %180 = vst [vmem:[%s174 + $0x10] sm:$0xff] %v179
                %v181 = vld [vmem:[%s173 + $0x28] sm:$0xff]
                %182 = vst [vmem:[%s174 + $0x18] sm:$0xff] %v181
                %v183 = vld [vmem:[%s173 + $0x40] sm:$0xff]
                %184 = vst [vmem:[%s174 + $0x20] sm:$0xff] %v183
                %v185 = vld [vmem:[%s173 + $0x48] sm:$0xff]
                %186 = vst [vmem:[%s174 + $0x28] sm:$0xff] %v185
                %v187 = vld [vmem:[%s173 + $0x60] sm:$0xff]
                %188 = vst [vmem:[%s174 + $0x30] sm:$0xff] %v187
                %v189 = vld [vmem:[%s173 + $0x68] sm:$0xff]
                %190 = vst [vmem:[%s174 + $0x38] sm:$0xff] %v189
                %v191 = vld [vmem:[%s173 + $0x80] sm:$0xff]
                %192 = vst [vmem:[%s174 + $0x40] sm:$0xff] %v191
                %v193 = vld [vmem:[%s173 + $0x88] sm:$0xff]
                %194 = vst [vmem:[%s174 + $0x48] sm:$0xff] %v193
                %v195 = vld [vmem:[%s173 + $0xa0] sm:$0xff]
                %196 = vst [vmem:[%s174 + $0x50] sm:$0xff] %v195
                %v197 = vld [vmem:[%s173 + $0xa8] sm:$0xff]
                %198 = vst [vmem:[%s174 + $0x58] sm:$0xff] %v197
                %v199 = vld [vmem:[%s173 + $0xc0] sm:$0xff]
                %200 = vst [vmem:[%s174 + $0x60] sm:$0xff] %v199
                %v201 = vld [vmem:[%s173 + $0xc8] sm:$0xff]
                %202 = vst [vmem:[%s174 + $0x68] sm:$0xff] %v201
                %v203 = vld [vmem:[%s173 + $0xe0] sm:$0xff]
                %204 = vst [vmem:[%s174 + $0x70] sm:$0xff] %v203
                %v205 = vld [vmem:[%s173 + $0xe8] sm:$0xff]
                %206 = vst [vmem:[%s174 + $0x78] sm:$0xff] %v205
                %v207 = vld [vmem:[%s173 + $0x100] sm:$0xff]
                %208 = vst [vmem:[%s174 + $0x80] sm:$0xff] %v207
                %v209 = vld [vmem:[%s173 + $0x108] sm:$0xff]
                %210 = vst [vmem:[%s174 + $0x88] sm:$0xff] %v209
                %v211 = vld [vmem:[%s173 + $0x120] sm:$0xff]
                %212 = vst [vmem:[%s174 + $0x90] sm:$0xff] %v211
                %v213 = vld [vmem:[%s173 + $0x128] sm:$0xff]
                %214 = vst [vmem:[%s174 + $0x98] sm:$0xff] %v213
                %v215 = vld [vmem:[%s173 + $0x140] sm:$0xff]
                %216 = vst [vmem:[%s174 + $0xa0] sm:$0xff] %v215
                %v217 = vld [vmem:[%s173 + $0x148] sm:$0xff]
                %218 = vst [vmem:[%s174 + $0xa8] sm:$0xff] %v217
                %v219 = vld [vmem:[%s173 + $0x160] sm:$0xff]
                %220 = vst [vmem:[%s174 + $0xb0] sm:$0xff] %v219
                %v221 = vld [vmem:[%s173 + $0x168] sm:$0xff]
                %222 = vst [vmem:[%s174 + $0xb8] sm:$0xff] %v221
                %v223 = vld [vmem:[%s173 + $0x180] sm:$0xff]
                %224 = vst [vmem:[%s174 + $0xc0] sm:$0xff] %v223
                %v225 = vld [vmem:[%s173 + $0x188] sm:$0xff]
                %226 = vst [vmem:[%s174 + $0xc8] sm:$0xff] %v225
                %v227 = vld [vmem:[%s173 + $0x1a0] sm:$0xff]
                %228 = vst [vmem:[%s174 + $0xd0] sm:$0xff] %v227
                %v229 = vld [vmem:[%s173 + $0x1a8] sm:$0xff]
                %230 = vst [vmem:[%s174 + $0xd8] sm:$0xff] %v229
                %v231 = vld [vmem:[%s173 + $0x1c0] sm:$0xff]
                %232 = vst [vmem:[%s174 + $0xe0] sm:$0xff] %v231
                %v233 = vld [vmem:[%s173 + $0x1c8] sm:$0xff]
                %234 = vst [vmem:[%s174 + $0xe8] sm:$0xff] %v233
                %v235 = vld [vmem:[%s173 + $0x1e0] sm:$0xff]
                %236 = vst [vmem:[%s174 + $0xf0] sm:$0xff] %v235
                %v237 = vld [vmem:[%s173 + $0x1e8] sm:$0xff]
                %238 = vst [vmem:[%s174 + $0xf8] sm:$0xff] %v237
                %v239 = vld [vmem:[%s173 + $0x200] sm:$0xff]
                %240 = vst [vmem:[%s174 + $0x100] sm:$0xff] %v239
                %v241 = vld [vmem:[%s173 + $0x208] sm:$0xff]
                %242 = vst [vmem:[%s174 + $0x108] sm:$0xff] %v241
                %v243 = vld [vmem:[%s173 + $0x220] sm:$0xff]
                %244 = vst [vmem:[%s174 + $0x110] sm:$0xff] %v243
                %v245 = vld [vmem:[%s173 + $0x228] sm:$0xff]
                %246 = vst [vmem:[%s174 + $0x118] sm:$0xff] %v245
                %v247 = vld [vmem:[%s173 + $0x240] sm:$0xff]
                %248 = vst [vmem:[%s174 + $0x120] sm:$0xff] %v247
                %v249 = vld [vmem:[%s173 + $0x248] sm:$0xff]
                %250 = vst [vmem:[%s174 + $0x128] sm:$0xff] %v249
              $region45: #{e_densenet_forward.25} parent=39 // loop_footer
                %s172 = sadd.s32 1, %s168
              $region46: #{e_densenet_forward.25} parent=39 // loop_footer_branch
                %167 = sbr.rel target = $region42
              $region47: #{e_densenet_forward.25} parent=39 // loop_exit
                _
            $region40: #{e_densenet_forward.25} parent=35 // pred_fallthru
              _
            // Predicated region
            $region48: #{e_densenet_forward.25} parent=35 // pred_check
              _
            $region49: #{e_densenet_forward.25} parent=35 // pred_check_branch
              %252 = sbr.rel target = $region51
            $region50: #{e_densenet_forward.25} parent=35 // pred_region
              _
            $region51: #{e_densenet_forward.25} parent=35 // pred_fallthru
              _
          $region36: #{e_densenet_forward.25} parent=31 // pred_fallthru
            _
          %253 = vnop
        $region32: #{e_densenet_forward.25} parent=27 // pred_fallthru
          _
      $region28: #{e_densenet_forward.25} parent=5 // pred_fallthru
        _
      %p254 = scmp.le.s32.totalorder 1, %s10
      %p255 = scmp.lt.s32.totalorder %s10, 3
      %p256 = pnand %p254, %p255
      %p257 = pneg %p256
      // Predicated region
      $region52: #{e_densenet_forward.25} parent=5 // pred_check
        _
      $region53: #{e_densenet_forward.25} parent=5 // pred_check_branch
        %259 = sbr.rel (%p256) target = $region55
      $region54: #{e_densenet_forward.25} parent=5 // pred_region
        %s260 = ssub.s32 %s10, 1
        %s261 = sand.u32 %s86, 1
        %s262 = sand.u32 %s86, 1
        %s263 = smul.addr %s262, 304
        %s264 = scalar_lea.vmem [#allocation2], %s263
        // Predicated region
        $region56: #{e_densenet_forward.25} parent=54 // pred_check
          %p265 = pneg %p99
        $region57: #{e_densenet_forward.25} parent=54 // pred_check_branch
          %267 = sbr.rel (%p265) target = $region59
        $region58: #{e_densenet_forward.25} parent=54 // pred_region
          _
        $region59: #{e_densenet_forward.25} parent=54 // pred_fallthru
          _
        %p268 = pneg %p31
        %p269 = pneg %p28
        %p270 = pneg %p52
        %p271 = pneg %p49
        %p272 = pneg %p73
        %p273 = pneg %p70
        %s274 = sand.u32 %s86, 1
        %s275 = sand.u32 %s86, 1
        %s276 = smul.addr %s275, 304
        %s277 = scalar_lea.vmem [#allocation2], %s276
        %p278 = pneg %p99
        %p279 = pneg %p96
        %p280 = pneg %p125
        %p281 = pneg %p122
        %s282 = smul.u32 2, %s15
        %p283 = scmp.lt.s32.totalorder %s282, 3
        %s284 = scalar_select %p283, %s282, 3
        %s285 = smul.addr %s284, 8
        %s286 = scalar_lea.vmem %s4, %s285
        %s287 = smul.u32 2, %s15
        %s288 = smul.u32 2, %s15
        %p289 = scmp.lt.s32.totalorder %s288, 3
        %s290 = scalar_select %p289, %s288, 3
        %s291 = smul.addr %s290, 8
        %s292 = scalar_lea.vmem %s4, %s291
        %s293 = smul.u32 2, %s15
        %v295 = vld [vmem:[%s264] sm:$0xff]
        %v296 = vld [vmem:[%s264 + $0x8] sm:$0xff]
        %v297 = vld [vmem:[%s264 + $0x10] sm:$0xff]
        %v298 = vld [vmem:[%s264 + $0x18] sm:$0xff]
        %v299 = vld [vmem:[%s264 + $0x20] sm:$0xff]
        %v300 = vld [vmem:[%s264 + $0x28] sm:$0xff]
        %v301 = vld [vmem:[%s264 + $0x30] sm:$0xff]
        %v302 = vld [vmem:[%s264 + $0x38] sm:$0xff]
        %v303 = vld [vmem:[%s264 + $0x40] sm:$0xff]
        %v304 = vld [vmem:[%s264 + $0x48] sm:$0xff]
        %v305 = vld [vmem:[%s264 + $0x50] sm:$0xff]
        %v306 = vld [vmem:[%s264 + $0x58] sm:$0xff]
        %v307 = vld [vmem:[%s264 + $0x60] sm:$0xff]
        %v308 = vld [vmem:[%s264 + $0x68] sm:$0xff]
        %v309 = vld [vmem:[%s264 + $0x70] sm:$0xff]
        %v310 = vld [vmem:[%s264 + $0x78] sm:$0xff]
        %v311 = vld [vmem:[%s264 + $0x80] sm:$0xff]
        %v312 = vld [vmem:[%s264 + $0x88] sm:$0xff]
        %v313 = vld [vmem:[%s264 + $0x90] sm:$0xff]
        %v314 = vld [vmem:[%s264 + $0x98] sm:$0xff]
        %v315 = vld [vmem:[%s264 + $0xa0] sm:$0xff]
        %v316 = vld [vmem:[%s264 + $0xa8] sm:$0xff]
        %v317 = vld [vmem:[%s264 + $0xb0] sm:$0xff]
        %v318 = vld [vmem:[%s264 + $0xb8] sm:$0xff]
        %v319 = vld [vmem:[%s264 + $0xc0] sm:$0xff]
        %v320 = vld [vmem:[%s264 + $0xc8] sm:$0xff]
        %v321 = vld [vmem:[%s264 + $0xd0] sm:$0xff]
        %v322 = vld [vmem:[%s264 + $0xd8] sm:$0xff]
        %v323 = vld [vmem:[%s264 + $0xe0] sm:$0xff]
        %v324 = vld [vmem:[%s264 + $0xe8] sm:$0xff]
        %v325 = vld [vmem:[%s264 + $0xf0] sm:$0xff]
        %v326 = vld [vmem:[%s264 + $0xf8] sm:$0xff]
        %v327 = vld [vmem:[%s264 + $0x100] sm:$0xff]
        %v328 = vld [vmem:[%s264 + $0x108] sm:$0xff]
        %v329 = vld [vmem:[%s264 + $0x110] sm:$0xff]
        %v330 = vld [vmem:[%s264 + $0x118] sm:$0xff]
        %v331 = vld [vmem:[%s264 + $0x120] sm:$0x7]
        %v332 = vld [vmem:[%s264 + $0x128] sm:$0x7]
        %v333 = vld [vmem:[%s0] sm:$0xff]
        %v334 = vpack.c.bf16 %v297, %v295
        %v335 = vpack.c.bf16 %v298, %v296
        %v336 = vpack.c.bf16 %v301, %v299
        %v337 = vpack.c.bf16 %v302, %v300
        %v338 = vpack.c.bf16 %v305, %v303
        %v339 = vpack.c.bf16 %v306, %v304
        %v340 = vpack.c.bf16 %v309, %v307
        %v341 = vpack.c.bf16 %v310, %v308
        %v342 = vpack.c.bf16 %v313, %v311
        %v343 = vpack.c.bf16 %v314, %v312
        %v344 = vpack.c.bf16 %v317, %v315
        %v345 = vpack.c.bf16 %v318, %v316
        %v346 = vpack.c.bf16 %v321, %v319
        %v347 = vpack.c.bf16 %v322, %v320
        %v348 = vpack.c.bf16 %v325, %v323
        %v349 = vpack.c.bf16 %v326, %v324
        %v350 = vpack.c.bf16 %v329, %v327
        %v351 = vpack.c.bf16 %v330, %v328
        %v352 = vpack.c.bf16 %v331, %v331
        %v353 = vpack.c.bf16 %v332, %v332
        %v355 = vunpack.c.l.b16 %v333
        %v356 = vunpack.c.h.b16 %v333
        %v357 = vpack.c.b16 %v355, %v355
        %v358 = vpack.c.b16 %v356, %v356
        %vm360 = vcmask 154624
        %v362 = vsel %vm360, %v358, 0
        %vm364 = vcmask 1040384
        %vm365 = vcmask 1041408
        %v366 = vsel %vm364, 4294967295, 65535
        %v367 = vsel %vm365, %v366, 0
        %v369 = vand.u32 %v352, %v367
        %v372 = vand.u32 %v353, %v367
        %374 = vmatprep.subr.bf16.mxu0 %v349
        %375 = vmatpush1.bf16.msra.mxu0 %v348
        %376 = vmatprep.subr.bf16.mxu0 %v347
        %377 = vmatpush1.bf16.msra.mxu0 %v346
        %378 = vmatprep.subr.bf16.mxu0 %v345
        %379 = vmatpush1.bf16.msra.mxu0 %v344
        %380 = vmatprep.subr.bf16.mxu0 %v343
        %381 = vmatpush1.bf16.msra.mxu0 %v342
        %382 = vmatprep.subr.bf16.mxu0 %v341
        %383 = vmatpush1.bf16.msra.mxu0 %v340
        %384 = vmatprep.subr.bf16.mxu0 %v339
        %385 = vmatpush1.bf16.msra.mxu0 %v338
        %386 = vmatprep.subr.bf16.mxu0 %v337
        %387 = vmatpush1.bf16.msra.mxu0 %v336
        %388 = vmatprep.subr.bf16.mxu0 %v335
        %389 = vmatpush1.bf16.msra.mxu0 %v334
        %390 = vmatprep.subr.bf16.mxu0 0
        %391 = vmatpush2.bf16.msra.mxu0 0
        %392 = vmatprep.subr.bf16.mxu0 0
        %393 = vmatpush2.bf16.msra.mxu0 0
        %394 = vmatprep.subr.bf16.mxu0 0
        %395 = vmatpush2.bf16.msra.mxu0 0
        %396 = vmatprep.subr.bf16.mxu0 0
        %397 = vmatpush2.bf16.msra.mxu0 0
        %398 = vmatprep.subr.bf16.mxu0 0
        %399 = vmatpush2.bf16.msra.mxu0 0
        %400 = vmatprep.subr.bf16.mxu0 0
        %401 = vmatpush2.bf16.msra.mxu0 0
        %402 = vmatprep.subr.bf16.mxu0 %v372
        %403 = vmatpush2.bf16.msra.mxu0 %v369
        %404 = vmatprep.subr.bf16.mxu0 %v351
        %405 = vmatpush2.bf16.msra.mxu0 %v350
        %406 = vmatprep.mubr.bf16.mxu0 %v362
        %407 = vmatmul.mubr.bf16.gmra.mxu0 %v357
        %v408 = vpop.f32.mrf.mxu0
        %v409 = vadd.f32 0.0, %v408
        %v410 = vpop.f32.mrf.mxu0
        %v411 = vadd.f32 0.0, %v410
        %v412 = vpop.f32.mrf.mxu0
        %v413 = vpop.f32.mrf.mxu0
        %414 = vdwg.mxu0
        %v415 = vld [vmem:[%s1] sm:$0xff]
        %417 = vset.pattern.permute.xlu0 0
        %418 = vperm.xlu0 %417, %v415
        %v419 = vpop.permute.xlu0 %418
        %v421 = vmul.f32 %v409, %v419
        %v422 = vmul.f32 %v411, %v419
        %v423 = vld [vmem:[%s2] sm:$0xff]
        %425 = vset.pattern.permute.xlu0 0
        %426 = vperm.xlu0 %425, %v423
        %v427 = vpop.permute.xlu0 %426
        %v429 = vadd.f32 %v421, %v427
        %v430 = vadd.f32 %v422, %v427
        %v431 = vmax.f32 %v429, 0.0
        %v432 = vmax.f32 %v430, 0.0
        %433 = vst [vmem:[%s292] sm:$0xff] %v431
        %434 = vst [vmem:[%s292 + $0x8] sm:$0xff] %v432
        %s435 = smul.u32 2, %s15
        %p436 = scmp.lt.s32.totalorder %s435, 3
        %s437 = scalar_select %p436, %s435, 3
        %s438 = smul.addr %s437, 8
        %s439 = scalar_lea.vmem %s4, %s438
        // Predicated region
        $region60: #{e_densenet_forward.25} parent=54 // pred_check
          %p440 = pneg %p122
        $region61: #{e_densenet_forward.25} parent=54 // pred_check_branch
          %442 = sbr.rel (%p440) target = $region63
        $region62: #{e_densenet_forward.25} parent=54 // pred_region
          %s443 = smul.u32 2, %s15
        $region63: #{e_densenet_forward.25} parent=54 // pred_fallthru
          _
      $region55: #{e_densenet_forward.25} parent=5 // pred_fallthru
        _
      %p444 = scmp.le.s32.totalorder 2, %s10
      // Predicated region
      $region64: #{e_densenet_forward.25} parent=5 // pred_check
        %p445 = pneg %p444
      $region65: #{e_densenet_forward.25} parent=5 // pred_check_branch
        %447 = sbr.rel (%p445) target = $region67
      $region66: #{e_densenet_forward.25} parent=5 // pred_region
        %s448 = ssub.s32 %s10, 2
        // Predicated region
        $region68: #{e_densenet_forward.25} parent=66 // pred_check
          %p449 = pneg %p128
        $region69: #{e_densenet_forward.25} parent=66 // pred_check_branch
          %451 = sbr.rel (%p449) target = $region71
        $region70: #{e_densenet_forward.25} parent=66 // pred_region
          %s452 = smul.u32 2, %s16
          %p453 = scmp.lt.s32.totalorder %s452, 3
          %s454 = scalar_select %p453, %s452, 3
          %s455 = smul.addr %s454, 8
          %s456 = scalar_lea.vmem %s4, %s455
        $region71: #{e_densenet_forward.25} parent=66 // pred_fallthru
          _
      $region67: #{e_densenet_forward.25} parent=5 // pred_fallthru
        _
    $region6: #{e_densenet_forward.25} parent=1 // loop_footer
      %s14 = sadd.s32 1, %s10
    $region7: #{e_densenet_forward.25} parent=1 // loop_footer_branch
      %9 = sbr.rel target = $region3
    $region8: #{e_densenet_forward.25} parent=1 // loop_exit
      _

// kernel: e_densenet_forward.26
$region0: #{e_densenet_forward.26}
  #allocation0 [shape = 'u32[]', space=smem, size = 0x4, offset = 0x4, fixed_abs, tag = 'smem constant byte address 0x4 - core index']
  #allocation1 [shape = 'u32[144,128]{1,0:T(1,128)}', space=vmem, size = 0x12000, scoped, tag = 'internal scratch']
  %s0 = inlined_call_operand.vmem [shape: f32[8,128], index: 0, kind: input, shape index: {}]
  %s1 = inlined_call_operand.vmem [shape: f32[8,128], index: 1, kind: input, shape index: {}]
  %s2 = inlined_call_operand.vmem [shape: f32[8,128], index: 2, kind: input, shape index: {}]
  %s3 = inlined_call_operand.vmem [shape: f32[8,128], index: 3, kind: input, shape index: {}]
  %s4 = inlined_call_operand.vmem [shape: f32[8,128], index: 4, kind: input, shape index: {}]
  %s5 = inlined_call_operand.vmem [shape: f32[8,128], index: 5, kind: input, shape index: {}]
  %s6 = inlined_call_operand.vmem [shape: f32[8,128], index: 6, kind: input, shape index: {}]
  %s7 = inlined_call_operand.vmem [shape: f32[8,128], index: 7, kind: input, shape index: {}]
  %s8 = inlined_call_operand.vmem [shape: f32[8,128], index: 8, kind: input, shape index: {}]
  %s9 = inlined_call_operand.vmem [shape: f32[8,128], index: 9, kind: output, shape index: {}]
  %s10 = sld [smem:[#allocation0]]
  $region46: #{e_densenet_forward.26} parent=0
    _
  %s12 = ssub.s32 1, %s10
  %s13 = scalar_select 0, %s12, %s10
  // Predicated region
  $region2: #{e_densenet_forward.26} parent=0 // pred_check
    _
  $region3: #{e_densenet_forward.26} parent=0 // pred_check_branch
    %15 = sbr.rel (0) target = $region5
  $region4: #{e_densenet_forward.26} parent=0 // pred_region
    _
  $region5: #{e_densenet_forward.26} parent=0 // pred_fallthru
    _
  // Predicated region
  $region6: #{e_densenet_forward.26} parent=0 // pred_check
    _
  $region7: #{e_densenet_forward.26} parent=0 // pred_check_branch
    %17 = sbr.rel (0) target = $region9
  $region8: #{e_densenet_forward.26} parent=0 // pred_region
    _
  $region9: #{e_densenet_forward.26} parent=0 // pred_fallthru
    _
  // Predicated region
  $region10: #{e_densenet_forward.26} parent=0 // pred_check
    _
  $region11: #{e_densenet_forward.26} parent=0 // pred_check_branch
    %19 = sbr.rel (0) target = $region13
  $region12: #{e_densenet_forward.26} parent=0 // pred_region
    _
  $region13: #{e_densenet_forward.26} parent=0 // pred_fallthru
    _
  // Predicated region
  $region14: #{e_densenet_forward.26} parent=0 // pred_check
    _
  $region15: #{e_densenet_forward.26} parent=0 // pred_check_branch
    %21 = sbr.rel (0) target = $region17
  $region16: #{e_densenet_forward.26} parent=0 // pred_region
    _
  $region17: #{e_densenet_forward.26} parent=0 // pred_fallthru
    _
  // Predicated region
  $region18: #{e_densenet_forward.26} parent=0 // pred_check
    _
  $region19: #{e_densenet_forward.26} parent=0 // pred_check_branch
    %23 = sbr.rel (0) target = $region21
  $region20: #{e_densenet_forward.26} parent=0 // pred_region
    _
  $region21: #{e_densenet_forward.26} parent=0 // pred_fallthru
    _
  // Predicated region
  $region22: #{e_densenet_forward.26} parent=0 // pred_check
    _
  $region23: #{e_densenet_forward.26} parent=0 // pred_check_branch
    %25 = sbr.rel (0) target = $region25
  $region24: #{e_densenet_forward.26} parent=0 // pred_region
    _
  $region25: #{e_densenet_forward.26} parent=0 // pred_fallthru
    _
  // Predicated region
  $region26: #{e_densenet_forward.26} parent=0 // pred_check
    _
  $region27: #{e_densenet_forward.26} parent=0 // pred_check_branch
    %27 = sbr.rel (0) target = $region29
  $region28: #{e_densenet_forward.26} parent=0 // pred_region
    _
  $region29: #{e_densenet_forward.26} parent=0 // pred_fallthru
    _
  // Predicated region
  $region30: #{e_densenet_forward.26} parent=0 // pred_check
    _
  $region31: #{e_densenet_forward.26} parent=0 // pred_check_branch
    %29 = sbr.rel (0) target = $region33
  $region32: #{e_densenet_forward.26} parent=0 // pred_region
    _
  $region33: #{e_densenet_forward.26} parent=0 // pred_fallthru
    _
  // Predicated region
  $region34: #{e_densenet_forward.26} parent=0 // pred_check
    _
  $region35: #{e_densenet_forward.26} parent=0 // pred_check_branch
    %31 = sbr.rel (0) target = $region37
  $region36: #{e_densenet_forward.26} parent=0 // pred_region
    _
  $region37: #{e_densenet_forward.26} parent=0 // pred_fallthru
    _
  %v32 = vld [vmem:[%s0] sm:$0xff]
  %v33 = vld [vmem:[%s1] sm:$0xff]
  %v34 = vmax.f32 %v32, %v33
  %v35 = vld [vmem:[%s2] sm:$0xff]
  %v36 = vmax.f32 %v34, %v35
  %v37 = vld [vmem:[%s3] sm:$0xff]
  %v38 = vmax.f32 %v36, %v37
  %v39 = vld [vmem:[%s4] sm:$0xff]
  %v40 = vmax.f32 %v38, %v39
  %v41 = vld [vmem:[%s5] sm:$0xff]
  %v42 = vmax.f32 %v40, %v41
  %v43 = vld [vmem:[%s6] sm:$0xff]
  %v44 = vmax.f32 %v42, %v43
  %v45 = vld [vmem:[%s7] sm:$0xff]
  %v46 = vmax.f32 %v44, %v45
  %v47 = vld [vmem:[%s8] sm:$0xff]
  %v48 = vmax.f32 %v46, %v47
  %49 = vst [vmem:[%s9] sm:$0xff] %v48
  // Predicated region
  $region38: #{e_densenet_forward.26} parent=0 // pred_check
    _
  $region39: #{e_densenet_forward.26} parent=0 // pred_check_branch
    %51 = sbr.rel (0) target = $region41
  $region40: #{e_densenet_forward.26} parent=0 // pred_region
    _
  $region41: #{e_densenet_forward.26} parent=0 // pred_fallthru
    _
  // Predicated region
  $region42: #{e_densenet_forward.26} parent=0 // pred_check
    _
  $region43: #{e_densenet_forward.26} parent=0 // pred_check_branch
    %53 = sbr.rel (0) target = $region45
  $region44: #{e_densenet_forward.26} parent=0 // pred_region
    _
  $region45: #{e_densenet_forward.26} parent=0 // pred_fallthru
    _

// kernel: e_densenet_forward.27
$region0: #{e_densenet_forward.27}
  #allocation0 [shape = 'u32[]', space=smem, size = 0x4, offset = 0x4, fixed_abs, tag = 'smem constant byte address 0x4 - core index']
  #allocation1 [shape = 'u32[144,128]{1,0:T(1,128)}', space=vmem, size = 0x12000, scoped, tag = 'internal scratch']
  %s0 = inlined_call_operand.vmem [shape: bf16[1,8,8], index: 0, kind: input, shape index: {}]
  %s1 = inlined_call_operand.vmem [shape: f32[8,1], index: 1, kind: input, shape index: {}]
  %s2 = inlined_call_operand.vmem [shape: f32[8,1], index: 2, kind: input, shape index: {}]
  %s3 = inlined_call_operand.vmem [shape: f32[8,1], index: 3, kind: input, shape index: {}]
  %s4 = inlined_call_operand.vmem [shape: f32[8,1], index: 4, kind: input, shape index: {}]
  %s5 = inlined_call_operand.vmem [shape: f32[8,128], index: 5, kind: input, shape index: {}]
  %s6 = inlined_call_operand.vmem [shape: bf16[8,128], index: 6, kind: output, shape index: {}]
  %s7 = sld [smem:[#allocation0]]
  $region34: #{e_densenet_forward.27} parent=0
    _
  %s9 = ssub.s32 1, %s7
  %s10 = scalar_select 0, %s9, %s7
  // Predicated region
  $region2: #{e_densenet_forward.27} parent=0 // pred_check
    _
  $region3: #{e_densenet_forward.27} parent=0 // pred_check_branch
    %12 = sbr.rel (0) target = $region5
  $region4: #{e_densenet_forward.27} parent=0 // pred_region
    _
  $region5: #{e_densenet_forward.27} parent=0 // pred_fallthru
    _
  // Predicated region
  $region6: #{e_densenet_forward.27} parent=0 // pred_check
    _
  $region7: #{e_densenet_forward.27} parent=0 // pred_check_branch
    %14 = sbr.rel (0) target = $region9
  $region8: #{e_densenet_forward.27} parent=0 // pred_region
    _
  $region9: #{e_densenet_forward.27} parent=0 // pred_fallthru
    _
  // Predicated region
  $region10: #{e_densenet_forward.27} parent=0 // pred_check
    _
  $region11: #{e_densenet_forward.27} parent=0 // pred_check_branch
    %16 = sbr.rel (0) target = $region13
  $region12: #{e_densenet_forward.27} parent=0 // pred_region
    _
  $region13: #{e_densenet_forward.27} parent=0 // pred_fallthru
    _
  // Predicated region
  $region14: #{e_densenet_forward.27} parent=0 // pred_check
    _
  $region15: #{e_densenet_forward.27} parent=0 // pred_check_branch
    %18 = sbr.rel (0) target = $region17
  $region16: #{e_densenet_forward.27} parent=0 // pred_region
    _
  $region17: #{e_densenet_forward.27} parent=0 // pred_fallthru
    _
  // Predicated region
  $region18: #{e_densenet_forward.27} parent=0 // pred_check
    _
  $region19: #{e_densenet_forward.27} parent=0 // pred_check_branch
    %20 = sbr.rel (0) target = $region21
  $region20: #{e_densenet_forward.27} parent=0 // pred_region
    _
  $region21: #{e_densenet_forward.27} parent=0 // pred_fallthru
    _
  // Predicated region
  $region22: #{e_densenet_forward.27} parent=0 // pred_check
    _
  $region23: #{e_densenet_forward.27} parent=0 // pred_check_branch
    %22 = sbr.rel (0) target = $region25
  $region24: #{e_densenet_forward.27} parent=0 // pred_region
    _
  $region25: #{e_densenet_forward.27} parent=0 // pred_fallthru
    _
  %v24 = vld [vmem:[%s5] sm:$0xff]
  %v25 = vld [vmem:[%s1] sm:$0xff]
  %27 = vset.pattern.permute.xlu0 0
  %28 = vperm.xlu0 %27, %v25
  %v29 = vpop.permute.xlu0 %28
  %v31 = vmul.f32 %v24, %v29
  %v32 = vld [vmem:[%s2] sm:$0xff]
  %34 = vset.pattern.permute.xlu0 0
  %35 = vperm.xlu0 %34, %v32
  %v36 = vpop.permute.xlu0 %35
  %v38 = vadd.f32 %v31, %v36
  %v39 = vmax.f32 %v38, 0.0
  %v40 = vld [vmem:[%s0] sm:$0xf]
  %v41 = vpack.c.bf16 %v39, %v39
  %vm42 = vcmask 64512
  %v44 = vsel %vm42, %v40, 0
  %vm46 = vcmask 1043456
  %v48 = vsel %vm46, %v41, 0
  %50 = vmatprep.subr.bf16.mxu0 0
  %51 = vmatpush1.bf16.msra.mxu0 0
  %52 = vmatprep.subr.bf16.mxu0 0
  %53 = vmatpush1.bf16.msra.mxu0 0
  %54 = vmatprep.subr.bf16.mxu0 0
  %55 = vmatpush1.bf16.msra.mxu0 0
  %56 = vmatprep.subr.bf16.mxu0 0
  %57 = vmatpush1.bf16.msra.mxu0 0
  %58 = vmatprep.subr.bf16.mxu0 0
  %59 = vmatpush1.bf16.msra.mxu0 0
  %60 = vmatprep.subr.bf16.mxu0 0
  %61 = vmatpush1.bf16.msra.mxu0 0
  %62 = vmatprep.subr.bf16.mxu0 0
  %63 = vmatpush1.bf16.msra.mxu0 0
  %64 = vmatprep.subr.bf16.mxu0 0
  %65 = vmatpush1.bf16.msra.mxu0 %v48
  %66 = vmatprep.subr.bf16.mxu0 0
  %67 = vmatpush2.bf16.msra.mxu0 0
  %68 = vmatprep.subr.bf16.mxu0 0
  %69 = vmatpush2.bf16.msra.mxu0 0
  %70 = vmatprep.subr.bf16.mxu0 0
  %71 = vmatpush2.bf16.msra.mxu0 0
  %72 = vmatprep.subr.bf16.mxu0 0
  %73 = vmatpush2.bf16.msra.mxu0 0
  %74 = vmatprep.subr.bf16.mxu0 0
  %75 = vmatpush2.bf16.msra.mxu0 0
  %76 = vmatprep.subr.bf16.mxu0 0
  %77 = vmatpush2.bf16.msra.mxu0 0
  %78 = vmatprep.subr.bf16.mxu0 0
  %79 = vmatpush2.bf16.msra.mxu0 0
  %80 = vmatprep.subr.bf16.mxu0 0
  %81 = vmatpush2.bf16.msra.mxu0 0
  %82 = vmatprep.mubr.bf16.mxu0 0
  %83 = vmatmul.mubr.bf16.gmra.mxu0 %v44
  %v84 = vpop.f32.mrf.mxu0
  %v85 = vadd.f32 0.0, %v84
  %v86 = vpop.f32.mrf.mxu0
  %v87 = vpop.f32.mrf.mxu0
  %v88 = vpop.f32.mrf.mxu0
  %89 = vdwg.mxu0
  %v90 = vld [vmem:[%s3] sm:$0xff]
  %92 = vset.pattern.permute.xlu0 0
  %93 = vperm.xlu0 %92, %v90
  %v94 = vpop.permute.xlu0 %93
  %v96 = vmul.f32 %v85, %v94
  %v97 = vld [vmem:[%s4] sm:$0xff]
  %99 = vset.pattern.permute.xlu0 0
  %100 = vperm.xlu0 %99, %v97
  %v101 = vpop.permute.xlu0 %100
  %v103 = vadd.f32 %v96, %v101
  %v104 = vmax.f32 %v103, 0.0
  %v105 = vpack.c.bf16 %v104, %v104
  %106 = vst [vmem:[%s6] sm:$0xf] %v105
  // Predicated region
  $region26: #{e_densenet_forward.27} parent=0 // pred_check
    _
  $region27: #{e_densenet_forward.27} parent=0 // pred_check_branch
    %108 = sbr.rel (0) target = $region29
  $region28: #{e_densenet_forward.27} parent=0 // pred_region
    _
  $region29: #{e_densenet_forward.27} parent=0 // pred_fallthru
    _
  // Predicated region
  $region30: #{e_densenet_forward.27} parent=0 // pred_check
    _
  $region31: #{e_densenet_forward.27} parent=0 // pred_check_branch
    %110 = sbr.rel (0) target = $region33
  $region32: #{e_densenet_forward.27} parent=0 // pred_region
    _
  $region33: #{e_densenet_forward.27} parent=0 // pred_fallthru
    _

// kernel: e_densenet_forward.29
$region0: #{e_densenet_forward.29}
  #allocation0 [shape = 'u32[]', space=smem, size = 0x4, offset = 0x4, fixed_abs, tag = 'smem constant byte address 0x4 - core index']
  #allocation1 [shape = 'u32[144,128]{1,0:T(1,128)}', space=vmem, size = 0x12000, scoped, tag = 'internal scratch']
  %s0 = inlined_call_operand.vmem [shape: bf16[1,8,12], index: 0, kind: input, shape index: {}]
  %s1 = inlined_call_operand.vmem [shape: f32[12,1], index: 1, kind: input, shape index: {}]
  %s2 = inlined_call_operand.vmem [shape: f32[12,1], index: 2, kind: input, shape index: {}]
  %s3 = inlined_call_operand.vmem [shape: f32[8,1], index: 3, kind: input, shape index: {}]
  %s4 = inlined_call_operand.vmem [shape: f32[8,1], index: 4, kind: input, shape index: {}]
  %s5 = inlined_call_operand.vmem [shape: f32[12,128], index: 5, kind: input, shape index: {}]
  %s6 = inlined_call_operand.vmem [shape: bf16[8,128], index: 6, kind: output, shape index: {}]
  %s7 = sld [smem:[#allocation0]]
  $region34: #{e_densenet_forward.29} parent=0
    _
  %s9 = ssub.s32 1, %s7
  %s10 = scalar_select 0, %s9, %s7
  // Predicated region
  $region2: #{e_densenet_forward.29} parent=0 // pred_check
    _
  $region3: #{e_densenet_forward.29} parent=0 // pred_check_branch
    %12 = sbr.rel (0) target = $region5
  $region4: #{e_densenet_forward.29} parent=0 // pred_region
    _
  $region5: #{e_densenet_forward.29} parent=0 // pred_fallthru
    _
  // Predicated region
  $region6: #{e_densenet_forward.29} parent=0 // pred_check
    _
  $region7: #{e_densenet_forward.29} parent=0 // pred_check_branch
    %14 = sbr.rel (0) target = $region9
  $region8: #{e_densenet_forward.29} parent=0 // pred_region
    _
  $region9: #{e_densenet_forward.29} parent=0 // pred_fallthru
    _
  // Predicated region
  $region10: #{e_densenet_forward.29} parent=0 // pred_check
    _
  $region11: #{e_densenet_forward.29} parent=0 // pred_check_branch
    %16 = sbr.rel (0) target = $region13
  $region12: #{e_densenet_forward.29} parent=0 // pred_region
    _
  $region13: #{e_densenet_forward.29} parent=0 // pred_fallthru
    _
  // Predicated region
  $region14: #{e_densenet_forward.29} parent=0 // pred_check
    _
  $region15: #{e_densenet_forward.29} parent=0 // pred_check_branch
    %18 = sbr.rel (0) target = $region17
  $region16: #{e_densenet_forward.29} parent=0 // pred_region
    _
  $region17: #{e_densenet_forward.29} parent=0 // pred_fallthru
    _
  // Predicated region
  $region18: #{e_densenet_forward.29} parent=0 // pred_check
    _
  $region19: #{e_densenet_forward.29} parent=0 // pred_check_branch
    %20 = sbr.rel (0) target = $region21
  $region20: #{e_densenet_forward.29} parent=0 // pred_region
    _
  $region21: #{e_densenet_forward.29} parent=0 // pred_fallthru
    _
  // Predicated region
  $region22: #{e_densenet_forward.29} parent=0 // pred_check
    _
  $region23: #{e_densenet_forward.29} parent=0 // pred_check_branch
    %22 = sbr.rel (0) target = $region25
  $region24: #{e_densenet_forward.29} parent=0 // pred_region
    _
  $region25: #{e_densenet_forward.29} parent=0 // pred_fallthru
    _
  %v24 = vld [vmem:[%s5] sm:$0xff]
  %v25 = vld [vmem:[%s5 + $0x8] sm:$0xf]
  %v26 = vld [vmem:[%s1] sm:$0xff]
  %v27 = vld [vmem:[%s1 + $0x8] sm:$0xf]
  %29 = vset.pattern.permute.xlu0 0
  %30 = vperm.xlu0 %29, %v26
  %v31 = vpop.permute.xlu0 %30
  %34 = vset.pattern.permute.xlu0 0
  %35 = vperm.xlu0 %34, %v27
  %v36 = vpop.permute.xlu0 %35
  %v38 = vmul.f32 %v24, %v31
  %v39 = vmul.f32 %v25, %v36
  %v40 = vld [vmem:[%s2] sm:$0xff]
  %v41 = vld [vmem:[%s2 + $0x8] sm:$0xf]
  %43 = vset.pattern.permute.xlu0 0
  %44 = vperm.xlu0 %43, %v40
  %v45 = vpop.permute.xlu0 %44
  %48 = vset.pattern.permute.xlu0 0
  %49 = vperm.xlu0 %48, %v41
  %v50 = vpop.permute.xlu0 %49
  %v52 = vadd.f32 %v38, %v45
  %v53 = vadd.f32 %v39, %v50
  %v54 = vmax.f32 %v52, 0.0
  %v55 = vmax.f32 %v53, 0.0
  %v56 = vld [vmem:[%s0] sm:$0xf]
  %v57 = vpack.c.bf16 %v55, %v54
  %vm58 = vcmask 97280
  %v60 = vsel %vm58, %v56, 0
  %vm62 = vcmask 1045504
  %v64 = vsel %vm62, %v57, 0
  %66 = vmatprep.subr.bf16.mxu0 0
  %67 = vmatpush1.bf16.msra.mxu0 0
  %68 = vmatprep.subr.bf16.mxu0 0
  %69 = vmatpush1.bf16.msra.mxu0 0
  %70 = vmatprep.subr.bf16.mxu0 0
  %71 = vmatpush1.bf16.msra.mxu0 0
  %72 = vmatprep.subr.bf16.mxu0 0
  %73 = vmatpush1.bf16.msra.mxu0 0
  %74 = vmatprep.subr.bf16.mxu0 0
  %75 = vmatpush1.bf16.msra.mxu0 0
  %76 = vmatprep.subr.bf16.mxu0 0
  %77 = vmatpush1.bf16.msra.mxu0 0
  %78 = vmatprep.subr.bf16.mxu0 0
  %79 = vmatpush1.bf16.msra.mxu0 0
  %80 = vmatprep.subr.bf16.mxu0 0
  %81 = vmatpush1.bf16.msra.mxu0 %v64
  %82 = vmatprep.subr.bf16.mxu0 0
  %83 = vmatpush2.bf16.msra.mxu0 0
  %84 = vmatprep.subr.bf16.mxu0 0
  %85 = vmatpush2.bf16.msra.mxu0 0
  %86 = vmatprep.subr.bf16.mxu0 0
  %87 = vmatpush2.bf16.msra.mxu0 0
  %88 = vmatprep.subr.bf16.mxu0 0
  %89 = vmatpush2.bf16.msra.mxu0 0
  %90 = vmatprep.subr.bf16.mxu0 0
  %91 = vmatpush2.bf16.msra.mxu0 0
  %92 = vmatprep.subr.bf16.mxu0 0
  %93 = vmatpush2.bf16.msra.mxu0 0
  %94 = vmatprep.subr.bf16.mxu0 0
  %95 = vmatpush2.bf16.msra.mxu0 0
  %96 = vmatprep.subr.bf16.mxu0 0
  %97 = vmatpush2.bf16.msra.mxu0 0
  %98 = vmatprep.mubr.bf16.mxu0 0
  %99 = vmatmul.mubr.bf16.gmra.mxu0 %v60
  %v100 = vpop.f32.mrf.mxu0
  %v101 = vadd.f32 0.0, %v100
  %v102 = vpop.f32.mrf.mxu0
  %v103 = vpop.f32.mrf.mxu0
  %v104 = vpop.f32.mrf.mxu0
  %105 = vdwg.mxu0
  %v106 = vld [vmem:[%s3] sm:$0xff]
  %108 = vset.pattern.permute.xlu0 0
  %109 = vperm.xlu0 %108, %v106
  %v110 = vpop.permute.xlu0 %109
  %v112 = vmul.f32 %v101, %v110
  %v113 = vld [vmem:[%s4] sm:$0xff]
  %115 = vset.pattern.permute.xlu0 0
  %116 = vperm.xlu0 %115, %v113
  %v117 = vpop.permute.xlu0 %116
  %v119 = vadd.f32 %v112, %v117
  %v120 = vmax.f32 %v119, 0.0
  %v121 = vpack.c.bf16 %v120, %v120
  %122 = vst [vmem:[%s6] sm:$0xf] %v121
  // Predicated region
  $region26: #{e_densenet_forward.29} parent=0 // pred_check
    _
  $region27: #{e_densenet_forward.29} parent=0 // pred_check_branch
    %124 = sbr.rel (0) target = $region29
  $region28: #{e_densenet_forward.29} parent=0 // pred_region
    _
  $region29: #{e_densenet_forward.29} parent=0 // pred_fallthru
    _
  // Predicated region
  $region30: #{e_densenet_forward.29} parent=0 // pred_check
    _
  $region31: #{e_densenet_forward.29} parent=0 // pred_check_branch
    %126 = sbr.rel (0) target = $region33
  $region32: #{e_densenet_forward.29} parent=0 // pred_region
    _
  $region33: #{e_densenet_forward.29} parent=0 // pred_fallthru
    _

// kernel: e_densenet_forward.28
$region0: #{e_densenet_forward.28}
  #allocation0 [shape = 'u32[]', space=smem, size = 0x4, offset = 0x4, fixed_abs, tag = 'smem constant byte address 0x4 - core index']
  #allocation1 [shape = 'u32[144,128]{1,0:T(1,128)}', space=vmem, size = 0x12000, scoped, tag = 'internal scratch']
  %s0 = inlined_call_operand.vmem [shape: bf16[9,4,8], index: 0, kind: input, shape index: {}]
  %s1 = inlined_call_operand.vmem [shape: bf16[8,128], index: 1, kind: input, shape index: {}]
  %s2 = inlined_call_operand.vmem [shape: bf16[8,128], index: 2, kind: input, shape index: {}]
  %s3 = inlined_call_operand.vmem [shape: bf16[8,128], index: 3, kind: input, shape index: {}]
  %s4 = inlined_call_operand.vmem [shape: bf16[8,128], index: 4, kind: input, shape index: {}]
  %s5 = inlined_call_operand.vmem [shape: bf16[8,128], index: 5, kind: input, shape index: {}]
  %s6 = inlined_call_operand.vmem [shape: bf16[8,128], index: 6, kind: input, shape index: {}]
  %s7 = inlined_call_operand.vmem [shape: bf16[8,128], index: 7, kind: input, shape index: {}]
  %s8 = inlined_call_operand.vmem [shape: bf16[8,128], index: 8, kind: input, shape index: {}]
  %s9 = inlined_call_operand.vmem [shape: bf16[8,128], index: 9, kind: input, shape index: {}]
  %s10 = inlined_call_operand.vmem [shape: f32[4,128], index: 10, kind: output, shape index: {}]
  %s11 = sld [smem:[#allocation0]]
  $region50: #{e_densenet_forward.28} parent=0
    _
  %s13 = ssub.s32 1, %s11
  %s14 = scalar_select 0, %s13, %s11
  // Predicated region
  $region2: #{e_densenet_forward.28} parent=0 // pred_check
    _
  $region3: #{e_densenet_forward.28} parent=0 // pred_check_branch
    %16 = sbr.rel (0) target = $region5
  $region4: #{e_densenet_forward.28} parent=0 // pred_region
    _
  $region5: #{e_densenet_forward.28} parent=0 // pred_fallthru
    _
  // Predicated region
  $region6: #{e_densenet_forward.28} parent=0 // pred_check
    _
  $region7: #{e_densenet_forward.28} parent=0 // pred_check_branch
    %18 = sbr.rel (0) target = $region9
  $region8: #{e_densenet_forward.28} parent=0 // pred_region
    _
  $region9: #{e_densenet_forward.28} parent=0 // pred_fallthru
    _
  // Predicated region
  $region10: #{e_densenet_forward.28} parent=0 // pred_check
    _
  $region11: #{e_densenet_forward.28} parent=0 // pred_check_branch
    %20 = sbr.rel (0) target = $region13
  $region12: #{e_densenet_forward.28} parent=0 // pred_region
    _
  $region13: #{e_densenet_forward.28} parent=0 // pred_fallthru
    _
  // Predicated region
  $region14: #{e_densenet_forward.28} parent=0 // pred_check
    _
  $region15: #{e_densenet_forward.28} parent=0 // pred_check_branch
    %22 = sbr.rel (0) target = $region17
  $region16: #{e_densenet_forward.28} parent=0 // pred_region
    _
  $region17: #{e_densenet_forward.28} parent=0 // pred_fallthru
    _
  // Predicated region
  $region18: #{e_densenet_forward.28} parent=0 // pred_check
    _
  $region19: #{e_densenet_forward.28} parent=0 // pred_check_branch
    %24 = sbr.rel (0) target = $region21
  $region20: #{e_densenet_forward.28} parent=0 // pred_region
    _
  $region21: #{e_densenet_forward.28} parent=0 // pred_fallthru
    _
  // Predicated region
  $region22: #{e_densenet_forward.28} parent=0 // pred_check
    _
  $region23: #{e_densenet_forward.28} parent=0 // pred_check_branch
    %26 = sbr.rel (0) target = $region25
  $region24: #{e_densenet_forward.28} parent=0 // pred_region
    _
  $region25: #{e_densenet_forward.28} parent=0 // pred_fallthru
    _
  // Predicated region
  $region26: #{e_densenet_forward.28} parent=0 // pred_check
    _
  $region27: #{e_densenet_forward.28} parent=0 // pred_check_branch
    %28 = sbr.rel (0) target = $region29
  $region28: #{e_densenet_forward.28} parent=0 // pred_region
    _
  $region29: #{e_densenet_forward.28} parent=0 // pred_fallthru
    _
  // Predicated region
  $region30: #{e_densenet_forward.28} parent=0 // pred_check
    _
  $region31: #{e_densenet_forward.28} parent=0 // pred_check_branch
    %30 = sbr.rel (0) target = $region33
  $region32: #{e_densenet_forward.28} parent=0 // pred_region
    _
  $region33: #{e_densenet_forward.28} parent=0 // pred_fallthru
    _
  // Predicated region
  $region34: #{e_densenet_forward.28} parent=0 // pred_check
    _
  $region35: #{e_densenet_forward.28} parent=0 // pred_check_branch
    %32 = sbr.rel (0) target = $region37
  $region36: #{e_densenet_forward.28} parent=0 // pred_region
    _
  $region37: #{e_densenet_forward.28} parent=0 // pred_fallthru
    _
  // Predicated region
  $region38: #{e_densenet_forward.28} parent=0 // pred_check
    _
  $region39: #{e_densenet_forward.28} parent=0 // pred_check_branch
    %34 = sbr.rel (0) target = $region41
  $region40: #{e_densenet_forward.28} parent=0 // pred_region
    _
  $region41: #{e_densenet_forward.28} parent=0 // pred_fallthru
    _
  %v36 = vld [vmem:[%s1] sm:$0xf]
  %v37 = vld [vmem:[%s0] sm:$0x3]
  %v38 = vld [vmem:[%s2] sm:$0xf]
  %s39 = scalar_lea.vmem %s0, 2
  %v40 = vld [vmem:[%s39] sm:$0x3]
  %vm41 = vcmask 64512
  %v43 = vsel %vm41, %v40, 0
  %vm45 = vcmask 1043456
  %v47 = vsel %vm45, %v38, 0
  %49 = vmatprep.subr.bf16.mxu0 0
  %50 = vmatpush1.bf16.msra.mxu0 0
  %51 = vmatprep.subr.bf16.mxu0 0
  %52 = vmatpush1.bf16.msra.mxu0 0
  %53 = vmatprep.subr.bf16.mxu0 0
  %54 = vmatpush1.bf16.msra.mxu0 0
  %55 = vmatprep.subr.bf16.mxu0 0
  %56 = vmatpush1.bf16.msra.mxu0 0
  %57 = vmatprep.subr.bf16.mxu0 0
  %58 = vmatpush1.bf16.msra.mxu0 0
  %59 = vmatprep.subr.bf16.mxu0 0
  %60 = vmatpush1.bf16.msra.mxu0 0
  %61 = vmatprep.subr.bf16.mxu0 0
  %62 = vmatpush1.bf16.msra.mxu0 0
  %63 = vmatprep.subr.bf16.mxu0 0
  %64 = vmatpush1.bf16.msra.mxu0 %v47
  %65 = vmatprep.subr.bf16.mxu0 0
  %66 = vmatpush2.bf16.msra.mxu0 0
  %67 = vmatprep.subr.bf16.mxu0 0
  %68 = vmatpush2.bf16.msra.mxu0 0
  %69 = vmatprep.subr.bf16.mxu0 0
  %70 = vmatpush2.bf16.msra.mxu0 0
  %71 = vmatprep.subr.bf16.mxu0 0
  %72 = vmatpush2.bf16.msra.mxu0 0
  %73 = vmatprep.subr.bf16.mxu0 0
  %74 = vmatpush2.bf16.msra.mxu0 0
  %75 = vmatprep.subr.bf16.mxu0 0
  %76 = vmatpush2.bf16.msra.mxu0 0
  %77 = vmatprep.subr.bf16.mxu0 0
  %78 = vmatpush2.bf16.msra.mxu0 0
  %79 = vmatprep.subr.bf16.mxu0 0
  %80 = vmatpush2.bf16.msra.mxu0 0
  %81 = vmatprep.mubr.bf16.mxu0 0
  %82 = vmatmul.mubr.bf16.gmra.mxu0 %v43
  %v83 = vpop.f32.mrf.mxu0
  %v84 = vadd.f32 0.0, %v83
  %v85 = vpop.f32.mrf.mxu0
  %v86 = vpop.f32.mrf.mxu0
  %v87 = vpop.f32.mrf.mxu0
  %88 = vdwg.mxu0
  %v90 = vsel %vm41, %v37, 0
  %v93 = vsel %vm45, %v36, 0
  %95 = vmatprep.subr.bf16.mxu0 0
  %96 = vmatpush1.bf16.msra.mxu0 0
  %97 = vmatprep.subr.bf16.mxu0 0
  %98 = vmatpush1.bf16.msra.mxu0 0
  %99 = vmatprep.subr.bf16.mxu0 0
  %100 = vmatpush1.bf16.msra.mxu0 0
  %101 = vmatprep.subr.bf16.mxu0 0
  %102 = vmatpush1.bf16.msra.mxu0 0
  %103 = vmatprep.subr.bf16.mxu0 0
  %104 = vmatpush1.bf16.msra.mxu0 0
  %105 = vmatprep.subr.bf16.mxu0 0
  %106 = vmatpush1.bf16.msra.mxu0 0
  %107 = vmatprep.subr.bf16.mxu0 0
  %108 = vmatpush1.bf16.msra.mxu0 0
  %109 = vmatprep.subr.bf16.mxu0 0
  %110 = vmatpush1.bf16.msra.mxu0 %v93
  %111 = vmatprep.subr.bf16.mxu0 0
  %112 = vmatpush2.bf16.msra.mxu0 0
  %113 = vmatprep.subr.bf16.mxu0 0
  %114 = vmatpush2.bf16.msra.mxu0 0
  %115 = vmatprep.subr.bf16.mxu0 0
  %116 = vmatpush2.bf16.msra.mxu0 0
  %117 = vmatprep.subr.bf16.mxu0 0
  %118 = vmatpush2.bf16.msra.mxu0 0
  %119 = vmatprep.subr.bf16.mxu0 0
  %120 = vmatpush2.bf16.msra.mxu0 0
  %121 = vmatprep.subr.bf16.mxu0 0
  %122 = vmatpush2.bf16.msra.mxu0 0
  %123 = vmatprep.subr.bf16.mxu0 0
  %124 = vmatpush2.bf16.msra.mxu0 0
  %125 = vmatprep.subr.bf16.mxu0 0
  %126 = vmatpush2.bf16.msra.mxu0 0
  %127 = vmatprep.mubr.bf16.mxu0 0
  %128 = vmatmul.mubr.bf16.gmra.mxu0 %v90
  %v129 = vpop.f32.mrf.mxu0
  %v130 = vadd.f32 %v84, %v129
  %v131 = vpop.f32.mrf.mxu0
  %v132 = vpop.f32.mrf.mxu0
  %v133 = vpop.f32.mrf.mxu0
  %134 = vdwg.mxu0
  %v135 = vld [vmem:[%s3] sm:$0xf]
  %s136 = scalar_lea.vmem %s0, 4
  %v137 = vld [vmem:[%s136] sm:$0x3]
  %v139 = vsel %vm41, %v137, 0
  %v142 = vsel %vm45, %v135, 0
  %144 = vmatprep.subr.bf16.mxu0 0
  %145 = vmatpush1.bf16.msra.mxu0 0
  %146 = vmatprep.subr.bf16.mxu0 0
  %147 = vmatpush1.bf16.msra.mxu0 0
  %148 = vmatprep.subr.bf16.mxu0 0
  %149 = vmatpush1.bf16.msra.mxu0 0
  %150 = vmatprep.subr.bf16.mxu0 0
  %151 = vmatpush1.bf16.msra.mxu0 0
  %152 = vmatprep.subr.bf16.mxu0 0
  %153 = vmatpush1.bf16.msra.mxu0 0
  %154 = vmatprep.subr.bf16.mxu0 0
  %155 = vmatpush1.bf16.msra.mxu0 0
  %156 = vmatprep.subr.bf16.mxu0 0
  %157 = vmatpush1.bf16.msra.mxu0 0
  %158 = vmatprep.subr.bf16.mxu0 0
  %159 = vmatpush1.bf16.msra.mxu0 %v142
  %160 = vmatprep.subr.bf16.mxu0 0
  %161 = vmatpush2.bf16.msra.mxu0 0
  %162 = vmatprep.subr.bf16.mxu0 0
  %163 = vmatpush2.bf16.msra.mxu0 0
  %164 = vmatprep.subr.bf16.mxu0 0
  %165 = vmatpush2.bf16.msra.mxu0 0
  %166 = vmatprep.subr.bf16.mxu0 0
  %167 = vmatpush2.bf16.msra.mxu0 0
  %168 = vmatprep.subr.bf16.mxu0 0
  %169 = vmatpush2.bf16.msra.mxu0 0
  %170 = vmatprep.subr.bf16.mxu0 0
  %171 = vmatpush2.bf16.msra.mxu0 0
  %172 = vmatprep.subr.bf16.mxu0 0
  %173 = vmatpush2.bf16.msra.mxu0 0
  %174 = vmatprep.subr.bf16.mxu0 0
  %175 = vmatpush2.bf16.msra.mxu0 0
  %176 = vmatprep.mubr.bf16.mxu0 0
  %177 = vmatmul.mubr.bf16.gmra.mxu0 %v139
  %v178 = vpop.f32.mrf.mxu0
  %v179 = vadd.f32 0.0, %v178
  %v180 = vpop.f32.mrf.mxu0
  %v181 = vpop.f32.mrf.mxu0
  %v182 = vpop.f32.mrf.mxu0
  %183 = vdwg.mxu0
  %v184 = vadd.f32 %v130, %v179
  %v185 = vld [vmem:[%s4] sm:$0xf]
  %s186 = scalar_lea.vmem %s0, 6
  %v187 = vld [vmem:[%s186] sm:$0x3]
  %v189 = vsel %vm41, %v187, 0
  %v192 = vsel %vm45, %v185, 0
  %194 = vmatprep.subr.bf16.mxu0 0
  %195 = vmatpush1.bf16.msra.mxu0 0
  %196 = vmatprep.subr.bf16.mxu0 0
  %197 = vmatpush1.bf16.msra.mxu0 0
  %198 = vmatprep.subr.bf16.mxu0 0
  %199 = vmatpush1.bf16.msra.mxu0 0
  %200 = vmatprep.subr.bf16.mxu0 0
  %201 = vmatpush1.bf16.msra.mxu0 0
  %202 = vmatprep.subr.bf16.mxu0 0
  %203 = vmatpush1.bf16.msra.mxu0 0
  %204 = vmatprep.subr.bf16.mxu0 0
  %205 = vmatpush1.bf16.msra.mxu0 0
  %206 = vmatprep.subr.bf16.mxu0 0
  %207 = vmatpush1.bf16.msra.mxu0 0
  %208 = vmatprep.subr.bf16.mxu0 0
  %209 = vmatpush1.bf16.msra.mxu0 %v192
  %210 = vmatprep.subr.bf16.mxu0 0
  %211 = vmatpush2.bf16.msra.mxu0 0
  %212 = vmatprep.subr.bf16.mxu0 0
  %213 = vmatpush2.bf16.msra.mxu0 0
  %214 = vmatprep.subr.bf16.mxu0 0
  %215 = vmatpush2.bf16.msra.mxu0 0
  %216 = vmatprep.subr.bf16.mxu0 0
  %217 = vmatpush2.bf16.msra.mxu0 0
  %218 = vmatprep.subr.bf16.mxu0 0
  %219 = vmatpush2.bf16.msra.mxu0 0
  %220 = vmatprep.subr.bf16.mxu0 0
  %221 = vmatpush2.bf16.msra.mxu0 0
  %222 = vmatprep.subr.bf16.mxu0 0
  %223 = vmatpush2.bf16.msra.mxu0 0
  %224 = vmatprep.subr.bf16.mxu0 0
  %225 = vmatpush2.bf16.msra.mxu0 0
  %226 = vmatprep.mubr.bf16.mxu0 0
  %227 = vmatmul.mubr.bf16.gmra.mxu0 %v189
  %v228 = vpop.f32.mrf.mxu0
  %v229 = vadd.f32 0.0, %v228
  %v230 = vpop.f32.mrf.mxu0
  %v231 = vpop.f32.mrf.mxu0
  %v232 = vpop.f32.mrf.mxu0
  %233 = vdwg.mxu0
  %v234 = vadd.f32 %v184, %v229
  %v235 = vld [vmem:[%s5] sm:$0xf]
  %s236 = scalar_lea.vmem %s0, 8
  %v237 = vld [vmem:[%s236] sm:$0x3]
  %v239 = vsel %vm41, %v237, 0
  %v242 = vsel %vm45, %v235, 0
  %244 = vmatprep.subr.bf16.mxu0 0
  %245 = vmatpush1.bf16.msra.mxu0 0
  %246 = vmatprep.subr.bf16.mxu0 0
  %247 = vmatpush1.bf16.msra.mxu0 0
  %248 = vmatprep.subr.bf16.mxu0 0
  %249 = vmatpush1.bf16.msra.mxu0 0
  %250 = vmatprep.subr.bf16.mxu0 0
  %251 = vmatpush1.bf16.msra.mxu0 0
  %252 = vmatprep.subr.bf16.mxu0 0
  %253 = vmatpush1.bf16.msra.mxu0 0
  %254 = vmatprep.subr.bf16.mxu0 0
  %255 = vmatpush1.bf16.msra.mxu0 0
  %256 = vmatprep.subr.bf16.mxu0 0
  %257 = vmatpush1.bf16.msra.mxu0 0
  %258 = vmatprep.subr.bf16.mxu0 0
  %259 = vmatpush1.bf16.msra.mxu0 %v242
  %260 = vmatprep.subr.bf16.mxu0 0
  %261 = vmatpush2.bf16.msra.mxu0 0
  %262 = vmatprep.subr.bf16.mxu0 0
  %263 = vmatpush2.bf16.msra.mxu0 0
  %264 = vmatprep.subr.bf16.mxu0 0
  %265 = vmatpush2.bf16.msra.mxu0 0
  %266 = vmatprep.subr.bf16.mxu0 0
  %267 = vmatpush2.bf16.msra.mxu0 0
  %268 = vmatprep.subr.bf16.mxu0 0
  %269 = vmatpush2.bf16.msra.mxu0 0
  %270 = vmatprep.subr.bf16.mxu0 0
  %271 = vmatpush2.bf16.msra.mxu0 0
  %272 = vmatprep.subr.bf16.mxu0 0
  %273 = vmatpush2.bf16.msra.mxu0 0
  %274 = vmatprep.subr.bf16.mxu0 0
  %275 = vmatpush2.bf16.msra.mxu0 0
  %276 = vmatprep.mubr.bf16.mxu0 0
  %277 = vmatmul.mubr.bf16.gmra.mxu0 %v239
  %v278 = vpop.f32.mrf.mxu0
  %v279 = vadd.f32 0.0, %v278
  %v280 = vpop.f32.mrf.mxu0
  %v281 = vpop.f32.mrf.mxu0
  %v282 = vpop.f32.mrf.mxu0
  %283 = vdwg.mxu0
  %v284 = vadd.f32 %v234, %v279
  %v285 = vld [vmem:[%s6] sm:$0xf]
  %s286 = scalar_lea.vmem %s0, 10
  %v287 = vld [vmem:[%s286] sm:$0x3]
  %v289 = vsel %vm41, %v287, 0
  %v292 = vsel %vm45, %v285, 0
  %294 = vmatprep.subr.bf16.mxu0 0
  %295 = vmatpush1.bf16.msra.mxu0 0
  %296 = vmatprep.subr.bf16.mxu0 0
  %297 = vmatpush1.bf16.msra.mxu0 0
  %298 = vmatprep.subr.bf16.mxu0 0
  %299 = vmatpush1.bf16.msra.mxu0 0
  %300 = vmatprep.subr.bf16.mxu0 0
  %301 = vmatpush1.bf16.msra.mxu0 0
  %302 = vmatprep.subr.bf16.mxu0 0
  %303 = vmatpush1.bf16.msra.mxu0 0
  %304 = vmatprep.subr.bf16.mxu0 0
  %305 = vmatpush1.bf16.msra.mxu0 0
  %306 = vmatprep.subr.bf16.mxu0 0
  %307 = vmatpush1.bf16.msra.mxu0 0
  %308 = vmatprep.subr.bf16.mxu0 0
  %309 = vmatpush1.bf16.msra.mxu0 %v292
  %310 = vmatprep.subr.bf16.mxu0 0
  %311 = vmatpush2.bf16.msra.mxu0 0
  %312 = vmatprep.subr.bf16.mxu0 0
  %313 = vmatpush2.bf16.msra.mxu0 0
  %314 = vmatprep.subr.bf16.mxu0 0
  %315 = vmatpush2.bf16.msra.mxu0 0
  %316 = vmatprep.subr.bf16.mxu0 0
  %317 = vmatpush2.bf16.msra.mxu0 0
  %318 = vmatprep.subr.bf16.mxu0 0
  %319 = vmatpush2.bf16.msra.mxu0 0
  %320 = vmatprep.subr.bf16.mxu0 0
  %321 = vmatpush2.bf16.msra.mxu0 0
  %322 = vmatprep.subr.bf16.mxu0 0
  %323 = vmatpush2.bf16.msra.mxu0 0
  %324 = vmatprep.subr.bf16.mxu0 0
  %325 = vmatpush2.bf16.msra.mxu0 0
  %326 = vmatprep.mubr.bf16.mxu0 0
  %327 = vmatmul.mubr.bf16.gmra.mxu0 %v289
  %v328 = vpop.f32.mrf.mxu0
  %v329 = vadd.f32 0.0, %v328
  %v330 = vpop.f32.mrf.mxu0
  %v331 = vpop.f32.mrf.mxu0
  %v332 = vpop.f32.mrf.mxu0
  %333 = vdwg.mxu0
  %v334 = vadd.f32 %v284, %v329
  %v335 = vld [vmem:[%s7] sm:$0xf]
  %s336 = scalar_lea.vmem %s0, 12
  %v337 = vld [vmem:[%s336] sm:$0x3]
  %v339 = vsel %vm41, %v337, 0
  %v342 = vsel %vm45, %v335, 0
  %344 = vmatprep.subr.bf16.mxu0 0
  %345 = vmatpush1.bf16.msra.mxu0 0
  %346 = vmatprep.subr.bf16.mxu0 0
  %347 = vmatpush1.bf16.msra.mxu0 0
  %348 = vmatprep.subr.bf16.mxu0 0
  %349 = vmatpush1.bf16.msra.mxu0 0
  %350 = vmatprep.subr.bf16.mxu0 0
  %351 = vmatpush1.bf16.msra.mxu0 0
  %352 = vmatprep.subr.bf16.mxu0 0
  %353 = vmatpush1.bf16.msra.mxu0 0
  %354 = vmatprep.subr.bf16.mxu0 0
  %355 = vmatpush1.bf16.msra.mxu0 0
  %356 = vmatprep.subr.bf16.mxu0 0
  %357 = vmatpush1.bf16.msra.mxu0 0
  %358 = vmatprep.subr.bf16.mxu0 0
  %359 = vmatpush1.bf16.msra.mxu0 %v342
  %360 = vmatprep.subr.bf16.mxu0 0
  %361 = vmatpush2.bf16.msra.mxu0 0
  %362 = vmatprep.subr.bf16.mxu0 0
  %363 = vmatpush2.bf16.msra.mxu0 0
  %364 = vmatprep.subr.bf16.mxu0 0
  %365 = vmatpush2.bf16.msra.mxu0 0
  %366 = vmatprep.subr.bf16.mxu0 0
  %367 = vmatpush2.bf16.msra.mxu0 0
  %368 = vmatprep.subr.bf16.mxu0 0
  %369 = vmatpush2.bf16.msra.mxu0 0
  %370 = vmatprep.subr.bf16.mxu0 0
  %371 = vmatpush2.bf16.msra.mxu0 0
  %372 = vmatprep.subr.bf16.mxu0 0
  %373 = vmatpush2.bf16.msra.mxu0 0
  %374 = vmatprep.subr.bf16.mxu0 0
  %375 = vmatpush2.bf16.msra.mxu0 0
  %376 = vmatprep.mubr.bf16.mxu0 0
  %377 = vmatmul.mubr.bf16.gmra.mxu0 %v339
  %v378 = vpop.f32.mrf.mxu0
  %v379 = vadd.f32 0.0, %v378
  %v380 = vpop.f32.mrf.mxu0
  %v381 = vpop.f32.mrf.mxu0
  %v382 = vpop.f32.mrf.mxu0
  %383 = vdwg.mxu0
  %v384 = vadd.f32 %v334, %v379
  %v385 = vld [vmem:[%s8] sm:$0xf]
  %s386 = scalar_lea.vmem %s0, 14
  %v387 = vld [vmem:[%s386] sm:$0x3]
  %v389 = vsel %vm41, %v387, 0
  %v392 = vsel %vm45, %v385, 0
  %394 = vmatprep.subr.bf16.mxu0 0
  %395 = vmatpush1.bf16.msra.mxu0 0
  %396 = vmatprep.subr.bf16.mxu0 0
  %397 = vmatpush1.bf16.msra.mxu0 0
  %398 = vmatprep.subr.bf16.mxu0 0
  %399 = vmatpush1.bf16.msra.mxu0 0
  %400 = vmatprep.subr.bf16.mxu0 0
  %401 = vmatpush1.bf16.msra.mxu0 0
  %402 = vmatprep.subr.bf16.mxu0 0
  %403 = vmatpush1.bf16.msra.mxu0 0
  %404 = vmatprep.subr.bf16.mxu0 0
  %405 = vmatpush1.bf16.msra.mxu0 0
  %406 = vmatprep.subr.bf16.mxu0 0
  %407 = vmatpush1.bf16.msra.mxu0 0
  %408 = vmatprep.subr.bf16.mxu0 0
  %409 = vmatpush1.bf16.msra.mxu0 %v392
  %410 = vmatprep.subr.bf16.mxu0 0
  %411 = vmatpush2.bf16.msra.mxu0 0
  %412 = vmatprep.subr.bf16.mxu0 0
  %413 = vmatpush2.bf16.msra.mxu0 0
  %414 = vmatprep.subr.bf16.mxu0 0
  %415 = vmatpush2.bf16.msra.mxu0 0
  %416 = vmatprep.subr.bf16.mxu0 0
  %417 = vmatpush2.bf16.msra.mxu0 0
  %418 = vmatprep.subr.bf16.mxu0 0
  %419 = vmatpush2.bf16.msra.mxu0 0
  %420 = vmatprep.subr.bf16.mxu0 0
  %421 = vmatpush2.bf16.msra.mxu0 0
  %422 = vmatprep.subr.bf16.mxu0 0
  %423 = vmatpush2.bf16.msra.mxu0 0
  %424 = vmatprep.subr.bf16.mxu0 0
  %425 = vmatpush2.bf16.msra.mxu0 0
  %426 = vmatprep.mubr.bf16.mxu0 0
  %427 = vmatmul.mubr.bf16.gmra.mxu0 %v389
  %v428 = vpop.f32.mrf.mxu0
  %v429 = vadd.f32 0.0, %v428
  %v430 = vpop.f32.mrf.mxu0
  %v431 = vpop.f32.mrf.mxu0
  %v432 = vpop.f32.mrf.mxu0
  %433 = vdwg.mxu0
  %v434 = vadd.f32 %v384, %v429
  %v435 = vld [vmem:[%s9] sm:$0xf]
  %s436 = scalar_lea.vmem %s0, 16
  %v437 = vld [vmem:[%s436] sm:$0x3]
  %v439 = vsel %vm41, %v437, 0
  %v442 = vsel %vm45, %v435, 0
  %444 = vmatprep.subr.bf16.mxu0 0
  %445 = vmatpush1.bf16.msra.mxu0 0
  %446 = vmatprep.subr.bf16.mxu0 0
  %447 = vmatpush1.bf16.msra.mxu0 0
  %448 = vmatprep.subr.bf16.mxu0 0
  %449 = vmatpush1.bf16.msra.mxu0 0
  %450 = vmatprep.subr.bf16.mxu0 0
  %451 = vmatpush1.bf16.msra.mxu0 0
  %452 = vmatprep.subr.bf16.mxu0 0
  %453 = vmatpush1.bf16.msra.mxu0 0
  %454 = vmatprep.subr.bf16.mxu0 0
  %455 = vmatpush1.bf16.msra.mxu0 0
  %456 = vmatprep.subr.bf16.mxu0 0
  %457 = vmatpush1.bf16.msra.mxu0 0
  %458 = vmatprep.subr.bf16.mxu0 0
  %459 = vmatpush1.bf16.msra.mxu0 %v442
  %460 = vmatprep.subr.bf16.mxu0 0
  %461 = vmatpush2.bf16.msra.mxu0 0
  %462 = vmatprep.subr.bf16.mxu0 0
  %463 = vmatpush2.bf16.msra.mxu0 0
  %464 = vmatprep.subr.bf16.mxu0 0
  %465 = vmatpush2.bf16.msra.mxu0 0
  %466 = vmatprep.subr.bf16.mxu0 0
  %467 = vmatpush2.bf16.msra.mxu0 0
  %468 = vmatprep.subr.bf16.mxu0 0
  %469 = vmatpush2.bf16.msra.mxu0 0
  %470 = vmatprep.subr.bf16.mxu0 0
  %471 = vmatpush2.bf16.msra.mxu0 0
  %472 = vmatprep.subr.bf16.mxu0 0
  %473 = vmatpush2.bf16.msra.mxu0 0
  %474 = vmatprep.subr.bf16.mxu0 0
  %475 = vmatpush2.bf16.msra.mxu0 0
  %476 = vmatprep.mubr.bf16.mxu0 0
  %477 = vmatmul.mubr.bf16.gmra.mxu0 %v439
  %v478 = vpop.f32.mrf.mxu0
  %v479 = vadd.f32 0.0, %v478
  %v480 = vpop.f32.mrf.mxu0
  %v481 = vpop.f32.mrf.mxu0
  %v482 = vpop.f32.mrf.mxu0
  %483 = vdwg.mxu0
  %v484 = vadd.f32 %v434, %v479
  %485 = vst [vmem:[%s10] sm:$0xf] %v484
  // Predicated region
  $region42: #{e_densenet_forward.28} parent=0 // pred_check
    _
  $region43: #{e_densenet_forward.28} parent=0 // pred_check_branch
    %487 = sbr.rel (0) target = $region45
  $region44: #{e_densenet_forward.28} parent=0 // pred_region
    _
  $region45: #{e_densenet_forward.28} parent=0 // pred_fallthru
    _
  // Predicated region
  $region46: #{e_densenet_forward.28} parent=0 // pred_check
    _
  $region47: #{e_densenet_forward.28} parent=0 // pred_check_branch
    %489 = sbr.rel (0) target = $region49
  $region48: #{e_densenet_forward.28} parent=0 // pred_region
    _
  $region49: #{e_densenet_forward.28} parent=0 // pred_fallthru
    _

// kernel: e_densenet_forward.31
$region0: #{e_densenet_forward.31}
  #allocation0 [shape = 'u32[]', space=smem, size = 0x4, offset = 0x4, fixed_abs, tag = 'smem constant byte address 0x4 - core index']
  #allocation1 [shape = 'u32[144,128]{1,0:T(1,128)}', space=vmem, size = 0x12000, scoped, tag = 'internal scratch']
  %s0 = inlined_call_operand.vmem [shape: bf16[1,8,16], index: 0, kind: input, shape index: {}]
  %s1 = inlined_call_operand.vmem [shape: f32[16,1], index: 1, kind: input, shape index: {}]
  %s2 = inlined_call_operand.vmem [shape: f32[16,1], index: 2, kind: input, shape index: {}]
  %s3 = inlined_call_operand.vmem [shape: f32[16,128], index: 3, kind: input, shape index: {}]
  %s4 = inlined_call_operand.vmem [shape: f32[8,128], index: 4, kind: output, shape index: {}]
  %s5 = sld [smem:[#allocation0]]
  $region26: #{e_densenet_forward.31} parent=0
    _
  %s7 = ssub.s32 1, %s5
  %s8 = scalar_select 0, %s7, %s5
  // Predicated region
  $region2: #{e_densenet_forward.31} parent=0 // pred_check
    _
  $region3: #{e_densenet_forward.31} parent=0 // pred_check_branch
    %10 = sbr.rel (0) target = $region5
  $region4: #{e_densenet_forward.31} parent=0 // pred_region
    _
  $region5: #{e_densenet_forward.31} parent=0 // pred_fallthru
    _
  // Predicated region
  $region6: #{e_densenet_forward.31} parent=0 // pred_check
    _
  $region7: #{e_densenet_forward.31} parent=0 // pred_check_branch
    %12 = sbr.rel (0) target = $region9
  $region8: #{e_densenet_forward.31} parent=0 // pred_region
    _
  $region9: #{e_densenet_forward.31} parent=0 // pred_fallthru
    _
  // Predicated region
  $region10: #{e_densenet_forward.31} parent=0 // pred_check
    _
  $region11: #{e_densenet_forward.31} parent=0 // pred_check_branch
    %14 = sbr.rel (0) target = $region13
  $region12: #{e_densenet_forward.31} parent=0 // pred_region
    _
  $region13: #{e_densenet_forward.31} parent=0 // pred_fallthru
    _
  // Predicated region
  $region14: #{e_densenet_forward.31} parent=0 // pred_check
    _
  $region15: #{e_densenet_forward.31} parent=0 // pred_check_branch
    %16 = sbr.rel (0) target = $region17
  $region16: #{e_densenet_forward.31} parent=0 // pred_region
    _
  $region17: #{e_densenet_forward.31} parent=0 // pred_fallthru
    _
  %v18 = vld [vmem:[%s3] sm:$0xff]
  %v19 = vld [vmem:[%s3 + $0x8] sm:$0xff]
  %v20 = vld [vmem:[%s1] sm:$0xff]
  %v21 = vld [vmem:[%s1 + $0x8] sm:$0xff]
  %23 = vset.pattern.permute.xlu0 0
  %24 = vperm.xlu0 %23, %v20
  %v25 = vpop.permute.xlu0 %24
  %28 = vset.pattern.permute.xlu0 0
  %29 = vperm.xlu0 %28, %v21
  %v30 = vpop.permute.xlu0 %29
  %v32 = vmul.f32 %v18, %v25
  %v33 = vmul.f32 %v19, %v30
  %v34 = vld [vmem:[%s2] sm:$0xff]
  %v35 = vld [vmem:[%s2 + $0x8] sm:$0xff]
  %37 = vset.pattern.permute.xlu0 0
  %38 = vperm.xlu0 %37, %v34
  %v39 = vpop.permute.xlu0 %38
  %42 = vset.pattern.permute.xlu0 0
  %43 = vperm.xlu0 %42, %v35
  %v44 = vpop.permute.xlu0 %43
  %v46 = vadd.f32 %v32, %v39
  %v47 = vadd.f32 %v33, %v44
  %v48 = vmax.f32 %v46, 0.0
  %v49 = vmax.f32 %v47, 0.0
  %v50 = vld [vmem:[%s0] sm:$0xf]
  %v51 = vpack.c.bf16 %v49, %v48
  %vm52 = vcmask 130048
  %v54 = vsel %vm52, %v50, 0
  %56 = vmatprep.subr.bf16.mxu0 0
  %57 = vmatpush1.bf16.msra.mxu0 0
  %58 = vmatprep.subr.bf16.mxu0 0
  %59 = vmatpush1.bf16.msra.mxu0 0
  %60 = vmatprep.subr.bf16.mxu0 0
  %61 = vmatpush1.bf16.msra.mxu0 0
  %62 = vmatprep.subr.bf16.mxu0 0
  %63 = vmatpush1.bf16.msra.mxu0 0
  %64 = vmatprep.subr.bf16.mxu0 0
  %65 = vmatpush1.bf16.msra.mxu0 0
  %66 = vmatprep.subr.bf16.mxu0 0
  %67 = vmatpush1.bf16.msra.mxu0 0
  %68 = vmatprep.subr.bf16.mxu0 0
  %69 = vmatpush1.bf16.msra.mxu0 0
  %70 = vmatprep.subr.bf16.mxu0 0
  %71 = vmatpush1.bf16.msra.mxu0 %v51
  %72 = vmatprep.subr.bf16.mxu0 0
  %73 = vmatpush2.bf16.msra.mxu0 0
  %74 = vmatprep.subr.bf16.mxu0 0
  %75 = vmatpush2.bf16.msra.mxu0 0
  %76 = vmatprep.subr.bf16.mxu0 0
  %77 = vmatpush2.bf16.msra.mxu0 0
  %78 = vmatprep.subr.bf16.mxu0 0
  %79 = vmatpush2.bf16.msra.mxu0 0
  %80 = vmatprep.subr.bf16.mxu0 0
  %81 = vmatpush2.bf16.msra.mxu0 0
  %82 = vmatprep.subr.bf16.mxu0 0
  %83 = vmatpush2.bf16.msra.mxu0 0
  %84 = vmatprep.subr.bf16.mxu0 0
  %85 = vmatpush2.bf16.msra.mxu0 0
  %86 = vmatprep.subr.bf16.mxu0 0
  %87 = vmatpush2.bf16.msra.mxu0 0
  %88 = vmatprep.mubr.bf16.mxu0 0
  %89 = vmatmul.mubr.bf16.gmra.mxu0 %v54
  %v90 = vpop.f32.mrf.mxu0
  %v91 = vadd.f32 0.0, %v90
  %v92 = vpop.f32.mrf.mxu0
  %v93 = vpop.f32.mrf.mxu0
  %v94 = vpop.f32.mrf.mxu0
  %95 = vdwg.mxu0
  %96 = vst [vmem:[%s4] sm:$0xff] %v91
  // Predicated region
  $region18: #{e_densenet_forward.31} parent=0 // pred_check
    _
  $region19: #{e_densenet_forward.31} parent=0 // pred_check_branch
    %98 = sbr.rel (0) target = $region21
  $region20: #{e_densenet_forward.31} parent=0 // pred_region
    _
  $region21: #{e_densenet_forward.31} parent=0 // pred_fallthru
    _
  // Predicated region
  $region22: #{e_densenet_forward.31} parent=0 // pred_check
    _
  $region23: #{e_densenet_forward.31} parent=0 // pred_check_branch
    %100 = sbr.rel (0) target = $region25
  $region24: #{e_densenet_forward.31} parent=0 // pred_region
    _
  $region25: #{e_densenet_forward.31} parent=0 // pred_fallthru
    _

// kernel: e_densenet_forward.32
$region0: #{e_densenet_forward.32}
  #allocation0 [shape = 'u32[]', space=smem, size = 0x4, offset = 0x4, fixed_abs, tag = 'smem constant byte address 0x4 - core index']
  #allocation1 [shape = 'u32[144,128]{1,0:T(1,128)}', space=vmem, size = 0x12000, scoped, tag = 'internal scratch']
  %s0 = inlined_call_operand.vmem [shape: f32[8,32], index: 0, kind: input, shape index: {}]
  %s1 = inlined_call_operand.vmem [shape: f32[8,32], index: 1, kind: input, shape index: {}]
  %s2 = inlined_call_operand.vmem [shape: f32[8,32], index: 2, kind: input, shape index: {}]
  %s3 = inlined_call_operand.vmem [shape: f32[8,32], index: 3, kind: input, shape index: {}]
  %s4 = inlined_call_operand.vmem [shape: f32[8,32], index: 4, kind: output, shape index: {}]
  %s5 = sld [smem:[#allocation0]]
  $region26: #{e_densenet_forward.32} parent=0
    _
  %s7 = ssub.s32 1, %s5
  %s8 = scalar_select 0, %s7, %s5
  // Predicated region
  $region2: #{e_densenet_forward.32} parent=0 // pred_check
    _
  $region3: #{e_densenet_forward.32} parent=0 // pred_check_branch
    %10 = sbr.rel (0) target = $region5
  $region4: #{e_densenet_forward.32} parent=0 // pred_region
    _
  $region5: #{e_densenet_forward.32} parent=0 // pred_fallthru
    _
  // Predicated region
  $region6: #{e_densenet_forward.32} parent=0 // pred_check
    _
  $region7: #{e_densenet_forward.32} parent=0 // pred_check_branch
    %12 = sbr.rel (0) target = $region9
  $region8: #{e_densenet_forward.32} parent=0 // pred_region
    _
  $region9: #{e_densenet_forward.32} parent=0 // pred_fallthru
    _
  // Predicated region
  $region10: #{e_densenet_forward.32} parent=0 // pred_check
    _
  $region11: #{e_densenet_forward.32} parent=0 // pred_check_branch
    %14 = sbr.rel (0) target = $region13
  $region12: #{e_densenet_forward.32} parent=0 // pred_region
    _
  $region13: #{e_densenet_forward.32} parent=0 // pred_fallthru
    _
  // Predicated region
  $region14: #{e_densenet_forward.32} parent=0 // pred_check
    _
  $region15: #{e_densenet_forward.32} parent=0 // pred_check_branch
    %16 = sbr.rel (0) target = $region17
  $region16: #{e_densenet_forward.32} parent=0 // pred_region
    _
  $region17: #{e_densenet_forward.32} parent=0 // pred_fallthru
    _
  %v17 = vld [vmem:[%s0] sm:$0xff]
  %v18 = vld [vmem:[%s1] sm:$0xff]
  %v19 = vadd.f32 %v17, %v18
  %v20 = vld [vmem:[%s2] sm:$0xff]
  %v21 = vadd.f32 %v19, %v20
  %v22 = vld [vmem:[%s3] sm:$0xff]
  %v23 = vadd.f32 %v21, %v22
  %v24 = vmul.f32 %v23, 0.25
  %vm25 = vcmask 261120
  %26 = vst.msk [vmem:[%s4] sm:$0xff] %vm25, %v24
  // Predicated region
  $region18: #{e_densenet_forward.32} parent=0 // pred_check
    _
  $region19: #{e_densenet_forward.32} parent=0 // pred_check_branch
    %28 = sbr.rel (0) target = $region21
  $region20: #{e_densenet_forward.32} parent=0 // pred_region
    _
  $region21: #{e_densenet_forward.32} parent=0 // pred_fallthru
    _
  // Predicated region
  $region22: #{e_densenet_forward.32} parent=0 // pred_check
    _
  $region23: #{e_densenet_forward.32} parent=0 // pred_check_branch
    %30 = sbr.rel (0) target = $region25
  $region24: #{e_densenet_forward.32} parent=0 // pred_region
    _
  $region25: #{e_densenet_forward.32} parent=0 // pred_fallthru
    _

// kernel: e_densenet_forward.33
$region0: #{e_densenet_forward.33}
  #allocation0 [shape = 'u32[]', space=smem, size = 0x4, offset = 0x4, fixed_abs, tag = 'smem constant byte address 0x4 - core index']
  #allocation1 [shape = 'u32[144,128]{1,0:T(1,128)}', space=vmem, size = 0x12000, scoped, tag = 'internal scratch']
  %s0 = inlined_call_operand.vmem [shape: bf16[1,8,8], index: 0, kind: input, shape index: {}]
  %s1 = inlined_call_operand.vmem [shape: f32[8,1], index: 1, kind: input, shape index: {}]
  %s2 = inlined_call_operand.vmem [shape: f32[8,1], index: 2, kind: input, shape index: {}]
  %s3 = inlined_call_operand.vmem [shape: f32[8,1], index: 3, kind: input, shape index: {}]
  %s4 = inlined_call_operand.vmem [shape: f32[8,1], index: 4, kind: input, shape index: {}]
  %s5 = inlined_call_operand.vmem [shape: f32[8,32], index: 5, kind: input, shape index: {}]
  %s6 = inlined_call_operand.vmem [shape: bf16[8,32], index: 6, kind: output, shape index: {}]
  %s7 = sld [smem:[#allocation0]]
  $region34: #{e_densenet_forward.33} parent=0
    _
  %s9 = ssub.s32 1, %s7
  %s10 = scalar_select 0, %s9, %s7
  // Predicated region
  $region2: #{e_densenet_forward.33} parent=0 // pred_check
    _
  $region3: #{e_densenet_forward.33} parent=0 // pred_check_branch
    %12 = sbr.rel (0) target = $region5
  $region4: #{e_densenet_forward.33} parent=0 // pred_region
    _
  $region5: #{e_densenet_forward.33} parent=0 // pred_fallthru
    _
  // Predicated region
  $region6: #{e_densenet_forward.33} parent=0 // pred_check
    _
  $region7: #{e_densenet_forward.33} parent=0 // pred_check_branch
    %14 = sbr.rel (0) target = $region9
  $region8: #{e_densenet_forward.33} parent=0 // pred_region
    _
  $region9: #{e_densenet_forward.33} parent=0 // pred_fallthru
    _
  // Predicated region
  $region10: #{e_densenet_forward.33} parent=0 // pred_check
    _
  $region11: #{e_densenet_forward.33} parent=0 // pred_check_branch
    %16 = sbr.rel (0) target = $region13
  $region12: #{e_densenet_forward.33} parent=0 // pred_region
    _
  $region13: #{e_densenet_forward.33} parent=0 // pred_fallthru
    _
  // Predicated region
  $region14: #{e_densenet_forward.33} parent=0 // pred_check
    _
  $region15: #{e_densenet_forward.33} parent=0 // pred_check_branch
    %18 = sbr.rel (0) target = $region17
  $region16: #{e_densenet_forward.33} parent=0 // pred_region
    _
  $region17: #{e_densenet_forward.33} parent=0 // pred_fallthru
    _
  // Predicated region
  $region18: #{e_densenet_forward.33} parent=0 // pred_check
    _
  $region19: #{e_densenet_forward.33} parent=0 // pred_check_branch
    %20 = sbr.rel (0) target = $region21
  $region20: #{e_densenet_forward.33} parent=0 // pred_region
    _
  $region21: #{e_densenet_forward.33} parent=0 // pred_fallthru
    _
  // Predicated region
  $region22: #{e_densenet_forward.33} parent=0 // pred_check
    _
  $region23: #{e_densenet_forward.33} parent=0 // pred_check_branch
    %22 = sbr.rel (0) target = $region25
  $region24: #{e_densenet_forward.33} parent=0 // pred_region
    _
  $region25: #{e_densenet_forward.33} parent=0 // pred_fallthru
    _
  %v24 = vld [vmem:[%s5] sm:$0xff]
  %v25 = vld [vmem:[%s1] sm:$0xff]
  %27 = vset.pattern.permute.xlu0 0
  %28 = vperm.xlu0 %27, %v25
  %v29 = vpop.permute.xlu0 %28
  %v31 = vmul.f32 %v24, %v29
  %v32 = vld [vmem:[%s2] sm:$0xff]
  %34 = vset.pattern.permute.xlu0 0
  %35 = vperm.xlu0 %34, %v32
  %v36 = vpop.permute.xlu0 %35
  %v38 = vadd.f32 %v31, %v36
  %v39 = vmax.f32 %v38, 0.0
  %v40 = vld [vmem:[%s0] sm:$0xf]
  %v41 = vpack.c.bf16 %v39, %v39
  %vm42 = vcmask 64512
  %v44 = vsel %vm42, %v40, 0
  %vm46 = vcmask 1043456
  %v48 = vsel %vm46, %v41, 0
  %50 = vmatprep.subr.bf16.mxu0 0
  %51 = vmatpush1.bf16.msra.mxu0 0
  %52 = vmatprep.subr.bf16.mxu0 0
  %53 = vmatpush1.bf16.msra.mxu0 0
  %54 = vmatprep.subr.bf16.mxu0 0
  %55 = vmatpush1.bf16.msra.mxu0 0
  %56 = vmatprep.subr.bf16.mxu0 0
  %57 = vmatpush1.bf16.msra.mxu0 0
  %58 = vmatprep.subr.bf16.mxu0 0
  %59 = vmatpush1.bf16.msra.mxu0 0
  %60 = vmatprep.subr.bf16.mxu0 0
  %61 = vmatpush1.bf16.msra.mxu0 0
  %62 = vmatprep.subr.bf16.mxu0 0
  %63 = vmatpush1.bf16.msra.mxu0 0
  %64 = vmatprep.subr.bf16.mxu0 0
  %65 = vmatpush1.bf16.msra.mxu0 %v48
  %66 = vmatprep.subr.bf16.mxu0 0
  %67 = vmatpush2.bf16.msra.mxu0 0
  %68 = vmatprep.subr.bf16.mxu0 0
  %69 = vmatpush2.bf16.msra.mxu0 0
  %70 = vmatprep.subr.bf16.mxu0 0
  %71 = vmatpush2.bf16.msra.mxu0 0
  %72 = vmatprep.subr.bf16.mxu0 0
  %73 = vmatpush2.bf16.msra.mxu0 0
  %74 = vmatprep.subr.bf16.mxu0 0
  %75 = vmatpush2.bf16.msra.mxu0 0
  %76 = vmatprep.subr.bf16.mxu0 0
  %77 = vmatpush2.bf16.msra.mxu0 0
  %78 = vmatprep.subr.bf16.mxu0 0
  %79 = vmatpush2.bf16.msra.mxu0 0
  %80 = vmatprep.subr.bf16.mxu0 0
  %81 = vmatpush2.bf16.msra.mxu0 0
  %82 = vmatprep.mubr.bf16.mxu0 0
  %83 = vmatmul.mubr.bf16.gmra.mxu0 %v44
  %v84 = vpop.f32.mrf.mxu0
  %v85 = vadd.f32 0.0, %v84
  %v86 = vpop.f32.mrf.mxu0
  %v87 = vpop.f32.mrf.mxu0
  %v88 = vpop.f32.mrf.mxu0
  %89 = vdwg.mxu0
  %v90 = vld [vmem:[%s3] sm:$0xff]
  %92 = vset.pattern.permute.xlu0 0
  %93 = vperm.xlu0 %92, %v90
  %v94 = vpop.permute.xlu0 %93
  %v96 = vmul.f32 %v85, %v94
  %v97 = vld [vmem:[%s4] sm:$0xff]
  %99 = vset.pattern.permute.xlu0 0
  %100 = vperm.xlu0 %99, %v97
  %v101 = vpop.permute.xlu0 %100
  %v103 = vadd.f32 %v96, %v101
  %v104 = vmax.f32 %v103, 0.0
  %v105 = vpack.c.bf16 %v104, %v104
  %vm106 = vcmask 257024
  %107 = vst.msk [vmem:[%s6] sm:$0xf] %vm106, %v105
  // Predicated region
  $region26: #{e_densenet_forward.33} parent=0 // pred_check
    _
  $region27: #{e_densenet_forward.33} parent=0 // pred_check_branch
    %109 = sbr.rel (0) target = $region29
  $region28: #{e_densenet_forward.33} parent=0 // pred_region
    _
  $region29: #{e_densenet_forward.33} parent=0 // pred_fallthru
    _
  // Predicated region
  $region30: #{e_densenet_forward.33} parent=0 // pred_check
    _
  $region31: #{e_densenet_forward.33} parent=0 // pred_check_branch
    %111 = sbr.rel (0) target = $region33
  $region32: #{e_densenet_forward.33} parent=0 // pred_region
    _
  $region33: #{e_densenet_forward.33} parent=0 // pred_fallthru
    _

// kernel: e_densenet_forward.34
$region0: #{e_densenet_forward.34}
  #allocation0 [shape = 'u32[]', space=smem, size = 0x4, offset = 0x4, fixed_abs, tag = 'smem constant byte address 0x4 - core index']
  #allocation1 [shape = 'u32[144,128]{1,0:T(1,128)}', space=vmem, size = 0x12000, scoped, tag = 'internal scratch']
  %s0 = inlined_call_operand.vmem [shape: bf16[9,4,8], index: 0, kind: input, shape index: {}]
  %s1 = inlined_call_operand.vmem [shape: bf16[8,32], index: 1, kind: input, shape index: {}]
  %s2 = inlined_call_operand.vmem [shape: bf16[8,32], index: 2, kind: input, shape index: {}]
  %s3 = inlined_call_operand.vmem [shape: bf16[8,32], index: 3, kind: input, shape index: {}]
  %s4 = inlined_call_operand.vmem [shape: bf16[8,32], index: 4, kind: input, shape index: {}]
  %s5 = inlined_call_operand.vmem [shape: bf16[8,32], index: 5, kind: input, shape index: {}]
  %s6 = inlined_call_operand.vmem [shape: bf16[8,32], index: 6, kind: input, shape index: {}]
  %s7 = inlined_call_operand.vmem [shape: bf16[8,32], index: 7, kind: input, shape index: {}]
  %s8 = inlined_call_operand.vmem [shape: bf16[8,32], index: 8, kind: input, shape index: {}]
  %s9 = inlined_call_operand.vmem [shape: bf16[8,32], index: 9, kind: input, shape index: {}]
  %s10 = inlined_call_operand.vmem [shape: f32[4,32], index: 10, kind: output, shape index: {}]
  %s11 = sld [smem:[#allocation0]]
  $region50: #{e_densenet_forward.34} parent=0
    _
  %s13 = ssub.s32 1, %s11
  %s14 = scalar_select 0, %s13, %s11
  // Predicated region
  $region2: #{e_densenet_forward.34} parent=0 // pred_check
    _
  $region3: #{e_densenet_forward.34} parent=0 // pred_check_branch
    %16 = sbr.rel (0) target = $region5
  $region4: #{e_densenet_forward.34} parent=0 // pred_region
    _
  $region5: #{e_densenet_forward.34} parent=0 // pred_fallthru
    _
  // Predicated region
  $region6: #{e_densenet_forward.34} parent=0 // pred_check
    _
  $region7: #{e_densenet_forward.34} parent=0 // pred_check_branch
    %18 = sbr.rel (0) target = $region9
  $region8: #{e_densenet_forward.34} parent=0 // pred_region
    _
  $region9: #{e_densenet_forward.34} parent=0 // pred_fallthru
    _
  // Predicated region
  $region10: #{e_densenet_forward.34} parent=0 // pred_check
    _
  $region11: #{e_densenet_forward.34} parent=0 // pred_check_branch
    %20 = sbr.rel (0) target = $region13
  $region12: #{e_densenet_forward.34} parent=0 // pred_region
    _
  $region13: #{e_densenet_forward.34} parent=0 // pred_fallthru
    _
  // Predicated region
  $region14: #{e_densenet_forward.34} parent=0 // pred_check
    _
  $region15: #{e_densenet_forward.34} parent=0 // pred_check_branch
    %22 = sbr.rel (0) target = $region17
  $region16: #{e_densenet_forward.34} parent=0 // pred_region
    _
  $region17: #{e_densenet_forward.34} parent=0 // pred_fallthru
    _
  // Predicated region
  $region18: #{e_densenet_forward.34} parent=0 // pred_check
    _
  $region19: #{e_densenet_forward.34} parent=0 // pred_check_branch
    %24 = sbr.rel (0) target = $region21
  $region20: #{e_densenet_forward.34} parent=0 // pred_region
    _
  $region21: #{e_densenet_forward.34} parent=0 // pred_fallthru
    _
  // Predicated region
  $region22: #{e_densenet_forward.34} parent=0 // pred_check
    _
  $region23: #{e_densenet_forward.34} parent=0 // pred_check_branch
    %26 = sbr.rel (0) target = $region25
  $region24: #{e_densenet_forward.34} parent=0 // pred_region
    _
  $region25: #{e_densenet_forward.34} parent=0 // pred_fallthru
    _
  // Predicated region
  $region26: #{e_densenet_forward.34} parent=0 // pred_check
    _
  $region27: #{e_densenet_forward.34} parent=0 // pred_check_branch
    %28 = sbr.rel (0) target = $region29
  $region28: #{e_densenet_forward.34} parent=0 // pred_region
    _
  $region29: #{e_densenet_forward.34} parent=0 // pred_fallthru
    _
  // Predicated region
  $region30: #{e_densenet_forward.34} parent=0 // pred_check
    _
  $region31: #{e_densenet_forward.34} parent=0 // pred_check_branch
    %30 = sbr.rel (0) target = $region33
  $region32: #{e_densenet_forward.34} parent=0 // pred_region
    _
  $region33: #{e_densenet_forward.34} parent=0 // pred_fallthru
    _
  // Predicated region
  $region34: #{e_densenet_forward.34} parent=0 // pred_check
    _
  $region35: #{e_densenet_forward.34} parent=0 // pred_check_branch
    %32 = sbr.rel (0) target = $region37
  $region36: #{e_densenet_forward.34} parent=0 // pred_region
    _
  $region37: #{e_densenet_forward.34} parent=0 // pred_fallthru
    _
  // Predicated region
  $region38: #{e_densenet_forward.34} parent=0 // pred_check
    _
  $region39: #{e_densenet_forward.34} parent=0 // pred_check_branch
    %34 = sbr.rel (0) target = $region41
  $region40: #{e_densenet_forward.34} parent=0 // pred_region
    _
  $region41: #{e_densenet_forward.34} parent=0 // pred_fallthru
    _
  %v36 = vld [vmem:[%s1] sm:$0xf]
  %v37 = vld [vmem:[%s0] sm:$0x3]
  %v38 = vld [vmem:[%s2] sm:$0xf]
  %s39 = scalar_lea.vmem %s0, 2
  %v40 = vld [vmem:[%s39] sm:$0x3]
  %vm41 = vcmask 64512
  %v43 = vsel %vm41, %v40, 0
  %vm45 = vcmask 1043456
  %v47 = vsel %vm45, %v38, 0
  %49 = vmatprep.subr.bf16.mxu0 0
  %50 = vmatpush1.bf16.msra.mxu0 0
  %51 = vmatprep.subr.bf16.mxu0 0
  %52 = vmatpush1.bf16.msra.mxu0 0
  %53 = vmatprep.subr.bf16.mxu0 0
  %54 = vmatpush1.bf16.msra.mxu0 0
  %55 = vmatprep.subr.bf16.mxu0 0
  %56 = vmatpush1.bf16.msra.mxu0 0
  %57 = vmatprep.subr.bf16.mxu0 0
  %58 = vmatpush1.bf16.msra.mxu0 0
  %59 = vmatprep.subr.bf16.mxu0 0
  %60 = vmatpush1.bf16.msra.mxu0 0
  %61 = vmatprep.subr.bf16.mxu0 0
  %62 = vmatpush1.bf16.msra.mxu0 0
  %63 = vmatprep.subr.bf16.mxu0 0
  %64 = vmatpush1.bf16.msra.mxu0 %v47
  %65 = vmatprep.subr.bf16.mxu0 0
  %66 = vmatpush2.bf16.msra.mxu0 0
  %67 = vmatprep.subr.bf16.mxu0 0
  %68 = vmatpush2.bf16.msra.mxu0 0
  %69 = vmatprep.subr.bf16.mxu0 0
  %70 = vmatpush2.bf16.msra.mxu0 0
  %71 = vmatprep.subr.bf16.mxu0 0
  %72 = vmatpush2.bf16.msra.mxu0 0
  %73 = vmatprep.subr.bf16.mxu0 0
  %74 = vmatpush2.bf16.msra.mxu0 0
  %75 = vmatprep.subr.bf16.mxu0 0
  %76 = vmatpush2.bf16.msra.mxu0 0
  %77 = vmatprep.subr.bf16.mxu0 0
  %78 = vmatpush2.bf16.msra.mxu0 0
  %79 = vmatprep.subr.bf16.mxu0 0
  %80 = vmatpush2.bf16.msra.mxu0 0
  %81 = vmatprep.mubr.bf16.mxu0 0
  %82 = vmatmul.mubr.bf16.gmra.mxu0 %v43
  %v83 = vpop.f32.mrf.mxu0
  %v84 = vadd.f32 0.0, %v83
  %v85 = vpop.f32.mrf.mxu0
  %v86 = vpop.f32.mrf.mxu0
  %v87 = vpop.f32.mrf.mxu0
  %88 = vdwg.mxu0
  %v90 = vsel %vm41, %v37, 0
  %v93 = vsel %vm45, %v36, 0
  %95 = vmatprep.subr.bf16.mxu0 0
  %96 = vmatpush1.bf16.msra.mxu0 0
  %97 = vmatprep.subr.bf16.mxu0 0
  %98 = vmatpush1.bf16.msra.mxu0 0
  %99 = vmatprep.subr.bf16.mxu0 0
  %100 = vmatpush1.bf16.msra.mxu0 0
  %101 = vmatprep.subr.bf16.mxu0 0
  %102 = vmatpush1.bf16.msra.mxu0 0
  %103 = vmatprep.subr.bf16.mxu0 0
  %104 = vmatpush1.bf16.msra.mxu0 0
  %105 = vmatprep.subr.bf16.mxu0 0
  %106 = vmatpush1.bf16.msra.mxu0 0
  %107 = vmatprep.subr.bf16.mxu0 0
  %108 = vmatpush1.bf16.msra.mxu0 0
  %109 = vmatprep.subr.bf16.mxu0 0
  %110 = vmatpush1.bf16.msra.mxu0 %v93
  %111 = vmatprep.subr.bf16.mxu0 0
  %112 = vmatpush2.bf16.msra.mxu0 0
  %113 = vmatprep.subr.bf16.mxu0 0
  %114 = vmatpush2.bf16.msra.mxu0 0
  %115 = vmatprep.subr.bf16.mxu0 0
  %116 = vmatpush2.bf16.msra.mxu0 0
  %117 = vmatprep.subr.bf16.mxu0 0
  %118 = vmatpush2.bf16.msra.mxu0 0
  %119 = vmatprep.subr.bf16.mxu0 0
  %120 = vmatpush2.bf16.msra.mxu0 0
  %121 = vmatprep.subr.bf16.mxu0 0
  %122 = vmatpush2.bf16.msra.mxu0 0
  %123 = vmatprep.subr.bf16.mxu0 0
  %124 = vmatpush2.bf16.msra.mxu0 0
  %125 = vmatprep.subr.bf16.mxu0 0
  %126 = vmatpush2.bf16.msra.mxu0 0
  %127 = vmatprep.mubr.bf16.mxu0 0
  %128 = vmatmul.mubr.bf16.gmra.mxu0 %v90
  %v129 = vpop.f32.mrf.mxu0
  %v130 = vadd.f32 %v84, %v129
  %v131 = vpop.f32.mrf.mxu0
  %v132 = vpop.f32.mrf.mxu0
  %v133 = vpop.f32.mrf.mxu0
  %134 = vdwg.mxu0
  %v135 = vld [vmem:[%s3] sm:$0xf]
  %s136 = scalar_lea.vmem %s0, 4
  %v137 = vld [vmem:[%s136] sm:$0x3]
  %v139 = vsel %vm41, %v137, 0
  %v142 = vsel %vm45, %v135, 0
  %144 = vmatprep.subr.bf16.mxu0 0
  %145 = vmatpush1.bf16.msra.mxu0 0
  %146 = vmatprep.subr.bf16.mxu0 0
  %147 = vmatpush1.bf16.msra.mxu0 0
  %148 = vmatprep.subr.bf16.mxu0 0
  %149 = vmatpush1.bf16.msra.mxu0 0
  %150 = vmatprep.subr.bf16.mxu0 0
  %151 = vmatpush1.bf16.msra.mxu0 0
  %152 = vmatprep.subr.bf16.mxu0 0
  %153 = vmatpush1.bf16.msra.mxu0 0
  %154 = vmatprep.subr.bf16.mxu0 0
  %155 = vmatpush1.bf16.msra.mxu0 0
  %156 = vmatprep.subr.bf16.mxu0 0
  %157 = vmatpush1.bf16.msra.mxu0 0
  %158 = vmatprep.subr.bf16.mxu0 0
  %159 = vmatpush1.bf16.msra.mxu0 %v142
  %160 = vmatprep.subr.bf16.mxu0 0
  %161 = vmatpush2.bf16.msra.mxu0 0
  %162 = vmatprep.subr.bf16.mxu0 0
  %163 = vmatpush2.bf16.msra.mxu0 0
  %164 = vmatprep.subr.bf16.mxu0 0
  %165 = vmatpush2.bf16.msra.mxu0 0
  %166 = vmatprep.subr.bf16.mxu0 0
  %167 = vmatpush2.bf16.msra.mxu0 0
  %168 = vmatprep.subr.bf16.mxu0 0
  %169 = vmatpush2.bf16.msra.mxu0 0
  %170 = vmatprep.subr.bf16.mxu0 0
  %171 = vmatpush2.bf16.msra.mxu0 0
  %172 = vmatprep.subr.bf16.mxu0 0
  %173 = vmatpush2.bf16.msra.mxu0 0
  %174 = vmatprep.subr.bf16.mxu0 0
  %175 = vmatpush2.bf16.msra.mxu0 0
  %176 = vmatprep.mubr.bf16.mxu0 0
  %177 = vmatmul.mubr.bf16.gmra.mxu0 %v139
  %v178 = vpop.f32.mrf.mxu0
  %v179 = vadd.f32 0.0, %v178
  %v180 = vpop.f32.mrf.mxu0
  %v181 = vpop.f32.mrf.mxu0
  %v182 = vpop.f32.mrf.mxu0
  %183 = vdwg.mxu0
  %v184 = vadd.f32 %v130, %v179
  %v185 = vld [vmem:[%s4] sm:$0xf]
  %s186 = scalar_lea.vmem %s0, 6
  %v187 = vld [vmem:[%s186] sm:$0x3]
  %v189 = vsel %vm41, %v187, 0
  %v192 = vsel %vm45, %v185, 0
  %194 = vmatprep.subr.bf16.mxu0 0
  %195 = vmatpush1.bf16.msra.mxu0 0
  %196 = vmatprep.subr.bf16.mxu0 0
  %197 = vmatpush1.bf16.msra.mxu0 0
  %198 = vmatprep.subr.bf16.mxu0 0
  %199 = vmatpush1.bf16.msra.mxu0 0
  %200 = vmatprep.subr.bf16.mxu0 0
  %201 = vmatpush1.bf16.msra.mxu0 0
  %202 = vmatprep.subr.bf16.mxu0 0
  %203 = vmatpush1.bf16.msra.mxu0 0
  %204 = vmatprep.subr.bf16.mxu0 0
  %205 = vmatpush1.bf16.msra.mxu0 0
  %206 = vmatprep.subr.bf16.mxu0 0
  %207 = vmatpush1.bf16.msra.mxu0 0
  %208 = vmatprep.subr.bf16.mxu0 0
  %209 = vmatpush1.bf16.msra.mxu0 %v192
  %210 = vmatprep.subr.bf16.mxu0 0
  %211 = vmatpush2.bf16.msra.mxu0 0
  %212 = vmatprep.subr.bf16.mxu0 0
  %213 = vmatpush2.bf16.msra.mxu0 0
  %214 = vmatprep.subr.bf16.mxu0 0
  %215 = vmatpush2.bf16.msra.mxu0 0
  %216 = vmatprep.subr.bf16.mxu0 0
  %217 = vmatpush2.bf16.msra.mxu0 0
  %218 = vmatprep.subr.bf16.mxu0 0
  %219 = vmatpush2.bf16.msra.mxu0 0
  %220 = vmatprep.subr.bf16.mxu0 0
  %221 = vmatpush2.bf16.msra.mxu0 0
  %222 = vmatprep.subr.bf16.mxu0 0
  %223 = vmatpush2.bf16.msra.mxu0 0
  %224 = vmatprep.subr.bf16.mxu0 0
  %225 = vmatpush2.bf16.msra.mxu0 0
  %226 = vmatprep.mubr.bf16.mxu0 0
  %227 = vmatmul.mubr.bf16.gmra.mxu0 %v189
  %v228 = vpop.f32.mrf.mxu0
  %v229 = vadd.f32 0.0, %v228
  %v230 = vpop.f32.mrf.mxu0
  %v231 = vpop.f32.mrf.mxu0
  %v232 = vpop.f32.mrf.mxu0
  %233 = vdwg.mxu0
  %v234 = vadd.f32 %v184, %v229
  %v235 = vld [vmem:[%s5] sm:$0xf]
  %s236 = scalar_lea.vmem %s0, 8
  %v237 = vld [vmem:[%s236] sm:$0x3]
  %v239 = vsel %vm41, %v237, 0
  %v242 = vsel %vm45, %v235, 0
  %244 = vmatprep.subr.bf16.mxu0 0
  %245 = vmatpush1.bf16.msra.mxu0 0
  %246 = vmatprep.subr.bf16.mxu0 0
  %247 = vmatpush1.bf16.msra.mxu0 0
  %248 = vmatprep.subr.bf16.mxu0 0
  %249 = vmatpush1.bf16.msra.mxu0 0
  %250 = vmatprep.subr.bf16.mxu0 0
  %251 = vmatpush1.bf16.msra.mxu0 0
  %252 = vmatprep.subr.bf16.mxu0 0
  %253 = vmatpush1.bf16.msra.mxu0 0
  %254 = vmatprep.subr.bf16.mxu0 0
  %255 = vmatpush1.bf16.msra.mxu0 0
  %256 = vmatprep.subr.bf16.mxu0 0
  %257 = vmatpush1.bf16.msra.mxu0 0
  %258 = vmatprep.subr.bf16.mxu0 0
  %259 = vmatpush1.bf16.msra.mxu0 %v242
  %260 = vmatprep.subr.bf16.mxu0 0
  %261 = vmatpush2.bf16.msra.mxu0 0
  %262 = vmatprep.subr.bf16.mxu0 0
  %263 = vmatpush2.bf16.msra.mxu0 0
  %264 = vmatprep.subr.bf16.mxu0 0
  %265 = vmatpush2.bf16.msra.mxu0 0
  %266 = vmatprep.subr.bf16.mxu0 0
  %267 = vmatpush2.bf16.msra.mxu0 0
  %268 = vmatprep.subr.bf16.mxu0 0
  %269 = vmatpush2.bf16.msra.mxu0 0
  %270 = vmatprep.subr.bf16.mxu0 0
  %271 = vmatpush2.bf16.msra.mxu0 0
  %272 = vmatprep.subr.bf16.mxu0 0
  %273 = vmatpush2.bf16.msra.mxu0 0
  %274 = vmatprep.subr.bf16.mxu0 0
  %275 = vmatpush2.bf16.msra.mxu0 0
  %276 = vmatprep.mubr.bf16.mxu0 0
  %277 = vmatmul.mubr.bf16.gmra.mxu0 %v239
  %v278 = vpop.f32.mrf.mxu0
  %v279 = vadd.f32 0.0, %v278
  %v280 = vpop.f32.mrf.mxu0
  %v281 = vpop.f32.mrf.mxu0
  %v282 = vpop.f32.mrf.mxu0
  %283 = vdwg.mxu0
  %v284 = vadd.f32 %v234, %v279
  %v285 = vld [vmem:[%s6] sm:$0xf]
  %s286 = scalar_lea.vmem %s0, 10
  %v287 = vld [vmem:[%s286] sm:$0x3]
  %v289 = vsel %vm41, %v287, 0
  %v292 = vsel %vm45, %v285, 0
  %294 = vmatprep.subr.bf16.mxu0 0
  %295 = vmatpush1.bf16.msra.mxu0 0
  %296 = vmatprep.subr.bf16.mxu0 0
  %297 = vmatpush1.bf16.msra.mxu0 0
  %298 = vmatprep.subr.bf16.mxu0 0
  %299 = vmatpush1.bf16.msra.mxu0 0
  %300 = vmatprep.subr.bf16.mxu0 0
  %301 = vmatpush1.bf16.msra.mxu0 0
  %302 = vmatprep.subr.bf16.mxu0 0
  %303 = vmatpush1.bf16.msra.mxu0 0
  %304 = vmatprep.subr.bf16.mxu0 0
  %305 = vmatpush1.bf16.msra.mxu0 0
  %306 = vmatprep.subr.bf16.mxu0 0
  %307 = vmatpush1.bf16.msra.mxu0 0
  %308 = vmatprep.subr.bf16.mxu0 0
  %309 = vmatpush1.bf16.msra.mxu0 %v292
  %310 = vmatprep.subr.bf16.mxu0 0
  %311 = vmatpush2.bf16.msra.mxu0 0
  %312 = vmatprep.subr.bf16.mxu0 0
  %313 = vmatpush2.bf16.msra.mxu0 0
  %314 = vmatprep.subr.bf16.mxu0 0
  %315 = vmatpush2.bf16.msra.mxu0 0
  %316 = vmatprep.subr.bf16.mxu0 0
  %317 = vmatpush2.bf16.msra.mxu0 0
  %318 = vmatprep.subr.bf16.mxu0 0
  %319 = vmatpush2.bf16.msra.mxu0 0
  %320 = vmatprep.subr.bf16.mxu0 0
  %321 = vmatpush2.bf16.msra.mxu0 0
  %322 = vmatprep.subr.bf16.mxu0 0
  %323 = vmatpush2.bf16.msra.mxu0 0
  %324 = vmatprep.subr.bf16.mxu0 0
  %325 = vmatpush2.bf16.msra.mxu0 0
  %326 = vmatprep.mubr.bf16.mxu0 0
  %327 = vmatmul.mubr.bf16.gmra.mxu0 %v289
  %v328 = vpop.f32.mrf.mxu0
  %v329 = vadd.f32 0.0, %v328
  %v330 = vpop.f32.mrf.mxu0
  %v331 = vpop.f32.mrf.mxu0
  %v332 = vpop.f32.mrf.mxu0
  %333 = vdwg.mxu0
  %v334 = vadd.f32 %v284, %v329
  %v335 = vld [vmem:[%s7] sm:$0xf]
  %s336 = scalar_lea.vmem %s0, 12
  %v337 = vld [vmem:[%s336] sm:$0x3]
  %v339 = vsel %vm41, %v337, 0
  %v342 = vsel %vm45, %v335, 0
  %344 = vmatprep.subr.bf16.mxu0 0
  %345 = vmatpush1.bf16.msra.mxu0 0
  %346 = vmatprep.subr.bf16.mxu0 0
  %347 = vmatpush1.bf16.msra.mxu0 0
  %348 = vmatprep.subr.bf16.mxu0 0
  %349 = vmatpush1.bf16.msra.mxu0 0
  %350 = vmatprep.subr.bf16.mxu0 0
  %351 = vmatpush1.bf16.msra.mxu0 0
  %352 = vmatprep.subr.bf16.mxu0 0
  %353 = vmatpush1.bf16.msra.mxu0 0
  %354 = vmatprep.subr.bf16.mxu0 0
  %355 = vmatpush1.bf16.msra.mxu0 0
  %356 = vmatprep.subr.bf16.mxu0 0
  %357 = vmatpush1.bf16.msra.mxu0 0
  %358 = vmatprep.subr.bf16.mxu0 0
  %359 = vmatpush1.bf16.msra.mxu0 %v342
  %360 = vmatprep.subr.bf16.mxu0 0
  %361 = vmatpush2.bf16.msra.mxu0 0
  %362 = vmatprep.subr.bf16.mxu0 0
  %363 = vmatpush2.bf16.msra.mxu0 0
  %364 = vmatprep.subr.bf16.mxu0 0
  %365 = vmatpush2.bf16.msra.mxu0 0
  %366 = vmatprep.subr.bf16.mxu0 0
  %367 = vmatpush2.bf16.msra.mxu0 0
  %368 = vmatprep.subr.bf16.mxu0 0
  %369 = vmatpush2.bf16.msra.mxu0 0
  %370 = vmatprep.subr.bf16.mxu0 0
  %371 = vmatpush2.bf16.msra.mxu0 0
  %372 = vmatprep.subr.bf16.mxu0 0
  %373 = vmatpush2.bf16.msra.mxu0 0
  %374 = vmatprep.subr.bf16.mxu0 0
  %375 = vmatpush2.bf16.msra.mxu0 0
  %376 = vmatprep.mubr.bf16.mxu0 0
  %377 = vmatmul.mubr.bf16.gmra.mxu0 %v339
  %v378 = vpop.f32.mrf.mxu0
  %v379 = vadd.f32 0.0, %v378
  %v380 = vpop.f32.mrf.mxu0
  %v381 = vpop.f32.mrf.mxu0
  %v382 = vpop.f32.mrf.mxu0
  %383 = vdwg.mxu0
  %v384 = vadd.f32 %v334, %v379
  %v385 = vld [vmem:[%s8] sm:$0xf]
  %s386 = scalar_lea.vmem %s0, 14
  %v387 = vld [vmem:[%s386] sm:$0x3]
  %v389 = vsel %vm41, %v387, 0
  %v392 = vsel %vm45, %v385, 0
  %394 = vmatprep.subr.bf16.mxu0 0
  %395 = vmatpush1.bf16.msra.mxu0 0
  %396 = vmatprep.subr.bf16.mxu0 0
  %397 = vmatpush1.bf16.msra.mxu0 0
  %398 = vmatprep.subr.bf16.mxu0 0
  %399 = vmatpush1.bf16.msra.mxu0 0
  %400 = vmatprep.subr.bf16.mxu0 0
  %401 = vmatpush1.bf16.msra.mxu0 0
  %402 = vmatprep.subr.bf16.mxu0 0
  %403 = vmatpush1.bf16.msra.mxu0 0
  %404 = vmatprep.subr.bf16.mxu0 0
  %405 = vmatpush1.bf16.msra.mxu0 0
  %406 = vmatprep.subr.bf16.mxu0 0
  %407 = vmatpush1.bf16.msra.mxu0 0
  %408 = vmatprep.subr.bf16.mxu0 0
  %409 = vmatpush1.bf16.msra.mxu0 %v392
  %410 = vmatprep.subr.bf16.mxu0 0
  %411 = vmatpush2.bf16.msra.mxu0 0
  %412 = vmatprep.subr.bf16.mxu0 0
  %413 = vmatpush2.bf16.msra.mxu0 0
  %414 = vmatprep.subr.bf16.mxu0 0
  %415 = vmatpush2.bf16.msra.mxu0 0
  %416 = vmatprep.subr.bf16.mxu0 0
  %417 = vmatpush2.bf16.msra.mxu0 0
  %418 = vmatprep.subr.bf16.mxu0 0
  %419 = vmatpush2.bf16.msra.mxu0 0
  %420 = vmatprep.subr.bf16.mxu0 0
  %421 = vmatpush2.bf16.msra.mxu0 0
  %422 = vmatprep.subr.bf16.mxu0 0
  %423 = vmatpush2.bf16.msra.mxu0 0
  %424 = vmatprep.subr.bf16.mxu0 0
  %425 = vmatpush2.bf16.msra.mxu0 0
  %426 = vmatprep.mubr.bf16.mxu0 0
  %427 = vmatmul.mubr.bf16.gmra.mxu0 %v389
  %v428 = vpop.f32.mrf.mxu0
  %v429 = vadd.f32 0.0, %v428
  %v430 = vpop.f32.mrf.mxu0
  %v431 = vpop.f32.mrf.mxu0
  %v432 = vpop.f32.mrf.mxu0
  %433 = vdwg.mxu0
  %v434 = vadd.f32 %v384, %v429
  %v435 = vld [vmem:[%s9] sm:$0xf]
  %s436 = scalar_lea.vmem %s0, 16
  %v437 = vld [vmem:[%s436] sm:$0x3]
  %v439 = vsel %vm41, %v437, 0
  %v442 = vsel %vm45, %v435, 0
  %444 = vmatprep.subr.bf16.mxu0 0
  %445 = vmatpush1.bf16.msra.mxu0 0
  %446 = vmatprep.subr.bf16.mxu0 0
  %447 = vmatpush1.bf16.msra.mxu0 0
  %448 = vmatprep.subr.bf16.mxu0 0
  %449 = vmatpush1.bf16.msra.mxu0 0
  %450 = vmatprep.subr.bf16.mxu0 0
  %451 = vmatpush1.bf16.msra.mxu0 0
  %452 = vmatprep.subr.bf16.mxu0 0
  %453 = vmatpush1.bf16.msra.mxu0 0
  %454 = vmatprep.subr.bf16.mxu0 0
  %455 = vmatpush1.bf16.msra.mxu0 0
  %456 = vmatprep.subr.bf16.mxu0 0
  %457 = vmatpush1.bf16.msra.mxu0 0
  %458 = vmatprep.subr.bf16.mxu0 0
  %459 = vmatpush1.bf16.msra.mxu0 %v442
  %460 = vmatprep.subr.bf16.mxu0 0
  %461 = vmatpush2.bf16.msra.mxu0 0
  %462 = vmatprep.subr.bf16.mxu0 0
  %463 = vmatpush2.bf16.msra.mxu0 0
  %464 = vmatprep.subr.bf16.mxu0 0
  %465 = vmatpush2.bf16.msra.mxu0 0
  %466 = vmatprep.subr.bf16.mxu0 0
  %467 = vmatpush2.bf16.msra.mxu0 0
  %468 = vmatprep.subr.bf16.mxu0 0
  %469 = vmatpush2.bf16.msra.mxu0 0
  %470 = vmatprep.subr.bf16.mxu0 0
  %471 = vmatpush2.bf16.msra.mxu0 0
  %472 = vmatprep.subr.bf16.mxu0 0
  %473 = vmatpush2.bf16.msra.mxu0 0
  %474 = vmatprep.subr.bf16.mxu0 0
  %475 = vmatpush2.bf16.msra.mxu0 0
  %476 = vmatprep.mubr.bf16.mxu0 0
  %477 = vmatmul.mubr.bf16.gmra.mxu0 %v439
  %v478 = vpop.f32.mrf.mxu0
  %v479 = vadd.f32 0.0, %v478
  %v480 = vpop.f32.mrf.mxu0
  %v481 = vpop.f32.mrf.mxu0
  %v482 = vpop.f32.mrf.mxu0
  %483 = vdwg.mxu0
  %v484 = vadd.f32 %v434, %v479
  %vm485 = vcmask 257024
  %486 = vst.msk [vmem:[%s10] sm:$0xf] %vm485, %v484
  // Predicated region
  $region42: #{e_densenet_forward.34} parent=0 // pred_check
    _
  $region43: #{e_densenet_forward.34} parent=0 // pred_check_branch
    %488 = sbr.rel (0) target = $region45
  $region44: #{e_densenet_forward.34} parent=0 // pred_region
    _
  $region45: #{e_densenet_forward.34} parent=0 // pred_fallthru
    _
  // Predicated region
  $region46: #{e_densenet_forward.34} parent=0 // pred_check
    _
  $region47: #{e_densenet_forward.34} parent=0 // pred_check_branch
    %490 = sbr.rel (0) target = $region49
  $region48: #{e_densenet_forward.34} parent=0 // pred_region
    _
  $region49: #{e_densenet_forward.34} parent=0 // pred_fallthru
    _

// kernel: e_densenet_forward.35
$region0: #{e_densenet_forward.35}
  #allocation0 [shape = 'u32[]', space=smem, size = 0x4, offset = 0x4, fixed_abs, tag = 'smem constant byte address 0x4 - core index']
  #allocation1 [shape = 'u32[144,128]{1,0:T(1,128)}', space=vmem, size = 0x12000, scoped, tag = 'internal scratch']
  %s0 = inlined_call_operand.vmem [shape: bf16[1,8,12], index: 0, kind: input, shape index: {}]
  %s1 = inlined_call_operand.vmem [shape: f32[12,1], index: 1, kind: input, shape index: {}]
  %s2 = inlined_call_operand.vmem [shape: f32[12,1], index: 2, kind: input, shape index: {}]
  %s3 = inlined_call_operand.vmem [shape: f32[8,1], index: 3, kind: input, shape index: {}]
  %s4 = inlined_call_operand.vmem [shape: f32[8,1], index: 4, kind: input, shape index: {}]
  %s5 = inlined_call_operand.vmem [shape: f32[12,32], index: 5, kind: input, shape index: {}]
  %s6 = inlined_call_operand.vmem [shape: bf16[8,32], index: 6, kind: output, shape index: {}]
  %s7 = sld [smem:[#allocation0]]
  $region34: #{e_densenet_forward.35} parent=0
    _
  %s9 = ssub.s32 1, %s7
  %s10 = scalar_select 0, %s9, %s7
  // Predicated region
  $region2: #{e_densenet_forward.35} parent=0 // pred_check
    _
  $region3: #{e_densenet_forward.35} parent=0 // pred_check_branch
    %12 = sbr.rel (0) target = $region5
  $region4: #{e_densenet_forward.35} parent=0 // pred_region
    _
  $region5: #{e_densenet_forward.35} parent=0 // pred_fallthru
    _
  // Predicated region
  $region6: #{e_densenet_forward.35} parent=0 // pred_check
    _
  $region7: #{e_densenet_forward.35} parent=0 // pred_check_branch
    %14 = sbr.rel (0) target = $region9
  $region8: #{e_densenet_forward.35} parent=0 // pred_region
    _
  $region9: #{e_densenet_forward.35} parent=0 // pred_fallthru
    _
  // Predicated region
  $region10: #{e_densenet_forward.35} parent=0 // pred_check
    _
  $region11: #{e_densenet_forward.35} parent=0 // pred_check_branch
    %16 = sbr.rel (0) target = $region13
  $region12: #{e_densenet_forward.35} parent=0 // pred_region
    _
  $region13: #{e_densenet_forward.35} parent=0 // pred_fallthru
    _
  // Predicated region
  $region14: #{e_densenet_forward.35} parent=0 // pred_check
    _
  $region15: #{e_densenet_forward.35} parent=0 // pred_check_branch
    %18 = sbr.rel (0) target = $region17
  $region16: #{e_densenet_forward.35} parent=0 // pred_region
    _
  $region17: #{e_densenet_forward.35} parent=0 // pred_fallthru
    _
  // Predicated region
  $region18: #{e_densenet_forward.35} parent=0 // pred_check
    _
  $region19: #{e_densenet_forward.35} parent=0 // pred_check_branch
    %20 = sbr.rel (0) target = $region21
  $region20: #{e_densenet_forward.35} parent=0 // pred_region
    _
  $region21: #{e_densenet_forward.35} parent=0 // pred_fallthru
    _
  // Predicated region
  $region22: #{e_densenet_forward.35} parent=0 // pred_check
    _
  $region23: #{e_densenet_forward.35} parent=0 // pred_check_branch
    %22 = sbr.rel (0) target = $region25
  $region24: #{e_densenet_forward.35} parent=0 // pred_region
    _
  $region25: #{e_densenet_forward.35} parent=0 // pred_fallthru
    _
  %v24 = vld [vmem:[%s5] sm:$0xff]
  %v25 = vld [vmem:[%s5 + $0x8] sm:$0xf]
  %v26 = vld [vmem:[%s1] sm:$0xff]
  %v27 = vld [vmem:[%s1 + $0x8] sm:$0xf]
  %29 = vset.pattern.permute.xlu0 0
  %30 = vperm.xlu0 %29, %v26
  %v31 = vpop.permute.xlu0 %30
  %34 = vset.pattern.permute.xlu0 0
  %35 = vperm.xlu0 %34, %v27
  %v36 = vpop.permute.xlu0 %35
  %v38 = vmul.f32 %v24, %v31
  %v39 = vmul.f32 %v25, %v36
  %v40 = vld [vmem:[%s2] sm:$0xff]
  %v41 = vld [vmem:[%s2 + $0x8] sm:$0xf]
  %43 = vset.pattern.permute.xlu0 0
  %44 = vperm.xlu0 %43, %v40
  %v45 = vpop.permute.xlu0 %44
  %48 = vset.pattern.permute.xlu0 0
  %49 = vperm.xlu0 %48, %v41
  %v50 = vpop.permute.xlu0 %49
  %v52 = vadd.f32 %v38, %v45
  %v53 = vadd.f32 %v39, %v50
  %v54 = vmax.f32 %v52, 0.0
  %v55 = vmax.f32 %v53, 0.0
  %v56 = vld [vmem:[%s0] sm:$0xf]
  %v57 = vpack.c.bf16 %v55, %v54
  %vm58 = vcmask 97280
  %v60 = vsel %vm58, %v56, 0
  %vm62 = vcmask 1045504
  %v64 = vsel %vm62, %v57, 0
  %66 = vmatprep.subr.bf16.mxu0 0
  %67 = vmatpush1.bf16.msra.mxu0 0
  %68 = vmatprep.subr.bf16.mxu0 0
  %69 = vmatpush1.bf16.msra.mxu0 0
  %70 = vmatprep.subr.bf16.mxu0 0
  %71 = vmatpush1.bf16.msra.mxu0 0
  %72 = vmatprep.subr.bf16.mxu0 0
  %73 = vmatpush1.bf16.msra.mxu0 0
  %74 = vmatprep.subr.bf16.mxu0 0
  %75 = vmatpush1.bf16.msra.mxu0 0
  %76 = vmatprep.subr.bf16.mxu0 0
  %77 = vmatpush1.bf16.msra.mxu0 0
  %78 = vmatprep.subr.bf16.mxu0 0
  %79 = vmatpush1.bf16.msra.mxu0 0
  %80 = vmatprep.subr.bf16.mxu0 0
  %81 = vmatpush1.bf16.msra.mxu0 %v64
  %82 = vmatprep.subr.bf16.mxu0 0
  %83 = vmatpush2.bf16.msra.mxu0 0
  %84 = vmatprep.subr.bf16.mxu0 0
  %85 = vmatpush2.bf16.msra.mxu0 0
  %86 = vmatprep.subr.bf16.mxu0 0
  %87 = vmatpush2.bf16.msra.mxu0 0
  %88 = vmatprep.subr.bf16.mxu0 0
  %89 = vmatpush2.bf16.msra.mxu0 0
  %90 = vmatprep.subr.bf16.mxu0 0
  %91 = vmatpush2.bf16.msra.mxu0 0
  %92 = vmatprep.subr.bf16.mxu0 0
  %93 = vmatpush2.bf16.msra.mxu0 0
  %94 = vmatprep.subr.bf16.mxu0 0
  %95 = vmatpush2.bf16.msra.mxu0 0
  %96 = vmatprep.subr.bf16.mxu0 0
  %97 = vmatpush2.bf16.msra.mxu0 0
  %98 = vmatprep.mubr.bf16.mxu0 0
  %99 = vmatmul.mubr.bf16.gmra.mxu0 %v60
  %v100 = vpop.f32.mrf.mxu0
  %v101 = vadd.f32 0.0, %v100
  %v102 = vpop.f32.mrf.mxu0
  %v103 = vpop.f32.mrf.mxu0
  %v104 = vpop.f32.mrf.mxu0
  %105 = vdwg.mxu0
  %v106 = vld [vmem:[%s3] sm:$0xff]
  %108 = vset.pattern.permute.xlu0 0
  %109 = vperm.xlu0 %108, %v106
  %v110 = vpop.permute.xlu0 %109
  %v112 = vmul.f32 %v101, %v110
  %v113 = vld [vmem:[%s4] sm:$0xff]
  %115 = vset.pattern.permute.xlu0 0
  %116 = vperm.xlu0 %115, %v113
  %v117 = vpop.permute.xlu0 %116
  %v119 = vadd.f32 %v112, %v117
  %v120 = vmax.f32 %v119, 0.0
  %v121 = vpack.c.bf16 %v120, %v120
  %vm122 = vcmask 257024
  %123 = vst.msk [vmem:[%s6] sm:$0xf] %vm122, %v121
  // Predicated region
  $region26: #{e_densenet_forward.35} parent=0 // pred_check
    _
  $region27: #{e_densenet_forward.35} parent=0 // pred_check_branch
    %125 = sbr.rel (0) target = $region29
  $region28: #{e_densenet_forward.35} parent=0 // pred_region
    _
  $region29: #{e_densenet_forward.35} parent=0 // pred_fallthru
    _
  // Predicated region
  $region30: #{e_densenet_forward.35} parent=0 // pred_check
    _
  $region31: #{e_densenet_forward.35} parent=0 // pred_check_branch
    %127 = sbr.rel (0) target = $region33
  $region32: #{e_densenet_forward.35} parent=0 // pred_region
    _
  $region33: #{e_densenet_forward.35} parent=0 // pred_fallthru
    _

// kernel: e_densenet_forward.37
$region0: #{e_densenet_forward.37}
  #allocation0 [shape = 'u32[]', space=smem, size = 0x4, offset = 0x4, fixed_abs, tag = 'smem constant byte address 0x4 - core index']
  #allocation1 [shape = 'u32[144,128]{1,0:T(1,128)}', space=vmem, size = 0x12000, scoped, tag = 'internal scratch']
  %s0 = inlined_call_operand.vmem [shape: bf16[1,8,16], index: 0, kind: input, shape index: {}]
  %s1 = inlined_call_operand.vmem [shape: f32[16,1], index: 1, kind: input, shape index: {}]
  %s2 = inlined_call_operand.vmem [shape: f32[16,1], index: 2, kind: input, shape index: {}]
  %s3 = inlined_call_operand.vmem [shape: f32[16,32], index: 3, kind: input, shape index: {}]
  %s4 = inlined_call_operand.vmem [shape: f32[8,32], index: 4, kind: output, shape index: {}]
  %s5 = sld [smem:[#allocation0]]
  $region26: #{e_densenet_forward.37} parent=0
    _
  %s7 = ssub.s32 1, %s5
  %s8 = scalar_select 0, %s7, %s5
  // Predicated region
  $region2: #{e_densenet_forward.37} parent=0 // pred_check
    _
  $region3: #{e_densenet_forward.37} parent=0 // pred_check_branch
    %10 = sbr.rel (0) target = $region5
  $region4: #{e_densenet_forward.37} parent=0 // pred_region
    _
  $region5: #{e_densenet_forward.37} parent=0 // pred_fallthru
    _
  // Predicated region
  $region6: #{e_densenet_forward.37} parent=0 // pred_check
    _
  $region7: #{e_densenet_forward.37} parent=0 // pred_check_branch
    %12 = sbr.rel (0) target = $region9
  $region8: #{e_densenet_forward.37} parent=0 // pred_region
    _
  $region9: #{e_densenet_forward.37} parent=0 // pred_fallthru
    _
  // Predicated region
  $region10: #{e_densenet_forward.37} parent=0 // pred_check
    _
  $region11: #{e_densenet_forward.37} parent=0 // pred_check_branch
    %14 = sbr.rel (0) target = $region13
  $region12: #{e_densenet_forward.37} parent=0 // pred_region
    _
  $region13: #{e_densenet_forward.37} parent=0 // pred_fallthru
    _
  // Predicated region
  $region14: #{e_densenet_forward.37} parent=0 // pred_check
    _
  $region15: #{e_densenet_forward.37} parent=0 // pred_check_branch
    %16 = sbr.rel (0) target = $region17
  $region16: #{e_densenet_forward.37} parent=0 // pred_region
    _
  $region17: #{e_densenet_forward.37} parent=0 // pred_fallthru
    _
  %v18 = vld [vmem:[%s3] sm:$0xff]
  %v19 = vld [vmem:[%s3 + $0x8] sm:$0xff]
  %v20 = vld [vmem:[%s1] sm:$0xff]
  %v21 = vld [vmem:[%s1 + $0x8] sm:$0xff]
  %23 = vset.pattern.permute.xlu0 0
  %24 = vperm.xlu0 %23, %v20
  %v25 = vpop.permute.xlu0 %24
  %28 = vset.pattern.permute.xlu0 0
  %29 = vperm.xlu0 %28, %v21
  %v30 = vpop.permute.xlu0 %29
  %v32 = vmul.f32 %v18, %v25
  %v33 = vmul.f32 %v19, %v30
  %v34 = vld [vmem:[%s2] sm:$0xff]
  %v35 = vld [vmem:[%s2 + $0x8] sm:$0xff]
  %37 = vset.pattern.permute.xlu0 0
  %38 = vperm.xlu0 %37, %v34
  %v39 = vpop.permute.xlu0 %38
  %42 = vset.pattern.permute.xlu0 0
  %43 = vperm.xlu0 %42, %v35
  %v44 = vpop.permute.xlu0 %43
  %v46 = vadd.f32 %v32, %v39
  %v47 = vadd.f32 %v33, %v44
  %v48 = vmax.f32 %v46, 0.0
  %v49 = vmax.f32 %v47, 0.0
  %v50 = vld [vmem:[%s0] sm:$0xf]
  %v51 = vpack.c.bf16 %v49, %v48
  %vm52 = vcmask 130048
  %v54 = vsel %vm52, %v50, 0
  %56 = vmatprep.subr.bf16.mxu0 0
  %57 = vmatpush1.bf16.msra.mxu0 0
  %58 = vmatprep.subr.bf16.mxu0 0
  %59 = vmatpush1.bf16.msra.mxu0 0
  %60 = vmatprep.subr.bf16.mxu0 0
  %61 = vmatpush1.bf16.msra.mxu0 0
  %62 = vmatprep.subr.bf16.mxu0 0
  %63 = vmatpush1.bf16.msra.mxu0 0
  %64 = vmatprep.subr.bf16.mxu0 0
  %65 = vmatpush1.bf16.msra.mxu0 0
  %66 = vmatprep.subr.bf16.mxu0 0
  %67 = vmatpush1.bf16.msra.mxu0 0
  %68 = vmatprep.subr.bf16.mxu0 0
  %69 = vmatpush1.bf16.msra.mxu0 0
  %70 = vmatprep.subr.bf16.mxu0 0
  %71 = vmatpush1.bf16.msra.mxu0 %v51
  %72 = vmatprep.subr.bf16.mxu0 0
  %73 = vmatpush2.bf16.msra.mxu0 0
  %74 = vmatprep.subr.bf16.mxu0 0
  %75 = vmatpush2.bf16.msra.mxu0 0
  %76 = vmatprep.subr.bf16.mxu0 0
  %77 = vmatpush2.bf16.msra.mxu0 0
  %78 = vmatprep.subr.bf16.mxu0 0
  %79 = vmatpush2.bf16.msra.mxu0 0
  %80 = vmatprep.subr.bf16.mxu0 0
  %81 = vmatpush2.bf16.msra.mxu0 0
  %82 = vmatprep.subr.bf16.mxu0 0
  %83 = vmatpush2.bf16.msra.mxu0 0
  %84 = vmatprep.subr.bf16.mxu0 0
  %85 = vmatpush2.bf16.msra.mxu0 0
  %86 = vmatprep.subr.bf16.mxu0 0
  %87 = vmatpush2.bf16.msra.mxu0 0
  %88 = vmatprep.mubr.bf16.mxu0 0
  %89 = vmatmul.mubr.bf16.gmra.mxu0 %v54
  %v90 = vpop.f32.mrf.mxu0
  %v91 = vadd.f32 0.0, %v90
  %v92 = vpop.f32.mrf.mxu0
  %v93 = vpop.f32.mrf.mxu0
  %v94 = vpop.f32.mrf.mxu0
  %95 = vdwg.mxu0
  %vm96 = vcmask 261120
  %97 = vst.msk [vmem:[%s4] sm:$0xff] %vm96, %v91
  // Predicated region
  $region18: #{e_densenet_forward.37} parent=0 // pred_check
    _
  $region19: #{e_densenet_forward.37} parent=0 // pred_check_branch
    %99 = sbr.rel (0) target = $region21
  $region20: #{e_densenet_forward.37} parent=0 // pred_region
    _
  $region21: #{e_densenet_forward.37} parent=0 // pred_fallthru
    _
  // Predicated region
  $region22: #{e_densenet_forward.37} parent=0 // pred_check
    _
  $region23: #{e_densenet_forward.37} parent=0 // pred_check_branch
    %101 = sbr.rel (0) target = $region25
  $region24: #{e_densenet_forward.37} parent=0 // pred_region
    _
  $region25: #{e_densenet_forward.37} parent=0 // pred_fallthru
    _

// kernel: e_densenet_forward.39
$region0: #{e_densenet_forward.39}
  #allocation0 [shape = 'u32[]', space=smem, size = 0x4, offset = 0x4, fixed_abs, tag = 'smem constant byte address 0x4 - core index']
  #allocation1 [shape = 'u32[144,128]{1,0:T(1,128)}', space=vmem, size = 0x12000, scoped, tag = 'internal scratch']
  %s0 = inlined_call_operand.vmem [shape: bf16[1,8,8], index: 0, kind: input, shape index: {}]
  %s1 = inlined_call_operand.vmem [shape: f32[8,1], index: 1, kind: input, shape index: {}]
  %s2 = inlined_call_operand.vmem [shape: f32[8,1], index: 2, kind: input, shape index: {}]
  %s3 = inlined_call_operand.vmem [shape: f32[8,1], index: 3, kind: input, shape index: {}]
  %s4 = inlined_call_operand.vmem [shape: f32[8,1], index: 4, kind: input, shape index: {}]
  %s5 = inlined_call_operand.vmem [shape: f32[8,8], index: 5, kind: input, shape index: {}]
  %s6 = inlined_call_operand.vmem [shape: bf16[8,8], index: 6, kind: output, shape index: {}]
  %s7 = sld [smem:[#allocation0]]
  $region34: #{e_densenet_forward.39} parent=0
    _
  %s9 = ssub.s32 1, %s7
  %s10 = scalar_select 0, %s9, %s7
  // Predicated region
  $region2: #{e_densenet_forward.39} parent=0 // pred_check
    _
  $region3: #{e_densenet_forward.39} parent=0 // pred_check_branch
    %12 = sbr.rel (0) target = $region5
  $region4: #{e_densenet_forward.39} parent=0 // pred_region
    _
  $region5: #{e_densenet_forward.39} parent=0 // pred_fallthru
    _
  // Predicated region
  $region6: #{e_densenet_forward.39} parent=0 // pred_check
    _
  $region7: #{e_densenet_forward.39} parent=0 // pred_check_branch
    %14 = sbr.rel (0) target = $region9
  $region8: #{e_densenet_forward.39} parent=0 // pred_region
    _
  $region9: #{e_densenet_forward.39} parent=0 // pred_fallthru
    _
  // Predicated region
  $region10: #{e_densenet_forward.39} parent=0 // pred_check
    _
  $region11: #{e_densenet_forward.39} parent=0 // pred_check_branch
    %16 = sbr.rel (0) target = $region13
  $region12: #{e_densenet_forward.39} parent=0 // pred_region
    _
  $region13: #{e_densenet_forward.39} parent=0 // pred_fallthru
    _
  // Predicated region
  $region14: #{e_densenet_forward.39} parent=0 // pred_check
    _
  $region15: #{e_densenet_forward.39} parent=0 // pred_check_branch
    %18 = sbr.rel (0) target = $region17
  $region16: #{e_densenet_forward.39} parent=0 // pred_region
    _
  $region17: #{e_densenet_forward.39} parent=0 // pred_fallthru
    _
  // Predicated region
  $region18: #{e_densenet_forward.39} parent=0 // pred_check
    _
  $region19: #{e_densenet_forward.39} parent=0 // pred_check_branch
    %20 = sbr.rel (0) target = $region21
  $region20: #{e_densenet_forward.39} parent=0 // pred_region
    _
  $region21: #{e_densenet_forward.39} parent=0 // pred_fallthru
    _
  // Predicated region
  $region22: #{e_densenet_forward.39} parent=0 // pred_check
    _
  $region23: #{e_densenet_forward.39} parent=0 // pred_check_branch
    %22 = sbr.rel (0) target = $region25
  $region24: #{e_densenet_forward.39} parent=0 // pred_region
    _
  $region25: #{e_densenet_forward.39} parent=0 // pred_fallthru
    _
  %v24 = vld [vmem:[%s5] sm:$0xff]
  %v25 = vld [vmem:[%s1] sm:$0xff]
  %27 = vset.pattern.permute.xlu0 0
  %28 = vperm.xlu0 %27, %v25
  %v29 = vpop.permute.xlu0 %28
  %v31 = vmul.f32 %v24, %v29
  %v32 = vld [vmem:[%s2] sm:$0xff]
  %34 = vset.pattern.permute.xlu0 0
  %35 = vperm.xlu0 %34, %v32
  %v36 = vpop.permute.xlu0 %35
  %v38 = vadd.f32 %v31, %v36
  %v39 = vmax.f32 %v38, 0.0
  %v40 = vld [vmem:[%s0] sm:$0xf]
  %v41 = vpack.c.bf16 %v39, %v39
  %vm42 = vcmask 64512
  %v44 = vsel %vm42, %v40, 0
  %vm46 = vcmask 1043456
  %v48 = vsel %vm46, %v41, 0
  %50 = vmatprep.subr.bf16.mxu0 0
  %51 = vmatpush1.bf16.msra.mxu0 0
  %52 = vmatprep.subr.bf16.mxu0 0
  %53 = vmatpush1.bf16.msra.mxu0 0
  %54 = vmatprep.subr.bf16.mxu0 0
  %55 = vmatpush1.bf16.msra.mxu0 0
  %56 = vmatprep.subr.bf16.mxu0 0
  %57 = vmatpush1.bf16.msra.mxu0 0
  %58 = vmatprep.subr.bf16.mxu0 0
  %59 = vmatpush1.bf16.msra.mxu0 0
  %60 = vmatprep.subr.bf16.mxu0 0
  %61 = vmatpush1.bf16.msra.mxu0 0
  %62 = vmatprep.subr.bf16.mxu0 0
  %63 = vmatpush1.bf16.msra.mxu0 0
  %64 = vmatprep.subr.bf16.mxu0 0
  %65 = vmatpush1.bf16.msra.mxu0 %v48
  %66 = vmatprep.subr.bf16.mxu0 0
  %67 = vmatpush2.bf16.msra.mxu0 0
  %68 = vmatprep.subr.bf16.mxu0 0
  %69 = vmatpush2.bf16.msra.mxu0 0
  %70 = vmatprep.subr.bf16.mxu0 0
  %71 = vmatpush2.bf16.msra.mxu0 0
  %72 = vmatprep.subr.bf16.mxu0 0
  %73 = vmatpush2.bf16.msra.mxu0 0
  %74 = vmatprep.subr.bf16.mxu0 0
  %75 = vmatpush2.bf16.msra.mxu0 0
  %76 = vmatprep.subr.bf16.mxu0 0
  %77 = vmatpush2.bf16.msra.mxu0 0
  %78 = vmatprep.subr.bf16.mxu0 0
  %79 = vmatpush2.bf16.msra.mxu0 0
  %80 = vmatprep.subr.bf16.mxu0 0
  %81 = vmatpush2.bf16.msra.mxu0 0
  %82 = vmatprep.mubr.bf16.mxu0 0
  %83 = vmatmul.mubr.bf16.gmra.mxu0 %v44
  %v84 = vpop.f32.mrf.mxu0
  %v85 = vadd.f32 0.0, %v84
  %v86 = vpop.f32.mrf.mxu0
  %v87 = vpop.f32.mrf.mxu0
  %v88 = vpop.f32.mrf.mxu0
  %89 = vdwg.mxu0
  %v90 = vld [vmem:[%s3] sm:$0xff]
  %92 = vset.pattern.permute.xlu0 0
  %93 = vperm.xlu0 %92, %v90
  %v94 = vpop.permute.xlu0 %93
  %v96 = vmul.f32 %v85, %v94
  %v97 = vld [vmem:[%s4] sm:$0xff]
  %99 = vset.pattern.permute.xlu0 0
  %100 = vperm.xlu0 %99, %v97
  %v101 = vpop.permute.xlu0 %100
  %v103 = vadd.f32 %v96, %v101
  %v104 = vmax.f32 %v103, 0.0
  %v105 = vpack.c.bf16 %v104, %v104
  %vm106 = vcmask 60416
  %107 = vst.msk [vmem:[%s6] sm:$0xf] %vm106, %v105
  // Predicated region
  $region26: #{e_densenet_forward.39} parent=0 // pred_check
    _
  $region27: #{e_densenet_forward.39} parent=0 // pred_check_branch
    %109 = sbr.rel (0) target = $region29
  $region28: #{e_densenet_forward.39} parent=0 // pred_region
    _
  $region29: #{e_densenet_forward.39} parent=0 // pred_fallthru
    _
  // Predicated region
  $region30: #{e_densenet_forward.39} parent=0 // pred_check
    _
  $region31: #{e_densenet_forward.39} parent=0 // pred_check_branch
    %111 = sbr.rel (0) target = $region33
  $region32: #{e_densenet_forward.39} parent=0 // pred_region
    _
  $region33: #{e_densenet_forward.39} parent=0 // pred_fallthru
    _

// kernel: e_densenet_forward.38
$region0: #{e_densenet_forward.38}
  #allocation0 [shape = 'u32[]', space=smem, size = 0x4, offset = 0x4, fixed_abs, tag = 'smem constant byte address 0x4 - core index']
  #allocation1 [shape = 'u32[144,128]{1,0:T(1,128)}', space=vmem, size = 0x12000, scoped, tag = 'internal scratch']
  %s0 = inlined_call_operand.vmem [shape: f32[8,8], index: 0, kind: input, shape index: {}]
  %s1 = inlined_call_operand.vmem [shape: f32[8,8], index: 1, kind: input, shape index: {}]
  %s2 = inlined_call_operand.vmem [shape: f32[8,8], index: 2, kind: input, shape index: {}]
  %s3 = inlined_call_operand.vmem [shape: f32[8,8], index: 3, kind: input, shape index: {}]
  %s4 = inlined_call_operand.vmem [shape: f32[8,8], index: 4, kind: output, shape index: {}]
  %s5 = sld [smem:[#allocation0]]
  $region26: #{e_densenet_forward.38} parent=0
    _
  %s7 = ssub.s32 1, %s5
  %s8 = scalar_select 0, %s7, %s5
  // Predicated region
  $region2: #{e_densenet_forward.38} parent=0 // pred_check
    _
  $region3: #{e_densenet_forward.38} parent=0 // pred_check_branch
    %10 = sbr.rel (0) target = $region5
  $region4: #{e_densenet_forward.38} parent=0 // pred_region
    _
  $region5: #{e_densenet_forward.38} parent=0 // pred_fallthru
    _
  // Predicated region
  $region6: #{e_densenet_forward.38} parent=0 // pred_check
    _
  $region7: #{e_densenet_forward.38} parent=0 // pred_check_branch
    %12 = sbr.rel (0) target = $region9
  $region8: #{e_densenet_forward.38} parent=0 // pred_region
    _
  $region9: #{e_densenet_forward.38} parent=0 // pred_fallthru
    _
  // Predicated region
  $region10: #{e_densenet_forward.38} parent=0 // pred_check
    _
  $region11: #{e_densenet_forward.38} parent=0 // pred_check_branch
    %14 = sbr.rel (0) target = $region13
  $region12: #{e_densenet_forward.38} parent=0 // pred_region
    _
  $region13: #{e_densenet_forward.38} parent=0 // pred_fallthru
    _
  // Predicated region
  $region14: #{e_densenet_forward.38} parent=0 // pred_check
    _
  $region15: #{e_densenet_forward.38} parent=0 // pred_check_branch
    %16 = sbr.rel (0) target = $region17
  $region16: #{e_densenet_forward.38} parent=0 // pred_region
    _
  $region17: #{e_densenet_forward.38} parent=0 // pred_fallthru
    _
  %v17 = vld [vmem:[%s0] sm:$0xff]
  %v18 = vld [vmem:[%s1] sm:$0xff]
  %v19 = vadd.f32 %v17, %v18
  %v20 = vld [vmem:[%s2] sm:$0xff]
  %v21 = vadd.f32 %v19, %v20
  %v22 = vld [vmem:[%s3] sm:$0xff]
  %v23 = vadd.f32 %v21, %v22
  %v24 = vmul.f32 %v23, 0.25
  %vm25 = vcmask 64512
  %26 = vst.msk [vmem:[%s4] sm:$0xff] %vm25, %v24
  // Predicated region
  $region18: #{e_densenet_forward.38} parent=0 // pred_check
    _
  $region19: #{e_densenet_forward.38} parent=0 // pred_check_branch
    %28 = sbr.rel (0) target = $region21
  $region20: #{e_densenet_forward.38} parent=0 // pred_region
    _
  $region21: #{e_densenet_forward.38} parent=0 // pred_fallthru
    _
  // Predicated region
  $region22: #{e_densenet_forward.38} parent=0 // pred_check
    _
  $region23: #{e_densenet_forward.38} parent=0 // pred_check_branch
    %30 = sbr.rel (0) target = $region25
  $region24: #{e_densenet_forward.38} parent=0 // pred_region
    _
  $region25: #{e_densenet_forward.38} parent=0 // pred_fallthru
    _

// kernel: e_densenet_forward.41
$region0: #{e_densenet_forward.41}
  #allocation0 [shape = 'u32[]', space=smem, size = 0x4, offset = 0x4, fixed_abs, tag = 'smem constant byte address 0x4 - core index']
  #allocation1 [shape = 'u32[144,128]{1,0:T(1,128)}', space=vmem, size = 0x12000, scoped, tag = 'internal scratch']
  %s0 = inlined_call_operand.vmem [shape: bf16[1,8,12], index: 0, kind: input, shape index: {}]
  %s1 = inlined_call_operand.vmem [shape: f32[12,1], index: 1, kind: input, shape index: {}]
  %s2 = inlined_call_operand.vmem [shape: f32[12,1], index: 2, kind: input, shape index: {}]
  %s3 = inlined_call_operand.vmem [shape: f32[8,1], index: 3, kind: input, shape index: {}]
  %s4 = inlined_call_operand.vmem [shape: f32[8,1], index: 4, kind: input, shape index: {}]
  %s5 = inlined_call_operand.vmem [shape: f32[12,8], index: 5, kind: input, shape index: {}]
  %s6 = inlined_call_operand.vmem [shape: bf16[8,8], index: 6, kind: output, shape index: {}]
  %s7 = sld [smem:[#allocation0]]
  $region34: #{e_densenet_forward.41} parent=0
    _
  %s9 = ssub.s32 1, %s7
  %s10 = scalar_select 0, %s9, %s7
  // Predicated region
  $region2: #{e_densenet_forward.41} parent=0 // pred_check
    _
  $region3: #{e_densenet_forward.41} parent=0 // pred_check_branch
    %12 = sbr.rel (0) target = $region5
  $region4: #{e_densenet_forward.41} parent=0 // pred_region
    _
  $region5: #{e_densenet_forward.41} parent=0 // pred_fallthru
    _
  // Predicated region
  $region6: #{e_densenet_forward.41} parent=0 // pred_check
    _
  $region7: #{e_densenet_forward.41} parent=0 // pred_check_branch
    %14 = sbr.rel (0) target = $region9
  $region8: #{e_densenet_forward.41} parent=0 // pred_region
    _
  $region9: #{e_densenet_forward.41} parent=0 // pred_fallthru
    _
  // Predicated region
  $region10: #{e_densenet_forward.41} parent=0 // pred_check
    _
  $region11: #{e_densenet_forward.41} parent=0 // pred_check_branch
    %16 = sbr.rel (0) target = $region13
  $region12: #{e_densenet_forward.41} parent=0 // pred_region
    _
  $region13: #{e_densenet_forward.41} parent=0 // pred_fallthru
    _
  // Predicated region
  $region14: #{e_densenet_forward.41} parent=0 // pred_check
    _
  $region15: #{e_densenet_forward.41} parent=0 // pred_check_branch
    %18 = sbr.rel (0) target = $region17
  $region16: #{e_densenet_forward.41} parent=0 // pred_region
    _
  $region17: #{e_densenet_forward.41} parent=0 // pred_fallthru
    _
  // Predicated region
  $region18: #{e_densenet_forward.41} parent=0 // pred_check
    _
  $region19: #{e_densenet_forward.41} parent=0 // pred_check_branch
    %20 = sbr.rel (0) target = $region21
  $region20: #{e_densenet_forward.41} parent=0 // pred_region
    _
  $region21: #{e_densenet_forward.41} parent=0 // pred_fallthru
    _
  // Predicated region
  $region22: #{e_densenet_forward.41} parent=0 // pred_check
    _
  $region23: #{e_densenet_forward.41} parent=0 // pred_check_branch
    %22 = sbr.rel (0) target = $region25
  $region24: #{e_densenet_forward.41} parent=0 // pred_region
    _
  $region25: #{e_densenet_forward.41} parent=0 // pred_fallthru
    _
  %v24 = vld [vmem:[%s5] sm:$0xff]
  %v25 = vld [vmem:[%s5 + $0x8] sm:$0xf]
  %v26 = vld [vmem:[%s1] sm:$0xff]
  %v27 = vld [vmem:[%s1 + $0x8] sm:$0xf]
  %29 = vset.pattern.permute.xlu0 0
  %30 = vperm.xlu0 %29, %v26
  %v31 = vpop.permute.xlu0 %30
  %34 = vset.pattern.permute.xlu0 0
  %35 = vperm.xlu0 %34, %v27
  %v36 = vpop.permute.xlu0 %35
  %v38 = vmul.f32 %v24, %v31
  %v39 = vmul.f32 %v25, %v36
  %v40 = vld [vmem:[%s2] sm:$0xff]
  %v41 = vld [vmem:[%s2 + $0x8] sm:$0xf]
  %43 = vset.pattern.permute.xlu0 0
  %44 = vperm.xlu0 %43, %v40
  %v45 = vpop.permute.xlu0 %44
  %48 = vset.pattern.permute.xlu0 0
  %49 = vperm.xlu0 %48, %v41
  %v50 = vpop.permute.xlu0 %49
  %v52 = vadd.f32 %v38, %v45
  %v53 = vadd.f32 %v39, %v50
  %v54 = vmax.f32 %v52, 0.0
  %v55 = vmax.f32 %v53, 0.0
  %v56 = vld [vmem:[%s0] sm:$0xf]
  %v57 = vpack.c.bf16 %v55, %v54
  %vm58 = vcmask 97280
  %v60 = vsel %vm58, %v56, 0
  %vm62 = vcmask 1045504
  %v64 = vsel %vm62, %v57, 0
  %66 = vmatprep.subr.bf16.mxu0 0
  %67 = vmatpush1.bf16.msra.mxu0 0
  %68 = vmatprep.subr.bf16.mxu0 0
  %69 = vmatpush1.bf16.msra.mxu0 0
  %70 = vmatprep.subr.bf16.mxu0 0
  %71 = vmatpush1.bf16.msra.mxu0 0
  %72 = vmatprep.subr.bf16.mxu0 0
  %73 = vmatpush1.bf16.msra.mxu0 0
  %74 = vmatprep.subr.bf16.mxu0 0
  %75 = vmatpush1.bf16.msra.mxu0 0
  %76 = vmatprep.subr.bf16.mxu0 0
  %77 = vmatpush1.bf16.msra.mxu0 0
  %78 = vmatprep.subr.bf16.mxu0 0
  %79 = vmatpush1.bf16.msra.mxu0 0
  %80 = vmatprep.subr.bf16.mxu0 0
  %81 = vmatpush1.bf16.msra.mxu0 %v64
  %82 = vmatprep.subr.bf16.mxu0 0
  %83 = vmatpush2.bf16.msra.mxu0 0
  %84 = vmatprep.subr.bf16.mxu0 0
  %85 = vmatpush2.bf16.msra.mxu0 0
  %86 = vmatprep.subr.bf16.mxu0 0
  %87 = vmatpush2.bf16.msra.mxu0 0
  %88 = vmatprep.subr.bf16.mxu0 0
  %89 = vmatpush2.bf16.msra.mxu0 0
  %90 = vmatprep.subr.bf16.mxu0 0
  %91 = vmatpush2.bf16.msra.mxu0 0
  %92 = vmatprep.subr.bf16.mxu0 0
  %93 = vmatpush2.bf16.msra.mxu0 0
  %94 = vmatprep.subr.bf16.mxu0 0
  %95 = vmatpush2.bf16.msra.mxu0 0
  %96 = vmatprep.subr.bf16.mxu0 0
  %97 = vmatpush2.bf16.msra.mxu0 0
  %98 = vmatprep.mubr.bf16.mxu0 0
  %99 = vmatmul.mubr.bf16.gmra.mxu0 %v60
  %v100 = vpop.f32.mrf.mxu0
  %v101 = vadd.f32 0.0, %v100
  %v102 = vpop.f32.mrf.mxu0
  %v103 = vpop.f32.mrf.mxu0
  %v104 = vpop.f32.mrf.mxu0
  %105 = vdwg.mxu0
  %v106 = vld [vmem:[%s3] sm:$0xff]
  %108 = vset.pattern.permute.xlu0 0
  %109 = vperm.xlu0 %108, %v106
  %v110 = vpop.permute.xlu0 %109
  %v112 = vmul.f32 %v101, %v110
  %v113 = vld [vmem:[%s4] sm:$0xff]
  %115 = vset.pattern.permute.xlu0 0
  %116 = vperm.xlu0 %115, %v113
  %v117 = vpop.permute.xlu0 %116
  %v119 = vadd.f32 %v112, %v117
  %v120 = vmax.f32 %v119, 0.0
  %v121 = vpack.c.bf16 %v120, %v120
  %vm122 = vcmask 60416
  %123 = vst.msk [vmem:[%s6] sm:$0xf] %vm122, %v121
  // Predicated region
  $region26: #{e_densenet_forward.41} parent=0 // pred_check
    _
  $region27: #{e_densenet_forward.41} parent=0 // pred_check_branch
    %125 = sbr.rel (0) target = $region29
  $region28: #{e_densenet_forward.41} parent=0 // pred_region
    _
  $region29: #{e_densenet_forward.41} parent=0 // pred_fallthru
    _
  // Predicated region
  $region30: #{e_densenet_forward.41} parent=0 // pred_check
    _
  $region31: #{e_densenet_forward.41} parent=0 // pred_check_branch
    %127 = sbr.rel (0) target = $region33
  $region32: #{e_densenet_forward.41} parent=0 // pred_region
    _
  $region33: #{e_densenet_forward.41} parent=0 // pred_fallthru
    _

// kernel: e_densenet_forward.40
$region0: #{e_densenet_forward.40}
  #allocation0 [shape = 'u32[]', space=smem, size = 0x4, offset = 0x4, fixed_abs, tag = 'smem constant byte address 0x4 - core index']
  #allocation1 [shape = 'u32[144,128]{1,0:T(1,128)}', space=vmem, size = 0x12000, scoped, tag = 'internal scratch']
  %s0 = inlined_call_operand.vmem [shape: bf16[9,4,8], index: 0, kind: input, shape index: {}]
  %s1 = inlined_call_operand.vmem [shape: bf16[8,8], index: 1, kind: input, shape index: {}]
  %s2 = inlined_call_operand.vmem [shape: bf16[8,8], index: 2, kind: input, shape index: {}]
  %s3 = inlined_call_operand.vmem [shape: bf16[8,8], index: 3, kind: input, shape index: {}]
  %s4 = inlined_call_operand.vmem [shape: bf16[8,8], index: 4, kind: input, shape index: {}]
  %s5 = inlined_call_operand.vmem [shape: bf16[8,8], index: 5, kind: input, shape index: {}]
  %s6 = inlined_call_operand.vmem [shape: bf16[8,8], index: 6, kind: input, shape index: {}]
  %s7 = inlined_call_operand.vmem [shape: bf16[8,8], index: 7, kind: input, shape index: {}]
  %s8 = inlined_call_operand.vmem [shape: bf16[8,8], index: 8, kind: input, shape index: {}]
  %s9 = inlined_call_operand.vmem [shape: bf16[8,8], index: 9, kind: input, shape index: {}]
  %s10 = inlined_call_operand.vmem [shape: f32[4,8], index: 10, kind: output, shape index: {}]
  %s11 = sld [smem:[#allocation0]]
  $region50: #{e_densenet_forward.40} parent=0
    _
  %s13 = ssub.s32 1, %s11
  %s14 = scalar_select 0, %s13, %s11
  // Predicated region
  $region2: #{e_densenet_forward.40} parent=0 // pred_check
    _
  $region3: #{e_densenet_forward.40} parent=0 // pred_check_branch
    %16 = sbr.rel (0) target = $region5
  $region4: #{e_densenet_forward.40} parent=0 // pred_region
    _
  $region5: #{e_densenet_forward.40} parent=0 // pred_fallthru
    _
  // Predicated region
  $region6: #{e_densenet_forward.40} parent=0 // pred_check
    _
  $region7: #{e_densenet_forward.40} parent=0 // pred_check_branch
    %18 = sbr.rel (0) target = $region9
  $region8: #{e_densenet_forward.40} parent=0 // pred_region
    _
  $region9: #{e_densenet_forward.40} parent=0 // pred_fallthru
    _
  // Predicated region
  $region10: #{e_densenet_forward.40} parent=0 // pred_check
    _
  $region11: #{e_densenet_forward.40} parent=0 // pred_check_branch
    %20 = sbr.rel (0) target = $region13
  $region12: #{e_densenet_forward.40} parent=0 // pred_region
    _
  $region13: #{e_densenet_forward.40} parent=0 // pred_fallthru
    _
  // Predicated region
  $region14: #{e_densenet_forward.40} parent=0 // pred_check
    _
  $region15: #{e_densenet_forward.40} parent=0 // pred_check_branch
    %22 = sbr.rel (0) target = $region17
  $region16: #{e_densenet_forward.40} parent=0 // pred_region
    _
  $region17: #{e_densenet_forward.40} parent=0 // pred_fallthru
    _
  // Predicated region
  $region18: #{e_densenet_forward.40} parent=0 // pred_check
    _
  $region19: #{e_densenet_forward.40} parent=0 // pred_check_branch
    %24 = sbr.rel (0) target = $region21
  $region20: #{e_densenet_forward.40} parent=0 // pred_region
    _
  $region21: #{e_densenet_forward.40} parent=0 // pred_fallthru
    _
  // Predicated region
  $region22: #{e_densenet_forward.40} parent=0 // pred_check
    _
  $region23: #{e_densenet_forward.40} parent=0 // pred_check_branch
    %26 = sbr.rel (0) target = $region25
  $region24: #{e_densenet_forward.40} parent=0 // pred_region
    _
  $region25: #{e_densenet_forward.40} parent=0 // pred_fallthru
    _
  // Predicated region
  $region26: #{e_densenet_forward.40} parent=0 // pred_check
    _
  $region27: #{e_densenet_forward.40} parent=0 // pred_check_branch
    %28 = sbr.rel (0) target = $region29
  $region28: #{e_densenet_forward.40} parent=0 // pred_region
    _
  $region29: #{e_densenet_forward.40} parent=0 // pred_fallthru
    _
  // Predicated region
  $region30: #{e_densenet_forward.40} parent=0 // pred_check
    _
  $region31: #{e_densenet_forward.40} parent=0 // pred_check_branch
    %30 = sbr.rel (0) target = $region33
  $region32: #{e_densenet_forward.40} parent=0 // pred_region
    _
  $region33: #{e_densenet_forward.40} parent=0 // pred_fallthru
    _
  // Predicated region
  $region34: #{e_densenet_forward.40} parent=0 // pred_check
    _
  $region35: #{e_densenet_forward.40} parent=0 // pred_check_branch
    %32 = sbr.rel (0) target = $region37
  $region36: #{e_densenet_forward.40} parent=0 // pred_region
    _
  $region37: #{e_densenet_forward.40} parent=0 // pred_fallthru
    _
  // Predicated region
  $region38: #{e_densenet_forward.40} parent=0 // pred_check
    _
  $region39: #{e_densenet_forward.40} parent=0 // pred_check_branch
    %34 = sbr.rel (0) target = $region41
  $region40: #{e_densenet_forward.40} parent=0 // pred_region
    _
  $region41: #{e_densenet_forward.40} parent=0 // pred_fallthru
    _
  %v36 = vld [vmem:[%s1] sm:$0xf]
  %v37 = vld [vmem:[%s0] sm:$0x3]
  %v38 = vld [vmem:[%s2] sm:$0xf]
  %s39 = scalar_lea.vmem %s0, 2
  %v40 = vld [vmem:[%s39] sm:$0x3]
  %vm41 = vcmask 64512
  %v43 = vsel %vm41, %v40, 0
  %vm45 = vcmask 1043456
  %v47 = vsel %vm45, %v38, 0
  %49 = vmatprep.subr.bf16.mxu0 0
  %50 = vmatpush1.bf16.msra.mxu0 0
  %51 = vmatprep.subr.bf16.mxu0 0
  %52 = vmatpush1.bf16.msra.mxu0 0
  %53 = vmatprep.subr.bf16.mxu0 0
  %54 = vmatpush1.bf16.msra.mxu0 0
  %55 = vmatprep.subr.bf16.mxu0 0
  %56 = vmatpush1.bf16.msra.mxu0 0
  %57 = vmatprep.subr.bf16.mxu0 0
  %58 = vmatpush1.bf16.msra.mxu0 0
  %59 = vmatprep.subr.bf16.mxu0 0
  %60 = vmatpush1.bf16.msra.mxu0 0
  %61 = vmatprep.subr.bf16.mxu0 0
  %62 = vmatpush1.bf16.msra.mxu0 0
  %63 = vmatprep.subr.bf16.mxu0 0
  %64 = vmatpush1.bf16.msra.mxu0 %v47
  %65 = vmatprep.subr.bf16.mxu0 0
  %66 = vmatpush2.bf16.msra.mxu0 0
  %67 = vmatprep.subr.bf16.mxu0 0
  %68 = vmatpush2.bf16.msra.mxu0 0
  %69 = vmatprep.subr.bf16.mxu0 0
  %70 = vmatpush2.bf16.msra.mxu0 0
  %71 = vmatprep.subr.bf16.mxu0 0
  %72 = vmatpush2.bf16.msra.mxu0 0
  %73 = vmatprep.subr.bf16.mxu0 0
  %74 = vmatpush2.bf16.msra.mxu0 0
  %75 = vmatprep.subr.bf16.mxu0 0
  %76 = vmatpush2.bf16.msra.mxu0 0
  %77 = vmatprep.subr.bf16.mxu0 0
  %78 = vmatpush2.bf16.msra.mxu0 0
  %79 = vmatprep.subr.bf16.mxu0 0
  %80 = vmatpush2.bf16.msra.mxu0 0
  %81 = vmatprep.mubr.bf16.mxu0 0
  %82 = vmatmul.mubr.bf16.gmra.mxu0 %v43
  %v83 = vpop.f32.mrf.mxu0
  %v84 = vadd.f32 0.0, %v83
  %v85 = vpop.f32.mrf.mxu0
  %v86 = vpop.f32.mrf.mxu0
  %v87 = vpop.f32.mrf.mxu0
  %88 = vdwg.mxu0
  %v90 = vsel %vm41, %v37, 0
  %v93 = vsel %vm45, %v36, 0
  %95 = vmatprep.subr.bf16.mxu0 0
  %96 = vmatpush1.bf16.msra.mxu0 0
  %97 = vmatprep.subr.bf16.mxu0 0
  %98 = vmatpush1.bf16.msra.mxu0 0
  %99 = vmatprep.subr.bf16.mxu0 0
  %100 = vmatpush1.bf16.msra.mxu0 0
  %101 = vmatprep.subr.bf16.mxu0 0
  %102 = vmatpush1.bf16.msra.mxu0 0
  %103 = vmatprep.subr.bf16.mxu0 0
  %104 = vmatpush1.bf16.msra.mxu0 0
  %105 = vmatprep.subr.bf16.mxu0 0
  %106 = vmatpush1.bf16.msra.mxu0 0
  %107 = vmatprep.subr.bf16.mxu0 0
  %108 = vmatpush1.bf16.msra.mxu0 0
  %109 = vmatprep.subr.bf16.mxu0 0
  %110 = vmatpush1.bf16.msra.mxu0 %v93
  %111 = vmatprep.subr.bf16.mxu0 0
  %112 = vmatpush2.bf16.msra.mxu0 0
  %113 = vmatprep.subr.bf16.mxu0 0
  %114 = vmatpush2.bf16.msra.mxu0 0
  %115 = vmatprep.subr.bf16.mxu0 0
  %116 = vmatpush2.bf16.msra.mxu0 0
  %117 = vmatprep.subr.bf16.mxu0 0
  %118 = vmatpush2.bf16.msra.mxu0 0
  %119 = vmatprep.subr.bf16.mxu0 0
  %120 = vmatpush2.bf16.msra.mxu0 0
  %121 = vmatprep.subr.bf16.mxu0 0
  %122 = vmatpush2.bf16.msra.mxu0 0
  %123 = vmatprep.subr.bf16.mxu0 0
  %124 = vmatpush2.bf16.msra.mxu0 0
  %125 = vmatprep.subr.bf16.mxu0 0
  %126 = vmatpush2.bf16.msra.mxu0 0
  %127 = vmatprep.mubr.bf16.mxu0 0
  %128 = vmatmul.mubr.bf16.gmra.mxu0 %v90
  %v129 = vpop.f32.mrf.mxu0
  %v130 = vadd.f32 %v84, %v129
  %v131 = vpop.f32.mrf.mxu0
  %v132 = vpop.f32.mrf.mxu0
  %v133 = vpop.f32.mrf.mxu0
  %134 = vdwg.mxu0
  %v135 = vld [vmem:[%s3] sm:$0xf]
  %s136 = scalar_lea.vmem %s0, 4
  %v137 = vld [vmem:[%s136] sm:$0x3]
  %v139 = vsel %vm41, %v137, 0
  %v142 = vsel %vm45, %v135, 0
  %144 = vmatprep.subr.bf16.mxu0 0
  %145 = vmatpush1.bf16.msra.mxu0 0
  %146 = vmatprep.subr.bf16.mxu0 0
  %147 = vmatpush1.bf16.msra.mxu0 0
  %148 = vmatprep.subr.bf16.mxu0 0
  %149 = vmatpush1.bf16.msra.mxu0 0
  %150 = vmatprep.subr.bf16.mxu0 0
  %151 = vmatpush1.bf16.msra.mxu0 0
  %152 = vmatprep.subr.bf16.mxu0 0
  %153 = vmatpush1.bf16.msra.mxu0 0
  %154 = vmatprep.subr.bf16.mxu0 0
  %155 = vmatpush1.bf16.msra.mxu0 0
  %156 = vmatprep.subr.bf16.mxu0 0
  %157 = vmatpush1.bf16.msra.mxu0 0
  %158 = vmatprep.subr.bf16.mxu0 0
  %159 = vmatpush1.bf16.msra.mxu0 %v142
  %160 = vmatprep.subr.bf16.mxu0 0
  %161 = vmatpush2.bf16.msra.mxu0 0
  %162 = vmatprep.subr.bf16.mxu0 0
  %163 = vmatpush2.bf16.msra.mxu0 0
  %164 = vmatprep.subr.bf16.mxu0 0
  %165 = vmatpush2.bf16.msra.mxu0 0
  %166 = vmatprep.subr.bf16.mxu0 0
  %167 = vmatpush2.bf16.msra.mxu0 0
  %168 = vmatprep.subr.bf16.mxu0 0
  %169 = vmatpush2.bf16.msra.mxu0 0
  %170 = vmatprep.subr.bf16.mxu0 0
  %171 = vmatpush2.bf16.msra.mxu0 0
  %172 = vmatprep.subr.bf16.mxu0 0
  %173 = vmatpush2.bf16.msra.mxu0 0
  %174 = vmatprep.subr.bf16.mxu0 0
  %175 = vmatpush2.bf16.msra.mxu0 0
  %176 = vmatprep.mubr.bf16.mxu0 0
  %177 = vmatmul.mubr.bf16.gmra.mxu0 %v139
  %v178 = vpop.f32.mrf.mxu0
  %v179 = vadd.f32 0.0, %v178
  %v180 = vpop.f32.mrf.mxu0
  %v181 = vpop.f32.mrf.mxu0
  %v182 = vpop.f32.mrf.mxu0
  %183 = vdwg.mxu0
  %v184 = vadd.f32 %v130, %v179
  %v185 = vld [vmem:[%s4] sm:$0xf]
  %s186 = scalar_lea.vmem %s0, 6
  %v187 = vld [vmem:[%s186] sm:$0x3]
  %v189 = vsel %vm41, %v187, 0
  %v192 = vsel %vm45, %v185, 0
  %194 = vmatprep.subr.bf16.mxu0 0
  %195 = vmatpush1.bf16.msra.mxu0 0
  %196 = vmatprep.subr.bf16.mxu0 0
  %197 = vmatpush1.bf16.msra.mxu0 0
  %198 = vmatprep.subr.bf16.mxu0 0
  %199 = vmatpush1.bf16.msra.mxu0 0
  %200 = vmatprep.subr.bf16.mxu0 0
  %201 = vmatpush1.bf16.msra.mxu0 0
  %202 = vmatprep.subr.bf16.mxu0 0
  %203 = vmatpush1.bf16.msra.mxu0 0
  %204 = vmatprep.subr.bf16.mxu0 0
  %205 = vmatpush1.bf16.msra.mxu0 0
  %206 = vmatprep.subr.bf16.mxu0 0
  %207 = vmatpush1.bf16.msra.mxu0 0
  %208 = vmatprep.subr.bf16.mxu0 0
  %209 = vmatpush1.bf16.msra.mxu0 %v192
  %210 = vmatprep.subr.bf16.mxu0 0
  %211 = vmatpush2.bf16.msra.mxu0 0
  %212 = vmatprep.subr.bf16.mxu0 0
  %213 = vmatpush2.bf16.msra.mxu0 0
  %214 = vmatprep.subr.bf16.mxu0 0
  %215 = vmatpush2.bf16.msra.mxu0 0
  %216 = vmatprep.subr.bf16.mxu0 0
  %217 = vmatpush2.bf16.msra.mxu0 0
  %218 = vmatprep.subr.bf16.mxu0 0
  %219 = vmatpush2.bf16.msra.mxu0 0
  %220 = vmatprep.subr.bf16.mxu0 0
  %221 = vmatpush2.bf16.msra.mxu0 0
  %222 = vmatprep.subr.bf16.mxu0 0
  %223 = vmatpush2.bf16.msra.mxu0 0
  %224 = vmatprep.subr.bf16.mxu0 0
  %225 = vmatpush2.bf16.msra.mxu0 0
  %226 = vmatprep.mubr.bf16.mxu0 0
  %227 = vmatmul.mubr.bf16.gmra.mxu0 %v189
  %v228 = vpop.f32.mrf.mxu0
  %v229 = vadd.f32 0.0, %v228
  %v230 = vpop.f32.mrf.mxu0
  %v231 = vpop.f32.mrf.mxu0
  %v232 = vpop.f32.mrf.mxu0
  %233 = vdwg.mxu0
  %v234 = vadd.f32 %v184, %v229
  %v235 = vld [vmem:[%s5] sm:$0xf]
  %s236 = scalar_lea.vmem %s0, 8
  %v237 = vld [vmem:[%s236] sm:$0x3]
  %v239 = vsel %vm41, %v237, 0
  %v242 = vsel %vm45, %v235, 0
  %244 = vmatprep.subr.bf16.mxu0 0
  %245 = vmatpush1.bf16.msra.mxu0 0
  %246 = vmatprep.subr.bf16.mxu0 0
  %247 = vmatpush1.bf16.msra.mxu0 0
  %248 = vmatprep.subr.bf16.mxu0 0
  %249 = vmatpush1.bf16.msra.mxu0 0
  %250 = vmatprep.subr.bf16.mxu0 0
  %251 = vmatpush1.bf16.msra.mxu0 0
  %252 = vmatprep.subr.bf16.mxu0 0
  %253 = vmatpush1.bf16.msra.mxu0 0
  %254 = vmatprep.subr.bf16.mxu0 0
  %255 = vmatpush1.bf16.msra.mxu0 0
  %256 = vmatprep.subr.bf16.mxu0 0
  %257 = vmatpush1.bf16.msra.mxu0 0
  %258 = vmatprep.subr.bf16.mxu0 0
  %259 = vmatpush1.bf16.msra.mxu0 %v242
  %260 = vmatprep.subr.bf16.mxu0 0
  %261 = vmatpush2.bf16.msra.mxu0 0
  %262 = vmatprep.subr.bf16.mxu0 0
  %263 = vmatpush2.bf16.msra.mxu0 0
  %264 = vmatprep.subr.bf16.mxu0 0
  %265 = vmatpush2.bf16.msra.mxu0 0
  %266 = vmatprep.subr.bf16.mxu0 0
  %267 = vmatpush2.bf16.msra.mxu0 0
  %268 = vmatprep.subr.bf16.mxu0 0
  %269 = vmatpush2.bf16.msra.mxu0 0
  %270 = vmatprep.subr.bf16.mxu0 0
  %271 = vmatpush2.bf16.msra.mxu0 0
  %272 = vmatprep.subr.bf16.mxu0 0
  %273 = vmatpush2.bf16.msra.mxu0 0
  %274 = vmatprep.subr.bf16.mxu0 0
  %275 = vmatpush2.bf16.msra.mxu0 0
  %276 = vmatprep.mubr.bf16.mxu0 0
  %277 = vmatmul.mubr.bf16.gmra.mxu0 %v239
  %v278 = vpop.f32.mrf.mxu0
  %v279 = vadd.f32 0.0, %v278
  %v280 = vpop.f32.mrf.mxu0
  %v281 = vpop.f32.mrf.mxu0
  %v282 = vpop.f32.mrf.mxu0
  %283 = vdwg.mxu0
  %v284 = vadd.f32 %v234, %v279
  %v285 = vld [vmem:[%s6] sm:$0xf]
  %s286 = scalar_lea.vmem %s0, 10
  %v287 = vld [vmem:[%s286] sm:$0x3]
  %v289 = vsel %vm41, %v287, 0
  %v292 = vsel %vm45, %v285, 0
  %294 = vmatprep.subr.bf16.mxu0 0
  %295 = vmatpush1.bf16.msra.mxu0 0
  %296 = vmatprep.subr.bf16.mxu0 0
  %297 = vmatpush1.bf16.msra.mxu0 0
  %298 = vmatprep.subr.bf16.mxu0 0
  %299 = vmatpush1.bf16.msra.mxu0 0
  %300 = vmatprep.subr.bf16.mxu0 0
  %301 = vmatpush1.bf16.msra.mxu0 0
  %302 = vmatprep.subr.bf16.mxu0 0
  %303 = vmatpush1.bf16.msra.mxu0 0
  %304 = vmatprep.subr.bf16.mxu0 0
  %305 = vmatpush1.bf16.msra.mxu0 0
  %306 = vmatprep.subr.bf16.mxu0 0
  %307 = vmatpush1.bf16.msra.mxu0 0
  %308 = vmatprep.subr.bf16.mxu0 0
  %309 = vmatpush1.bf16.msra.mxu0 %v292
  %310 = vmatprep.subr.bf16.mxu0 0
  %311 = vmatpush2.bf16.msra.mxu0 0
  %312 = vmatprep.subr.bf16.mxu0 0
  %313 = vmatpush2.bf16.msra.mxu0 0
  %314 = vmatprep.subr.bf16.mxu0 0
  %315 = vmatpush2.bf16.msra.mxu0 0
  %316 = vmatprep.subr.bf16.mxu0 0
  %317 = vmatpush2.bf16.msra.mxu0 0
  %318 = vmatprep.subr.bf16.mxu0 0
  %319 = vmatpush2.bf16.msra.mxu0 0
  %320 = vmatprep.subr.bf16.mxu0 0
  %321 = vmatpush2.bf16.msra.mxu0 0
  %322 = vmatprep.subr.bf16.mxu0 0
  %323 = vmatpush2.bf16.msra.mxu0 0
  %324 = vmatprep.subr.bf16.mxu0 0
  %325 = vmatpush2.bf16.msra.mxu0 0
  %326 = vmatprep.mubr.bf16.mxu0 0
  %327 = vmatmul.mubr.bf16.gmra.mxu0 %v289
  %v328 = vpop.f32.mrf.mxu0
  %v329 = vadd.f32 0.0, %v328
  %v330 = vpop.f32.mrf.mxu0
  %v331 = vpop.f32.mrf.mxu0
  %v332 = vpop.f32.mrf.mxu0
  %333 = vdwg.mxu0
  %v334 = vadd.f32 %v284, %v329
  %v335 = vld [vmem:[%s7] sm:$0xf]
  %s336 = scalar_lea.vmem %s0, 12
  %v337 = vld [vmem:[%s336] sm:$0x3]
  %v339 = vsel %vm41, %v337, 0
  %v342 = vsel %vm45, %v335, 0
  %344 = vmatprep.subr.bf16.mxu0 0
  %345 = vmatpush1.bf16.msra.mxu0 0
  %346 = vmatprep.subr.bf16.mxu0 0
  %347 = vmatpush1.bf16.msra.mxu0 0
  %348 = vmatprep.subr.bf16.mxu0 0
  %349 = vmatpush1.bf16.msra.mxu0 0
  %350 = vmatprep.subr.bf16.mxu0 0
  %351 = vmatpush1.bf16.msra.mxu0 0
  %352 = vmatprep.subr.bf16.mxu0 0
  %353 = vmatpush1.bf16.msra.mxu0 0
  %354 = vmatprep.subr.bf16.mxu0 0
  %355 = vmatpush1.bf16.msra.mxu0 0
  %356 = vmatprep.subr.bf16.mxu0 0
  %357 = vmatpush1.bf16.msra.mxu0 0
  %358 = vmatprep.subr.bf16.mxu0 0
  %359 = vmatpush1.bf16.msra.mxu0 %v342
  %360 = vmatprep.subr.bf16.mxu0 0
  %361 = vmatpush2.bf16.msra.mxu0 0
  %362 = vmatprep.subr.bf16.mxu0 0
  %363 = vmatpush2.bf16.msra.mxu0 0
  %364 = vmatprep.subr.bf16.mxu0 0
  %365 = vmatpush2.bf16.msra.mxu0 0
  %366 = vmatprep.subr.bf16.mxu0 0
  %367 = vmatpush2.bf16.msra.mxu0 0
  %368 = vmatprep.subr.bf16.mxu0 0
  %369 = vmatpush2.bf16.msra.mxu0 0
  %370 = vmatprep.subr.bf16.mxu0 0
  %371 = vmatpush2.bf16.msra.mxu0 0
  %372 = vmatprep.subr.bf16.mxu0 0
  %373 = vmatpush2.bf16.msra.mxu0 0
  %374 = vmatprep.subr.bf16.mxu0 0
  %375 = vmatpush2.bf16.msra.mxu0 0
  %376 = vmatprep.mubr.bf16.mxu0 0
  %377 = vmatmul.mubr.bf16.gmra.mxu0 %v339
  %v378 = vpop.f32.mrf.mxu0
  %v379 = vadd.f32 0.0, %v378
  %v380 = vpop.f32.mrf.mxu0
  %v381 = vpop.f32.mrf.mxu0
  %v382 = vpop.f32.mrf.mxu0
  %383 = vdwg.mxu0
  %v384 = vadd.f32 %v334, %v379
  %v385 = vld [vmem:[%s8] sm:$0xf]
  %s386 = scalar_lea.vmem %s0, 14
  %v387 = vld [vmem:[%s386] sm:$0x3]
  %v389 = vsel %vm41, %v387, 0
  %v392 = vsel %vm45, %v385, 0
  %394 = vmatprep.subr.bf16.mxu0 0
  %395 = vmatpush1.bf16.msra.mxu0 0
  %396 = vmatprep.subr.bf16.mxu0 0
  %397 = vmatpush1.bf16.msra.mxu0 0
  %398 = vmatprep.subr.bf16.mxu0 0
  %399 = vmatpush1.bf16.msra.mxu0 0
  %400 = vmatprep.subr.bf16.mxu0 0
  %401 = vmatpush1.bf16.msra.mxu0 0
  %402 = vmatprep.subr.bf16.mxu0 0
  %403 = vmatpush1.bf16.msra.mxu0 0
  %404 = vmatprep.subr.bf16.mxu0 0
  %405 = vmatpush1.bf16.msra.mxu0 0
  %406 = vmatprep.subr.bf16.mxu0 0
  %407 = vmatpush1.bf16.msra.mxu0 0
  %408 = vmatprep.subr.bf16.mxu0 0
  %409 = vmatpush1.bf16.msra.mxu0 %v392
  %410 = vmatprep.subr.bf16.mxu0 0
  %411 = vmatpush2.bf16.msra.mxu0 0
  %412 = vmatprep.subr.bf16.mxu0 0
  %413 = vmatpush2.bf16.msra.mxu0 0
  %414 = vmatprep.subr.bf16.mxu0 0
  %415 = vmatpush2.bf16.msra.mxu0 0
  %416 = vmatprep.subr.bf16.mxu0 0
  %417 = vmatpush2.bf16.msra.mxu0 0
  %418 = vmatprep.subr.bf16.mxu0 0
  %419 = vmatpush2.bf16.msra.mxu0 0
  %420 = vmatprep.subr.bf16.mxu0 0
  %421 = vmatpush2.bf16.msra.mxu0 0
  %422 = vmatprep.subr.bf16.mxu0 0
  %423 = vmatpush2.bf16.msra.mxu0 0
  %424 = vmatprep.subr.bf16.mxu0 0
  %425 = vmatpush2.bf16.msra.mxu0 0
  %426 = vmatprep.mubr.bf16.mxu0 0
  %427 = vmatmul.mubr.bf16.gmra.mxu0 %v389
  %v428 = vpop.f32.mrf.mxu0
  %v429 = vadd.f32 0.0, %v428
  %v430 = vpop.f32.mrf.mxu0
  %v431 = vpop.f32.mrf.mxu0
  %v432 = vpop.f32.mrf.mxu0
  %433 = vdwg.mxu0
  %v434 = vadd.f32 %v384, %v429
  %v435 = vld [vmem:[%s9] sm:$0xf]
  %s436 = scalar_lea.vmem %s0, 16
  %v437 = vld [vmem:[%s436] sm:$0x3]
  %v439 = vsel %vm41, %v437, 0
  %v442 = vsel %vm45, %v435, 0
  %444 = vmatprep.subr.bf16.mxu0 0
  %445 = vmatpush1.bf16.msra.mxu0 0
  %446 = vmatprep.subr.bf16.mxu0 0
  %447 = vmatpush1.bf16.msra.mxu0 0
  %448 = vmatprep.subr.bf16.mxu0 0
  %449 = vmatpush1.bf16.msra.mxu0 0
  %450 = vmatprep.subr.bf16.mxu0 0
  %451 = vmatpush1.bf16.msra.mxu0 0
  %452 = vmatprep.subr.bf16.mxu0 0
  %453 = vmatpush1.bf16.msra.mxu0 0
  %454 = vmatprep.subr.bf16.mxu0 0
  %455 = vmatpush1.bf16.msra.mxu0 0
  %456 = vmatprep.subr.bf16.mxu0 0
  %457 = vmatpush1.bf16.msra.mxu0 0
  %458 = vmatprep.subr.bf16.mxu0 0
  %459 = vmatpush1.bf16.msra.mxu0 %v442
  %460 = vmatprep.subr.bf16.mxu0 0
  %461 = vmatpush2.bf16.msra.mxu0 0
  %462 = vmatprep.subr.bf16.mxu0 0
  %463 = vmatpush2.bf16.msra.mxu0 0
  %464 = vmatprep.subr.bf16.mxu0 0
  %465 = vmatpush2.bf16.msra.mxu0 0
  %466 = vmatprep.subr.bf16.mxu0 0
  %467 = vmatpush2.bf16.msra.mxu0 0
  %468 = vmatprep.subr.bf16.mxu0 0
  %469 = vmatpush2.bf16.msra.mxu0 0
  %470 = vmatprep.subr.bf16.mxu0 0
  %471 = vmatpush2.bf16.msra.mxu0 0
  %472 = vmatprep.subr.bf16.mxu0 0
  %473 = vmatpush2.bf16.msra.mxu0 0
  %474 = vmatprep.subr.bf16.mxu0 0
  %475 = vmatpush2.bf16.msra.mxu0 0
  %476 = vmatprep.mubr.bf16.mxu0 0
  %477 = vmatmul.mubr.bf16.gmra.mxu0 %v439
  %v478 = vpop.f32.mrf.mxu0
  %v479 = vadd.f32 0.0, %v478
  %v480 = vpop.f32.mrf.mxu0
  %v481 = vpop.f32.mrf.mxu0
  %v482 = vpop.f32.mrf.mxu0
  %483 = vdwg.mxu0
  %v484 = vadd.f32 %v434, %v479
  %vm485 = vcmask 60416
  %486 = vst.msk [vmem:[%s10] sm:$0xf] %vm485, %v484
  // Predicated region
  $region42: #{e_densenet_forward.40} parent=0 // pred_check
    _
  $region43: #{e_densenet_forward.40} parent=0 // pred_check_branch
    %488 = sbr.rel (0) target = $region45
  $region44: #{e_densenet_forward.40} parent=0 // pred_region
    _
  $region45: #{e_densenet_forward.40} parent=0 // pred_fallthru
    _
  // Predicated region
  $region46: #{e_densenet_forward.40} parent=0 // pred_check
    _
  $region47: #{e_densenet_forward.40} parent=0 // pred_check_branch
    %490 = sbr.rel (0) target = $region49
  $region48: #{e_densenet_forward.40} parent=0 // pred_region
    _
  $region49: #{e_densenet_forward.40} parent=0 // pred_fallthru
    _

// kernel: e_densenet_forward.43
$region0: #{e_densenet_forward.43}
  #allocation0 [shape = 'u32[]', space=smem, size = 0x4, offset = 0x4, fixed_abs, tag = 'smem constant byte address 0x4 - core index']
  #allocation1 [shape = 'u32[144,128]{1,0:T(1,128)}', space=vmem, size = 0x12000, scoped, tag = 'internal scratch']
  %s0 = inlined_call_operand.vmem [shape: bf16[1,8,16], index: 0, kind: input, shape index: {}]
  %s1 = inlined_call_operand.vmem [shape: f32[16,1], index: 1, kind: input, shape index: {}]
  %s2 = inlined_call_operand.vmem [shape: f32[16,1], index: 2, kind: input, shape index: {}]
  %s3 = inlined_call_operand.vmem [shape: f32[16,8], index: 3, kind: input, shape index: {}]
  %s4 = inlined_call_operand.vmem [shape: f32[8,8], index: 4, kind: output, shape index: {}]
  %s5 = sld [smem:[#allocation0]]
  $region26: #{e_densenet_forward.43} parent=0
    _
  %s7 = ssub.s32 1, %s5
  %s8 = scalar_select 0, %s7, %s5
  // Predicated region
  $region2: #{e_densenet_forward.43} parent=0 // pred_check
    _
  $region3: #{e_densenet_forward.43} parent=0 // pred_check_branch
    %10 = sbr.rel (0) target = $region5
  $region4: #{e_densenet_forward.43} parent=0 // pred_region
    _
  $region5: #{e_densenet_forward.43} parent=0 // pred_fallthru
    _
  // Predicated region
  $region6: #{e_densenet_forward.43} parent=0 // pred_check
    _
  $region7: #{e_densenet_forward.43} parent=0 // pred_check_branch
    %12 = sbr.rel (0) target = $region9
  $region8: #{e_densenet_forward.43} parent=0 // pred_region
    _
  $region9: #{e_densenet_forward.43} parent=0 // pred_fallthru
    _
  // Predicated region
  $region10: #{e_densenet_forward.43} parent=0 // pred_check
    _
  $region11: #{e_densenet_forward.43} parent=0 // pred_check_branch
    %14 = sbr.rel (0) target = $region13
  $region12: #{e_densenet_forward.43} parent=0 // pred_region
    _
  $region13: #{e_densenet_forward.43} parent=0 // pred_fallthru
    _
  // Predicated region
  $region14: #{e_densenet_forward.43} parent=0 // pred_check
    _
  $region15: #{e_densenet_forward.43} parent=0 // pred_check_branch
    %16 = sbr.rel (0) target = $region17
  $region16: #{e_densenet_forward.43} parent=0 // pred_region
    _
  $region17: #{e_densenet_forward.43} parent=0 // pred_fallthru
    _
  %v18 = vld [vmem:[%s3] sm:$0xff]
  %v19 = vld [vmem:[%s3 + $0x8] sm:$0xff]
  %v20 = vld [vmem:[%s1] sm:$0xff]
  %v21 = vld [vmem:[%s1 + $0x8] sm:$0xff]
  %23 = vset.pattern.permute.xlu0 0
  %24 = vperm.xlu0 %23, %v20
  %v25 = vpop.permute.xlu0 %24
  %28 = vset.pattern.permute.xlu0 0
  %29 = vperm.xlu0 %28, %v21
  %v30 = vpop.permute.xlu0 %29
  %v32 = vmul.f32 %v18, %v25
  %v33 = vmul.f32 %v19, %v30
  %v34 = vld [vmem:[%s2] sm:$0xff]
  %v35 = vld [vmem:[%s2 + $0x8] sm:$0xff]
  %37 = vset.pattern.permute.xlu0 0
  %38 = vperm.xlu0 %37, %v34
  %v39 = vpop.permute.xlu0 %38
  %42 = vset.pattern.permute.xlu0 0
  %43 = vperm.xlu0 %42, %v35
  %v44 = vpop.permute.xlu0 %43
  %v46 = vadd.f32 %v32, %v39
  %v47 = vadd.f32 %v33, %v44
  %v48 = vmax.f32 %v46, 0.0
  %v49 = vmax.f32 %v47, 0.0
  %v50 = vld [vmem:[%s0] sm:$0xf]
  %v51 = vpack.c.bf16 %v49, %v48
  %vm52 = vcmask 130048
  %v54 = vsel %vm52, %v50, 0
  %56 = vmatprep.subr.bf16.mxu0 0
  %57 = vmatpush1.bf16.msra.mxu0 0
  %58 = vmatprep.subr.bf16.mxu0 0
  %59 = vmatpush1.bf16.msra.mxu0 0
  %60 = vmatprep.subr.bf16.mxu0 0
  %61 = vmatpush1.bf16.msra.mxu0 0
  %62 = vmatprep.subr.bf16.mxu0 0
  %63 = vmatpush1.bf16.msra.mxu0 0
  %64 = vmatprep.subr.bf16.mxu0 0
  %65 = vmatpush1.bf16.msra.mxu0 0
  %66 = vmatprep.subr.bf16.mxu0 0
  %67 = vmatpush1.bf16.msra.mxu0 0
  %68 = vmatprep.subr.bf16.mxu0 0
  %69 = vmatpush1.bf16.msra.mxu0 0
  %70 = vmatprep.subr.bf16.mxu0 0
  %71 = vmatpush1.bf16.msra.mxu0 %v51
  %72 = vmatprep.subr.bf16.mxu0 0
  %73 = vmatpush2.bf16.msra.mxu0 0
  %74 = vmatprep.subr.bf16.mxu0 0
  %75 = vmatpush2.bf16.msra.mxu0 0
  %76 = vmatprep.subr.bf16.mxu0 0
  %77 = vmatpush2.bf16.msra.mxu0 0
  %78 = vmatprep.subr.bf16.mxu0 0
  %79 = vmatpush2.bf16.msra.mxu0 0
  %80 = vmatprep.subr.bf16.mxu0 0
  %81 = vmatpush2.bf16.msra.mxu0 0
  %82 = vmatprep.subr.bf16.mxu0 0
  %83 = vmatpush2.bf16.msra.mxu0 0
  %84 = vmatprep.subr.bf16.mxu0 0
  %85 = vmatpush2.bf16.msra.mxu0 0
  %86 = vmatprep.subr.bf16.mxu0 0
  %87 = vmatpush2.bf16.msra.mxu0 0
  %88 = vmatprep.mubr.bf16.mxu0 0
  %89 = vmatmul.mubr.bf16.gmra.mxu0 %v54
  %v90 = vpop.f32.mrf.mxu0
  %v91 = vadd.f32 0.0, %v90
  %v92 = vpop.f32.mrf.mxu0
  %v93 = vpop.f32.mrf.mxu0
  %v94 = vpop.f32.mrf.mxu0
  %95 = vdwg.mxu0
  %vm96 = vcmask 64512
  %97 = vst.msk [vmem:[%s4] sm:$0xff] %vm96, %v91
  // Predicated region
  $region18: #{e_densenet_forward.43} parent=0 // pred_check
    _
  $region19: #{e_densenet_forward.43} parent=0 // pred_check_branch
    %99 = sbr.rel (0) target = $region21
  $region20: #{e_densenet_forward.43} parent=0 // pred_region
    _
  $region21: #{e_densenet_forward.43} parent=0 // pred_fallthru
    _
  // Predicated region
  $region22: #{e_densenet_forward.43} parent=0 // pred_check
    _
  $region23: #{e_densenet_forward.43} parent=0 // pred_check_branch
    %101 = sbr.rel (0) target = $region25
  $region24: #{e_densenet_forward.43} parent=0 // pred_region
    _
  $region25: #{e_densenet_forward.43} parent=0 // pred_fallthru
    _

// kernel: e_densenet_forward.44
$region0: #{e_densenet_forward.44}
  #allocation0 [shape = 'u32[]', space=smem, size = 0x4, offset = 0x4, fixed_abs, tag = 'smem constant byte address 0x4 - core index']
  #allocation1 [shape = 'u32[144,128]{1,0:T(1,128)}', space=vmem, size = 0x12000, scoped, tag = 'internal scratch']
  %s0 = inlined_call_operand.vmem [shape: f32[8,2], index: 0, kind: input, shape index: {}]
  %s1 = inlined_call_operand.vmem [shape: f32[8,2], index: 1, kind: input, shape index: {}]
  %s2 = inlined_call_operand.vmem [shape: f32[8,2], index: 2, kind: input, shape index: {}]
  %s3 = inlined_call_operand.vmem [shape: f32[8,2], index: 3, kind: input, shape index: {}]
  %s4 = inlined_call_operand.vmem [shape: f32[8,2], index: 4, kind: output, shape index: {}]
  %s5 = sld [smem:[#allocation0]]
  $region26: #{e_densenet_forward.44} parent=0
    _
  %s7 = ssub.s32 1, %s5
  %s8 = scalar_select 0, %s7, %s5
  // Predicated region
  $region2: #{e_densenet_forward.44} parent=0 // pred_check
    _
  $region3: #{e_densenet_forward.44} parent=0 // pred_check_branch
    %10 = sbr.rel (0) target = $region5
  $region4: #{e_densenet_forward.44} parent=0 // pred_region
    _
  $region5: #{e_densenet_forward.44} parent=0 // pred_fallthru
    _
  // Predicated region
  $region6: #{e_densenet_forward.44} parent=0 // pred_check
    _
  $region7: #{e_densenet_forward.44} parent=0 // pred_check_branch
    %12 = sbr.rel (0) target = $region9
  $region8: #{e_densenet_forward.44} parent=0 // pred_region
    _
  $region9: #{e_densenet_forward.44} parent=0 // pred_fallthru
    _
  // Predicated region
  $region10: #{e_densenet_forward.44} parent=0 // pred_check
    _
  $region11: #{e_densenet_forward.44} parent=0 // pred_check_branch
    %14 = sbr.rel (0) target = $region13
  $region12: #{e_densenet_forward.44} parent=0 // pred_region
    _
  $region13: #{e_densenet_forward.44} parent=0 // pred_fallthru
    _
  // Predicated region
  $region14: #{e_densenet_forward.44} parent=0 // pred_check
    _
  $region15: #{e_densenet_forward.44} parent=0 // pred_check_branch
    %16 = sbr.rel (0) target = $region17
  $region16: #{e_densenet_forward.44} parent=0 // pred_region
    _
  $region17: #{e_densenet_forward.44} parent=0 // pred_fallthru
    _
  %v17 = vld [vmem:[%s0] sm:$0xff]
  %v18 = vld [vmem:[%s1] sm:$0xff]
  %v19 = vadd.f32 %v17, %v18
  %v20 = vld [vmem:[%s2] sm:$0xff]
  %v21 = vadd.f32 %v19, %v20
  %v22 = vld [vmem:[%s3] sm:$0xff]
  %v23 = vadd.f32 %v21, %v22
  %v24 = vmul.f32 %v23, 0.25
  %vm25 = vcmask 15360
  %26 = vst.msk [vmem:[%s4] sm:$0xff] %vm25, %v24
  // Predicated region
  $region18: #{e_densenet_forward.44} parent=0 // pred_check
    _
  $region19: #{e_densenet_forward.44} parent=0 // pred_check_branch
    %28 = sbr.rel (0) target = $region21
  $region20: #{e_densenet_forward.44} parent=0 // pred_region
    _
  $region21: #{e_densenet_forward.44} parent=0 // pred_fallthru
    _
  // Predicated region
  $region22: #{e_densenet_forward.44} parent=0 // pred_check
    _
  $region23: #{e_densenet_forward.44} parent=0 // pred_check_branch
    %30 = sbr.rel (0) target = $region25
  $region24: #{e_densenet_forward.44} parent=0 // pred_region
    _
  $region25: #{e_densenet_forward.44} parent=0 // pred_fallthru
    _

// kernel: e_densenet_forward.45
$region0: #{e_densenet_forward.45}
  #allocation0 [shape = 'u32[]', space=smem, size = 0x4, offset = 0x4, fixed_abs, tag = 'smem constant byte address 0x4 - core index']
  #allocation1 [shape = 'u32[144,128]{1,0:T(1,128)}', space=vmem, size = 0x12000, scoped, tag = 'internal scratch']
  %s0 = inlined_call_operand.vmem [shape: bf16[1,8,8], index: 0, kind: input, shape index: {}]
  %s1 = inlined_call_operand.vmem [shape: f32[8,1], index: 1, kind: input, shape index: {}]
  %s2 = inlined_call_operand.vmem [shape: f32[8,1], index: 2, kind: input, shape index: {}]
  %s3 = inlined_call_operand.vmem [shape: f32[8,1], index: 3, kind: input, shape index: {}]
  %s4 = inlined_call_operand.vmem [shape: f32[8,1], index: 4, kind: input, shape index: {}]
  %s5 = inlined_call_operand.vmem [shape: f32[8,2], index: 5, kind: input, shape index: {}]
  %s6 = inlined_call_operand.vmem [shape: bf16[8,2], index: 6, kind: output, shape index: {}]
  %s7 = sld [smem:[#allocation0]]
  $region34: #{e_densenet_forward.45} parent=0
    _
  %s9 = ssub.s32 1, %s7
  %s10 = scalar_select 0, %s9, %s7
  // Predicated region
  $region2: #{e_densenet_forward.45} parent=0 // pred_check
    _
  $region3: #{e_densenet_forward.45} parent=0 // pred_check_branch
    %12 = sbr.rel (0) target = $region5
  $region4: #{e_densenet_forward.45} parent=0 // pred_region
    _
  $region5: #{e_densenet_forward.45} parent=0 // pred_fallthru
    _
  // Predicated region
  $region6: #{e_densenet_forward.45} parent=0 // pred_check
    _
  $region7: #{e_densenet_forward.45} parent=0 // pred_check_branch
    %14 = sbr.rel (0) target = $region9
  $region8: #{e_densenet_forward.45} parent=0 // pred_region
    _
  $region9: #{e_densenet_forward.45} parent=0 // pred_fallthru
    _
  // Predicated region
  $region10: #{e_densenet_forward.45} parent=0 // pred_check
    _
  $region11: #{e_densenet_forward.45} parent=0 // pred_check_branch
    %16 = sbr.rel (0) target = $region13
  $region12: #{e_densenet_forward.45} parent=0 // pred_region
    _
  $region13: #{e_densenet_forward.45} parent=0 // pred_fallthru
    _
  // Predicated region
  $region14: #{e_densenet_forward.45} parent=0 // pred_check
    _
  $region15: #{e_densenet_forward.45} parent=0 // pred_check_branch
    %18 = sbr.rel (0) target = $region17
  $region16: #{e_densenet_forward.45} parent=0 // pred_region
    _
  $region17: #{e_densenet_forward.45} parent=0 // pred_fallthru
    _
  // Predicated region
  $region18: #{e_densenet_forward.45} parent=0 // pred_check
    _
  $region19: #{e_densenet_forward.45} parent=0 // pred_check_branch
    %20 = sbr.rel (0) target = $region21
  $region20: #{e_densenet_forward.45} parent=0 // pred_region
    _
  $region21: #{e_densenet_forward.45} parent=0 // pred_fallthru
    _
  // Predicated region
  $region22: #{e_densenet_forward.45} parent=0 // pred_check
    _
  $region23: #{e_densenet_forward.45} parent=0 // pred_check_branch
    %22 = sbr.rel (0) target = $region25
  $region24: #{e_densenet_forward.45} parent=0 // pred_region
    _
  $region25: #{e_densenet_forward.45} parent=0 // pred_fallthru
    _
  %v24 = vld [vmem:[%s5] sm:$0xff]
  %v25 = vld [vmem:[%s1] sm:$0xff]
  %27 = vset.pattern.permute.xlu0 0
  %28 = vperm.xlu0 %27, %v25
  %v29 = vpop.permute.xlu0 %28
  %v31 = vmul.f32 %v24, %v29
  %v32 = vld [vmem:[%s2] sm:$0xff]
  %34 = vset.pattern.permute.xlu0 0
  %35 = vperm.xlu0 %34, %v32
  %v36 = vpop.permute.xlu0 %35
  %v38 = vadd.f32 %v31, %v36
  %v39 = vmax.f32 %v38, 0.0
  %v40 = vld [vmem:[%s0] sm:$0xf]
  %v41 = vpack.c.bf16 %v39, %v39
  %vm42 = vcmask 64512
  %v44 = vsel %vm42, %v40, 0
  %vm46 = vcmask 1043456
  %v48 = vsel %vm46, %v41, 0
  %50 = vmatprep.subr.bf16.mxu0 0
  %51 = vmatpush1.bf16.msra.mxu0 0
  %52 = vmatprep.subr.bf16.mxu0 0
  %53 = vmatpush1.bf16.msra.mxu0 0
  %54 = vmatprep.subr.bf16.mxu0 0
  %55 = vmatpush1.bf16.msra.mxu0 0
  %56 = vmatprep.subr.bf16.mxu0 0
  %57 = vmatpush1.bf16.msra.mxu0 0
  %58 = vmatprep.subr.bf16.mxu0 0
  %59 = vmatpush1.bf16.msra.mxu0 0
  %60 = vmatprep.subr.bf16.mxu0 0
  %61 = vmatpush1.bf16.msra.mxu0 0
  %62 = vmatprep.subr.bf16.mxu0 0
  %63 = vmatpush1.bf16.msra.mxu0 0
  %64 = vmatprep.subr.bf16.mxu0 0
  %65 = vmatpush1.bf16.msra.mxu0 %v48
  %66 = vmatprep.subr.bf16.mxu0 0
  %67 = vmatpush2.bf16.msra.mxu0 0
  %68 = vmatprep.subr.bf16.mxu0 0
  %69 = vmatpush2.bf16.msra.mxu0 0
  %70 = vmatprep.subr.bf16.mxu0 0
  %71 = vmatpush2.bf16.msra.mxu0 0
  %72 = vmatprep.subr.bf16.mxu0 0
  %73 = vmatpush2.bf16.msra.mxu0 0
  %74 = vmatprep.subr.bf16.mxu0 0
  %75 = vmatpush2.bf16.msra.mxu0 0
  %76 = vmatprep.subr.bf16.mxu0 0
  %77 = vmatpush2.bf16.msra.mxu0 0
  %78 = vmatprep.subr.bf16.mxu0 0
  %79 = vmatpush2.bf16.msra.mxu0 0
  %80 = vmatprep.subr.bf16.mxu0 0
  %81 = vmatpush2.bf16.msra.mxu0 0
  %82 = vmatprep.mubr.bf16.mxu0 0
  %83 = vmatmul.mubr.bf16.gmra.mxu0 %v44
  %v84 = vpop.f32.mrf.mxu0
  %v85 = vadd.f32 0.0, %v84
  %v86 = vpop.f32.mrf.mxu0
  %v87 = vpop.f32.mrf.mxu0
  %v88 = vpop.f32.mrf.mxu0
  %89 = vdwg.mxu0
  %v90 = vld [vmem:[%s3] sm:$0xff]
  %92 = vset.pattern.permute.xlu0 0
  %93 = vperm.xlu0 %92, %v90
  %v94 = vpop.permute.xlu0 %93
  %v96 = vmul.f32 %v85, %v94
  %v97 = vld [vmem:[%s4] sm:$0xff]
  %99 = vset.pattern.permute.xlu0 0
  %100 = vperm.xlu0 %99, %v97
  %v101 = vpop.permute.xlu0 %100
  %v103 = vadd.f32 %v96, %v101
  %v104 = vmax.f32 %v103, 0.0
  %v105 = vpack.c.bf16 %v104, %v104
  %vm106 = vcmask 11264
  %107 = vst.msk [vmem:[%s6] sm:$0xf] %vm106, %v105
  // Predicated region
  $region26: #{e_densenet_forward.45} parent=0 // pred_check
    _
  $region27: #{e_densenet_forward.45} parent=0 // pred_check_branch
    %109 = sbr.rel (0) target = $region29
  $region28: #{e_densenet_forward.45} parent=0 // pred_region
    _
  $region29: #{e_densenet_forward.45} parent=0 // pred_fallthru
    _
  // Predicated region
  $region30: #{e_densenet_forward.45} parent=0 // pred_check
    _
  $region31: #{e_densenet_forward.45} parent=0 // pred_check_branch
    %111 = sbr.rel (0) target = $region33
  $region32: #{e_densenet_forward.45} parent=0 // pred_region
    _
  $region33: #{e_densenet_forward.45} parent=0 // pred_fallthru
    _

// kernel: e_densenet_forward.47
$region0: #{e_densenet_forward.47}
  #allocation0 [shape = 'u32[]', space=smem, size = 0x4, offset = 0x4, fixed_abs, tag = 'smem constant byte address 0x4 - core index']
  #allocation1 [shape = 'u32[144,128]{1,0:T(1,128)}', space=vmem, size = 0x12000, scoped, tag = 'internal scratch']
  %s0 = inlined_call_operand.vmem [shape: bf16[1,8,12], index: 0, kind: input, shape index: {}]
  %s1 = inlined_call_operand.vmem [shape: f32[12,1], index: 1, kind: input, shape index: {}]
  %s2 = inlined_call_operand.vmem [shape: f32[12,1], index: 2, kind: input, shape index: {}]
  %s3 = inlined_call_operand.vmem [shape: f32[8,1], index: 3, kind: input, shape index: {}]
  %s4 = inlined_call_operand.vmem [shape: f32[8,1], index: 4, kind: input, shape index: {}]
  %s5 = inlined_call_operand.vmem [shape: f32[12,2], index: 5, kind: input, shape index: {}]
  %s6 = inlined_call_operand.vmem [shape: bf16[8,2], index: 6, kind: output, shape index: {}]
  %s7 = sld [smem:[#allocation0]]
  $region34: #{e_densenet_forward.47} parent=0
    _
  %s9 = ssub.s32 1, %s7
  %s10 = scalar_select 0, %s9, %s7
  // Predicated region
  $region2: #{e_densenet_forward.47} parent=0 // pred_check
    _
  $region3: #{e_densenet_forward.47} parent=0 // pred_check_branch
    %12 = sbr.rel (0) target = $region5
  $region4: #{e_densenet_forward.47} parent=0 // pred_region
    _
  $region5: #{e_densenet_forward.47} parent=0 // pred_fallthru
    _
  // Predicated region
  $region6: #{e_densenet_forward.47} parent=0 // pred_check
    _
  $region7: #{e_densenet_forward.47} parent=0 // pred_check_branch
    %14 = sbr.rel (0) target = $region9
  $region8: #{e_densenet_forward.47} parent=0 // pred_region
    _
  $region9: #{e_densenet_forward.47} parent=0 // pred_fallthru
    _
  // Predicated region
  $region10: #{e_densenet_forward.47} parent=0 // pred_check
    _
  $region11: #{e_densenet_forward.47} parent=0 // pred_check_branch
    %16 = sbr.rel (0) target = $region13
  $region12: #{e_densenet_forward.47} parent=0 // pred_region
    _
  $region13: #{e_densenet_forward.47} parent=0 // pred_fallthru
    _
  // Predicated region
  $region14: #{e_densenet_forward.47} parent=0 // pred_check
    _
  $region15: #{e_densenet_forward.47} parent=0 // pred_check_branch
    %18 = sbr.rel (0) target = $region17
  $region16: #{e_densenet_forward.47} parent=0 // pred_region
    _
  $region17: #{e_densenet_forward.47} parent=0 // pred_fallthru
    _
  // Predicated region
  $region18: #{e_densenet_forward.47} parent=0 // pred_check
    _
  $region19: #{e_densenet_forward.47} parent=0 // pred_check_branch
    %20 = sbr.rel (0) target = $region21
  $region20: #{e_densenet_forward.47} parent=0 // pred_region
    _
  $region21: #{e_densenet_forward.47} parent=0 // pred_fallthru
    _
  // Predicated region
  $region22: #{e_densenet_forward.47} parent=0 // pred_check
    _
  $region23: #{e_densenet_forward.47} parent=0 // pred_check_branch
    %22 = sbr.rel (0) target = $region25
  $region24: #{e_densenet_forward.47} parent=0 // pred_region
    _
  $region25: #{e_densenet_forward.47} parent=0 // pred_fallthru
    _
  %v24 = vld [vmem:[%s5] sm:$0xff]
  %v25 = vld [vmem:[%s5 + $0x8] sm:$0xf]
  %v26 = vld [vmem:[%s1] sm:$0xff]
  %v27 = vld [vmem:[%s1 + $0x8] sm:$0xf]
  %29 = vset.pattern.permute.xlu0 0
  %30 = vperm.xlu0 %29, %v26
  %v31 = vpop.permute.xlu0 %30
  %34 = vset.pattern.permute.xlu0 0
  %35 = vperm.xlu0 %34, %v27
  %v36 = vpop.permute.xlu0 %35
  %v38 = vmul.f32 %v24, %v31
  %v39 = vmul.f32 %v25, %v36
  %v40 = vld [vmem:[%s2] sm:$0xff]
  %v41 = vld [vmem:[%s2 + $0x8] sm:$0xf]
  %43 = vset.pattern.permute.xlu0 0
  %44 = vperm.xlu0 %43, %v40
  %v45 = vpop.permute.xlu0 %44
  %48 = vset.pattern.permute.xlu0 0
  %49 = vperm.xlu0 %48, %v41
  %v50 = vpop.permute.xlu0 %49
  %v52 = vadd.f32 %v38, %v45
  %v53 = vadd.f32 %v39, %v50
  %v54 = vmax.f32 %v52, 0.0
  %v55 = vmax.f32 %v53, 0.0
  %v56 = vld [vmem:[%s0] sm:$0xf]
  %v57 = vpack.c.bf16 %v55, %v54
  %vm58 = vcmask 97280
  %v60 = vsel %vm58, %v56, 0
  %vm62 = vcmask 1045504
  %v64 = vsel %vm62, %v57, 0
  %66 = vmatprep.subr.bf16.mxu0 0
  %67 = vmatpush1.bf16.msra.mxu0 0
  %68 = vmatprep.subr.bf16.mxu0 0
  %69 = vmatpush1.bf16.msra.mxu0 0
  %70 = vmatprep.subr.bf16.mxu0 0
  %71 = vmatpush1.bf16.msra.mxu0 0
  %72 = vmatprep.subr.bf16.mxu0 0
  %73 = vmatpush1.bf16.msra.mxu0 0
  %74 = vmatprep.subr.bf16.mxu0 0
  %75 = vmatpush1.bf16.msra.mxu0 0
  %76 = vmatprep.subr.bf16.mxu0 0
  %77 = vmatpush1.bf16.msra.mxu0 0
  %78 = vmatprep.subr.bf16.mxu0 0
  %79 = vmatpush1.bf16.msra.mxu0 0
  %80 = vmatprep.subr.bf16.mxu0 0
  %81 = vmatpush1.bf16.msra.mxu0 %v64
  %82 = vmatprep.subr.bf16.mxu0 0
  %83 = vmatpush2.bf16.msra.mxu0 0
  %84 = vmatprep.subr.bf16.mxu0 0
  %85 = vmatpush2.bf16.msra.mxu0 0
  %86 = vmatprep.subr.bf16.mxu0 0
  %87 = vmatpush2.bf16.msra.mxu0 0
  %88 = vmatprep.subr.bf16.mxu0 0
  %89 = vmatpush2.bf16.msra.mxu0 0
  %90 = vmatprep.subr.bf16.mxu0 0
  %91 = vmatpush2.bf16.msra.mxu0 0
  %92 = vmatprep.subr.bf16.mxu0 0
  %93 = vmatpush2.bf16.msra.mxu0 0
  %94 = vmatprep.subr.bf16.mxu0 0
  %95 = vmatpush2.bf16.msra.mxu0 0
  %96 = vmatprep.subr.bf16.mxu0 0
  %97 = vmatpush2.bf16.msra.mxu0 0
  %98 = vmatprep.mubr.bf16.mxu0 0
  %99 = vmatmul.mubr.bf16.gmra.mxu0 %v60
  %v100 = vpop.f32.mrf.mxu0
  %v101 = vadd.f32 0.0, %v100
  %v102 = vpop.f32.mrf.mxu0
  %v103 = vpop.f32.mrf.mxu0
  %v104 = vpop.f32.mrf.mxu0
  %105 = vdwg.mxu0
  %v106 = vld [vmem:[%s3] sm:$0xff]
  %108 = vset.pattern.permute.xlu0 0
  %109 = vperm.xlu0 %108, %v106
  %v110 = vpop.permute.xlu0 %109
  %v112 = vmul.f32 %v101, %v110
  %v113 = vld [vmem:[%s4] sm:$0xff]
  %115 = vset.pattern.permute.xlu0 0
  %116 = vperm.xlu0 %115, %v113
  %v117 = vpop.permute.xlu0 %116
  %v119 = vadd.f32 %v112, %v117
  %v120 = vmax.f32 %v119, 0.0
  %v121 = vpack.c.bf16 %v120, %v120
  %vm122 = vcmask 11264
  %123 = vst.msk [vmem:[%s6] sm:$0xf] %vm122, %v121
  // Predicated region
  $region26: #{e_densenet_forward.47} parent=0 // pred_check
    _
  $region27: #{e_densenet_forward.47} parent=0 // pred_check_branch
    %125 = sbr.rel (0) target = $region29
  $region28: #{e_densenet_forward.47} parent=0 // pred_region
    _
  $region29: #{e_densenet_forward.47} parent=0 // pred_fallthru
    _
  // Predicated region
  $region30: #{e_densenet_forward.47} parent=0 // pred_check
    _
  $region31: #{e_densenet_forward.47} parent=0 // pred_check_branch
    %127 = sbr.rel (0) target = $region33
  $region32: #{e_densenet_forward.47} parent=0 // pred_region
    _
  $region33: #{e_densenet_forward.47} parent=0 // pred_fallthru
    _

// kernel: e_densenet_forward.49
$region0: #{e_densenet_forward.49}
  #allocation0 [shape = 'u32[]', space=smem, size = 0x4, offset = 0x4, fixed_abs, tag = 'smem constant byte address 0x4 - core index']
  #allocation1 [shape = 'u32[144,128]{1,0:T(1,128)}', space=vmem, size = 0x12000, scoped, tag = 'internal scratch']
  %s0 = inlined_call_operand.vmem [shape: f32[16,2], index: 0, kind: input, shape index: {}]
  %s1 = inlined_call_operand.vmem [shape: f32[16,1], index: 1, kind: input, shape index: {}]
  %s2 = inlined_call_operand.vmem [shape: f32[16,1], index: 2, kind: input, shape index: {}]
  %s3 = inlined_call_operand.vmem [shape: f32[16,2], index: 3, kind: output, shape index: {}]
  %s4 = sld [smem:[#allocation0]]
  $region22: #{e_densenet_forward.49} parent=0
    _
  %s6 = ssub.s32 1, %s4
  %s7 = scalar_select 0, %s6, %s4
  // Predicated region
  $region2: #{e_densenet_forward.49} parent=0 // pred_check
    _
  $region3: #{e_densenet_forward.49} parent=0 // pred_check_branch
    %9 = sbr.rel (0) target = $region5
  $region4: #{e_densenet_forward.49} parent=0 // pred_region
    _
  $region5: #{e_densenet_forward.49} parent=0 // pred_fallthru
    _
  // Predicated region
  $region6: #{e_densenet_forward.49} parent=0 // pred_check
    _
  $region7: #{e_densenet_forward.49} parent=0 // pred_check_branch
    %11 = sbr.rel (0) target = $region9
  $region8: #{e_densenet_forward.49} parent=0 // pred_region
    _
  $region9: #{e_densenet_forward.49} parent=0 // pred_fallthru
    _
  // Predicated region
  $region10: #{e_densenet_forward.49} parent=0 // pred_check
    _
  $region11: #{e_densenet_forward.49} parent=0 // pred_check_branch
    %13 = sbr.rel (0) target = $region13
  $region12: #{e_densenet_forward.49} parent=0 // pred_region
    _
  $region13: #{e_densenet_forward.49} parent=0 // pred_fallthru
    _
  %v14 = vld [vmem:[%s0] sm:$0xff]
  %v15 = vld [vmem:[%s0 + $0x8] sm:$0xff]
  %v16 = vld [vmem:[%s1] sm:$0xff]
  %v17 = vld [vmem:[%s1 + $0x8] sm:$0xff]
  %19 = vset.pattern.permute.xlu0 0
  %20 = vperm.xlu0 %19, %v16
  %v21 = vpop.permute.xlu0 %20
  %24 = vset.pattern.permute.xlu0 0
  %25 = vperm.xlu0 %24, %v17
  %v26 = vpop.permute.xlu0 %25
  %v28 = vmul.f32 %v14, %v21
  %v29 = vmul.f32 %v15, %v26
  %v30 = vld [vmem:[%s2] sm:$0xff]
  %v31 = vld [vmem:[%s2 + $0x8] sm:$0xff]
  %33 = vset.pattern.permute.xlu0 0
  %34 = vperm.xlu0 %33, %v30
  %v35 = vpop.permute.xlu0 %34
  %38 = vset.pattern.permute.xlu0 0
  %39 = vperm.xlu0 %38, %v31
  %v40 = vpop.permute.xlu0 %39
  %v42 = vadd.f32 %v28, %v35
  %v43 = vadd.f32 %v29, %v40
  %v44 = vmax.f32 %v42, 0.0
  %v45 = vmax.f32 %v43, 0.0
  %vm46 = vcmask 15360
  %47 = vst.msk [vmem:[%s3] sm:$0xff] %vm46, %v44
  %48 = vst.msk [vmem:[%s3 + $0x8] sm:$0xff] %vm46, %v45
  // Predicated region
  $region14: #{e_densenet_forward.49} parent=0 // pred_check
    _
  $region15: #{e_densenet_forward.49} parent=0 // pred_check_branch
    %50 = sbr.rel (0) target = $region17
  $region16: #{e_densenet_forward.49} parent=0 // pred_region
    _
  $region17: #{e_densenet_forward.49} parent=0 // pred_fallthru
    _
  // Predicated region
  $region18: #{e_densenet_forward.49} parent=0 // pred_check
    _
  $region19: #{e_densenet_forward.49} parent=0 // pred_check_branch
    %52 = sbr.rel (0) target = $region21
  $region20: #{e_densenet_forward.49} parent=0 // pred_region
    _
  $region21: #{e_densenet_forward.49} parent=0 // pred_fallthru
    _

// kernel: e_densenet_forward.46
$region0: #{e_densenet_forward.46}
  #allocation0 [shape = 'u32[]', space=smem, size = 0x4, offset = 0x4, fixed_abs, tag = 'smem constant byte address 0x4 - core index']
  #allocation1 [shape = 'u32[144,128]{1,0:T(1,128)}', space=vmem, size = 0x12000, scoped, tag = 'internal scratch']
  %s0 = inlined_call_operand.vmem [shape: bf16[9,4,8], index: 0, kind: input, shape index: {}]
  %s1 = inlined_call_operand.vmem [shape: bf16[8,2], index: 1, kind: input, shape index: {}, may-alias: {1,2,3,4,6,7,8,9}]
  %s2 = inlined_call_operand.vmem [shape: bf16[8,2], index: 2, kind: input, shape index: {}, may-alias: {1,2,3,4,6,7,8,9}]
  %s3 = inlined_call_operand.vmem [shape: bf16[8,2], index: 3, kind: input, shape index: {}, may-alias: {1,2,3,4,6,7,8,9}]
  %s4 = inlined_call_operand.vmem [shape: bf16[8,2], index: 4, kind: input, shape index: {}, may-alias: {1,2,3,4,6,7,8,9}]
  %s5 = inlined_call_operand.vmem [shape: bf16[8,2], index: 5, kind: input, shape index: {}]
  %s6 = inlined_call_operand.vmem [shape: bf16[8,2], index: 6, kind: input, shape index: {}, may-alias: {1,2,3,4,6,7,8,9}]
  %s7 = inlined_call_operand.vmem [shape: bf16[8,2], index: 7, kind: input, shape index: {}, may-alias: {1,2,3,4,6,7,8,9}]
  %s8 = inlined_call_operand.vmem [shape: bf16[8,2], index: 8, kind: input, shape index: {}, may-alias: {1,2,3,4,6,7,8,9}]
  %s9 = inlined_call_operand.vmem [shape: bf16[8,2], index: 9, kind: input, shape index: {}, may-alias: {1,2,3,4,6,7,8,9}]
  %s10 = inlined_call_operand.vmem [shape: f32[4,2], index: 10, kind: output, shape index: {}]
  %s11 = sld [smem:[#allocation0]]
  $region50: #{e_densenet_forward.46} parent=0
    _
  %s13 = ssub.s32 1, %s11
  %s14 = scalar_select 0, %s13, %s11
  // Predicated region
  $region2: #{e_densenet_forward.46} parent=0 // pred_check
    _
  $region3: #{e_densenet_forward.46} parent=0 // pred_check_branch
    %16 = sbr.rel (0) target = $region5
  $region4: #{e_densenet_forward.46} parent=0 // pred_region
    _
  $region5: #{e_densenet_forward.46} parent=0 // pred_fallthru
    _
  // Predicated region
  $region6: #{e_densenet_forward.46} parent=0 // pred_check
    _
  $region7: #{e_densenet_forward.46} parent=0 // pred_check_branch
    %18 = sbr.rel (0) target = $region9
  $region8: #{e_densenet_forward.46} parent=0 // pred_region
    _
  $region9: #{e_densenet_forward.46} parent=0 // pred_fallthru
    _
  // Predicated region
  $region10: #{e_densenet_forward.46} parent=0 // pred_check
    _
  $region11: #{e_densenet_forward.46} parent=0 // pred_check_branch
    %20 = sbr.rel (0) target = $region13
  $region12: #{e_densenet_forward.46} parent=0 // pred_region
    _
  $region13: #{e_densenet_forward.46} parent=0 // pred_fallthru
    _
  // Predicated region
  $region14: #{e_densenet_forward.46} parent=0 // pred_check
    _
  $region15: #{e_densenet_forward.46} parent=0 // pred_check_branch
    %22 = sbr.rel (0) target = $region17
  $region16: #{e_densenet_forward.46} parent=0 // pred_region
    _
  $region17: #{e_densenet_forward.46} parent=0 // pred_fallthru
    _
  // Predicated region
  $region18: #{e_densenet_forward.46} parent=0 // pred_check
    _
  $region19: #{e_densenet_forward.46} parent=0 // pred_check_branch
    %24 = sbr.rel (0) target = $region21
  $region20: #{e_densenet_forward.46} parent=0 // pred_region
    _
  $region21: #{e_densenet_forward.46} parent=0 // pred_fallthru
    _
  // Predicated region
  $region22: #{e_densenet_forward.46} parent=0 // pred_check
    _
  $region23: #{e_densenet_forward.46} parent=0 // pred_check_branch
    %26 = sbr.rel (0) target = $region25
  $region24: #{e_densenet_forward.46} parent=0 // pred_region
    _
  $region25: #{e_densenet_forward.46} parent=0 // pred_fallthru
    _
  // Predicated region
  $region26: #{e_densenet_forward.46} parent=0 // pred_check
    _
  $region27: #{e_densenet_forward.46} parent=0 // pred_check_branch
    %28 = sbr.rel (0) target = $region29
  $region28: #{e_densenet_forward.46} parent=0 // pred_region
    _
  $region29: #{e_densenet_forward.46} parent=0 // pred_fallthru
    _
  // Predicated region
  $region30: #{e_densenet_forward.46} parent=0 // pred_check
    _
  $region31: #{e_densenet_forward.46} parent=0 // pred_check_branch
    %30 = sbr.rel (0) target = $region33
  $region32: #{e_densenet_forward.46} parent=0 // pred_region
    _
  $region33: #{e_densenet_forward.46} parent=0 // pred_fallthru
    _
  // Predicated region
  $region34: #{e_densenet_forward.46} parent=0 // pred_check
    _
  $region35: #{e_densenet_forward.46} parent=0 // pred_check_branch
    %32 = sbr.rel (0) target = $region37
  $region36: #{e_densenet_forward.46} parent=0 // pred_region
    _
  $region37: #{e_densenet_forward.46} parent=0 // pred_fallthru
    _
  // Predicated region
  $region38: #{e_densenet_forward.46} parent=0 // pred_check
    _
  $region39: #{e_densenet_forward.46} parent=0 // pred_check_branch
    %34 = sbr.rel (0) target = $region41
  $region40: #{e_densenet_forward.46} parent=0 // pred_region
    _
  $region41: #{e_densenet_forward.46} parent=0 // pred_fallthru
    _
  %v36 = vld [vmem:[%s1] sm:$0xf]
  %v37 = vld [vmem:[%s0] sm:$0x3]
  %v38 = vld [vmem:[%s2] sm:$0xf]
  %s39 = scalar_lea.vmem %s0, 2
  %v40 = vld [vmem:[%s39] sm:$0x3]
  %vm41 = vcmask 64512
  %v43 = vsel %vm41, %v40, 0
  %vm45 = vcmask 1043456
  %v47 = vsel %vm45, %v38, 0
  %49 = vmatprep.subr.bf16.mxu0 0
  %50 = vmatpush1.bf16.msra.mxu0 0
  %51 = vmatprep.subr.bf16.mxu0 0
  %52 = vmatpush1.bf16.msra.mxu0 0
  %53 = vmatprep.subr.bf16.mxu0 0
  %54 = vmatpush1.bf16.msra.mxu0 0
  %55 = vmatprep.subr.bf16.mxu0 0
  %56 = vmatpush1.bf16.msra.mxu0 0
  %57 = vmatprep.subr.bf16.mxu0 0
  %58 = vmatpush1.bf16.msra.mxu0 0
  %59 = vmatprep.subr.bf16.mxu0 0
  %60 = vmatpush1.bf16.msra.mxu0 0
  %61 = vmatprep.subr.bf16.mxu0 0
  %62 = vmatpush1.bf16.msra.mxu0 0
  %63 = vmatprep.subr.bf16.mxu0 0
  %64 = vmatpush1.bf16.msra.mxu0 %v47
  %65 = vmatprep.subr.bf16.mxu0 0
  %66 = vmatpush2.bf16.msra.mxu0 0
  %67 = vmatprep.subr.bf16.mxu0 0
  %68 = vmatpush2.bf16.msra.mxu0 0
  %69 = vmatprep.subr.bf16.mxu0 0
  %70 = vmatpush2.bf16.msra.mxu0 0
  %71 = vmatprep.subr.bf16.mxu0 0
  %72 = vmatpush2.bf16.msra.mxu0 0
  %73 = vmatprep.subr.bf16.mxu0 0
  %74 = vmatpush2.bf16.msra.mxu0 0
  %75 = vmatprep.subr.bf16.mxu0 0
  %76 = vmatpush2.bf16.msra.mxu0 0
  %77 = vmatprep.subr.bf16.mxu0 0
  %78 = vmatpush2.bf16.msra.mxu0 0
  %79 = vmatprep.subr.bf16.mxu0 0
  %80 = vmatpush2.bf16.msra.mxu0 0
  %81 = vmatprep.mubr.bf16.mxu0 0
  %82 = vmatmul.mubr.bf16.gmra.mxu0 %v43
  %v83 = vpop.f32.mrf.mxu0
  %v84 = vadd.f32 0.0, %v83
  %v85 = vpop.f32.mrf.mxu0
  %v86 = vpop.f32.mrf.mxu0
  %v87 = vpop.f32.mrf.mxu0
  %88 = vdwg.mxu0
  %v90 = vsel %vm41, %v37, 0
  %v93 = vsel %vm45, %v36, 0
  %95 = vmatprep.subr.bf16.mxu0 0
  %96 = vmatpush1.bf16.msra.mxu0 0
  %97 = vmatprep.subr.bf16.mxu0 0
  %98 = vmatpush1.bf16.msra.mxu0 0
  %99 = vmatprep.subr.bf16.mxu0 0
  %100 = vmatpush1.bf16.msra.mxu0 0
  %101 = vmatprep.subr.bf16.mxu0 0
  %102 = vmatpush1.bf16.msra.mxu0 0
  %103 = vmatprep.subr.bf16.mxu0 0
  %104 = vmatpush1.bf16.msra.mxu0 0
  %105 = vmatprep.subr.bf16.mxu0 0
  %106 = vmatpush1.bf16.msra.mxu0 0
  %107 = vmatprep.subr.bf16.mxu0 0
  %108 = vmatpush1.bf16.msra.mxu0 0
  %109 = vmatprep.subr.bf16.mxu0 0
  %110 = vmatpush1.bf16.msra.mxu0 %v93
  %111 = vmatprep.subr.bf16.mxu0 0
  %112 = vmatpush2.bf16.msra.mxu0 0
  %113 = vmatprep.subr.bf16.mxu0 0
  %114 = vmatpush2.bf16.msra.mxu0 0
  %115 = vmatprep.subr.bf16.mxu0 0
  %116 = vmatpush2.bf16.msra.mxu0 0
  %117 = vmatprep.subr.bf16.mxu0 0
  %118 = vmatpush2.bf16.msra.mxu0 0
  %119 = vmatprep.subr.bf16.mxu0 0
  %120 = vmatpush2.bf16.msra.mxu0 0
  %121 = vmatprep.subr.bf16.mxu0 0
  %122 = vmatpush2.bf16.msra.mxu0 0
  %123 = vmatprep.subr.bf16.mxu0 0
  %124 = vmatpush2.bf16.msra.mxu0 0
  %125 = vmatprep.subr.bf16.mxu0 0
  %126 = vmatpush2.bf16.msra.mxu0 0
  %127 = vmatprep.mubr.bf16.mxu0 0
  %128 = vmatmul.mubr.bf16.gmra.mxu0 %v90
  %v129 = vpop.f32.mrf.mxu0
  %v130 = vadd.f32 %v84, %v129
  %v131 = vpop.f32.mrf.mxu0
  %v132 = vpop.f32.mrf.mxu0
  %v133 = vpop.f32.mrf.mxu0
  %134 = vdwg.mxu0
  %v135 = vld [vmem:[%s3] sm:$0xf]
  %s136 = scalar_lea.vmem %s0, 4
  %v137 = vld [vmem:[%s136] sm:$0x3]
  %v139 = vsel %vm41, %v137, 0
  %v142 = vsel %vm45, %v135, 0
  %144 = vmatprep.subr.bf16.mxu0 0
  %145 = vmatpush1.bf16.msra.mxu0 0
  %146 = vmatprep.subr.bf16.mxu0 0
  %147 = vmatpush1.bf16.msra.mxu0 0
  %148 = vmatprep.subr.bf16.mxu0 0
  %149 = vmatpush1.bf16.msra.mxu0 0
  %150 = vmatprep.subr.bf16.mxu0 0
  %151 = vmatpush1.bf16.msra.mxu0 0
  %152 = vmatprep.subr.bf16.mxu0 0
  %153 = vmatpush1.bf16.msra.mxu0 0
  %154 = vmatprep.subr.bf16.mxu0 0
  %155 = vmatpush1.bf16.msra.mxu0 0
  %156 = vmatprep.subr.bf16.mxu0 0
  %157 = vmatpush1.bf16.msra.mxu0 0
  %158 = vmatprep.subr.bf16.mxu0 0
  %159 = vmatpush1.bf16.msra.mxu0 %v142
  %160 = vmatprep.subr.bf16.mxu0 0
  %161 = vmatpush2.bf16.msra.mxu0 0
  %162 = vmatprep.subr.bf16.mxu0 0
  %163 = vmatpush2.bf16.msra.mxu0 0
  %164 = vmatprep.subr.bf16.mxu0 0
  %165 = vmatpush2.bf16.msra.mxu0 0
  %166 = vmatprep.subr.bf16.mxu0 0
  %167 = vmatpush2.bf16.msra.mxu0 0
  %168 = vmatprep.subr.bf16.mxu0 0
  %169 = vmatpush2.bf16.msra.mxu0 0
  %170 = vmatprep.subr.bf16.mxu0 0
  %171 = vmatpush2.bf16.msra.mxu0 0
  %172 = vmatprep.subr.bf16.mxu0 0
  %173 = vmatpush2.bf16.msra.mxu0 0
  %174 = vmatprep.subr.bf16.mxu0 0
  %175 = vmatpush2.bf16.msra.mxu0 0
  %176 = vmatprep.mubr.bf16.mxu0 0
  %177 = vmatmul.mubr.bf16.gmra.mxu0 %v139
  %v178 = vpop.f32.mrf.mxu0
  %v179 = vadd.f32 0.0, %v178
  %v180 = vpop.f32.mrf.mxu0
  %v181 = vpop.f32.mrf.mxu0
  %v182 = vpop.f32.mrf.mxu0
  %183 = vdwg.mxu0
  %v184 = vadd.f32 %v130, %v179
  %v185 = vld [vmem:[%s4] sm:$0xf]
  %s186 = scalar_lea.vmem %s0, 6
  %v187 = vld [vmem:[%s186] sm:$0x3]
  %v189 = vsel %vm41, %v187, 0
  %v192 = vsel %vm45, %v185, 0
  %194 = vmatprep.subr.bf16.mxu0 0
  %195 = vmatpush1.bf16.msra.mxu0 0
  %196 = vmatprep.subr.bf16.mxu0 0
  %197 = vmatpush1.bf16.msra.mxu0 0
  %198 = vmatprep.subr.bf16.mxu0 0
  %199 = vmatpush1.bf16.msra.mxu0 0
  %200 = vmatprep.subr.bf16.mxu0 0
  %201 = vmatpush1.bf16.msra.mxu0 0
  %202 = vmatprep.subr.bf16.mxu0 0
  %203 = vmatpush1.bf16.msra.mxu0 0
  %204 = vmatprep.subr.bf16.mxu0 0
  %205 = vmatpush1.bf16.msra.mxu0 0
  %206 = vmatprep.subr.bf16.mxu0 0
  %207 = vmatpush1.bf16.msra.mxu0 0
  %208 = vmatprep.subr.bf16.mxu0 0
  %209 = vmatpush1.bf16.msra.mxu0 %v192
  %210 = vmatprep.subr.bf16.mxu0 0
  %211 = vmatpush2.bf16.msra.mxu0 0
  %212 = vmatprep.subr.bf16.mxu0 0
  %213 = vmatpush2.bf16.msra.mxu0 0
  %214 = vmatprep.subr.bf16.mxu0 0
  %215 = vmatpush2.bf16.msra.mxu0 0
  %216 = vmatprep.subr.bf16.mxu0 0
  %217 = vmatpush2.bf16.msra.mxu0 0
  %218 = vmatprep.subr.bf16.mxu0 0
  %219 = vmatpush2.bf16.msra.mxu0 0
  %220 = vmatprep.subr.bf16.mxu0 0
  %221 = vmatpush2.bf16.msra.mxu0 0
  %222 = vmatprep.subr.bf16.mxu0 0
  %223 = vmatpush2.bf16.msra.mxu0 0
  %224 = vmatprep.subr.bf16.mxu0 0
  %225 = vmatpush2.bf16.msra.mxu0 0
  %226 = vmatprep.mubr.bf16.mxu0 0
  %227 = vmatmul.mubr.bf16.gmra.mxu0 %v189
  %v228 = vpop.f32.mrf.mxu0
  %v229 = vadd.f32 0.0, %v228
  %v230 = vpop.f32.mrf.mxu0
  %v231 = vpop.f32.mrf.mxu0
  %v232 = vpop.f32.mrf.mxu0
  %233 = vdwg.mxu0
  %v234 = vadd.f32 %v184, %v229
  %v235 = vld [vmem:[%s5] sm:$0xf]
  %s236 = scalar_lea.vmem %s0, 8
  %v237 = vld [vmem:[%s236] sm:$0x3]
  %v239 = vsel %vm41, %v237, 0
  %v242 = vsel %vm45, %v235, 0
  %244 = vmatprep.subr.bf16.mxu0 0
  %245 = vmatpush1.bf16.msra.mxu0 0
  %246 = vmatprep.subr.bf16.mxu0 0
  %247 = vmatpush1.bf16.msra.mxu0 0
  %248 = vmatprep.subr.bf16.mxu0 0
  %249 = vmatpush1.bf16.msra.mxu0 0
  %250 = vmatprep.subr.bf16.mxu0 0
  %251 = vmatpush1.bf16.msra.mxu0 0
  %252 = vmatprep.subr.bf16.mxu0 0
  %253 = vmatpush1.bf16.msra.mxu0 0
  %254 = vmatprep.subr.bf16.mxu0 0
  %255 = vmatpush1.bf16.msra.mxu0 0
  %256 = vmatprep.subr.bf16.mxu0 0
  %257 = vmatpush1.bf16.msra.mxu0 0
  %258 = vmatprep.subr.bf16.mxu0 0
  %259 = vmatpush1.bf16.msra.mxu0 %v242
  %260 = vmatprep.subr.bf16.mxu0 0
  %261 = vmatpush2.bf16.msra.mxu0 0
  %262 = vmatprep.subr.bf16.mxu0 0
  %263 = vmatpush2.bf16.msra.mxu0 0
  %264 = vmatprep.subr.bf16.mxu0 0
  %265 = vmatpush2.bf16.msra.mxu0 0
  %266 = vmatprep.subr.bf16.mxu0 0
  %267 = vmatpush2.bf16.msra.mxu0 0
  %268 = vmatprep.subr.bf16.mxu0 0
  %269 = vmatpush2.bf16.msra.mxu0 0
  %270 = vmatprep.subr.bf16.mxu0 0
  %271 = vmatpush2.bf16.msra.mxu0 0
  %272 = vmatprep.subr.bf16.mxu0 0
  %273 = vmatpush2.bf16.msra.mxu0 0
  %274 = vmatprep.subr.bf16.mxu0 0
  %275 = vmatpush2.bf16.msra.mxu0 0
  %276 = vmatprep.mubr.bf16.mxu0 0
  %277 = vmatmul.mubr.bf16.gmra.mxu0 %v239
  %v278 = vpop.f32.mrf.mxu0
  %v279 = vadd.f32 0.0, %v278
  %v280 = vpop.f32.mrf.mxu0
  %v281 = vpop.f32.mrf.mxu0
  %v282 = vpop.f32.mrf.mxu0
  %283 = vdwg.mxu0
  %v284 = vadd.f32 %v234, %v279
  %v285 = vld [vmem:[%s6] sm:$0xf]
  %s286 = scalar_lea.vmem %s0, 10
  %v287 = vld [vmem:[%s286] sm:$0x3]
  %v289 = vsel %vm41, %v287, 0
  %v292 = vsel %vm45, %v285, 0
  %294 = vmatprep.subr.bf16.mxu0 0
  %295 = vmatpush1.bf16.msra.mxu0 0
  %296 = vmatprep.subr.bf16.mxu0 0
  %297 = vmatpush1.bf16.msra.mxu0 0
  %298 = vmatprep.subr.bf16.mxu0 0
  %299 = vmatpush1.bf16.msra.mxu0 0
  %300 = vmatprep.subr.bf16.mxu0 0
  %301 = vmatpush1.bf16.msra.mxu0 0
  %302 = vmatprep.subr.bf16.mxu0 0
  %303 = vmatpush1.bf16.msra.mxu0 0
  %304 = vmatprep.subr.bf16.mxu0 0
  %305 = vmatpush1.bf16.msra.mxu0 0
  %306 = vmatprep.subr.bf16.mxu0 0
  %307 = vmatpush1.bf16.msra.mxu0 0
  %308 = vmatprep.subr.bf16.mxu0 0
  %309 = vmatpush1.bf16.msra.mxu0 %v292
  %310 = vmatprep.subr.bf16.mxu0 0
  %311 = vmatpush2.bf16.msra.mxu0 0
  %312 = vmatprep.subr.bf16.mxu0 0
  %313 = vmatpush2.bf16.msra.mxu0 0
  %314 = vmatprep.subr.bf16.mxu0 0
  %315 = vmatpush2.bf16.msra.mxu0 0
  %316 = vmatprep.subr.bf16.mxu0 0
  %317 = vmatpush2.bf16.msra.mxu0 0
  %318 = vmatprep.subr.bf16.mxu0 0
  %319 = vmatpush2.bf16.msra.mxu0 0
  %320 = vmatprep.subr.bf16.mxu0 0
  %321 = vmatpush2.bf16.msra.mxu0 0
  %322 = vmatprep.subr.bf16.mxu0 0
  %323 = vmatpush2.bf16.msra.mxu0 0
  %324 = vmatprep.subr.bf16.mxu0 0
  %325 = vmatpush2.bf16.msra.mxu0 0
  %326 = vmatprep.mubr.bf16.mxu0 0
  %327 = vmatmul.mubr.bf16.gmra.mxu0 %v289
  %v328 = vpop.f32.mrf.mxu0
  %v329 = vadd.f32 0.0, %v328
  %v330 = vpop.f32.mrf.mxu0
  %v331 = vpop.f32.mrf.mxu0
  %v332 = vpop.f32.mrf.mxu0
  %333 = vdwg.mxu0
  %v334 = vadd.f32 %v284, %v329
  %v335 = vld [vmem:[%s7] sm:$0xf]
  %s336 = scalar_lea.vmem %s0, 12
  %v337 = vld [vmem:[%s336] sm:$0x3]
  %v339 = vsel %vm41, %v337, 0
  %v342 = vsel %vm45, %v335, 0
  %344 = vmatprep.subr.bf16.mxu0 0
  %345 = vmatpush1.bf16.msra.mxu0 0
  %346 = vmatprep.subr.bf16.mxu0 0
  %347 = vmatpush1.bf16.msra.mxu0 0
  %348 = vmatprep.subr.bf16.mxu0 0
  %349 = vmatpush1.bf16.msra.mxu0 0
  %350 = vmatprep.subr.bf16.mxu0 0
  %351 = vmatpush1.bf16.msra.mxu0 0
  %352 = vmatprep.subr.bf16.mxu0 0
  %353 = vmatpush1.bf16.msra.mxu0 0
  %354 = vmatprep.subr.bf16.mxu0 0
  %355 = vmatpush1.bf16.msra.mxu0 0
  %356 = vmatprep.subr.bf16.mxu0 0
  %357 = vmatpush1.bf16.msra.mxu0 0
  %358 = vmatprep.subr.bf16.mxu0 0
  %359 = vmatpush1.bf16.msra.mxu0 %v342
  %360 = vmatprep.subr.bf16.mxu0 0
  %361 = vmatpush2.bf16.msra.mxu0 0
  %362 = vmatprep.subr.bf16.mxu0 0
  %363 = vmatpush2.bf16.msra.mxu0 0
  %364 = vmatprep.subr.bf16.mxu0 0
  %365 = vmatpush2.bf16.msra.mxu0 0
  %366 = vmatprep.subr.bf16.mxu0 0
  %367 = vmatpush2.bf16.msra.mxu0 0
  %368 = vmatprep.subr.bf16.mxu0 0
  %369 = vmatpush2.bf16.msra.mxu0 0
  %370 = vmatprep.subr.bf16.mxu0 0
  %371 = vmatpush2.bf16.msra.mxu0 0
  %372 = vmatprep.subr.bf16.mxu0 0
  %373 = vmatpush2.bf16.msra.mxu0 0
  %374 = vmatprep.subr.bf16.mxu0 0
  %375 = vmatpush2.bf16.msra.mxu0 0
  %376 = vmatprep.mubr.bf16.mxu0 0
  %377 = vmatmul.mubr.bf16.gmra.mxu0 %v339
  %v378 = vpop.f32.mrf.mxu0
  %v379 = vadd.f32 0.0, %v378
  %v380 = vpop.f32.mrf.mxu0
  %v381 = vpop.f32.mrf.mxu0
  %v382 = vpop.f32.mrf.mxu0
  %383 = vdwg.mxu0
  %v384 = vadd.f32 %v334, %v379
  %v385 = vld [vmem:[%s8] sm:$0xf]
  %s386 = scalar_lea.vmem %s0, 14
  %v387 = vld [vmem:[%s386] sm:$0x3]
  %v389 = vsel %vm41, %v387, 0
  %v392 = vsel %vm45, %v385, 0
  %394 = vmatprep.subr.bf16.mxu0 0
  %395 = vmatpush1.bf16.msra.mxu0 0
  %396 = vmatprep.subr.bf16.mxu0 0
  %397 = vmatpush1.bf16.msra.mxu0 0
  %398 = vmatprep.subr.bf16.mxu0 0
  %399 = vmatpush1.bf16.msra.mxu0 0
  %400 = vmatprep.subr.bf16.mxu0 0
  %401 = vmatpush1.bf16.msra.mxu0 0
  %402 = vmatprep.subr.bf16.mxu0 0
  %403 = vmatpush1.bf16.msra.mxu0 0
  %404 = vmatprep.subr.bf16.mxu0 0
  %405 = vmatpush1.bf16.msra.mxu0 0
  %406 = vmatprep.subr.bf16.mxu0 0
  %407 = vmatpush1.bf16.msra.mxu0 0
  %408 = vmatprep.subr.bf16.mxu0 0
  %409 = vmatpush1.bf16.msra.mxu0 %v392
  %410 = vmatprep.subr.bf16.mxu0 0
  %411 = vmatpush2.bf16.msra.mxu0 0
  %412 = vmatprep.subr.bf16.mxu0 0
  %413 = vmatpush2.bf16.msra.mxu0 0
  %414 = vmatprep.subr.bf16.mxu0 0
  %415 = vmatpush2.bf16.msra.mxu0 0
  %416 = vmatprep.subr.bf16.mxu0 0
  %417 = vmatpush2.bf16.msra.mxu0 0
  %418 = vmatprep.subr.bf16.mxu0 0
  %419 = vmatpush2.bf16.msra.mxu0 0
  %420 = vmatprep.subr.bf16.mxu0 0
  %421 = vmatpush2.bf16.msra.mxu0 0
  %422 = vmatprep.subr.bf16.mxu0 0
  %423 = vmatpush2.bf16.msra.mxu0 0
  %424 = vmatprep.subr.bf16.mxu0 0
  %425 = vmatpush2.bf16.msra.mxu0 0
  %426 = vmatprep.mubr.bf16.mxu0 0
  %427 = vmatmul.mubr.bf16.gmra.mxu0 %v389
  %v428 = vpop.f32.mrf.mxu0
  %v429 = vadd.f32 0.0, %v428
  %v430 = vpop.f32.mrf.mxu0
  %v431 = vpop.f32.mrf.mxu0
  %v432 = vpop.f32.mrf.mxu0
  %433 = vdwg.mxu0
  %v434 = vadd.f32 %v384, %v429
  %v435 = vld [vmem:[%s9] sm:$0xf]
  %s436 = scalar_lea.vmem %s0, 16
  %v437 = vld [vmem:[%s436] sm:$0x3]
  %v439 = vsel %vm41, %v437, 0
  %v442 = vsel %vm45, %v435, 0
  %444 = vmatprep.subr.bf16.mxu0 0
  %445 = vmatpush1.bf16.msra.mxu0 0
  %446 = vmatprep.subr.bf16.mxu0 0
  %447 = vmatpush1.bf16.msra.mxu0 0
  %448 = vmatprep.subr.bf16.mxu0 0
  %449 = vmatpush1.bf16.msra.mxu0 0
  %450 = vmatprep.subr.bf16.mxu0 0
  %451 = vmatpush1.bf16.msra.mxu0 0
  %452 = vmatprep.subr.bf16.mxu0 0
  %453 = vmatpush1.bf16.msra.mxu0 0
  %454 = vmatprep.subr.bf16.mxu0 0
  %455 = vmatpush1.bf16.msra.mxu0 0
  %456 = vmatprep.subr.bf16.mxu0 0
  %457 = vmatpush1.bf16.msra.mxu0 0
  %458 = vmatprep.subr.bf16.mxu0 0
  %459 = vmatpush1.bf16.msra.mxu0 %v442
  %460 = vmatprep.subr.bf16.mxu0 0
  %461 = vmatpush2.bf16.msra.mxu0 0
  %462 = vmatprep.subr.bf16.mxu0 0
  %463 = vmatpush2.bf16.msra.mxu0 0
  %464 = vmatprep.subr.bf16.mxu0 0
  %465 = vmatpush2.bf16.msra.mxu0 0
  %466 = vmatprep.subr.bf16.mxu0 0
  %467 = vmatpush2.bf16.msra.mxu0 0
  %468 = vmatprep.subr.bf16.mxu0 0
  %469 = vmatpush2.bf16.msra.mxu0 0
  %470 = vmatprep.subr.bf16.mxu0 0
  %471 = vmatpush2.bf16.msra.mxu0 0
  %472 = vmatprep.subr.bf16.mxu0 0
  %473 = vmatpush2.bf16.msra.mxu0 0
  %474 = vmatprep.subr.bf16.mxu0 0
  %475 = vmatpush2.bf16.msra.mxu0 0
  %476 = vmatprep.mubr.bf16.mxu0 0
  %477 = vmatmul.mubr.bf16.gmra.mxu0 %v439
  %v478 = vpop.f32.mrf.mxu0
  %v479 = vadd.f32 0.0, %v478
  %v480 = vpop.f32.mrf.mxu0
  %v481 = vpop.f32.mrf.mxu0
  %v482 = vpop.f32.mrf.mxu0
  %483 = vdwg.mxu0
  %v484 = vadd.f32 %v434, %v479
  %vm485 = vcmask 11264
  %486 = vst.msk [vmem:[%s10] sm:$0xf] %vm485, %v484
  // Predicated region
  $region42: #{e_densenet_forward.46} parent=0 // pred_check
    _
  $region43: #{e_densenet_forward.46} parent=0 // pred_check_branch
    %488 = sbr.rel (0) target = $region45
  $region44: #{e_densenet_forward.46} parent=0 // pred_region
    _
  $region45: #{e_densenet_forward.46} parent=0 // pred_fallthru
    _
  // Predicated region
  $region46: #{e_densenet_forward.46} parent=0 // pred_check
    _
  $region47: #{e_densenet_forward.46} parent=0 // pred_check_branch
    %490 = sbr.rel (0) target = $region49
  $region48: #{e_densenet_forward.46} parent=0 // pred_region
    _
  $region49: #{e_densenet_forward.46} parent=0 // pred_fallthru
    _

</llo_original>
